<compile_context>
chip_gen: v6e
topology: v6e:2x2x1
jax: 0.10.0
libtpu: 0.0.40
codegen_flags: <defaults>
</compile_context>

<pallas_src>
import math
import functools

import jax
import jax.numpy as jnp
from jax.experimental import pallas as pl
from jax.experimental.pallas import tpu as pltpu


# ----------------------------- kernel helpers ------------------------------

def _layernorm(x, g, b, eps=1e-5):
    # PyTorch nn.LayerNorm: biased variance, eps inside the sqrt.
    mu = jnp.mean(x, axis=-1, keepdims=True)
    var = jnp.mean((x - mu) ** 2, axis=-1, keepdims=True)
    return (x - mu) * jax.lax.rsqrt(var + eps) * g + b


def _erf(x):
    # Abramowitz & Stegun 7.1.26 (|err| < 1.5e-7).  Uses only mul/add/div/exp/select,
    # all of which have Mosaic lowerings (lax.erf itself is not guaranteed to lower).
    a1, a2, a3, a4, a5 = 0.254829592, -0.284496736, 1.421413741, -1.453152027, 1.061405429
    p = 0.3275911
    ax = jnp.where(x < 0.0, -x, x)
    t = 1.0 / (1.0 + p * ax)
    poly = ((((a5 * t + a4) * t + a3) * t + a2) * t + a1) * t
    y = 1.0 - poly * jnp.exp(-ax * ax)
    return jnp.where(x < 0.0, -y, y)


def _gelu_exact(x):
    # PyTorch F.gelu default = exact erf-based GELU.
    return 0.5 * x * (1.0 + _erf(x * 0.7071067811865476))


# --------------------------- fused Pallas kernel ----------------------------

def fused_encoder_kernel(x_ref, pe_ref,
                         ln1w_ref, ln1b_ref,
                         wq_ref, bq_ref, wk_ref, bk_ref, wv_ref, bv_ref,
                         wo_ref, bo_ref,
                         ln2w_ref, ln2b_ref, w1_ref, b1_ref, w2_ref, b2_ref,
                         o_ref, *, n_layer, n_head, head_dim, d_model, batch, seq):
    """Whole encoder stack for the full (B*L, E) activation slab in one invocation."""
    B, L, H, Dh, E = batch, seq, n_head, head_dim, d_model
    BL = B * L
    scale = 1.0 / math.sqrt(Dh)

    # x + pe[:B]: (B, L, E) + (B, 1, E) - pe broadcast over the sequence dim inside the
    # kernel (exactly the PyTorch behaviour); pos-enc dropout == identity at inference.
    x = (x_ref[...] + pe_ref[...]).reshape(BL, E)

    # TODO(synk): static layer loop is fine while n_layer is tiny; for deeper stacks
    # switch to a grid=(n_layer,) "arbitrary" axis with per-layer weight BlockSpecs so
    # weights stream under double-buffering and vreg live ranges stay bounded.
    for li in range(n_layer):
        # ---------------- pre-norm multi-head self-attention ----------------
        xn = _layernorm(x, ln1w_ref[li], ln1b_ref[li])

        wq_l, wk_l, wv_l, wo_l = wq_ref[li], wk_ref[li], wv_ref[li], wo_ref[li]
        bq_l, bk_l, bv_l = bq_ref[li], bk_ref[li], bv_ref[li]

        attn = jnp.zeros((BL, E), jnp.float32)
        # Static head loop.  The head split comes from the wrapper-side weight stacking,
        # so there is NO lane-offset activation slicing / stack / concat here: each head
        # is three small MXU dots + two single-batch-dim einsums, and the output
        # projection of the concatenated heads is folded into sum_h(o_h @ Wo[h]).
        # TODO(synk): on v6e/v7x at realistic sizes, cast the dot/einsum operands to
        # bfloat16 here (keep preferred_element_type=f32 and all elementwise math in f32).
        for h in range(H):
            q = (jnp.dot(xn, wq_l[h], preferred_element_type=jnp.float32)
                 + bq_l[h]).reshape(B, L, Dh)
            k = (jnp.dot(xn, wk_l[h], preferred_element_type=jnp.float32)
                 + bk_l[h]).reshape(B, L, Dh)
            v = (jnp.dot(xn, wv_l[h], preferred_element_type=jnp.float32)
                 + bv_l[h]).reshape(B, L, Dh)

            s = jnp.einsum('bqd,bkd->bqk', q, k,
                           preferred_element_type=jnp.float32) * scale      # (B, L, L)
            s = s - jnp.max(s, axis=-1, keepdims=True)
            p = jnp.exp(s)
            # softmax denominator on the EUP reciprocal (frees the VALU divide)
            p = p * pl.reciprocal(jnp.sum(p, axis=-1, keepdims=True), approx=True)
            o = jnp.einsum('bqk,bkd->bqd', p, v,
                           preferred_element_type=jnp.float32)               # (B, L, Dh)

            attn = attn + jnp.dot(o.reshape(BL, Dh), wo_l[h],
                                  preferred_element_type=jnp.float32)        # (BL, E)

        x = x + attn + bo_ref[li]                         # dropout1 == identity

        # ---------------- pre-norm GELU feed-forward ----------------
        xn2 = _layernorm(x, ln2w_ref[li], ln2b_ref[li])
        hdn = _gelu_exact(jnp.dot(xn2, w1_ref[li],
                                  preferred_element_type=jnp.float32) + b1_ref[li])
        x = x + jnp.dot(hdn, w2_ref[li],
                        preferred_element_type=jnp.float32) + b2_ref[li]     # dropout2 == id

    # TODO(synk): for larger E store through a lane-dense (B*L*E/128, 128) view so the
    # final write is an unmasked vst; at E=32 / B*L=16 the repack relayout costs more
    # than the masked store it would save.
    o_ref[...] = x.astype(o_ref.dtype)


# ------------------------------- wrapper -------------------------------------

_N_STACKED = 16   # number of stacked parameter arrays handed to the kernel


def _stack_params(params_list, n_head):
    """Stack per-layer params along a leading layer axis.  Q/K/V and the output
    projection are split PER HEAD here (wrapper side, free) so the kernel never has to
    slice activations at sub-128 lane offsets."""
    E = params_list[0]['wo'].shape[0]
    Dh = E // n_head

    def per_layer(p):
        wqkv = p['wqkv']                       # (E, 3E) in (in, out) layout
        bqkv = p['bqkv'][0]                    # (3E,)

        def head_w(w):                         # (E, E) -> (H, E, Dh)
            return w.reshape(E, n_head, Dh).transpose(1, 0, 2)

        def head_b(b):                         # (E,) -> (H, 1, Dh)
            return b.reshape(n_head, 1, Dh)

        return (p['ln1_w'], p['ln1_b'],
                head_w(wqkv[:, 0 * E:1 * E]), head_b(bqkv[0 * E:1 * E]),
                head_w(wqkv[:, 1 * E:2 * E]), head_b(bqkv[1 * E:2 * E]),
                head_w(wqkv[:, 2 * E:3 * E]), head_b(bqkv[2 * E:3 * E]),
                p['wo'].reshape(n_head, Dh, E), p['bo'],
                p['ln2_w'], p['ln2_b'], p['w1'], p['b1'], p['w2'], p['b2'])

    layers = [per_layer(p) for p in params_list]
    return [jnp.stack(arrs, axis=0) for arrs in zip(*layers)]


def transformer_encoder_forward(x_bel, params_list, pe, n_head):
    """x_bel: (B, n_embd, L) -> (B, n_embd, L).  One fused, gridless pallas_call."""
    B, E, L = x_bel.shape
    n_layer = len(params_list)
    head_dim = E // n_head
    n_inner = params_list[0]['w1'].shape[1]

    x_ble = jnp.transpose(x_bel, (0, 2, 1))           # (B, L, E) batch-first
    pe_b = pe[:B]                                     # (B, 1, E): broadcast over L in-kernel

    stacked = _stack_params(params_list, n_head)
    assert len(stacked) == _N_STACKED

    kernel = functools.partial(
        fused_encoder_kernel, n_layer=n_layer, n_head=n_head,
        head_dim=head_dim, d_model=E, batch=B, seq=L)

    flops = n_layer * (2 * B * L * E * 3 * E                 # q/k/v projections
                       + 4 * B * n_head * L * L * head_dim   # scores + attn @ V
                       + 2 * B * L * E * E                   # output projection
                       + 4 * B * L * E * n_inner)            # feed-forward
    transcendentals = n_layer * (B * n_head * L * L + B * L * n_inner)
    bytes_accessed = 4 * (x_ble.size + pe_b.size
                          + sum(int(a.size) for a in stacked) + B * L * E)

    vmem = pl.BlockSpec(memory_space=pltpu.MemorySpace.VMEM)

    # Gridless: all stacked layer weights (~33 KB/layer) plus the 2 KB activation slab are
    # VMEM-resident for the whole forward on every TPU generation, so one invocation
    # removes all per-layer launches and intermediate HBM round-trips.
    # TODO(synk): for large B*L add a leading token grid axis with
    # dimension_semantics=("parallel", ...) (v7x dual TensorCore) and set
    # vmem_limit_bytes explicitly once the resident-weight plan grows (v5e's 16 MiB
    # default scoped VMEM, v7x's 64 MiB physical).
    out_slab = pl.pallas_call(
        kernel,
        out_shape=jax.ShapeDtypeStruct((B * L, E), x_ble.dtype),
        in_specs=[vmem] * (2 + _N_STACKED),
        out_specs=vmem,
        cost_estimate=pl.CostEstimate(flops=int(flops),
                                      transcendentals=int(transcendentals),
                                      bytes_accessed=int(bytes_accessed)),
    )(x_ble, pe_b, *stacked)

    return jnp.transpose(out_slab.reshape(B, L, E), (0, 2, 1))   # back to (B, n_embd, L)


# --------------------------- params / buffers --------------------------------

def make_positional_table(n_embd, max_len=512):
    position = jnp.arange(max_len, dtype=jnp.float32)[:, None]
    div_term = jnp.exp(jnp.arange(0, n_embd, 2, dtype=jnp.float32)
                       * (-math.log(10000.0) / n_embd))
    pe = jnp.zeros((max_len, 1, n_embd), jnp.float32)
    pe = pe.at[:, 0, 0::2].set(jnp.sin(position * div_term))
    pe = pe.at[:, 0, 1::2].set(jnp.cos(position * div_term))
    return pe


def init_params(key, n_embd, n_layer, n_inner):
    """Deterministic synthetic weights. Linear weights stored as (in, out)
    (already transposed relative to PyTorch's (out, in)); biases as (1, out)."""
    E = n_embd
    layers = []
    for _ in range(n_layer):
        key, *ks = jax.random.split(key, 9)
        u = lambda k, shape, s=0.1: jax.random.uniform(k, shape, jnp.float32, -s, s)
        layers.append(dict(
            ln1_w=jnp.ones((1, E), jnp.float32), ln1_b=jnp.zeros((1, E), jnp.float32),
            wqkv=u(ks[0], (E, 3 * E)), bqkv=u(ks[1], (1, 3 * E)),
            wo=u(ks[2], (E, E)), bo=u(ks[3], (1, E)),
            ln2_w=jnp.ones((1, E), jnp.float32), ln2_b=jnp.zeros((1, E), jnp.float32),
            w1=u(ks[4], (E, n_inner)), b1=u(ks[5], (1, n_inner)),
            w2=u(ks[6], (n_inner, E)), b2=u(ks[7], (1, E)),
        ))
    return layers


# ---------------------------- pure-JAX reference ------------------------------

def reference_forward(x_bel, params_list, pe, n_head):
    x = jnp.transpose(x_bel, (0, 2, 1))
    B, L, E = x.shape
    Dh = E // n_head
    x = x + pe[:B]                                   # same broadcast as the PyTorch code
    for p in params_list:
        xn = _layernorm(x, p['ln1_w'], p['ln1_b'])
        qkv = xn @ p['wqkv'] + p['bqkv']
        q, k, v = jnp.split(qkv, 3, axis=-1)
        q = q.reshape(B, L, n_head, Dh).transpose(0, 2, 1, 3)
        k = k.reshape(B, L, n_head, Dh).transpose(0, 2, 1, 3)
        v = v.reshape(B, L, n_head, Dh).transpose(0, 2, 1, 3)
        s = (q @ jnp.swapaxes(k, -1, -2)) / math.sqrt(Dh)
        a = jax.nn.softmax(s, axis=-1)
        o = (a @ v).transpose(0, 2, 1, 3).reshape(B, L, E)
        x = x + o @ p['wo'] + p['bo']
        xn2 = _layernorm(x, p['ln2_w'], p['ln2_b'])
        h = jax.nn.gelu(xn2 @ p['w1'] + p['b1'], approximate=False)
        x = x + h @ p['w2'] + p['b2']
    return jnp.transpose(x, (0, 2, 1))


# ----------------------------------- main -------------------------------------

if __name__ == "__main__":
    # Small config consistent with the module: n_embd=32, n_layer=2, n_head=4, n_inner=64
    B, L = 2, 8
    n_embd, n_layer, n_head, n_inner = 32, 2, 4, 64

    key = jax.random.PRNGKey(0)
    kx, kp = jax.random.split(key)
    x = jax.random.normal(kx, (B, n_embd, L), jnp.float32)   # (B, C=n_embd, L)

    params = init_params(kp, n_embd, n_layer, n_inner)
    pe = make_positional_table(n_embd)

    out = transformer_encoder_forward(x, params, pe, n_head)
    out = jax.block_until_ready(out)

    ref = reference_forward(x, params, pe, n_head)
    assert out.shape == x.shape, (out.shape, x.shape)
    max_err = float(jnp.max(jnp.abs(out - ref)))
    assert max_err < 2e-2, f"mismatch vs reference: {max_err}"

    print("KERNEL_OK")
</pallas_src>

<mosaic_0001>
module attributes {stable_mosaic.version = 11 : i64} {
  func.func @fused_encoder_kernel(%arg0: memref<2x8x32xf32, #tpu.memory_space<vmem>>, %arg1: memref<2x1x32xf32, #tpu.memory_space<vmem>>, %arg2: memref<2x1x32xf32, #tpu.memory_space<vmem>>, %arg3: memref<2x1x32xf32, #tpu.memory_space<vmem>>, %arg4: memref<2x4x32x8xf32, #tpu.memory_space<vmem>>, %arg5: memref<2x4x1x8xf32, #tpu.memory_space<vmem>>, %arg6: memref<2x4x32x8xf32, #tpu.memory_space<vmem>>, %arg7: memref<2x4x1x8xf32, #tpu.memory_space<vmem>>, %arg8: memref<2x4x32x8xf32, #tpu.memory_space<vmem>>, %arg9: memref<2x4x1x8xf32, #tpu.memory_space<vmem>>, %arg10: memref<2x4x8x32xf32, #tpu.memory_space<vmem>>, %arg11: memref<2x1x32xf32, #tpu.memory_space<vmem>>, %arg12: memref<2x1x32xf32, #tpu.memory_space<vmem>>, %arg13: memref<2x1x32xf32, #tpu.memory_space<vmem>>, %arg14: memref<2x32x64xf32, #tpu.memory_space<vmem>>, %arg15: memref<2x1x64xf32, #tpu.memory_space<vmem>>, %arg16: memref<2x64x32xf32, #tpu.memory_space<vmem>>, %arg17: memref<2x1x32xf32, #tpu.memory_space<vmem>>, %arg18: memref<16x32xf32, #tpu.memory_space<vmem>>) attributes {dimension_semantics = [], scalar_prefetch = 0 : i64, scratch_operands = 0 : i64, tpu.core_type = #tpu.core_type<tc>} {
    %c0 = arith.constant 0 : index
    %c0_0 = arith.constant 0 : index
    %c0_1 = arith.constant 0 : index
    %0 = vector.load %arg0[%c0, %c0_0, %c0_1] : memref<2x8x32xf32, #tpu.memory_space<vmem>>, vector<2x8x32xf32>
    %c0_2 = arith.constant 0 : index
    %c0_3 = arith.constant 0 : index
    %c0_4 = arith.constant 0 : index
    %1 = vector.load %arg1[%c0_2, %c0_3, %c0_4] : memref<2x1x32xf32, #tpu.memory_space<vmem>>, vector<2x1x32xf32>
    %2 = vector.broadcast %1 : vector<2x1x32xf32> to vector<2x8x32xf32>
    %3 = arith.addf %0, %2 : vector<2x8x32xf32>
    %4 = vector.shape_cast %3 : vector<2x8x32xf32> to vector<16x32xf32>
    %c0_5 = arith.constant 0 : index
    %c0_6 = arith.constant 0 : index
    %c0_7 = arith.constant 0 : index
    %5 = vector.load %arg2[%c0_5, %c0_6, %c0_7] : memref<2x1x32xf32, #tpu.memory_space<vmem>>, vector<1x1x32xf32>
    %6 = vector.shape_cast %5 : vector<1x1x32xf32> to vector<1x32xf32>
    %c0_8 = arith.constant 0 : index
    %c0_9 = arith.constant 0 : index
    %c0_10 = arith.constant 0 : index
    %7 = vector.load %arg3[%c0_8, %c0_9, %c0_10] : memref<2x1x32xf32, #tpu.memory_space<vmem>>, vector<1x1x32xf32>
    %8 = vector.shape_cast %7 : vector<1x1x32xf32> to vector<1x32xf32>
    %cst = arith.constant dense<0.000000e+00> : vector<16xf32>
    %9 = vector.multi_reduction <add>, %4, %cst [1] : vector<16x32xf32> to vector<16xf32>
    %10 = vector.shape_cast %9 : vector<16xf32> to vector<16x1xf32>
    %cst_11 = arith.constant 3.200000e+01 : f32
    %11 = vector.broadcast %cst_11 : f32 to vector<16x1xf32>
    %12 = arith.divf %10, %11 : vector<16x1xf32>
    %13 = vector.broadcast %12 : vector<16x1xf32> to vector<16x32xf32>
    %14 = arith.subf %4, %13 : vector<16x32xf32>
    %15 = arith.mulf %14, %14 : vector<16x32xf32>
    %cst_12 = arith.constant dense<0.000000e+00> : vector<16xf32>
    %16 = vector.multi_reduction <add>, %15, %cst_12 [1] : vector<16x32xf32> to vector<16xf32>
    %17 = vector.shape_cast %16 : vector<16xf32> to vector<16x1xf32>
    %cst_13 = arith.constant 3.200000e+01 : f32
    %18 = vector.broadcast %cst_13 : f32 to vector<16x1xf32>
    %19 = arith.divf %17, %18 : vector<16x1xf32>
    %20 = vector.broadcast %12 : vector<16x1xf32> to vector<16x32xf32>
    %21 = arith.subf %4, %20 : vector<16x32xf32>
    %cst_14 = arith.constant 9.99999974E-6 : f32
    %22 = vector.broadcast %cst_14 : f32 to vector<16x1xf32>
    %23 = arith.addf %19, %22 : vector<16x1xf32>
    %24 = math.rsqrt %23 : vector<16x1xf32>
    %25 = vector.broadcast %24 : vector<16x1xf32> to vector<16x32xf32>
    %26 = arith.mulf %21, %25 : vector<16x32xf32>
    %27 = vector.broadcast %6 : vector<1x32xf32> to vector<16x32xf32>
    %28 = arith.mulf %26, %27 : vector<16x32xf32>
    %29 = vector.broadcast %8 : vector<1x32xf32> to vector<16x32xf32>
    %30 = arith.addf %28, %29 : vector<16x32xf32>
    %c0_15 = arith.constant 0 : index
    %c0_16 = arith.constant 0 : index
    %c0_17 = arith.constant 0 : index
    %c0_18 = arith.constant 0 : index
    %31 = vector.load %arg4[%c0_15, %c0_16, %c0_17, %c0_18] : memref<2x4x32x8xf32, #tpu.memory_space<vmem>>, vector<1x4x32x8xf32>
    %32 = vector.shape_cast %31 : vector<1x4x32x8xf32> to vector<4x32x8xf32>
    %c0_19 = arith.constant 0 : index
    %c0_20 = arith.constant 0 : index
    %c0_21 = arith.constant 0 : index
    %c0_22 = arith.constant 0 : index
    %33 = vector.load %arg6[%c0_19, %c0_20, %c0_21, %c0_22] : memref<2x4x32x8xf32, #tpu.memory_space<vmem>>, vector<1x4x32x8xf32>
    %34 = vector.shape_cast %33 : vector<1x4x32x8xf32> to vector<4x32x8xf32>
    %c0_23 = arith.constant 0 : index
    %c0_24 = arith.constant 0 : index
    %c0_25 = arith.constant 0 : index
    %c0_26 = arith.constant 0 : index
    %35 = vector.load %arg8[%c0_23, %c0_24, %c0_25, %c0_26] : memref<2x4x32x8xf32, #tpu.memory_space<vmem>>, vector<1x4x32x8xf32>
    %36 = vector.shape_cast %35 : vector<1x4x32x8xf32> to vector<4x32x8xf32>
    %c0_27 = arith.constant 0 : index
    %c0_28 = arith.constant 0 : index
    %c0_29 = arith.constant 0 : index
    %c0_30 = arith.constant 0 : index
    %37 = vector.load %arg10[%c0_27, %c0_28, %c0_29, %c0_30] : memref<2x4x8x32xf32, #tpu.memory_space<vmem>>, vector<1x4x8x32xf32>
    %38 = vector.shape_cast %37 : vector<1x4x8x32xf32> to vector<4x8x32xf32>
    %c0_31 = arith.constant 0 : index
    %c0_32 = arith.constant 0 : index
    %c0_33 = arith.constant 0 : index
    %c0_34 = arith.constant 0 : index
    %39 = vector.load %arg5[%c0_31, %c0_32, %c0_33, %c0_34] : memref<2x4x1x8xf32, #tpu.memory_space<vmem>>, vector<1x4x1x8xf32>
    %40 = vector.shape_cast %39 : vector<1x4x1x8xf32> to vector<4x1x8xf32>
    %c0_35 = arith.constant 0 : index
    %c0_36 = arith.constant 0 : index
    %c0_37 = arith.constant 0 : index
    %c0_38 = arith.constant 0 : index
    %41 = vector.load %arg7[%c0_35, %c0_36, %c0_37, %c0_38] : memref<2x4x1x8xf32, #tpu.memory_space<vmem>>, vector<1x4x1x8xf32>
    %42 = vector.shape_cast %41 : vector<1x4x1x8xf32> to vector<4x1x8xf32>
    %c0_39 = arith.constant 0 : index
    %c0_40 = arith.constant 0 : index
    %c0_41 = arith.constant 0 : index
    %c0_42 = arith.constant 0 : index
    %43 = vector.load %arg9[%c0_39, %c0_40, %c0_41, %c0_42] : memref<2x4x1x8xf32, #tpu.memory_space<vmem>>, vector<1x4x1x8xf32>
    %44 = vector.shape_cast %43 : vector<1x4x1x8xf32> to vector<4x1x8xf32>
    %cst_43 = arith.constant 0.000000e+00 : f32
    %45 = vector.broadcast %cst_43 : f32 to vector<16x32xf32>
    %46 = vector.extract_strided_slice %32 {offsets = [0, 0, 0], sizes = [1, 32, 8], strides = [1, 1, 1]} : vector<4x32x8xf32> to vector<1x32x8xf32>
    %47 = vector.shape_cast %46 : vector<1x32x8xf32> to vector<32x8xf32>
    %cst_44 = arith.constant dense<0.000000e+00> : vector<16x8xf32>
    %48 = tpu.matmul %30, %47, %cst_44 {dimension_numbers = #tpu.dot_dimension_numbers<[1], [0], [0], [1], [0, 0, 1, 1], [], []>} : vector<16x32xf32>, vector<32x8xf32>, vector<16x8xf32> -> vector<16x8xf32>
    %49 = vector.extract_strided_slice %40 {offsets = [0, 0, 0], sizes = [1, 1, 8], strides = [1, 1, 1]} : vector<4x1x8xf32> to vector<1x1x8xf32>
    %50 = vector.shape_cast %49 : vector<1x1x8xf32> to vector<1x8xf32>
    %51 = vector.broadcast %50 : vector<1x8xf32> to vector<16x8xf32>
    %52 = arith.addf %48, %51 : vector<16x8xf32>
    %53 = vector.shape_cast %52 : vector<16x8xf32> to vector<2x8x8xf32>
    %54 = vector.extract_strided_slice %34 {offsets = [0, 0, 0], sizes = [1, 32, 8], strides = [1, 1, 1]} : vector<4x32x8xf32> to vector<1x32x8xf32>
    %55 = vector.shape_cast %54 : vector<1x32x8xf32> to vector<32x8xf32>
    %cst_45 = arith.constant dense<0.000000e+00> : vector<16x8xf32>
    %56 = tpu.matmul %30, %55, %cst_45 {dimension_numbers = #tpu.dot_dimension_numbers<[1], [0], [0], [1], [0, 0, 1, 1], [], []>} : vector<16x32xf32>, vector<32x8xf32>, vector<16x8xf32> -> vector<16x8xf32>
    %57 = vector.extract_strided_slice %42 {offsets = [0, 0, 0], sizes = [1, 1, 8], strides = [1, 1, 1]} : vector<4x1x8xf32> to vector<1x1x8xf32>
    %58 = vector.shape_cast %57 : vector<1x1x8xf32> to vector<1x8xf32>
    %59 = vector.broadcast %58 : vector<1x8xf32> to vector<16x8xf32>
    %60 = arith.addf %56, %59 : vector<16x8xf32>
    %61 = vector.shape_cast %60 : vector<16x8xf32> to vector<2x8x8xf32>
    %62 = vector.extract_strided_slice %36 {offsets = [0, 0, 0], sizes = [1, 32, 8], strides = [1, 1, 1]} : vector<4x32x8xf32> to vector<1x32x8xf32>
    %63 = vector.shape_cast %62 : vector<1x32x8xf32> to vector<32x8xf32>
    %cst_46 = arith.constant dense<0.000000e+00> : vector<16x8xf32>
    %64 = tpu.matmul %30, %63, %cst_46 {dimension_numbers = #tpu.dot_dimension_numbers<[1], [0], [0], [1], [0, 0, 1, 1], [], []>} : vector<16x32xf32>, vector<32x8xf32>, vector<16x8xf32> -> vector<16x8xf32>
    %65 = vector.extract_strided_slice %44 {offsets = [0, 0, 0], sizes = [1, 1, 8], strides = [1, 1, 1]} : vector<4x1x8xf32> to vector<1x1x8xf32>
    %66 = vector.shape_cast %65 : vector<1x1x8xf32> to vector<1x8xf32>
    %67 = vector.broadcast %66 : vector<1x8xf32> to vector<16x8xf32>
    %68 = arith.addf %64, %67 : vector<16x8xf32>
    %69 = vector.shape_cast %68 : vector<16x8xf32> to vector<2x8x8xf32>
    "tpu.trace_start"() <{level = 10 : i32, message = "bqd,bkd->bqk"}> : () -> ()
    %cst_47 = arith.constant dense<0.000000e+00> : vector<2x8x8xf32>
    %70 = tpu.matmul %53, %61, %cst_47 {dimension_numbers = #tpu.dot_dimension_numbers<[2], [2], [1], [1], [0, 0, 0, 1, 1, 1], [0], [0]>} : vector<2x8x8xf32>, vector<2x8x8xf32>, vector<2x8x8xf32> -> vector<2x8x8xf32>
    "tpu.trace_stop"() : () -> ()
    %cst_48 = arith.constant 0.353553385 : f32
    %71 = vector.broadcast %cst_48 : f32 to vector<2x8x8xf32>
    %72 = arith.mulf %70, %71 : vector<2x8x8xf32>
    %cst_49 = arith.constant dense<0xFF800000> : vector<2x8xf32>
    %73 = vector.multi_reduction <maximumf>, %72, %cst_49 [2] : vector<2x8x8xf32> to vector<2x8xf32>
    %74 = vector.shape_cast %73 : vector<2x8xf32> to vector<2x8x1xf32>
    %75 = vector.broadcast %74 : vector<2x8x1xf32> to vector<2x8x8xf32>
    %76 = arith.subf %72, %75 : vector<2x8x8xf32>
    %77 = math.exp %76 : vector<2x8x8xf32>
    %cst_50 = arith.constant dense<0.000000e+00> : vector<2x8xf32>
    %78 = vector.multi_reduction <add>, %77, %cst_50 [2] : vector<2x8x8xf32> to vector<2x8xf32>
    %79 = vector.shape_cast %78 : vector<2x8xf32> to vector<2x8x1xf32>
    %80 = tpu.reciprocal %79 {approx = true} : vector<2x8x1xf32> -> vector<2x8x1xf32>
    %81 = vector.broadcast %80 : vector<2x8x1xf32> to vector<2x8x8xf32>
    %82 = arith.mulf %77, %81 : vector<2x8x8xf32>
    "tpu.trace_start"() <{level = 10 : i32, message = "bqk,bkd->bqd"}> : () -> ()
    %cst_51 = arith.constant dense<0.000000e+00> : vector<2x8x8xf32>
    %83 = tpu.matmul %82, %69, %cst_51 {dimension_numbers = #tpu.dot_dimension_numbers<[2], [1], [1], [2], [0, 0, 0, 1, 1, 2], [0], [0]>} : vector<2x8x8xf32>, vector<2x8x8xf32>, vector<2x8x8xf32> -> vector<2x8x8xf32>
    "tpu.trace_stop"() : () -> ()
    %84 = vector.shape_cast %83 : vector<2x8x8xf32> to vector<16x8xf32>
    %85 = vector.extract_strided_slice %38 {offsets = [0, 0, 0], sizes = [1, 8, 32], strides = [1, 1, 1]} : vector<4x8x32xf32> to vector<1x8x32xf32>
    %86 = vector.shape_cast %85 : vector<1x8x32xf32> to vector<8x32xf32>
    %cst_52 = arith.constant dense<0.000000e+00> : vector<16x32xf32>
    %87 = tpu.matmul %84, %86, %cst_52 {dimension_numbers = #tpu.dot_dimension_numbers<[1], [0], [0], [1], [0, 0, 1, 1], [], []>} : vector<16x8xf32>, vector<8x32xf32>, vector<16x32xf32> -> vector<16x32xf32>
    %88 = arith.addf %45, %87 : vector<16x32xf32>
    %89 = vector.extract_strided_slice %32 {offsets = [1, 0, 0], sizes = [1, 32, 8], strides = [1, 1, 1]} : vector<4x32x8xf32> to vector<1x32x8xf32>
    %90 = vector.shape_cast %89 : vector<1x32x8xf32> to vector<32x8xf32>
    %cst_53 = arith.constant dense<0.000000e+00> : vector<16x8xf32>
    %91 = tpu.matmul %30, %90, %cst_53 {dimension_numbers = #tpu.dot_dimension_numbers<[1], [0], [0], [1], [0, 0, 1, 1], [], []>} : vector<16x32xf32>, vector<32x8xf32>, vector<16x8xf32> -> vector<16x8xf32>
    %92 = vector.extract_strided_slice %40 {offsets = [1, 0, 0], sizes = [1, 1, 8], strides = [1, 1, 1]} : vector<4x1x8xf32> to vector<1x1x8xf32>
    %93 = vector.shape_cast %92 : vector<1x1x8xf32> to vector<1x8xf32>
    %94 = vector.broadcast %93 : vector<1x8xf32> to vector<16x8xf32>
    %95 = arith.addf %91, %94 : vector<16x8xf32>
    %96 = vector.shape_cast %95 : vector<16x8xf32> to vector<2x8x8xf32>
    %97 = vector.extract_strided_slice %34 {offsets = [1, 0, 0], sizes = [1, 32, 8], strides = [1, 1, 1]} : vector<4x32x8xf32> to vector<1x32x8xf32>
    %98 = vector.shape_cast %97 : vector<1x32x8xf32> to vector<32x8xf32>
    %cst_54 = arith.constant dense<0.000000e+00> : vector<16x8xf32>
    %99 = tpu.matmul %30, %98, %cst_54 {dimension_numbers = #tpu.dot_dimension_numbers<[1], [0], [0], [1], [0, 0, 1, 1], [], []>} : vector<16x32xf32>, vector<32x8xf32>, vector<16x8xf32> -> vector<16x8xf32>
    %100 = vector.extract_strided_slice %42 {offsets = [1, 0, 0], sizes = [1, 1, 8], strides = [1, 1, 1]} : vector<4x1x8xf32> to vector<1x1x8xf32>
    %101 = vector.shape_cast %100 : vector<1x1x8xf32> to vector<1x8xf32>
    %102 = vector.broadcast %101 : vector<1x8xf32> to vector<16x8xf32>
    %103 = arith.addf %99, %102 : vector<16x8xf32>
    %104 = vector.shape_cast %103 : vector<16x8xf32> to vector<2x8x8xf32>
    %105 = vector.extract_strided_slice %36 {offsets = [1, 0, 0], sizes = [1, 32, 8], strides = [1, 1, 1]} : vector<4x32x8xf32> to vector<1x32x8xf32>
    %106 = vector.shape_cast %105 : vector<1x32x8xf32> to vector<32x8xf32>
    %cst_55 = arith.constant dense<0.000000e+00> : vector<16x8xf32>
    %107 = tpu.matmul %30, %106, %cst_55 {dimension_numbers = #tpu.dot_dimension_numbers<[1], [0], [0], [1], [0, 0, 1, 1], [], []>} : vector<16x32xf32>, vector<32x8xf32>, vector<16x8xf32> -> vector<16x8xf32>
    %108 = vector.extract_strided_slice %44 {offsets = [1, 0, 0], sizes = [1, 1, 8], strides = [1, 1, 1]} : vector<4x1x8xf32> to vector<1x1x8xf32>
    %109 = vector.shape_cast %108 : vector<1x1x8xf32> to vector<1x8xf32>
    %110 = vector.broadcast %109 : vector<1x8xf32> to vector<16x8xf32>
    %111 = arith.addf %107, %110 : vector<16x8xf32>
    %112 = vector.shape_cast %111 : vector<16x8xf32> to vector<2x8x8xf32>
    "tpu.trace_start"() <{level = 10 : i32, message = "bqd,bkd->bqk"}> : () -> ()
    %cst_56 = arith.constant dense<0.000000e+00> : vector<2x8x8xf32>
    %113 = tpu.matmul %96, %104, %cst_56 {dimension_numbers = #tpu.dot_dimension_numbers<[2], [2], [1], [1], [0, 0, 0, 1, 1, 1], [0], [0]>} : vector<2x8x8xf32>, vector<2x8x8xf32>, vector<2x8x8xf32> -> vector<2x8x8xf32>
    "tpu.trace_stop"() : () -> ()
    %cst_57 = arith.constant 0.353553385 : f32
    %114 = vector.broadcast %cst_57 : f32 to vector<2x8x8xf32>
    %115 = arith.mulf %113, %114 : vector<2x8x8xf32>
    %cst_58 = arith.constant dense<0xFF800000> : vector<2x8xf32>
    %116 = vector.multi_reduction <maximumf>, %115, %cst_58 [2] : vector<2x8x8xf32> to vector<2x8xf32>
    %117 = vector.shape_cast %116 : vector<2x8xf32> to vector<2x8x1xf32>
    %118 = vector.broadcast %117 : vector<2x8x1xf32> to vector<2x8x8xf32>
    %119 = arith.subf %115, %118 : vector<2x8x8xf32>
    %120 = math.exp %119 : vector<2x8x8xf32>
    %cst_59 = arith.constant dense<0.000000e+00> : vector<2x8xf32>
    %121 = vector.multi_reduction <add>, %120, %cst_59 [2] : vector<2x8x8xf32> to vector<2x8xf32>
    %122 = vector.shape_cast %121 : vector<2x8xf32> to vector<2x8x1xf32>
    %123 = tpu.reciprocal %122 {approx = true} : vector<2x8x1xf32> -> vector<2x8x1xf32>
    %124 = vector.broadcast %123 : vector<2x8x1xf32> to vector<2x8x8xf32>
    %125 = arith.mulf %120, %124 : vector<2x8x8xf32>
    "tpu.trace_start"() <{level = 10 : i32, message = "bqk,bkd->bqd"}> : () -> ()
    %cst_60 = arith.constant dense<0.000000e+00> : vector<2x8x8xf32>
    %126 = tpu.matmul %125, %112, %cst_60 {dimension_numbers = #tpu.dot_dimension_numbers<[2], [1], [1], [2], [0, 0, 0, 1, 1, 2], [0], [0]>} : vector<2x8x8xf32>, vector<2x8x8xf32>, vector<2x8x8xf32> -> vector<2x8x8xf32>
    "tpu.trace_stop"() : () -> ()
    %127 = vector.shape_cast %126 : vector<2x8x8xf32> to vector<16x8xf32>
    %128 = vector.extract_strided_slice %38 {offsets = [1, 0, 0], sizes = [1, 8, 32], strides = [1, 1, 1]} : vector<4x8x32xf32> to vector<1x8x32xf32>
    %129 = vector.shape_cast %128 : vector<1x8x32xf32> to vector<8x32xf32>
    %cst_61 = arith.constant dense<0.000000e+00> : vector<16x32xf32>
    %130 = tpu.matmul %127, %129, %cst_61 {dimension_numbers = #tpu.dot_dimension_numbers<[1], [0], [0], [1], [0, 0, 1, 1], [], []>} : vector<16x8xf32>, vector<8x32xf32>, vector<16x32xf32> -> vector<16x32xf32>
    %131 = arith.addf %88, %130 : vector<16x32xf32>
    %132 = vector.extract_strided_slice %32 {offsets = [2, 0, 0], sizes = [1, 32, 8], strides = [1, 1, 1]} : vector<4x32x8xf32> to vector<1x32x8xf32>
    %133 = vector.shape_cast %132 : vector<1x32x8xf32> to vector<32x8xf32>
    %cst_62 = arith.constant dense<0.000000e+00> : vector<16x8xf32>
    %134 = tpu.matmul %30, %133, %cst_62 {dimension_numbers = #tpu.dot_dimension_numbers<[1], [0], [0], [1], [0, 0, 1, 1], [], []>} : vector<16x32xf32>, vector<32x8xf32>, vector<16x8xf32> -> vector<16x8xf32>
    %135 = vector.extract_strided_slice %40 {offsets = [2, 0, 0], sizes = [1, 1, 8], strides = [1, 1, 1]} : vector<4x1x8xf32> to vector<1x1x8xf32>
    %136 = vector.shape_cast %135 : vector<1x1x8xf32> to vector<1x8xf32>
    %137 = vector.broadcast %136 : vector<1x8xf32> to vector<16x8xf32>
    %138 = arith.addf %134, %137 : vector<16x8xf32>
    %139 = vector.shape_cast %138 : vector<16x8xf32> to vector<2x8x8xf32>
    %140 = vector.extract_strided_slice %34 {offsets = [2, 0, 0], sizes = [1, 32, 8], strides = [1, 1, 1]} : vector<4x32x8xf32> to vector<1x32x8xf32>
    %141 = vector.shape_cast %140 : vector<1x32x8xf32> to vector<32x8xf32>
    %cst_63 = arith.constant dense<0.000000e+00> : vector<16x8xf32>
    %142 = tpu.matmul %30, %141, %cst_63 {dimension_numbers = #tpu.dot_dimension_numbers<[1], [0], [0], [1], [0, 0, 1, 1], [], []>} : vector<16x32xf32>, vector<32x8xf32>, vector<16x8xf32> -> vector<16x8xf32>
    %143 = vector.extract_strided_slice %42 {offsets = [2, 0, 0], sizes = [1, 1, 8], strides = [1, 1, 1]} : vector<4x1x8xf32> to vector<1x1x8xf32>
    %144 = vector.shape_cast %143 : vector<1x1x8xf32> to vector<1x8xf32>
    %145 = vector.broadcast %144 : vector<1x8xf32> to vector<16x8xf32>
    %146 = arith.addf %142, %145 : vector<16x8xf32>
    %147 = vector.shape_cast %146 : vector<16x8xf32> to vector<2x8x8xf32>
    %148 = vector.extract_strided_slice %36 {offsets = [2, 0, 0], sizes = [1, 32, 8], strides = [1, 1, 1]} : vector<4x32x8xf32> to vector<1x32x8xf32>
    %149 = vector.shape_cast %148 : vector<1x32x8xf32> to vector<32x8xf32>
    %cst_64 = arith.constant dense<0.000000e+00> : vector<16x8xf32>
    %150 = tpu.matmul %30, %149, %cst_64 {dimension_numbers = #tpu.dot_dimension_numbers<[1], [0], [0], [1], [0, 0, 1, 1], [], []>} : vector<16x32xf32>, vector<32x8xf32>, vector<16x8xf32> -> vector<16x8xf32>
    %151 = vector.extract_strided_slice %44 {offsets = [2, 0, 0], sizes = [1, 1, 8], strides = [1, 1, 1]} : vector<4x1x8xf32> to vector<1x1x8xf32>
    %152 = vector.shape_cast %151 : vector<1x1x8xf32> to vector<1x8xf32>
    %153 = vector.broadcast %152 : vector<1x8xf32> to vector<16x8xf32>
    %154 = arith.addf %150, %153 : vector<16x8xf32>
    %155 = vector.shape_cast %154 : vector<16x8xf32> to vector<2x8x8xf32>
    "tpu.trace_start"() <{level = 10 : i32, message = "bqd,bkd->bqk"}> : () -> ()
    %cst_65 = arith.constant dense<0.000000e+00> : vector<2x8x8xf32>
    %156 = tpu.matmul %139, %147, %cst_65 {dimension_numbers = #tpu.dot_dimension_numbers<[2], [2], [1], [1], [0, 0, 0, 1, 1, 1], [0], [0]>} : vector<2x8x8xf32>, vector<2x8x8xf32>, vector<2x8x8xf32> -> vector<2x8x8xf32>
    "tpu.trace_stop"() : () -> ()
    %cst_66 = arith.constant 0.353553385 : f32
    %157 = vector.broadcast %cst_66 : f32 to vector<2x8x8xf32>
    %158 = arith.mulf %156, %157 : vector<2x8x8xf32>
    %cst_67 = arith.constant dense<0xFF800000> : vector<2x8xf32>
    %159 = vector.multi_reduction <maximumf>, %158, %cst_67 [2] : vector<2x8x8xf32> to vector<2x8xf32>
    %160 = vector.shape_cast %159 : vector<2x8xf32> to vector<2x8x1xf32>
    %161 = vector.broadcast %160 : vector<2x8x1xf32> to vector<2x8x8xf32>
    %162 = arith.subf %158, %161 : vector<2x8x8xf32>
    %163 = math.exp %162 : vector<2x8x8xf32>
    %cst_68 = arith.constant dense<0.000000e+00> : vector<2x8xf32>
    %164 = vector.multi_reduction <add>, %163, %cst_68 [2] : vector<2x8x8xf32> to vector<2x8xf32>
    %165 = vector.shape_cast %164 : vector<2x8xf32> to vector<2x8x1xf32>
    %166 = tpu.reciprocal %165 {approx = true} : vector<2x8x1xf32> -> vector<2x8x1xf32>
    %167 = vector.broadcast %166 : vector<2x8x1xf32> to vector<2x8x8xf32>
    %168 = arith.mulf %163, %167 : vector<2x8x8xf32>
    "tpu.trace_start"() <{level = 10 : i32, message = "bqk,bkd->bqd"}> : () -> ()
    %cst_69 = arith.constant dense<0.000000e+00> : vector<2x8x8xf32>
    %169 = tpu.matmul %168, %155, %cst_69 {dimension_numbers = #tpu.dot_dimension_numbers<[2], [1], [1], [2], [0, 0, 0, 1, 1, 2], [0], [0]>} : vector<2x8x8xf32>, vector<2x8x8xf32>, vector<2x8x8xf32> -> vector<2x8x8xf32>
    "tpu.trace_stop"() : () -> ()
    %170 = vector.shape_cast %169 : vector<2x8x8xf32> to vector<16x8xf32>
    %171 = vector.extract_strided_slice %38 {offsets = [2, 0, 0], sizes = [1, 8, 32], strides = [1, 1, 1]} : vector<4x8x32xf32> to vector<1x8x32xf32>
    %172 = vector.shape_cast %171 : vector<1x8x32xf32> to vector<8x32xf32>
    %cst_70 = arith.constant dense<0.000000e+00> : vector<16x32xf32>
    %173 = tpu.matmul %170, %172, %cst_70 {dimension_numbers = #tpu.dot_dimension_numbers<[1], [0], [0], [1], [0, 0, 1, 1], [], []>} : vector<16x8xf32>, vector<8x32xf32>, vector<16x32xf32> -> vector<16x32xf32>
    %174 = arith.addf %131, %173 : vector<16x32xf32>
    %175 = vector.extract_strided_slice %32 {offsets = [3, 0, 0], sizes = [1, 32, 8], strides = [1, 1, 1]} : vector<4x32x8xf32> to vector<1x32x8xf32>
    %176 = vector.shape_cast %175 : vector<1x32x8xf32> to vector<32x8xf32>
    %cst_71 = arith.constant dense<0.000000e+00> : vector<16x8xf32>
    %177 = tpu.matmul %30, %176, %cst_71 {dimension_numbers = #tpu.dot_dimension_numbers<[1], [0], [0], [1], [0, 0, 1, 1], [], []>} : vector<16x32xf32>, vector<32x8xf32>, vector<16x8xf32> -> vector<16x8xf32>
    %178 = vector.extract_strided_slice %40 {offsets = [3, 0, 0], sizes = [1, 1, 8], strides = [1, 1, 1]} : vector<4x1x8xf32> to vector<1x1x8xf32>
    %179 = vector.shape_cast %178 : vector<1x1x8xf32> to vector<1x8xf32>
    %180 = vector.broadcast %179 : vector<1x8xf32> to vector<16x8xf32>
    %181 = arith.addf %177, %180 : vector<16x8xf32>
    %182 = vector.shape_cast %181 : vector<16x8xf32> to vector<2x8x8xf32>
    %183 = vector.extract_strided_slice %34 {offsets = [3, 0, 0], sizes = [1, 32, 8], strides = [1, 1, 1]} : vector<4x32x8xf32> to vector<1x32x8xf32>
    %184 = vector.shape_cast %183 : vector<1x32x8xf32> to vector<32x8xf32>
    %cst_72 = arith.constant dense<0.000000e+00> : vector<16x8xf32>
    %185 = tpu.matmul %30, %184, %cst_72 {dimension_numbers = #tpu.dot_dimension_numbers<[1], [0], [0], [1], [0, 0, 1, 1], [], []>} : vector<16x32xf32>, vector<32x8xf32>, vector<16x8xf32> -> vector<16x8xf32>
    %186 = vector.extract_strided_slice %42 {offsets = [3, 0, 0], sizes = [1, 1, 8], strides = [1, 1, 1]} : vector<4x1x8xf32> to vector<1x1x8xf32>
    %187 = vector.shape_cast %186 : vector<1x1x8xf32> to vector<1x8xf32>
    %188 = vector.broadcast %187 : vector<1x8xf32> to vector<16x8xf32>
    %189 = arith.addf %185, %188 : vector<16x8xf32>
    %190 = vector.shape_cast %189 : vector<16x8xf32> to vector<2x8x8xf32>
    %191 = vector.extract_strided_slice %36 {offsets = [3, 0, 0], sizes = [1, 32, 8], strides = [1, 1, 1]} : vector<4x32x8xf32> to vector<1x32x8xf32>
    %192 = vector.shape_cast %191 : vector<1x32x8xf32> to vector<32x8xf32>
    %cst_73 = arith.constant dense<0.000000e+00> : vector<16x8xf32>
    %193 = tpu.matmul %30, %192, %cst_73 {dimension_numbers = #tpu.dot_dimension_numbers<[1], [0], [0], [1], [0, 0, 1, 1], [], []>} : vector<16x32xf32>, vector<32x8xf32>, vector<16x8xf32> -> vector<16x8xf32>
    %194 = vector.extract_strided_slice %44 {offsets = [3, 0, 0], sizes = [1, 1, 8], strides = [1, 1, 1]} : vector<4x1x8xf32> to vector<1x1x8xf32>
    %195 = vector.shape_cast %194 : vector<1x1x8xf32> to vector<1x8xf32>
    %196 = vector.broadcast %195 : vector<1x8xf32> to vector<16x8xf32>
    %197 = arith.addf %193, %196 : vector<16x8xf32>
    %198 = vector.shape_cast %197 : vector<16x8xf32> to vector<2x8x8xf32>
    "tpu.trace_start"() <{level = 10 : i32, message = "bqd,bkd->bqk"}> : () -> ()
    %cst_74 = arith.constant dense<0.000000e+00> : vector<2x8x8xf32>
    %199 = tpu.matmul %182, %190, %cst_74 {dimension_numbers = #tpu.dot_dimension_numbers<[2], [2], [1], [1], [0, 0, 0, 1, 1, 1], [0], [0]>} : vector<2x8x8xf32>, vector<2x8x8xf32>, vector<2x8x8xf32> -> vector<2x8x8xf32>
    "tpu.trace_stop"() : () -> ()
    %cst_75 = arith.constant 0.353553385 : f32
    %200 = vector.broadcast %cst_75 : f32 to vector<2x8x8xf32>
    %201 = arith.mulf %199, %200 : vector<2x8x8xf32>
    %cst_76 = arith.constant dense<0xFF800000> : vector<2x8xf32>
    %202 = vector.multi_reduction <maximumf>, %201, %cst_76 [2] : vector<2x8x8xf32> to vector<2x8xf32>
    %203 = vector.shape_cast %202 : vector<2x8xf32> to vector<2x8x1xf32>
    %204 = vector.broadcast %203 : vector<2x8x1xf32> to vector<2x8x8xf32>
    %205 = arith.subf %201, %204 : vector<2x8x8xf32>
    %206 = math.exp %205 : vector<2x8x8xf32>
    %cst_77 = arith.constant dense<0.000000e+00> : vector<2x8xf32>
    %207 = vector.multi_reduction <add>, %206, %cst_77 [2] : vector<2x8x8xf32> to vector<2x8xf32>
    %208 = vector.shape_cast %207 : vector<2x8xf32> to vector<2x8x1xf32>
    %209 = tpu.reciprocal %208 {approx = true} : vector<2x8x1xf32> -> vector<2x8x1xf32>
    %210 = vector.broadcast %209 : vector<2x8x1xf32> to vector<2x8x8xf32>
    %211 = arith.mulf %206, %210 : vector<2x8x8xf32>
    "tpu.trace_start"() <{level = 10 : i32, message = "bqk,bkd->bqd"}> : () -> ()
    %cst_78 = arith.constant dense<0.000000e+00> : vector<2x8x8xf32>
    %212 = tpu.matmul %211, %198, %cst_78 {dimension_numbers = #tpu.dot_dimension_numbers<[2], [1], [1], [2], [0, 0, 0, 1, 1, 2], [0], [0]>} : vector<2x8x8xf32>, vector<2x8x8xf32>, vector<2x8x8xf32> -> vector<2x8x8xf32>
    "tpu.trace_stop"() : () -> ()
    %213 = vector.shape_cast %212 : vector<2x8x8xf32> to vector<16x8xf32>
    %214 = vector.extract_strided_slice %38 {offsets = [3, 0, 0], sizes = [1, 8, 32], strides = [1, 1, 1]} : vector<4x8x32xf32> to vector<1x8x32xf32>
    %215 = vector.shape_cast %214 : vector<1x8x32xf32> to vector<8x32xf32>
    %cst_79 = arith.constant dense<0.000000e+00> : vector<16x32xf32>
    %216 = tpu.matmul %213, %215, %cst_79 {dimension_numbers = #tpu.dot_dimension_numbers<[1], [0], [0], [1], [0, 0, 1, 1], [], []>} : vector<16x8xf32>, vector<8x32xf32>, vector<16x32xf32> -> vector<16x32xf32>
    %217 = arith.addf %174, %216 : vector<16x32xf32>
    %218 = arith.addf %4, %217 : vector<16x32xf32>
    %c0_80 = arith.constant 0 : index
    %c0_81 = arith.constant 0 : index
    %c0_82 = arith.constant 0 : index
    %219 = vector.load %arg11[%c0_80, %c0_81, %c0_82] : memref<2x1x32xf32, #tpu.memory_space<vmem>>, vector<1x1x32xf32>
    %220 = vector.shape_cast %219 : vector<1x1x32xf32> to vector<1x32xf32>
    %221 = vector.broadcast %220 : vector<1x32xf32> to vector<16x32xf32>
    %222 = arith.addf %218, %221 : vector<16x32xf32>
    %c0_83 = arith.constant 0 : index
    %c0_84 = arith.constant 0 : index
    %c0_85 = arith.constant 0 : index
    %223 = vector.load %arg12[%c0_83, %c0_84, %c0_85] : memref<2x1x32xf32, #tpu.memory_space<vmem>>, vector<1x1x32xf32>
    %224 = vector.shape_cast %223 : vector<1x1x32xf32> to vector<1x32xf32>
    %c0_86 = arith.constant 0 : index
    %c0_87 = arith.constant 0 : index
    %c0_88 = arith.constant 0 : index
    %225 = vector.load %arg13[%c0_86, %c0_87, %c0_88] : memref<2x1x32xf32, #tpu.memory_space<vmem>>, vector<1x1x32xf32>
    %226 = vector.shape_cast %225 : vector<1x1x32xf32> to vector<1x32xf32>
    %cst_89 = arith.constant dense<0.000000e+00> : vector<16xf32>
    %227 = vector.multi_reduction <add>, %222, %cst_89 [1] : vector<16x32xf32> to vector<16xf32>
    %228 = vector.shape_cast %227 : vector<16xf32> to vector<16x1xf32>
    %cst_90 = arith.constant 3.200000e+01 : f32
    %229 = vector.broadcast %cst_90 : f32 to vector<16x1xf32>
    %230 = arith.divf %228, %229 : vector<16x1xf32>
    %231 = vector.broadcast %230 : vector<16x1xf32> to vector<16x32xf32>
    %232 = arith.subf %222, %231 : vector<16x32xf32>
    %233 = arith.mulf %232, %232 : vector<16x32xf32>
    %cst_91 = arith.constant dense<0.000000e+00> : vector<16xf32>
    %234 = vector.multi_reduction <add>, %233, %cst_91 [1] : vector<16x32xf32> to vector<16xf32>
    %235 = vector.shape_cast %234 : vector<16xf32> to vector<16x1xf32>
    %cst_92 = arith.constant 3.200000e+01 : f32
    %236 = vector.broadcast %cst_92 : f32 to vector<16x1xf32>
    %237 = arith.divf %235, %236 : vector<16x1xf32>
    %238 = vector.broadcast %230 : vector<16x1xf32> to vector<16x32xf32>
    %239 = arith.subf %222, %238 : vector<16x32xf32>
    %cst_93 = arith.constant 9.99999974E-6 : f32
    %240 = vector.broadcast %cst_93 : f32 to vector<16x1xf32>
    %241 = arith.addf %237, %240 : vector<16x1xf32>
    %242 = math.rsqrt %241 : vector<16x1xf32>
    %243 = vector.broadcast %242 : vector<16x1xf32> to vector<16x32xf32>
    %244 = arith.mulf %239, %243 : vector<16x32xf32>
    %245 = vector.broadcast %224 : vector<1x32xf32> to vector<16x32xf32>
    %246 = arith.mulf %244, %245 : vector<16x32xf32>
    %247 = vector.broadcast %226 : vector<1x32xf32> to vector<16x32xf32>
    %248 = arith.addf %246, %247 : vector<16x32xf32>
    %c0_94 = arith.constant 0 : index
    %c0_95 = arith.constant 0 : index
    %c0_96 = arith.constant 0 : index
    %249 = vector.load %arg14[%c0_94, %c0_95, %c0_96] : memref<2x32x64xf32, #tpu.memory_space<vmem>>, vector<1x32x64xf32>
    %250 = vector.shape_cast %249 : vector<1x32x64xf32> to vector<32x64xf32>
    %cst_97 = arith.constant dense<0.000000e+00> : vector<16x64xf32>
    %251 = tpu.matmul %248, %250, %cst_97 {dimension_numbers = #tpu.dot_dimension_numbers<[1], [0], [0], [1], [0, 0, 1, 1], [], []>} : vector<16x32xf32>, vector<32x64xf32>, vector<16x64xf32> -> vector<16x64xf32>
    %c0_98 = arith.constant 0 : index
    %c0_99 = arith.constant 0 : index
    %c0_100 = arith.constant 0 : index
    %252 = vector.load %arg15[%c0_98, %c0_99, %c0_100] : memref<2x1x64xf32, #tpu.memory_space<vmem>>, vector<1x1x64xf32>
    %253 = vector.shape_cast %252 : vector<1x1x64xf32> to vector<1x64xf32>
    %254 = vector.broadcast %253 : vector<1x64xf32> to vector<16x64xf32>
    %255 = arith.addf %251, %254 : vector<16x64xf32>
    %cst_101 = arith.constant 5.000000e-01 : f32
    %256 = vector.broadcast %cst_101 : f32 to vector<16x64xf32>
    %257 = arith.mulf %256, %255 : vector<16x64xf32>
    %cst_102 = arith.constant 0.707106769 : f32
    %258 = vector.broadcast %cst_102 : f32 to vector<16x64xf32>
    %259 = arith.mulf %255, %258 : vector<16x64xf32>
    %cst_103 = arith.constant 0.000000e+00 : f32
    %260 = vector.broadcast %cst_103 : f32 to vector<16x64xf32>
    %261 = arith.cmpf olt, %259, %260 : vector<16x64xf32>
    %cst_104 = arith.constant 0.000000e+00 : f32
    %262 = vector.broadcast %cst_104 : f32 to vector<16x64xf32>
    %263 = arith.subf %262, %259 : vector<16x64xf32>
    %264 = arith.select %261, %263, %259 : vector<16x64xi1>, vector<16x64xf32>
    %cst_105 = arith.constant 0.327591091 : f32
    %265 = vector.broadcast %cst_105 : f32 to vector<16x64xf32>
    %266 = arith.mulf %265, %264 : vector<16x64xf32>
    %cst_106 = arith.constant 1.000000e+00 : f32
    %267 = vector.broadcast %cst_106 : f32 to vector<16x64xf32>
    %268 = arith.addf %267, %266 : vector<16x64xf32>
    %cst_107 = arith.constant 1.000000e+00 : f32
    %269 = vector.broadcast %cst_107 : f32 to vector<16x64xf32>
    %270 = arith.divf %269, %268 : vector<16x64xf32>
    %cst_108 = arith.constant 1.06140542 : f32
    %271 = vector.broadcast %cst_108 : f32 to vector<16x64xf32>
    %272 = arith.mulf %271, %270 : vector<16x64xf32>
    %cst_109 = arith.constant -1.45315206 : f32
    %273 = vector.broadcast %cst_109 : f32 to vector<16x64xf32>
    %274 = arith.addf %272, %273 : vector<16x64xf32>
    %275 = arith.mulf %274, %270 : vector<16x64xf32>
    %cst_110 = arith.constant 1.42141378 : f32
    %276 = vector.broadcast %cst_110 : f32 to vector<16x64xf32>
    %277 = arith.addf %275, %276 : vector<16x64xf32>
    %278 = arith.mulf %277, %270 : vector<16x64xf32>
    %cst_111 = arith.constant -0.284496725 : f32
    %279 = vector.broadcast %cst_111 : f32 to vector<16x64xf32>
    %280 = arith.addf %278, %279 : vector<16x64xf32>
    %281 = arith.mulf %280, %270 : vector<16x64xf32>
    %cst_112 = arith.constant 0.254829586 : f32
    %282 = vector.broadcast %cst_112 : f32 to vector<16x64xf32>
    %283 = arith.addf %281, %282 : vector<16x64xf32>
    %284 = arith.mulf %283, %270 : vector<16x64xf32>
    %cst_113 = arith.constant 0.000000e+00 : f32
    %285 = vector.broadcast %cst_113 : f32 to vector<16x64xf32>
    %286 = arith.subf %285, %264 : vector<16x64xf32>
    %287 = arith.mulf %286, %264 : vector<16x64xf32>
    %288 = math.exp %287 : vector<16x64xf32>
    %289 = arith.mulf %284, %288 : vector<16x64xf32>
    %cst_114 = arith.constant 1.000000e+00 : f32
    %290 = vector.broadcast %cst_114 : f32 to vector<16x64xf32>
    %291 = arith.subf %290, %289 : vector<16x64xf32>
    %cst_115 = arith.constant 0.000000e+00 : f32
    %292 = vector.broadcast %cst_115 : f32 to vector<16x64xf32>
    %293 = arith.cmpf olt, %259, %292 : vector<16x64xf32>
    %cst_116 = arith.constant 0.000000e+00 : f32
    %294 = vector.broadcast %cst_116 : f32 to vector<16x64xf32>
    %295 = arith.subf %294, %291 : vector<16x64xf32>
    %296 = arith.select %293, %295, %291 : vector<16x64xi1>, vector<16x64xf32>
    %cst_117 = arith.constant 1.000000e+00 : f32
    %297 = vector.broadcast %cst_117 : f32 to vector<16x64xf32>
    %298 = arith.addf %297, %296 : vector<16x64xf32>
    %299 = arith.mulf %257, %298 : vector<16x64xf32>
    %c0_118 = arith.constant 0 : index
    %c0_119 = arith.constant 0 : index
    %c0_120 = arith.constant 0 : index
    %300 = vector.load %arg16[%c0_118, %c0_119, %c0_120] : memref<2x64x32xf32, #tpu.memory_space<vmem>>, vector<1x64x32xf32>
    %301 = vector.shape_cast %300 : vector<1x64x32xf32> to vector<64x32xf32>
    %cst_121 = arith.constant dense<0.000000e+00> : vector<16x32xf32>
    %302 = tpu.matmul %299, %301, %cst_121 {dimension_numbers = #tpu.dot_dimension_numbers<[1], [0], [0], [1], [0, 0, 1, 1], [], []>} : vector<16x64xf32>, vector<64x32xf32>, vector<16x32xf32> -> vector<16x32xf32>
    %303 = arith.addf %222, %302 : vector<16x32xf32>
    %c0_122 = arith.constant 0 : index
    %c0_123 = arith.constant 0 : index
    %c0_124 = arith.constant 0 : index
    %304 = vector.load %arg17[%c0_122, %c0_123, %c0_124] : memref<2x1x32xf32, #tpu.memory_space<vmem>>, vector<1x1x32xf32>
    %305 = vector.shape_cast %304 : vector<1x1x32xf32> to vector<1x32xf32>
    %306 = vector.broadcast %305 : vector<1x32xf32> to vector<16x32xf32>
    %307 = arith.addf %303, %306 : vector<16x32xf32>
    %c1 = arith.constant 1 : index
    %c0_125 = arith.constant 0 : index
    %c0_126 = arith.constant 0 : index
    %308 = vector.load %arg2[%c1, %c0_125, %c0_126] : memref<2x1x32xf32, #tpu.memory_space<vmem>>, vector<1x1x32xf32>
    %309 = vector.shape_cast %308 : vector<1x1x32xf32> to vector<1x32xf32>
    %c1_127 = arith.constant 1 : index
    %c0_128 = arith.constant 0 : index
    %c0_129 = arith.constant 0 : index
    %310 = vector.load %arg3[%c1_127, %c0_128, %c0_129] : memref<2x1x32xf32, #tpu.memory_space<vmem>>, vector<1x1x32xf32>
    %311 = vector.shape_cast %310 : vector<1x1x32xf32> to vector<1x32xf32>
    %cst_130 = arith.constant dense<0.000000e+00> : vector<16xf32>
    %312 = vector.multi_reduction <add>, %307, %cst_130 [1] : vector<16x32xf32> to vector<16xf32>
    %313 = vector.shape_cast %312 : vector<16xf32> to vector<16x1xf32>
    %cst_131 = arith.constant 3.200000e+01 : f32
    %314 = vector.broadcast %cst_131 : f32 to vector<16x1xf32>
    %315 = arith.divf %313, %314 : vector<16x1xf32>
    %316 = vector.broadcast %315 : vector<16x1xf32> to vector<16x32xf32>
    %317 = arith.subf %307, %316 : vector<16x32xf32>
    %318 = arith.mulf %317, %317 : vector<16x32xf32>
    %cst_132 = arith.constant dense<0.000000e+00> : vector<16xf32>
    %319 = vector.multi_reduction <add>, %318, %cst_132 [1] : vector<16x32xf32> to vector<16xf32>
    %320 = vector.shape_cast %319 : vector<16xf32> to vector<16x1xf32>
    %cst_133 = arith.constant 3.200000e+01 : f32
    %321 = vector.broadcast %cst_133 : f32 to vector<16x1xf32>
    %322 = arith.divf %320, %321 : vector<16x1xf32>
    %323 = vector.broadcast %315 : vector<16x1xf32> to vector<16x32xf32>
    %324 = arith.subf %307, %323 : vector<16x32xf32>
    %cst_134 = arith.constant 9.99999974E-6 : f32
    %325 = vector.broadcast %cst_134 : f32 to vector<16x1xf32>
    %326 = arith.addf %322, %325 : vector<16x1xf32>
    %327 = math.rsqrt %326 : vector<16x1xf32>
    %328 = vector.broadcast %327 : vector<16x1xf32> to vector<16x32xf32>
    %329 = arith.mulf %324, %328 : vector<16x32xf32>
    %330 = vector.broadcast %309 : vector<1x32xf32> to vector<16x32xf32>
    %331 = arith.mulf %329, %330 : vector<16x32xf32>
    %332 = vector.broadcast %311 : vector<1x32xf32> to vector<16x32xf32>
    %333 = arith.addf %331, %332 : vector<16x32xf32>
    %c1_135 = arith.constant 1 : index
    %c0_136 = arith.constant 0 : index
    %c0_137 = arith.constant 0 : index
    %c0_138 = arith.constant 0 : index
    %334 = vector.load %arg4[%c1_135, %c0_136, %c0_137, %c0_138] : memref<2x4x32x8xf32, #tpu.memory_space<vmem>>, vector<1x4x32x8xf32>
    %335 = vector.shape_cast %334 : vector<1x4x32x8xf32> to vector<4x32x8xf32>
    %c1_139 = arith.constant 1 : index
    %c0_140 = arith.constant 0 : index
    %c0_141 = arith.constant 0 : index
    %c0_142 = arith.constant 0 : index
    %336 = vector.load %arg6[%c1_139, %c0_140, %c0_141, %c0_142] : memref<2x4x32x8xf32, #tpu.memory_space<vmem>>, vector<1x4x32x8xf32>
    %337 = vector.shape_cast %336 : vector<1x4x32x8xf32> to vector<4x32x8xf32>
    %c1_143 = arith.constant 1 : index
    %c0_144 = arith.constant 0 : index
    %c0_145 = arith.constant 0 : index
    %c0_146 = arith.constant 0 : index
    %338 = vector.load %arg8[%c1_143, %c0_144, %c0_145, %c0_146] : memref<2x4x32x8xf32, #tpu.memory_space<vmem>>, vector<1x4x32x8xf32>
    %339 = vector.shape_cast %338 : vector<1x4x32x8xf32> to vector<4x32x8xf32>
    %c1_147 = arith.constant 1 : index
    %c0_148 = arith.constant 0 : index
    %c0_149 = arith.constant 0 : index
    %c0_150 = arith.constant 0 : index
    %340 = vector.load %arg10[%c1_147, %c0_148, %c0_149, %c0_150] : memref<2x4x8x32xf32, #tpu.memory_space<vmem>>, vector<1x4x8x32xf32>
    %341 = vector.shape_cast %340 : vector<1x4x8x32xf32> to vector<4x8x32xf32>
    %c1_151 = arith.constant 1 : index
    %c0_152 = arith.constant 0 : index
    %c0_153 = arith.constant 0 : index
    %c0_154 = arith.constant 0 : index
    %342 = vector.load %arg5[%c1_151, %c0_152, %c0_153, %c0_154] : memref<2x4x1x8xf32, #tpu.memory_space<vmem>>, vector<1x4x1x8xf32>
    %343 = vector.shape_cast %342 : vector<1x4x1x8xf32> to vector<4x1x8xf32>
    %c1_155 = arith.constant 1 : index
    %c0_156 = arith.constant 0 : index
    %c0_157 = arith.constant 0 : index
    %c0_158 = arith.constant 0 : index
    %344 = vector.load %arg7[%c1_155, %c0_156, %c0_157, %c0_158] : memref<2x4x1x8xf32, #tpu.memory_space<vmem>>, vector<1x4x1x8xf32>
    %345 = vector.shape_cast %344 : vector<1x4x1x8xf32> to vector<4x1x8xf32>
    %c1_159 = arith.constant 1 : index
    %c0_160 = arith.constant 0 : index
    %c0_161 = arith.constant 0 : index
    %c0_162 = arith.constant 0 : index
    %346 = vector.load %arg9[%c1_159, %c0_160, %c0_161, %c0_162] : memref<2x4x1x8xf32, #tpu.memory_space<vmem>>, vector<1x4x1x8xf32>
    %347 = vector.shape_cast %346 : vector<1x4x1x8xf32> to vector<4x1x8xf32>
    %cst_163 = arith.constant 0.000000e+00 : f32
    %348 = vector.broadcast %cst_163 : f32 to vector<16x32xf32>
    %349 = vector.extract_strided_slice %335 {offsets = [0, 0, 0], sizes = [1, 32, 8], strides = [1, 1, 1]} : vector<4x32x8xf32> to vector<1x32x8xf32>
    %350 = vector.shape_cast %349 : vector<1x32x8xf32> to vector<32x8xf32>
    %cst_164 = arith.constant dense<0.000000e+00> : vector<16x8xf32>
    %351 = tpu.matmul %333, %350, %cst_164 {dimension_numbers = #tpu.dot_dimension_numbers<[1], [0], [0], [1], [0, 0, 1, 1], [], []>} : vector<16x32xf32>, vector<32x8xf32>, vector<16x8xf32> -> vector<16x8xf32>
    %352 = vector.extract_strided_slice %343 {offsets = [0, 0, 0], sizes = [1, 1, 8], strides = [1, 1, 1]} : vector<4x1x8xf32> to vector<1x1x8xf32>
    %353 = vector.shape_cast %352 : vector<1x1x8xf32> to vector<1x8xf32>
    %354 = vector.broadcast %353 : vector<1x8xf32> to vector<16x8xf32>
    %355 = arith.addf %351, %354 : vector<16x8xf32>
    %356 = vector.shape_cast %355 : vector<16x8xf32> to vector<2x8x8xf32>
    %357 = vector.extract_strided_slice %337 {offsets = [0, 0, 0], sizes = [1, 32, 8], strides = [1, 1, 1]} : vector<4x32x8xf32> to vector<1x32x8xf32>
    %358 = vector.shape_cast %357 : vector<1x32x8xf32> to vector<32x8xf32>
    %cst_165 = arith.constant dense<0.000000e+00> : vector<16x8xf32>
    %359 = tpu.matmul %333, %358, %cst_165 {dimension_numbers = #tpu.dot_dimension_numbers<[1], [0], [0], [1], [0, 0, 1, 1], [], []>} : vector<16x32xf32>, vector<32x8xf32>, vector<16x8xf32> -> vector<16x8xf32>
    %360 = vector.extract_strided_slice %345 {offsets = [0, 0, 0], sizes = [1, 1, 8], strides = [1, 1, 1]} : vector<4x1x8xf32> to vector<1x1x8xf32>
    %361 = vector.shape_cast %360 : vector<1x1x8xf32> to vector<1x8xf32>
    %362 = vector.broadcast %361 : vector<1x8xf32> to vector<16x8xf32>
    %363 = arith.addf %359, %362 : vector<16x8xf32>
    %364 = vector.shape_cast %363 : vector<16x8xf32> to vector<2x8x8xf32>
    %365 = vector.extract_strided_slice %339 {offsets = [0, 0, 0], sizes = [1, 32, 8], strides = [1, 1, 1]} : vector<4x32x8xf32> to vector<1x32x8xf32>
    %366 = vector.shape_cast %365 : vector<1x32x8xf32> to vector<32x8xf32>
    %cst_166 = arith.constant dense<0.000000e+00> : vector<16x8xf32>
    %367 = tpu.matmul %333, %366, %cst_166 {dimension_numbers = #tpu.dot_dimension_numbers<[1], [0], [0], [1], [0, 0, 1, 1], [], []>} : vector<16x32xf32>, vector<32x8xf32>, vector<16x8xf32> -> vector<16x8xf32>
    %368 = vector.extract_strided_slice %347 {offsets = [0, 0, 0], sizes = [1, 1, 8], strides = [1, 1, 1]} : vector<4x1x8xf32> to vector<1x1x8xf32>
    %369 = vector.shape_cast %368 : vector<1x1x8xf32> to vector<1x8xf32>
    %370 = vector.broadcast %369 : vector<1x8xf32> to vector<16x8xf32>
    %371 = arith.addf %367, %370 : vector<16x8xf32>
    %372 = vector.shape_cast %371 : vector<16x8xf32> to vector<2x8x8xf32>
    "tpu.trace_start"() <{level = 10 : i32, message = "bqd,bkd->bqk"}> : () -> ()
    %cst_167 = arith.constant dense<0.000000e+00> : vector<2x8x8xf32>
    %373 = tpu.matmul %356, %364, %cst_167 {dimension_numbers = #tpu.dot_dimension_numbers<[2], [2], [1], [1], [0, 0, 0, 1, 1, 1], [0], [0]>} : vector<2x8x8xf32>, vector<2x8x8xf32>, vector<2x8x8xf32> -> vector<2x8x8xf32>
    "tpu.trace_stop"() : () -> ()
    %cst_168 = arith.constant 0.353553385 : f32
    %374 = vector.broadcast %cst_168 : f32 to vector<2x8x8xf32>
    %375 = arith.mulf %373, %374 : vector<2x8x8xf32>
    %cst_169 = arith.constant dense<0xFF800000> : vector<2x8xf32>
    %376 = vector.multi_reduction <maximumf>, %375, %cst_169 [2] : vector<2x8x8xf32> to vector<2x8xf32>
    %377 = vector.shape_cast %376 : vector<2x8xf32> to vector<2x8x1xf32>
    %378 = vector.broadcast %377 : vector<2x8x1xf32> to vector<2x8x8xf32>
    %379 = arith.subf %375, %378 : vector<2x8x8xf32>
    %380 = math.exp %379 : vector<2x8x8xf32>
    %cst_170 = arith.constant dense<0.000000e+00> : vector<2x8xf32>
    %381 = vector.multi_reduction <add>, %380, %cst_170 [2] : vector<2x8x8xf32> to vector<2x8xf32>
    %382 = vector.shape_cast %381 : vector<2x8xf32> to vector<2x8x1xf32>
    %383 = tpu.reciprocal %382 {approx = true} : vector<2x8x1xf32> -> vector<2x8x1xf32>
    %384 = vector.broadcast %383 : vector<2x8x1xf32> to vector<2x8x8xf32>
    %385 = arith.mulf %380, %384 : vector<2x8x8xf32>
    "tpu.trace_start"() <{level = 10 : i32, message = "bqk,bkd->bqd"}> : () -> ()
    %cst_171 = arith.constant dense<0.000000e+00> : vector<2x8x8xf32>
    %386 = tpu.matmul %385, %372, %cst_171 {dimension_numbers = #tpu.dot_dimension_numbers<[2], [1], [1], [2], [0, 0, 0, 1, 1, 2], [0], [0]>} : vector<2x8x8xf32>, vector<2x8x8xf32>, vector<2x8x8xf32> -> vector<2x8x8xf32>
    "tpu.trace_stop"() : () -> ()
    %387 = vector.shape_cast %386 : vector<2x8x8xf32> to vector<16x8xf32>
    %388 = vector.extract_strided_slice %341 {offsets = [0, 0, 0], sizes = [1, 8, 32], strides = [1, 1, 1]} : vector<4x8x32xf32> to vector<1x8x32xf32>
    %389 = vector.shape_cast %388 : vector<1x8x32xf32> to vector<8x32xf32>
    %cst_172 = arith.constant dense<0.000000e+00> : vector<16x32xf32>
    %390 = tpu.matmul %387, %389, %cst_172 {dimension_numbers = #tpu.dot_dimension_numbers<[1], [0], [0], [1], [0, 0, 1, 1], [], []>} : vector<16x8xf32>, vector<8x32xf32>, vector<16x32xf32> -> vector<16x32xf32>
    %391 = arith.addf %348, %390 : vector<16x32xf32>
    %392 = vector.extract_strided_slice %335 {offsets = [1, 0, 0], sizes = [1, 32, 8], strides = [1, 1, 1]} : vector<4x32x8xf32> to vector<1x32x8xf32>
    %393 = vector.shape_cast %392 : vector<1x32x8xf32> to vector<32x8xf32>
    %cst_173 = arith.constant dense<0.000000e+00> : vector<16x8xf32>
    %394 = tpu.matmul %333, %393, %cst_173 {dimension_numbers = #tpu.dot_dimension_numbers<[1], [0], [0], [1], [0, 0, 1, 1], [], []>} : vector<16x32xf32>, vector<32x8xf32>, vector<16x8xf32> -> vector<16x8xf32>
    %395 = vector.extract_strided_slice %343 {offsets = [1, 0, 0], sizes = [1, 1, 8], strides = [1, 1, 1]} : vector<4x1x8xf32> to vector<1x1x8xf32>
    %396 = vector.shape_cast %395 : vector<1x1x8xf32> to vector<1x8xf32>
    %397 = vector.broadcast %396 : vector<1x8xf32> to vector<16x8xf32>
    %398 = arith.addf %394, %397 : vector<16x8xf32>
    %399 = vector.shape_cast %398 : vector<16x8xf32> to vector<2x8x8xf32>
    %400 = vector.extract_strided_slice %337 {offsets = [1, 0, 0], sizes = [1, 32, 8], strides = [1, 1, 1]} : vector<4x32x8xf32> to vector<1x32x8xf32>
    %401 = vector.shape_cast %400 : vector<1x32x8xf32> to vector<32x8xf32>
    %cst_174 = arith.constant dense<0.000000e+00> : vector<16x8xf32>
    %402 = tpu.matmul %333, %401, %cst_174 {dimension_numbers = #tpu.dot_dimension_numbers<[1], [0], [0], [1], [0, 0, 1, 1], [], []>} : vector<16x32xf32>, vector<32x8xf32>, vector<16x8xf32> -> vector<16x8xf32>
    %403 = vector.extract_strided_slice %345 {offsets = [1, 0, 0], sizes = [1, 1, 8], strides = [1, 1, 1]} : vector<4x1x8xf32> to vector<1x1x8xf32>
    %404 = vector.shape_cast %403 : vector<1x1x8xf32> to vector<1x8xf32>
    %405 = vector.broadcast %404 : vector<1x8xf32> to vector<16x8xf32>
    %406 = arith.addf %402, %405 : vector<16x8xf32>
    %407 = vector.shape_cast %406 : vector<16x8xf32> to vector<2x8x8xf32>
    %408 = vector.extract_strided_slice %339 {offsets = [1, 0, 0], sizes = [1, 32, 8], strides = [1, 1, 1]} : vector<4x32x8xf32> to vector<1x32x8xf32>
    %409 = vector.shape_cast %408 : vector<1x32x8xf32> to vector<32x8xf32>
    %cst_175 = arith.constant dense<0.000000e+00> : vector<16x8xf32>
    %410 = tpu.matmul %333, %409, %cst_175 {dimension_numbers = #tpu.dot_dimension_numbers<[1], [0], [0], [1], [0, 0, 1, 1], [], []>} : vector<16x32xf32>, vector<32x8xf32>, vector<16x8xf32> -> vector<16x8xf32>
    %411 = vector.extract_strided_slice %347 {offsets = [1, 0, 0], sizes = [1, 1, 8], strides = [1, 1, 1]} : vector<4x1x8xf32> to vector<1x1x8xf32>
    %412 = vector.shape_cast %411 : vector<1x1x8xf32> to vector<1x8xf32>
    %413 = vector.broadcast %412 : vector<1x8xf32> to vector<16x8xf32>
    %414 = arith.addf %410, %413 : vector<16x8xf32>
    %415 = vector.shape_cast %414 : vector<16x8xf32> to vector<2x8x8xf32>
    "tpu.trace_start"() <{level = 10 : i32, message = "bqd,bkd->bqk"}> : () -> ()
    %cst_176 = arith.constant dense<0.000000e+00> : vector<2x8x8xf32>
    %416 = tpu.matmul %399, %407, %cst_176 {dimension_numbers = #tpu.dot_dimension_numbers<[2], [2], [1], [1], [0, 0, 0, 1, 1, 1], [0], [0]>} : vector<2x8x8xf32>, vector<2x8x8xf32>, vector<2x8x8xf32> -> vector<2x8x8xf32>
    "tpu.trace_stop"() : () -> ()
    %cst_177 = arith.constant 0.353553385 : f32
    %417 = vector.broadcast %cst_177 : f32 to vector<2x8x8xf32>
    %418 = arith.mulf %416, %417 : vector<2x8x8xf32>
    %cst_178 = arith.constant dense<0xFF800000> : vector<2x8xf32>
    %419 = vector.multi_reduction <maximumf>, %418, %cst_178 [2] : vector<2x8x8xf32> to vector<2x8xf32>
    %420 = vector.shape_cast %419 : vector<2x8xf32> to vector<2x8x1xf32>
    %421 = vector.broadcast %420 : vector<2x8x1xf32> to vector<2x8x8xf32>
    %422 = arith.subf %418, %421 : vector<2x8x8xf32>
    %423 = math.exp %422 : vector<2x8x8xf32>
    %cst_179 = arith.constant dense<0.000000e+00> : vector<2x8xf32>
    %424 = vector.multi_reduction <add>, %423, %cst_179 [2] : vector<2x8x8xf32> to vector<2x8xf32>
    %425 = vector.shape_cast %424 : vector<2x8xf32> to vector<2x8x1xf32>
    %426 = tpu.reciprocal %425 {approx = true} : vector<2x8x1xf32> -> vector<2x8x1xf32>
    %427 = vector.broadcast %426 : vector<2x8x1xf32> to vector<2x8x8xf32>
    %428 = arith.mulf %423, %427 : vector<2x8x8xf32>
    "tpu.trace_start"() <{level = 10 : i32, message = "bqk,bkd->bqd"}> : () -> ()
    %cst_180 = arith.constant dense<0.000000e+00> : vector<2x8x8xf32>
    %429 = tpu.matmul %428, %415, %cst_180 {dimension_numbers = #tpu.dot_dimension_numbers<[2], [1], [1], [2], [0, 0, 0, 1, 1, 2], [0], [0]>} : vector<2x8x8xf32>, vector<2x8x8xf32>, vector<2x8x8xf32> -> vector<2x8x8xf32>
    "tpu.trace_stop"() : () -> ()
    %430 = vector.shape_cast %429 : vector<2x8x8xf32> to vector<16x8xf32>
    %431 = vector.extract_strided_slice %341 {offsets = [1, 0, 0], sizes = [1, 8, 32], strides = [1, 1, 1]} : vector<4x8x32xf32> to vector<1x8x32xf32>
    %432 = vector.shape_cast %431 : vector<1x8x32xf32> to vector<8x32xf32>
    %cst_181 = arith.constant dense<0.000000e+00> : vector<16x32xf32>
    %433 = tpu.matmul %430, %432, %cst_181 {dimension_numbers = #tpu.dot_dimension_numbers<[1], [0], [0], [1], [0, 0, 1, 1], [], []>} : vector<16x8xf32>, vector<8x32xf32>, vector<16x32xf32> -> vector<16x32xf32>
    %434 = arith.addf %391, %433 : vector<16x32xf32>
    %435 = vector.extract_strided_slice %335 {offsets = [2, 0, 0], sizes = [1, 32, 8], strides = [1, 1, 1]} : vector<4x32x8xf32> to vector<1x32x8xf32>
    %436 = vector.shape_cast %435 : vector<1x32x8xf32> to vector<32x8xf32>
    %cst_182 = arith.constant dense<0.000000e+00> : vector<16x8xf32>
    %437 = tpu.matmul %333, %436, %cst_182 {dimension_numbers = #tpu.dot_dimension_numbers<[1], [0], [0], [1], [0, 0, 1, 1], [], []>} : vector<16x32xf32>, vector<32x8xf32>, vector<16x8xf32> -> vector<16x8xf32>
    %438 = vector.extract_strided_slice %343 {offsets = [2, 0, 0], sizes = [1, 1, 8], strides = [1, 1, 1]} : vector<4x1x8xf32> to vector<1x1x8xf32>
    %439 = vector.shape_cast %438 : vector<1x1x8xf32> to vector<1x8xf32>
    %440 = vector.broadcast %439 : vector<1x8xf32> to vector<16x8xf32>
    %441 = arith.addf %437, %440 : vector<16x8xf32>
    %442 = vector.shape_cast %441 : vector<16x8xf32> to vector<2x8x8xf32>
    %443 = vector.extract_strided_slice %337 {offsets = [2, 0, 0], sizes = [1, 32, 8], strides = [1, 1, 1]} : vector<4x32x8xf32> to vector<1x32x8xf32>
    %444 = vector.shape_cast %443 : vector<1x32x8xf32> to vector<32x8xf32>
    %cst_183 = arith.constant dense<0.000000e+00> : vector<16x8xf32>
    %445 = tpu.matmul %333, %444, %cst_183 {dimension_numbers = #tpu.dot_dimension_numbers<[1], [0], [0], [1], [0, 0, 1, 1], [], []>} : vector<16x32xf32>, vector<32x8xf32>, vector<16x8xf32> -> vector<16x8xf32>
    %446 = vector.extract_strided_slice %345 {offsets = [2, 0, 0], sizes = [1, 1, 8], strides = [1, 1, 1]} : vector<4x1x8xf32> to vector<1x1x8xf32>
    %447 = vector.shape_cast %446 : vector<1x1x8xf32> to vector<1x8xf32>
    %448 = vector.broadcast %447 : vector<1x8xf32> to vector<16x8xf32>
    %449 = arith.addf %445, %448 : vector<16x8xf32>
    %450 = vector.shape_cast %449 : vector<16x8xf32> to vector<2x8x8xf32>
    %451 = vector.extract_strided_slice %339 {offsets = [2, 0, 0], sizes = [1, 32, 8], strides = [1, 1, 1]} : vector<4x32x8xf32> to vector<1x32x8xf32>
    %452 = vector.shape_cast %451 : vector<1x32x8xf32> to vector<32x8xf32>
    %cst_184 = arith.constant dense<0.000000e+00> : vector<16x8xf32>
    %453 = tpu.matmul %333, %452, %cst_184 {dimension_numbers = #tpu.dot_dimension_numbers<[1], [0], [0], [1], [0, 0, 1, 1], [], []>} : vector<16x32xf32>, vector<32x8xf32>, vector<16x8xf32> -> vector<16x8xf32>
    %454 = vector.extract_strided_slice %347 {offsets = [2, 0, 0], sizes = [1, 1, 8], strides = [1, 1, 1]} : vector<4x1x8xf32> to vector<1x1x8xf32>
    %455 = vector.shape_cast %454 : vector<1x1x8xf32> to vector<1x8xf32>
    %456 = vector.broadcast %455 : vector<1x8xf32> to vector<16x8xf32>
    %457 = arith.addf %453, %456 : vector<16x8xf32>
    %458 = vector.shape_cast %457 : vector<16x8xf32> to vector<2x8x8xf32>
    "tpu.trace_start"() <{level = 10 : i32, message = "bqd,bkd->bqk"}> : () -> ()
    %cst_185 = arith.constant dense<0.000000e+00> : vector<2x8x8xf32>
    %459 = tpu.matmul %442, %450, %cst_185 {dimension_numbers = #tpu.dot_dimension_numbers<[2], [2], [1], [1], [0, 0, 0, 1, 1, 1], [0], [0]>} : vector<2x8x8xf32>, vector<2x8x8xf32>, vector<2x8x8xf32> -> vector<2x8x8xf32>
    "tpu.trace_stop"() : () -> ()
    %cst_186 = arith.constant 0.353553385 : f32
    %460 = vector.broadcast %cst_186 : f32 to vector<2x8x8xf32>
    %461 = arith.mulf %459, %460 : vector<2x8x8xf32>
    %cst_187 = arith.constant dense<0xFF800000> : vector<2x8xf32>
    %462 = vector.multi_reduction <maximumf>, %461, %cst_187 [2] : vector<2x8x8xf32> to vector<2x8xf32>
    %463 = vector.shape_cast %462 : vector<2x8xf32> to vector<2x8x1xf32>
    %464 = vector.broadcast %463 : vector<2x8x1xf32> to vector<2x8x8xf32>
    %465 = arith.subf %461, %464 : vector<2x8x8xf32>
    %466 = math.exp %465 : vector<2x8x8xf32>
    %cst_188 = arith.constant dense<0.000000e+00> : vector<2x8xf32>
    %467 = vector.multi_reduction <add>, %466, %cst_188 [2] : vector<2x8x8xf32> to vector<2x8xf32>
    %468 = vector.shape_cast %467 : vector<2x8xf32> to vector<2x8x1xf32>
    %469 = tpu.reciprocal %468 {approx = true} : vector<2x8x1xf32> -> vector<2x8x1xf32>
    %470 = vector.broadcast %469 : vector<2x8x1xf32> to vector<2x8x8xf32>
    %471 = arith.mulf %466, %470 : vector<2x8x8xf32>
    "tpu.trace_start"() <{level = 10 : i32, message = "bqk,bkd->bqd"}> : () -> ()
    %cst_189 = arith.constant dense<0.000000e+00> : vector<2x8x8xf32>
    %472 = tpu.matmul %471, %458, %cst_189 {dimension_numbers = #tpu.dot_dimension_numbers<[2], [1], [1], [2], [0, 0, 0, 1, 1, 2], [0], [0]>} : vector<2x8x8xf32>, vector<2x8x8xf32>, vector<2x8x8xf32> -> vector<2x8x8xf32>
    "tpu.trace_stop"() : () -> ()
    %473 = vector.shape_cast %472 : vector<2x8x8xf32> to vector<16x8xf32>
    %474 = vector.extract_strided_slice %341 {offsets = [2, 0, 0], sizes = [1, 8, 32], strides = [1, 1, 1]} : vector<4x8x32xf32> to vector<1x8x32xf32>
    %475 = vector.shape_cast %474 : vector<1x8x32xf32> to vector<8x32xf32>
    %cst_190 = arith.constant dense<0.000000e+00> : vector<16x32xf32>
    %476 = tpu.matmul %473, %475, %cst_190 {dimension_numbers = #tpu.dot_dimension_numbers<[1], [0], [0], [1], [0, 0, 1, 1], [], []>} : vector<16x8xf32>, vector<8x32xf32>, vector<16x32xf32> -> vector<16x32xf32>
    %477 = arith.addf %434, %476 : vector<16x32xf32>
    %478 = vector.extract_strided_slice %335 {offsets = [3, 0, 0], sizes = [1, 32, 8], strides = [1, 1, 1]} : vector<4x32x8xf32> to vector<1x32x8xf32>
    %479 = vector.shape_cast %478 : vector<1x32x8xf32> to vector<32x8xf32>
    %cst_191 = arith.constant dense<0.000000e+00> : vector<16x8xf32>
    %480 = tpu.matmul %333, %479, %cst_191 {dimension_numbers = #tpu.dot_dimension_numbers<[1], [0], [0], [1], [0, 0, 1, 1], [], []>} : vector<16x32xf32>, vector<32x8xf32>, vector<16x8xf32> -> vector<16x8xf32>
    %481 = vector.extract_strided_slice %343 {offsets = [3, 0, 0], sizes = [1, 1, 8], strides = [1, 1, 1]} : vector<4x1x8xf32> to vector<1x1x8xf32>
    %482 = vector.shape_cast %481 : vector<1x1x8xf32> to vector<1x8xf32>
    %483 = vector.broadcast %482 : vector<1x8xf32> to vector<16x8xf32>
    %484 = arith.addf %480, %483 : vector<16x8xf32>
    %485 = vector.shape_cast %484 : vector<16x8xf32> to vector<2x8x8xf32>
    %486 = vector.extract_strided_slice %337 {offsets = [3, 0, 0], sizes = [1, 32, 8], strides = [1, 1, 1]} : vector<4x32x8xf32> to vector<1x32x8xf32>
    %487 = vector.shape_cast %486 : vector<1x32x8xf32> to vector<32x8xf32>
    %cst_192 = arith.constant dense<0.000000e+00> : vector<16x8xf32>
    %488 = tpu.matmul %333, %487, %cst_192 {dimension_numbers = #tpu.dot_dimension_numbers<[1], [0], [0], [1], [0, 0, 1, 1], [], []>} : vector<16x32xf32>, vector<32x8xf32>, vector<16x8xf32> -> vector<16x8xf32>
    %489 = vector.extract_strided_slice %345 {offsets = [3, 0, 0], sizes = [1, 1, 8], strides = [1, 1, 1]} : vector<4x1x8xf32> to vector<1x1x8xf32>
    %490 = vector.shape_cast %489 : vector<1x1x8xf32> to vector<1x8xf32>
    %491 = vector.broadcast %490 : vector<1x8xf32> to vector<16x8xf32>
    %492 = arith.addf %488, %491 : vector<16x8xf32>
    %493 = vector.shape_cast %492 : vector<16x8xf32> to vector<2x8x8xf32>
    %494 = vector.extract_strided_slice %339 {offsets = [3, 0, 0], sizes = [1, 32, 8], strides = [1, 1, 1]} : vector<4x32x8xf32> to vector<1x32x8xf32>
    %495 = vector.shape_cast %494 : vector<1x32x8xf32> to vector<32x8xf32>
    %cst_193 = arith.constant dense<0.000000e+00> : vector<16x8xf32>
    %496 = tpu.matmul %333, %495, %cst_193 {dimension_numbers = #tpu.dot_dimension_numbers<[1], [0], [0], [1], [0, 0, 1, 1], [], []>} : vector<16x32xf32>, vector<32x8xf32>, vector<16x8xf32> -> vector<16x8xf32>
    %497 = vector.extract_strided_slice %347 {offsets = [3, 0, 0], sizes = [1, 1, 8], strides = [1, 1, 1]} : vector<4x1x8xf32> to vector<1x1x8xf32>
    %498 = vector.shape_cast %497 : vector<1x1x8xf32> to vector<1x8xf32>
    %499 = vector.broadcast %498 : vector<1x8xf32> to vector<16x8xf32>
    %500 = arith.addf %496, %499 : vector<16x8xf32>
    %501 = vector.shape_cast %500 : vector<16x8xf32> to vector<2x8x8xf32>
    "tpu.trace_start"() <{level = 10 : i32, message = "bqd,bkd->bqk"}> : () -> ()
    %cst_194 = arith.constant dense<0.000000e+00> : vector<2x8x8xf32>
    %502 = tpu.matmul %485, %493, %cst_194 {dimension_numbers = #tpu.dot_dimension_numbers<[2], [2], [1], [1], [0, 0, 0, 1, 1, 1], [0], [0]>} : vector<2x8x8xf32>, vector<2x8x8xf32>, vector<2x8x8xf32> -> vector<2x8x8xf32>
    "tpu.trace_stop"() : () -> ()
    %cst_195 = arith.constant 0.353553385 : f32
    %503 = vector.broadcast %cst_195 : f32 to vector<2x8x8xf32>
    %504 = arith.mulf %502, %503 : vector<2x8x8xf32>
    %cst_196 = arith.constant dense<0xFF800000> : vector<2x8xf32>
    %505 = vector.multi_reduction <maximumf>, %504, %cst_196 [2] : vector<2x8x8xf32> to vector<2x8xf32>
    %506 = vector.shape_cast %505 : vector<2x8xf32> to vector<2x8x1xf32>
    %507 = vector.broadcast %506 : vector<2x8x1xf32> to vector<2x8x8xf32>
    %508 = arith.subf %504, %507 : vector<2x8x8xf32>
    %509 = math.exp %508 : vector<2x8x8xf32>
    %cst_197 = arith.constant dense<0.000000e+00> : vector<2x8xf32>
    %510 = vector.multi_reduction <add>, %509, %cst_197 [2] : vector<2x8x8xf32> to vector<2x8xf32>
    %511 = vector.shape_cast %510 : vector<2x8xf32> to vector<2x8x1xf32>
    %512 = tpu.reciprocal %511 {approx = true} : vector<2x8x1xf32> -> vector<2x8x1xf32>
    %513 = vector.broadcast %512 : vector<2x8x1xf32> to vector<2x8x8xf32>
    %514 = arith.mulf %509, %513 : vector<2x8x8xf32>
    "tpu.trace_start"() <{level = 10 : i32, message = "bqk,bkd->bqd"}> : () -> ()
    %cst_198 = arith.constant dense<0.000000e+00> : vector<2x8x8xf32>
    %515 = tpu.matmul %514, %501, %cst_198 {dimension_numbers = #tpu.dot_dimension_numbers<[2], [1], [1], [2], [0, 0, 0, 1, 1, 2], [0], [0]>} : vector<2x8x8xf32>, vector<2x8x8xf32>, vector<2x8x8xf32> -> vector<2x8x8xf32>
    "tpu.trace_stop"() : () -> ()
    %516 = vector.shape_cast %515 : vector<2x8x8xf32> to vector<16x8xf32>
    %517 = vector.extract_strided_slice %341 {offsets = [3, 0, 0], sizes = [1, 8, 32], strides = [1, 1, 1]} : vector<4x8x32xf32> to vector<1x8x32xf32>
    %518 = vector.shape_cast %517 : vector<1x8x32xf32> to vector<8x32xf32>
    %cst_199 = arith.constant dense<0.000000e+00> : vector<16x32xf32>
    %519 = tpu.matmul %516, %518, %cst_199 {dimension_numbers = #tpu.dot_dimension_numbers<[1], [0], [0], [1], [0, 0, 1, 1], [], []>} : vector<16x8xf32>, vector<8x32xf32>, vector<16x32xf32> -> vector<16x32xf32>
    %520 = arith.addf %477, %519 : vector<16x32xf32>
    %521 = arith.addf %307, %520 : vector<16x32xf32>
    %c1_200 = arith.constant 1 : index
    %c0_201 = arith.constant 0 : index
    %c0_202 = arith.constant 0 : index
    %522 = vector.load %arg11[%c1_200, %c0_201, %c0_202] : memref<2x1x32xf32, #tpu.memory_space<vmem>>, vector<1x1x32xf32>
    %523 = vector.shape_cast %522 : vector<1x1x32xf32> to vector<1x32xf32>
    %524 = vector.broadcast %523 : vector<1x32xf32> to vector<16x32xf32>
    %525 = arith.addf %521, %524 : vector<16x32xf32>
    %c1_203 = arith.constant 1 : index
    %c0_204 = arith.constant 0 : index
    %c0_205 = arith.constant 0 : index
    %526 = vector.load %arg12[%c1_203, %c0_204, %c0_205] : memref<2x1x32xf32, #tpu.memory_space<vmem>>, vector<1x1x32xf32>
    %527 = vector.shape_cast %526 : vector<1x1x32xf32> to vector<1x32xf32>
    %c1_206 = arith.constant 1 : index
    %c0_207 = arith.constant 0 : index
    %c0_208 = arith.constant 0 : index
    %528 = vector.load %arg13[%c1_206, %c0_207, %c0_208] : memref<2x1x32xf32, #tpu.memory_space<vmem>>, vector<1x1x32xf32>
    %529 = vector.shape_cast %528 : vector<1x1x32xf32> to vector<1x32xf32>
    %cst_209 = arith.constant dense<0.000000e+00> : vector<16xf32>
    %530 = vector.multi_reduction <add>, %525, %cst_209 [1] : vector<16x32xf32> to vector<16xf32>
    %531 = vector.shape_cast %530 : vector<16xf32> to vector<16x1xf32>
    %cst_210 = arith.constant 3.200000e+01 : f32
    %532 = vector.broadcast %cst_210 : f32 to vector<16x1xf32>
    %533 = arith.divf %531, %532 : vector<16x1xf32>
    %534 = vector.broadcast %533 : vector<16x1xf32> to vector<16x32xf32>
    %535 = arith.subf %525, %534 : vector<16x32xf32>
    %536 = arith.mulf %535, %535 : vector<16x32xf32>
    %cst_211 = arith.constant dense<0.000000e+00> : vector<16xf32>
    %537 = vector.multi_reduction <add>, %536, %cst_211 [1] : vector<16x32xf32> to vector<16xf32>
    %538 = vector.shape_cast %537 : vector<16xf32> to vector<16x1xf32>
    %cst_212 = arith.constant 3.200000e+01 : f32
    %539 = vector.broadcast %cst_212 : f32 to vector<16x1xf32>
    %540 = arith.divf %538, %539 : vector<16x1xf32>
    %541 = vector.broadcast %533 : vector<16x1xf32> to vector<16x32xf32>
    %542 = arith.subf %525, %541 : vector<16x32xf32>
    %cst_213 = arith.constant 9.99999974E-6 : f32
    %543 = vector.broadcast %cst_213 : f32 to vector<16x1xf32>
    %544 = arith.addf %540, %543 : vector<16x1xf32>
    %545 = math.rsqrt %544 : vector<16x1xf32>
    %546 = vector.broadcast %545 : vector<16x1xf32> to vector<16x32xf32>
    %547 = arith.mulf %542, %546 : vector<16x32xf32>
    %548 = vector.broadcast %527 : vector<1x32xf32> to vector<16x32xf32>
    %549 = arith.mulf %547, %548 : vector<16x32xf32>
    %550 = vector.broadcast %529 : vector<1x32xf32> to vector<16x32xf32>
    %551 = arith.addf %549, %550 : vector<16x32xf32>
    %c1_214 = arith.constant 1 : index
    %c0_215 = arith.constant 0 : index
    %c0_216 = arith.constant 0 : index
    %552 = vector.load %arg14[%c1_214, %c0_215, %c0_216] : memref<2x32x64xf32, #tpu.memory_space<vmem>>, vector<1x32x64xf32>
    %553 = vector.shape_cast %552 : vector<1x32x64xf32> to vector<32x64xf32>
    %cst_217 = arith.constant dense<0.000000e+00> : vector<16x64xf32>
    %554 = tpu.matmul %551, %553, %cst_217 {dimension_numbers = #tpu.dot_dimension_numbers<[1], [0], [0], [1], [0, 0, 1, 1], [], []>} : vector<16x32xf32>, vector<32x64xf32>, vector<16x64xf32> -> vector<16x64xf32>
    %c1_218 = arith.constant 1 : index
    %c0_219 = arith.constant 0 : index
    %c0_220 = arith.constant 0 : index
    %555 = vector.load %arg15[%c1_218, %c0_219, %c0_220] : memref<2x1x64xf32, #tpu.memory_space<vmem>>, vector<1x1x64xf32>
    %556 = vector.shape_cast %555 : vector<1x1x64xf32> to vector<1x64xf32>
    %557 = vector.broadcast %556 : vector<1x64xf32> to vector<16x64xf32>
    %558 = arith.addf %554, %557 : vector<16x64xf32>
    %cst_221 = arith.constant 5.000000e-01 : f32
    %559 = vector.broadcast %cst_221 : f32 to vector<16x64xf32>
    %560 = arith.mulf %559, %558 : vector<16x64xf32>
    %cst_222 = arith.constant 0.707106769 : f32
    %561 = vector.broadcast %cst_222 : f32 to vector<16x64xf32>
    %562 = arith.mulf %558, %561 : vector<16x64xf32>
    %cst_223 = arith.constant 0.000000e+00 : f32
    %563 = vector.broadcast %cst_223 : f32 to vector<16x64xf32>
    %564 = arith.cmpf olt, %562, %563 : vector<16x64xf32>
    %cst_224 = arith.constant 0.000000e+00 : f32
    %565 = vector.broadcast %cst_224 : f32 to vector<16x64xf32>
    %566 = arith.subf %565, %562 : vector<16x64xf32>
    %567 = arith.select %564, %566, %562 : vector<16x64xi1>, vector<16x64xf32>
    %cst_225 = arith.constant 0.327591091 : f32
    %568 = vector.broadcast %cst_225 : f32 to vector<16x64xf32>
    %569 = arith.mulf %568, %567 : vector<16x64xf32>
    %cst_226 = arith.constant 1.000000e+00 : f32
    %570 = vector.broadcast %cst_226 : f32 to vector<16x64xf32>
    %571 = arith.addf %570, %569 : vector<16x64xf32>
    %cst_227 = arith.constant 1.000000e+00 : f32
    %572 = vector.broadcast %cst_227 : f32 to vector<16x64xf32>
    %573 = arith.divf %572, %571 : vector<16x64xf32>
    %cst_228 = arith.constant 1.06140542 : f32
    %574 = vector.broadcast %cst_228 : f32 to vector<16x64xf32>
    %575 = arith.mulf %574, %573 : vector<16x64xf32>
    %cst_229 = arith.constant -1.45315206 : f32
    %576 = vector.broadcast %cst_229 : f32 to vector<16x64xf32>
    %577 = arith.addf %575, %576 : vector<16x64xf32>
    %578 = arith.mulf %577, %573 : vector<16x64xf32>
    %cst_230 = arith.constant 1.42141378 : f32
    %579 = vector.broadcast %cst_230 : f32 to vector<16x64xf32>
    %580 = arith.addf %578, %579 : vector<16x64xf32>
    %581 = arith.mulf %580, %573 : vector<16x64xf32>
    %cst_231 = arith.constant -0.284496725 : f32
    %582 = vector.broadcast %cst_231 : f32 to vector<16x64xf32>
    %583 = arith.addf %581, %582 : vector<16x64xf32>
    %584 = arith.mulf %583, %573 : vector<16x64xf32>
    %cst_232 = arith.constant 0.254829586 : f32
    %585 = vector.broadcast %cst_232 : f32 to vector<16x64xf32>
    %586 = arith.addf %584, %585 : vector<16x64xf32>
    %587 = arith.mulf %586, %573 : vector<16x64xf32>
    %cst_233 = arith.constant 0.000000e+00 : f32
    %588 = vector.broadcast %cst_233 : f32 to vector<16x64xf32>
    %589 = arith.subf %588, %567 : vector<16x64xf32>
    %590 = arith.mulf %589, %567 : vector<16x64xf32>
    %591 = math.exp %590 : vector<16x64xf32>
    %592 = arith.mulf %587, %591 : vector<16x64xf32>
    %cst_234 = arith.constant 1.000000e+00 : f32
    %593 = vector.broadcast %cst_234 : f32 to vector<16x64xf32>
    %594 = arith.subf %593, %592 : vector<16x64xf32>
    %cst_235 = arith.constant 0.000000e+00 : f32
    %595 = vector.broadcast %cst_235 : f32 to vector<16x64xf32>
    %596 = arith.cmpf olt, %562, %595 : vector<16x64xf32>
    %cst_236 = arith.constant 0.000000e+00 : f32
    %597 = vector.broadcast %cst_236 : f32 to vector<16x64xf32>
    %598 = arith.subf %597, %594 : vector<16x64xf32>
    %599 = arith.select %596, %598, %594 : vector<16x64xi1>, vector<16x64xf32>
    %cst_237 = arith.constant 1.000000e+00 : f32
    %600 = vector.broadcast %cst_237 : f32 to vector<16x64xf32>
    %601 = arith.addf %600, %599 : vector<16x64xf32>
    %602 = arith.mulf %560, %601 : vector<16x64xf32>
    %c1_238 = arith.constant 1 : index
    %c0_239 = arith.constant 0 : index
    %c0_240 = arith.constant 0 : index
    %603 = vector.load %arg16[%c1_238, %c0_239, %c0_240] : memref<2x64x32xf32, #tpu.memory_space<vmem>>, vector<1x64x32xf32>
    %604 = vector.shape_cast %603 : vector<1x64x32xf32> to vector<64x32xf32>
    %cst_241 = arith.constant dense<0.000000e+00> : vector<16x32xf32>
    %605 = tpu.matmul %602, %604, %cst_241 {dimension_numbers = #tpu.dot_dimension_numbers<[1], [0], [0], [1], [0, 0, 1, 1], [], []>} : vector<16x64xf32>, vector<64x32xf32>, vector<16x32xf32> -> vector<16x32xf32>
    %606 = arith.addf %525, %605 : vector<16x32xf32>
    %c1_242 = arith.constant 1 : index
    %c0_243 = arith.constant 0 : index
    %c0_244 = arith.constant 0 : index
    %607 = vector.load %arg17[%c1_242, %c0_243, %c0_244] : memref<2x1x32xf32, #tpu.memory_space<vmem>>, vector<1x1x32xf32>
    %608 = vector.shape_cast %607 : vector<1x1x32xf32> to vector<1x32xf32>
    %609 = vector.broadcast %608 : vector<1x32xf32> to vector<16x32xf32>
    %610 = arith.addf %606, %609 : vector<16x32xf32>
    %c0_245 = arith.constant 0 : index
    %c0_246 = arith.constant 0 : index
    %611 = vector.load %arg18[%c0_245, %c0_246] : memref<16x32xf32, #tpu.memory_space<vmem>>, vector<16x32xf32>
    tpu.vector_store %arg18[%c0_245, %c0_246], %610 {strides = array<i32>} : memref<16x32xf32, #tpu.memory_space<vmem>>, vector<16x32xf32>,
    return
  }
}

</mosaic_0001>

<llo_original>
// kernel: tpu_custom_call.1
$region0: #{tpu_custom_call.1}
  #allocation0 [shape = 'u32[]', space=smem, size = 0x4, offset = 0x4, fixed_abs, tag = 'smem constant byte address 0x4 - core index']
  #allocation1 [shape = 'u32[144,128]{1,0:T(1,128)}', space=vmem, size = 0x12000, scoped, tag = 'internal scratch']
  %s0 = inlined_call_operand.vmem [shape: f32[2,8,32], index: 0, kind: input, shape index: {}]
  %s1 = inlined_call_operand.vmem [shape: f32[2,1,32], index: 1, kind: input, shape index: {}]
  %s2 = inlined_call_operand.vmem [shape: f32[2,1,32], index: 2, kind: input, shape index: {}]
  %s3 = inlined_call_operand.vmem [shape: f32[2,1,32], index: 3, kind: input, shape index: {}]
  %s4 = inlined_call_operand.vmem [shape: f32[2,4,32,8], index: 4, kind: input, shape index: {}]
  %s5 = inlined_call_operand.vmem [shape: f32[2,4,1,8], index: 5, kind: input, shape index: {}]
  %s6 = inlined_call_operand.vmem [shape: f32[2,4,32,8], index: 6, kind: input, shape index: {}]
  %s7 = inlined_call_operand.vmem [shape: f32[2,4,1,8], index: 7, kind: input, shape index: {}]
  %s8 = inlined_call_operand.vmem [shape: f32[2,4,32,8], index: 8, kind: input, shape index: {}]
  %s9 = inlined_call_operand.vmem [shape: f32[2,4,1,8], index: 9, kind: input, shape index: {}]
  %s10 = inlined_call_operand.vmem [shape: f32[2,4,8,32], index: 10, kind: input, shape index: {}]
  %s11 = inlined_call_operand.vmem [shape: f32[2,1,32], index: 11, kind: input, shape index: {}]
  %s12 = inlined_call_operand.vmem [shape: f32[2,1,32], index: 12, kind: input, shape index: {}]
  %s13 = inlined_call_operand.vmem [shape: f32[2,1,32], index: 13, kind: input, shape index: {}]
  %s14 = inlined_call_operand.vmem [shape: f32[2,32,64], index: 14, kind: input, shape index: {}]
  %s15 = inlined_call_operand.vmem [shape: f32[2,1,64], index: 15, kind: input, shape index: {}]
  %s16 = inlined_call_operand.vmem [shape: f32[2,64,32], index: 16, kind: input, shape index: {}]
  %s17 = inlined_call_operand.vmem [shape: f32[2,1,32], index: 17, kind: input, shape index: {}]
  %s18 = inlined_call_operand.hbm [shape: f32[16,32], index: 18, kind: output, shape index: {}]
  %s19 = sld [smem:[#allocation0]]
  $region82: #{tpu_custom_call.1} parent=0
    _
  %s21 = ssub.s32 1, %s19
  %s22 = scalar_select 0, %s21, %s19
  $region1: #{tpu_custom_call.1} parent=0
    #allocation2 [shape = 'u8[8192]{0}', space=vmem, size = 0x2000, scoped, tag = 'output window, operand 0, single buffered']
    #allocation3 [shape = 's32[1]{0}', space=sflag, size = 0x4, scoped, tag = 'scoped memory for tpu_custom_call.1']
    %23 = vsyncpa [#allocation3], 0
    // Predicated region
    $region2: #{tpu_custom_call.1} parent=1 // pred_check
      _
    $region3: #{tpu_custom_call.1} parent=1 // pred_check_branch
      %25 = sbr.rel (0) target = $region5
    $region4: #{tpu_custom_call.1} parent=1 // pred_region
      _
    $region5: #{tpu_custom_call.1} parent=1 // pred_fallthru
      _
    // Predicated region
    $region6: #{tpu_custom_call.1} parent=1 // pred_check
      _
    $region7: #{tpu_custom_call.1} parent=1 // pred_check_branch
      %27 = sbr.rel (0) target = $region9
    $region8: #{tpu_custom_call.1} parent=1 // pred_region
      _
    $region9: #{tpu_custom_call.1} parent=1 // pred_fallthru
      _
    // Predicated region
    $region10: #{tpu_custom_call.1} parent=1 // pred_check
      _
    $region11: #{tpu_custom_call.1} parent=1 // pred_check_branch
      %29 = sbr.rel (0) target = $region13
    $region12: #{tpu_custom_call.1} parent=1 // pred_region
      _
    $region13: #{tpu_custom_call.1} parent=1 // pred_fallthru
      _
    // Predicated region
    $region14: #{tpu_custom_call.1} parent=1 // pred_check
      _
    $region15: #{tpu_custom_call.1} parent=1 // pred_check_branch
      %31 = sbr.rel (0) target = $region17
    $region16: #{tpu_custom_call.1} parent=1 // pred_region
      _
    $region17: #{tpu_custom_call.1} parent=1 // pred_fallthru
      _
    // Predicated region
    $region18: #{tpu_custom_call.1} parent=1 // pred_check
      _
    $region19: #{tpu_custom_call.1} parent=1 // pred_check_branch
      %33 = sbr.rel (0) target = $region21
    $region20: #{tpu_custom_call.1} parent=1 // pred_region
      _
    $region21: #{tpu_custom_call.1} parent=1 // pred_fallthru
      _
    // Predicated region
    $region22: #{tpu_custom_call.1} parent=1 // pred_check
      _
    $region23: #{tpu_custom_call.1} parent=1 // pred_check_branch
      %35 = sbr.rel (0) target = $region25
    $region24: #{tpu_custom_call.1} parent=1 // pred_region
      _
    $region25: #{tpu_custom_call.1} parent=1 // pred_fallthru
      _
    // Predicated region
    $region26: #{tpu_custom_call.1} parent=1 // pred_check
      _
    $region27: #{tpu_custom_call.1} parent=1 // pred_check_branch
      %37 = sbr.rel (0) target = $region29
    $region28: #{tpu_custom_call.1} parent=1 // pred_region
      _
    $region29: #{tpu_custom_call.1} parent=1 // pred_fallthru
      _
    // Predicated region
    $region30: #{tpu_custom_call.1} parent=1 // pred_check
      _
    $region31: #{tpu_custom_call.1} parent=1 // pred_check_branch
      %39 = sbr.rel (0) target = $region33
    $region32: #{tpu_custom_call.1} parent=1 // pred_region
      _
    $region33: #{tpu_custom_call.1} parent=1 // pred_fallthru
      _
    // Predicated region
    $region34: #{tpu_custom_call.1} parent=1 // pred_check
      _
    $region35: #{tpu_custom_call.1} parent=1 // pred_check_branch
      %41 = sbr.rel (0) target = $region37
    $region36: #{tpu_custom_call.1} parent=1 // pred_region
      _
    $region37: #{tpu_custom_call.1} parent=1 // pred_fallthru
      _
    // Predicated region
    $region38: #{tpu_custom_call.1} parent=1 // pred_check
      _
    $region39: #{tpu_custom_call.1} parent=1 // pred_check_branch
      %43 = sbr.rel (0) target = $region41
    $region40: #{tpu_custom_call.1} parent=1 // pred_region
      _
    $region41: #{tpu_custom_call.1} parent=1 // pred_fallthru
      _
    // Predicated region
    $region42: #{tpu_custom_call.1} parent=1 // pred_check
      _
    $region43: #{tpu_custom_call.1} parent=1 // pred_check_branch
      %45 = sbr.rel (0) target = $region45
    $region44: #{tpu_custom_call.1} parent=1 // pred_region
      _
    $region45: #{tpu_custom_call.1} parent=1 // pred_fallthru
      _
    // Predicated region
    $region46: #{tpu_custom_call.1} parent=1 // pred_check
      _
    $region47: #{tpu_custom_call.1} parent=1 // pred_check_branch
      %47 = sbr.rel (0) target = $region49
    $region48: #{tpu_custom_call.1} parent=1 // pred_region
      _
    $region49: #{tpu_custom_call.1} parent=1 // pred_fallthru
      _
    // Predicated region
    $region50: #{tpu_custom_call.1} parent=1 // pred_check
      _
    $region51: #{tpu_custom_call.1} parent=1 // pred_check_branch
      %49 = sbr.rel (0) target = $region53
    $region52: #{tpu_custom_call.1} parent=1 // pred_region
      _
    $region53: #{tpu_custom_call.1} parent=1 // pred_fallthru
      _
    // Predicated region
    $region54: #{tpu_custom_call.1} parent=1 // pred_check
      _
    $region55: #{tpu_custom_call.1} parent=1 // pred_check_branch
      %51 = sbr.rel (0) target = $region57
    $region56: #{tpu_custom_call.1} parent=1 // pred_region
      _
    $region57: #{tpu_custom_call.1} parent=1 // pred_fallthru
      _
    // Predicated region
    $region58: #{tpu_custom_call.1} parent=1 // pred_check
      _
    $region59: #{tpu_custom_call.1} parent=1 // pred_check_branch
      %53 = sbr.rel (0) target = $region61
    $region60: #{tpu_custom_call.1} parent=1 // pred_region
      _
    $region61: #{tpu_custom_call.1} parent=1 // pred_fallthru
      _
    // Predicated region
    $region62: #{tpu_custom_call.1} parent=1 // pred_check
      _
    $region63: #{tpu_custom_call.1} parent=1 // pred_check_branch
      %55 = sbr.rel (0) target = $region65
    $region64: #{tpu_custom_call.1} parent=1 // pred_region
      _
    $region65: #{tpu_custom_call.1} parent=1 // pred_fallthru
      _
    // Predicated region
    $region66: #{tpu_custom_call.1} parent=1 // pred_check
      _
    $region67: #{tpu_custom_call.1} parent=1 // pred_check_branch
      %57 = sbr.rel (0) target = $region69
    $region68: #{tpu_custom_call.1} parent=1 // pred_region
      _
    $region69: #{tpu_custom_call.1} parent=1 // pred_fallthru
      _
    // Predicated region
    $region70: #{tpu_custom_call.1} parent=1 // pred_check
      _
    $region71: #{tpu_custom_call.1} parent=1 // pred_check_branch
      %59 = sbr.rel (0) target = $region73
    $region72: #{tpu_custom_call.1} parent=1 // pred_region
      _
    $region73: #{tpu_custom_call.1} parent=1 // pred_fallthru
      _
    %v60 = vld [vmem:[%s0] sm:$0xff]
    %v61 = vld [vmem:[%s0 + $0x8] sm:$0xff]
    %v62 = vld [vmem:[%s1] sm:$0x1]
    %v63 = vld [vmem:[%s1 + $0x1] sm:$0x1]
    %v66 = vlaneseq
    %v67 = vshrl.u32 %v66, 7
    %v68 = vsub.s32 0, %v67
    %v69 = vrot.slane %v62, %v68
    %v70 = vlaneseq
    %v71 = vshrl.u32 %v70, 7
    %v72 = vsub.s32 0, %v71
    %v73 = vrot.slane %v63, %v72
    %v76 = vadd.f32 %v60, %v69
    %v77 = vadd.f32 %v61, %v73
    %v78 = vld [vmem:[%s2] sm:$0x1]
    %v79 = vld [vmem:[%s3] sm:$0x1]
    %vm80 = vcmask 261120
    %v81 = vsel %vm80, %v76, 0.0
    %82 = vadd.xlane.f32.xlu0 %v81
    %v83 = vpop.xlane.xlu0 %82
    %v84 = vsel %vm80, %v77, 0.0
    %85 = vadd.xlane.f32.xlu0 %v84
    %v86 = vpop.xlane.xlu0 %85
    %v87 = vrcp.pop 32.0
    %v88 = vmul.f32 %v83, %v87
    %v89 = vmul.f32 %v86, %v87
    %v90 = vsub.f32 %v76, %v88
    %v91 = vsub.f32 %v77, %v89
    %v92 = vmul.f32 %v90, %v90
    %v93 = vmul.f32 %v91, %v91
    %v94 = vsel %vm80, %v92, 0.0
    %95 = vadd.xlane.f32.xlu0 %v94
    %v96 = vpop.xlane.xlu0 %95
    %v97 = vsel %vm80, %v93, 0.0
    %98 = vadd.xlane.f32.xlu0 %v97
    %v99 = vpop.xlane.xlu0 %98
    %v100 = vmul.f32 %v96, %v87
    %v101 = vmul.f32 %v99, %v87
    %v102 = vadd.f32 %v100, 1e-05
    %v103 = vadd.f32 %v101, 1e-05
    %v104 = vrsqrt.pop %v102
    %v105 = vrsqrt.pop %v103
    %v106 = vmul.f32 %v90, %v104
    %v107 = vmul.f32 %v91, %v105
    %v109 = vlaneseq
    %v110 = vshrl.u32 %v109, 7
    %v111 = vsub.s32 0, %v110
    %v112 = vrot.slane %v78, %v111
    %v114 = vmul.f32 %v106, %v112
    %v115 = vmul.f32 %v107, %v112
    %v117 = vlaneseq
    %v118 = vshrl.u32 %v117, 7
    %v119 = vsub.s32 0, %v118
    %v120 = vrot.slane %v79, %v119
    %v122 = vadd.f32 %v114, %v120
    %v123 = vadd.f32 %v115, %v120
    %v124 = vld [vmem:[%s4] sm:$0xff]
    %v125 = vld [vmem:[%s4 + $0x8] sm:$0xff]
    %v126 = vld [vmem:[%s4 + $0x10] sm:$0xff]
    %v127 = vld [vmem:[%s4 + $0x18] sm:$0xff]
    %v128 = vld [vmem:[%s4 + $0x20] sm:$0xff]
    %v129 = vld [vmem:[%s4 + $0x28] sm:$0xff]
    %v130 = vld [vmem:[%s4 + $0x30] sm:$0xff]
    %v131 = vld [vmem:[%s4 + $0x38] sm:$0xff]
    %v132 = vld [vmem:[%s4 + $0x40] sm:$0xff]
    %v133 = vld [vmem:[%s4 + $0x48] sm:$0xff]
    %v134 = vld [vmem:[%s4 + $0x50] sm:$0xff]
    %v135 = vld [vmem:[%s4 + $0x58] sm:$0xff]
    %v136 = vld [vmem:[%s4 + $0x60] sm:$0xff]
    %v137 = vld [vmem:[%s4 + $0x68] sm:$0xff]
    %v138 = vld [vmem:[%s4 + $0x70] sm:$0xff]
    %v139 = vld [vmem:[%s4 + $0x78] sm:$0xff]
    %v140 = vld [vmem:[%s6] sm:$0xff]
    %v141 = vld [vmem:[%s6 + $0x8] sm:$0xff]
    %v142 = vld [vmem:[%s6 + $0x10] sm:$0xff]
    %v143 = vld [vmem:[%s6 + $0x18] sm:$0xff]
    %v144 = vld [vmem:[%s6 + $0x20] sm:$0xff]
    %v145 = vld [vmem:[%s6 + $0x28] sm:$0xff]
    %v146 = vld [vmem:[%s6 + $0x30] sm:$0xff]
    %v147 = vld [vmem:[%s6 + $0x38] sm:$0xff]
    %v148 = vld [vmem:[%s6 + $0x40] sm:$0xff]
    %v149 = vld [vmem:[%s6 + $0x48] sm:$0xff]
    %v150 = vld [vmem:[%s6 + $0x50] sm:$0xff]
    %v151 = vld [vmem:[%s6 + $0x58] sm:$0xff]
    %v152 = vld [vmem:[%s6 + $0x60] sm:$0xff]
    %v153 = vld [vmem:[%s6 + $0x68] sm:$0xff]
    %v154 = vld [vmem:[%s6 + $0x70] sm:$0xff]
    %v155 = vld [vmem:[%s6 + $0x78] sm:$0xff]
    %v156 = vld [vmem:[%s8] sm:$0xff]
    %v157 = vld [vmem:[%s8 + $0x8] sm:$0xff]
    %v158 = vld [vmem:[%s8 + $0x10] sm:$0xff]
    %v159 = vld [vmem:[%s8 + $0x18] sm:$0xff]
    %v160 = vld [vmem:[%s8 + $0x20] sm:$0xff]
    %v161 = vld [vmem:[%s8 + $0x28] sm:$0xff]
    %v162 = vld [vmem:[%s8 + $0x30] sm:$0xff]
    %v163 = vld [vmem:[%s8 + $0x38] sm:$0xff]
    %v164 = vld [vmem:[%s8 + $0x40] sm:$0xff]
    %v165 = vld [vmem:[%s8 + $0x48] sm:$0xff]
    %v166 = vld [vmem:[%s8 + $0x50] sm:$0xff]
    %v167 = vld [vmem:[%s8 + $0x58] sm:$0xff]
    %v168 = vld [vmem:[%s8 + $0x60] sm:$0xff]
    %v169 = vld [vmem:[%s8 + $0x68] sm:$0xff]
    %v170 = vld [vmem:[%s8 + $0x70] sm:$0xff]
    %v171 = vld [vmem:[%s8 + $0x78] sm:$0xff]
    %v172 = vld [vmem:[%s10] sm:$0xff]
    %v173 = vld [vmem:[%s10 + $0x8] sm:$0xff]
    %v174 = vld [vmem:[%s10 + $0x10] sm:$0xff]
    %v175 = vld [vmem:[%s10 + $0x18] sm:$0xff]
    %v176 = vld [vmem:[%s5] sm:$0x1]
    %v177 = vld [vmem:[%s5 + $0x1] sm:$0x1]
    %v178 = vld [vmem:[%s5 + $0x2] sm:$0x1]
    %v179 = vld [vmem:[%s5 + $0x3] sm:$0x1]
    %v180 = vld [vmem:[%s7] sm:$0x1]
    %v181 = vld [vmem:[%s7 + $0x1] sm:$0x1]
    %v182 = vld [vmem:[%s7 + $0x2] sm:$0x1]
    %v183 = vld [vmem:[%s7 + $0x3] sm:$0x1]
    %v184 = vld [vmem:[%s9] sm:$0x1]
    %v185 = vld [vmem:[%s9 + $0x1] sm:$0x1]
    %v186 = vld [vmem:[%s9 + $0x2] sm:$0x1]
    %v187 = vld [vmem:[%s9 + $0x3] sm:$0x1]
    %v189 = vlaneseq
    %v190 = vshrl.u32 %v189, 7
    %v191 = vsub.s32 0, %v190
    %v192 = vrot.slane %v176, %v191
    %v195 = vsel %vm80, %v122, 0
    %v198 = vsel %vm80, %v123, 0
    %200 = vmatprep.subr.mxu0 0.0
    %201 = vmatpush1.msra.mxu0 0.0
    %202 = vmatprep.subr.mxu0 0.0
    %203 = vmatpush1.msra.mxu0 0.0
    %204 = vmatprep.subr.mxu0 0.0
    %205 = vmatpush1.msra.mxu0 0.0
    %206 = vmatprep.subr.mxu0 0.0
    %207 = vmatpush1.msra.mxu0 0.0
    %208 = vmatprep.subr.mxu0 0.0
    %209 = vmatpush1.msra.mxu0 0.0
    %210 = vmatprep.subr.mxu0 0.0
    %211 = vmatpush1.msra.mxu0 0.0
    %212 = vmatprep.subr.mxu0 0.0
    %213 = vmatpush1.msra.mxu0 0.0
    %214 = vmatprep.subr.mxu0 0.0
    %215 = vmatpush1.msra.mxu0 0.0
    %216 = vmatprep.subr.mxu0 0.0
    %217 = vmatpush1.msra.mxu0 0.0
    %218 = vmatprep.subr.mxu0 0.0
    %219 = vmatpush1.msra.mxu0 0.0
    %220 = vmatprep.subr.mxu0 0.0
    %221 = vmatpush1.msra.mxu0 0.0
    %222 = vmatprep.subr.mxu0 0.0
    %223 = vmatpush1.msra.mxu0 0.0
    %224 = vmatprep.subr.mxu0 0.0
    %225 = vmatpush1.msra.mxu0 %v127
    %226 = vmatprep.subr.mxu0 0.0
    %227 = vmatpush1.msra.mxu0 %v126
    %228 = vmatprep.subr.mxu0 0.0
    %229 = vmatpush1.msra.mxu0 %v125
    %230 = vmatprep.subr.mxu0 0.0
    %231 = vmatpush1.msra.mxu0 %v124
    %232 = vmatprep.subr.mxu0 0.0
    %233 = vmatpush2.msra.mxu0 0.0
    %234 = vmatprep.subr.mxu0 0.0
    %235 = vmatpush2.msra.mxu0 0.0
    %236 = vmatprep.subr.mxu0 0.0
    %237 = vmatpush2.msra.mxu0 0.0
    %238 = vmatprep.subr.mxu0 0.0
    %239 = vmatpush2.msra.mxu0 0.0
    %240 = vmatprep.subr.mxu0 0.0
    %241 = vmatpush2.msra.mxu0 0.0
    %242 = vmatprep.subr.mxu0 0.0
    %243 = vmatpush2.msra.mxu0 0.0
    %244 = vmatprep.subr.mxu0 0.0
    %245 = vmatpush2.msra.mxu0 0.0
    %246 = vmatprep.subr.mxu0 0.0
    %247 = vmatpush2.msra.mxu0 0.0
    %248 = vmatprep.subr.mxu0 0.0
    %249 = vmatpush2.msra.mxu0 0.0
    %250 = vmatprep.subr.mxu0 0.0
    %251 = vmatpush2.msra.mxu0 0.0
    %252 = vmatprep.subr.mxu0 0.0
    %253 = vmatpush2.msra.mxu0 0.0
    %254 = vmatprep.subr.mxu0 0.0
    %255 = vmatpush2.msra.mxu0 0.0
    %256 = vmatprep.subr.mxu0 0.0
    %257 = vmatpush2.msra.mxu0 0.0
    %258 = vmatprep.subr.mxu0 0.0
    %259 = vmatpush2.msra.mxu0 0.0
    %260 = vmatprep.subr.mxu0 0.0
    %261 = vmatpush2.msra.mxu0 0.0
    %262 = vmatprep.subr.mxu0 0.0
    %263 = vmatpush2.msra.mxu0 0.0
    %264 = vmatprep.mubr.f32.mxu0 0.0
    %265 = vmatmul.mubr.f32.gmra.mxu0 %v195
    %v266 = vpop.f32.mrf.mxu0
    %v267 = vadd.f32 %v192, %v266
    %v268 = vpop.f32.mrf.mxu0
    %269 = vmatprep.mubr.f32.mxu0 0.0
    %270 = vmatmul.mubr.f32.gmra.mxu0 %v198
    %v271 = vpop.f32.mrf.mxu0
    %v272 = vadd.f32 %v192, %v271
    %v273 = vpop.f32.mrf.mxu0
    %274 = vdwg.mxu0
    %v276 = vlaneseq
    %v277 = vshrl.u32 %v276, 7
    %v278 = vsub.s32 0, %v277
    %v279 = vrot.slane %v180, %v278
    %281 = vmatprep.subr.mxu0 0.0
    %282 = vmatpush1.msra.mxu0 0.0
    %283 = vmatprep.subr.mxu0 0.0
    %284 = vmatpush1.msra.mxu0 0.0
    %285 = vmatprep.subr.mxu0 0.0
    %286 = vmatpush1.msra.mxu0 0.0
    %287 = vmatprep.subr.mxu0 0.0
    %288 = vmatpush1.msra.mxu0 0.0
    %289 = vmatprep.subr.mxu0 0.0
    %290 = vmatpush1.msra.mxu0 0.0
    %291 = vmatprep.subr.mxu0 0.0
    %292 = vmatpush1.msra.mxu0 0.0
    %293 = vmatprep.subr.mxu0 0.0
    %294 = vmatpush1.msra.mxu0 0.0
    %295 = vmatprep.subr.mxu0 0.0
    %296 = vmatpush1.msra.mxu0 0.0
    %297 = vmatprep.subr.mxu0 0.0
    %298 = vmatpush1.msra.mxu0 0.0
    %299 = vmatprep.subr.mxu0 0.0
    %300 = vmatpush1.msra.mxu0 0.0
    %301 = vmatprep.subr.mxu0 0.0
    %302 = vmatpush1.msra.mxu0 0.0
    %303 = vmatprep.subr.mxu0 0.0
    %304 = vmatpush1.msra.mxu0 0.0
    %305 = vmatprep.subr.mxu0 0.0
    %306 = vmatpush1.msra.mxu0 %v143
    %307 = vmatprep.subr.mxu0 0.0
    %308 = vmatpush1.msra.mxu0 %v142
    %309 = vmatprep.subr.mxu0 0.0
    %310 = vmatpush1.msra.mxu0 %v141
    %311 = vmatprep.subr.mxu0 0.0
    %312 = vmatpush1.msra.mxu0 %v140
    %313 = vmatprep.subr.mxu0 0.0
    %314 = vmatpush2.msra.mxu0 0.0
    %315 = vmatprep.subr.mxu0 0.0
    %316 = vmatpush2.msra.mxu0 0.0
    %317 = vmatprep.subr.mxu0 0.0
    %318 = vmatpush2.msra.mxu0 0.0
    %319 = vmatprep.subr.mxu0 0.0
    %320 = vmatpush2.msra.mxu0 0.0
    %321 = vmatprep.subr.mxu0 0.0
    %322 = vmatpush2.msra.mxu0 0.0
    %323 = vmatprep.subr.mxu0 0.0
    %324 = vmatpush2.msra.mxu0 0.0
    %325 = vmatprep.subr.mxu0 0.0
    %326 = vmatpush2.msra.mxu0 0.0
    %327 = vmatprep.subr.mxu0 0.0
    %328 = vmatpush2.msra.mxu0 0.0
    %329 = vmatprep.subr.mxu0 0.0
    %330 = vmatpush2.msra.mxu0 0.0
    %331 = vmatprep.subr.mxu0 0.0
    %332 = vmatpush2.msra.mxu0 0.0
    %333 = vmatprep.subr.mxu0 0.0
    %334 = vmatpush2.msra.mxu0 0.0
    %335 = vmatprep.subr.mxu0 0.0
    %336 = vmatpush2.msra.mxu0 0.0
    %337 = vmatprep.subr.mxu0 0.0
    %338 = vmatpush2.msra.mxu0 0.0
    %339 = vmatprep.subr.mxu0 0.0
    %340 = vmatpush2.msra.mxu0 0.0
    %341 = vmatprep.subr.mxu0 0.0
    %342 = vmatpush2.msra.mxu0 0.0
    %343 = vmatprep.subr.mxu0 0.0
    %344 = vmatpush2.msra.mxu0 0.0
    %345 = vmatprep.mubr.f32.mxu0 0.0
    %346 = vmatmul.mubr.f32.gmra.mxu0 %v195
    %v347 = vpop.f32.mrf.mxu0
    %v348 = vadd.f32 %v279, %v347
    %v349 = vpop.f32.mrf.mxu0
    %350 = vmatprep.mubr.f32.mxu0 0.0
    %351 = vmatmul.mubr.f32.gmra.mxu0 %v198
    %v352 = vpop.f32.mrf.mxu0
    %v353 = vadd.f32 %v279, %v352
    %v354 = vpop.f32.mrf.mxu0
    %355 = vdwg.mxu0
    %v357 = vlaneseq
    %v358 = vshrl.u32 %v357, 7
    %v359 = vsub.s32 0, %v358
    %v360 = vrot.slane %v184, %v359
    %362 = vmatprep.subr.mxu0 0.0
    %363 = vmatpush1.msra.mxu0 0.0
    %364 = vmatprep.subr.mxu0 0.0
    %365 = vmatpush1.msra.mxu0 0.0
    %366 = vmatprep.subr.mxu0 0.0
    %367 = vmatpush1.msra.mxu0 0.0
    %368 = vmatprep.subr.mxu0 0.0
    %369 = vmatpush1.msra.mxu0 0.0
    %370 = vmatprep.subr.mxu0 0.0
    %371 = vmatpush1.msra.mxu0 0.0
    %372 = vmatprep.subr.mxu0 0.0
    %373 = vmatpush1.msra.mxu0 0.0
    %374 = vmatprep.subr.mxu0 0.0
    %375 = vmatpush1.msra.mxu0 0.0
    %376 = vmatprep.subr.mxu0 0.0
    %377 = vmatpush1.msra.mxu0 0.0
    %378 = vmatprep.subr.mxu0 0.0
    %379 = vmatpush1.msra.mxu0 0.0
    %380 = vmatprep.subr.mxu0 0.0
    %381 = vmatpush1.msra.mxu0 0.0
    %382 = vmatprep.subr.mxu0 0.0
    %383 = vmatpush1.msra.mxu0 0.0
    %384 = vmatprep.subr.mxu0 0.0
    %385 = vmatpush1.msra.mxu0 0.0
    %386 = vmatprep.subr.mxu0 0.0
    %387 = vmatpush1.msra.mxu0 %v159
    %388 = vmatprep.subr.mxu0 0.0
    %389 = vmatpush1.msra.mxu0 %v158
    %390 = vmatprep.subr.mxu0 0.0
    %391 = vmatpush1.msra.mxu0 %v157
    %392 = vmatprep.subr.mxu0 0.0
    %393 = vmatpush1.msra.mxu0 %v156
    %394 = vmatprep.subr.mxu0 0.0
    %395 = vmatpush2.msra.mxu0 0.0
    %396 = vmatprep.subr.mxu0 0.0
    %397 = vmatpush2.msra.mxu0 0.0
    %398 = vmatprep.subr.mxu0 0.0
    %399 = vmatpush2.msra.mxu0 0.0
    %400 = vmatprep.subr.mxu0 0.0
    %401 = vmatpush2.msra.mxu0 0.0
    %402 = vmatprep.subr.mxu0 0.0
    %403 = vmatpush2.msra.mxu0 0.0
    %404 = vmatprep.subr.mxu0 0.0
    %405 = vmatpush2.msra.mxu0 0.0
    %406 = vmatprep.subr.mxu0 0.0
    %407 = vmatpush2.msra.mxu0 0.0
    %408 = vmatprep.subr.mxu0 0.0
    %409 = vmatpush2.msra.mxu0 0.0
    %410 = vmatprep.subr.mxu0 0.0
    %411 = vmatpush2.msra.mxu0 0.0
    %412 = vmatprep.subr.mxu0 0.0
    %413 = vmatpush2.msra.mxu0 0.0
    %414 = vmatprep.subr.mxu0 0.0
    %415 = vmatpush2.msra.mxu0 0.0
    %416 = vmatprep.subr.mxu0 0.0
    %417 = vmatpush2.msra.mxu0 0.0
    %418 = vmatprep.subr.mxu0 0.0
    %419 = vmatpush2.msra.mxu0 0.0
    %420 = vmatprep.subr.mxu0 0.0
    %421 = vmatpush2.msra.mxu0 0.0
    %422 = vmatprep.subr.mxu0 0.0
    %423 = vmatpush2.msra.mxu0 0.0
    %424 = vmatprep.subr.mxu0 0.0
    %425 = vmatpush2.msra.mxu0 0.0
    %426 = vmatprep.mubr.f32.mxu0 0.0
    %427 = vmatmul.mubr.f32.gmra.mxu0 %v195
    %v428 = vpop.f32.mrf.mxu0
    %v429 = vadd.f32 %v360, %v428
    %v430 = vpop.f32.mrf.mxu0
    %431 = vmatprep.mubr.f32.mxu0 0.0
    %432 = vmatmul.mubr.f32.gmra.mxu0 %v198
    %v433 = vpop.f32.mrf.mxu0
    %v434 = vadd.f32 %v360, %v433
    %v435 = vpop.f32.mrf.mxu0
    %436 = vdwg.mxu0
    %vm437 = vcmask 64512
    %v439 = vsel %vm437, %v267, 0
    %v442 = vsel %vm437, %v348, 0
    %444 = vmatprep.subr.mxu0 0.0
    %445 = vmatpush1.xpose.msra.mxu0 0.0
    %446 = vmatprep.subr.mxu0 0.0
    %447 = vmatpush1.xpose.msra.mxu0 0.0
    %448 = vmatprep.subr.mxu0 0.0
    %449 = vmatpush1.xpose.msra.mxu0 0.0
    %450 = vmatprep.subr.mxu0 0.0
    %451 = vmatpush1.xpose.msra.mxu0 0.0
    %452 = vmatprep.subr.mxu0 0.0
    %453 = vmatpush1.xpose.msra.mxu0 0.0
    %454 = vmatprep.subr.mxu0 0.0
    %455 = vmatpush1.xpose.msra.mxu0 0.0
    %456 = vmatprep.subr.mxu0 0.0
    %457 = vmatpush1.xpose.msra.mxu0 0.0
    %458 = vmatprep.subr.mxu0 0.0
    %459 = vmatpush1.xpose.msra.mxu0 0.0
    %460 = vmatprep.subr.mxu0 0.0
    %461 = vmatpush1.xpose.msra.mxu0 0.0
    %462 = vmatprep.subr.mxu0 0.0
    %463 = vmatpush1.xpose.msra.mxu0 0.0
    %464 = vmatprep.subr.mxu0 0.0
    %465 = vmatpush1.xpose.msra.mxu0 0.0
    %466 = vmatprep.subr.mxu0 0.0
    %467 = vmatpush1.xpose.msra.mxu0 0.0
    %468 = vmatprep.subr.mxu0 0.0
    %469 = vmatpush1.xpose.msra.mxu0 0.0
    %470 = vmatprep.subr.mxu0 0.0
    %471 = vmatpush1.xpose.msra.mxu0 0.0
    %472 = vmatprep.subr.mxu0 0.0
    %473 = vmatpush1.xpose.msra.mxu0 0.0
    %474 = vmatprep.subr.mxu0 0.0
    %475 = vmatpush1.xpose.msra.mxu0 %v442
    %476 = vmatprep.subr.mxu0 0.0
    %477 = vmatpush2.xpose.msra.mxu0 0.0
    %478 = vmatprep.subr.mxu0 0.0
    %479 = vmatpush2.xpose.msra.mxu0 0.0
    %480 = vmatprep.subr.mxu0 0.0
    %481 = vmatpush2.xpose.msra.mxu0 0.0
    %482 = vmatprep.subr.mxu0 0.0
    %483 = vmatpush2.xpose.msra.mxu0 0.0
    %484 = vmatprep.subr.mxu0 0.0
    %485 = vmatpush2.xpose.msra.mxu0 0.0
    %486 = vmatprep.subr.mxu0 0.0
    %487 = vmatpush2.xpose.msra.mxu0 0.0
    %488 = vmatprep.subr.mxu0 0.0
    %489 = vmatpush2.xpose.msra.mxu0 0.0
    %490 = vmatprep.subr.mxu0 0.0
    %491 = vmatpush2.xpose.msra.mxu0 0.0
    %492 = vmatprep.subr.mxu0 0.0
    %493 = vmatpush2.xpose.msra.mxu0 0.0
    %494 = vmatprep.subr.mxu0 0.0
    %495 = vmatpush2.xpose.msra.mxu0 0.0
    %496 = vmatprep.subr.mxu0 0.0
    %497 = vmatpush2.xpose.msra.mxu0 0.0
    %498 = vmatprep.subr.mxu0 0.0
    %499 = vmatpush2.xpose.msra.mxu0 0.0
    %500 = vmatprep.subr.mxu0 0.0
    %501 = vmatpush2.xpose.msra.mxu0 0.0
    %502 = vmatprep.subr.mxu0 0.0
    %503 = vmatpush2.xpose.msra.mxu0 0.0
    %504 = vmatprep.subr.mxu0 0.0
    %505 = vmatpush2.xpose.msra.mxu0 0.0
    %506 = vmatprep.subr.mxu0 0.0
    %507 = vmatpush2.xpose.msra.mxu0 0.0
    %508 = vmatprep.mubr.f32.mxu0 0.0
    %509 = vmatmul.mubr.f32.gmra.mxu0 %v439
    %v510 = vpop.f32.mrf.mxu0
    %v511 = vadd.f32 0.0, %v510
    %v512 = vpop.f32.mrf.mxu0
    %513 = vdwg.mxu0
    %v515 = vsel %vm437, %v272, 0
    %v518 = vsel %vm437, %v353, 0
    %520 = vmatprep.subr.mxu0 0.0
    %521 = vmatpush1.xpose.msra.mxu0 0.0
    %522 = vmatprep.subr.mxu0 0.0
    %523 = vmatpush1.xpose.msra.mxu0 0.0
    %524 = vmatprep.subr.mxu0 0.0
    %525 = vmatpush1.xpose.msra.mxu0 0.0
    %526 = vmatprep.subr.mxu0 0.0
    %527 = vmatpush1.xpose.msra.mxu0 0.0
    %528 = vmatprep.subr.mxu0 0.0
    %529 = vmatpush1.xpose.msra.mxu0 0.0
    %530 = vmatprep.subr.mxu0 0.0
    %531 = vmatpush1.xpose.msra.mxu0 0.0
    %532 = vmatprep.subr.mxu0 0.0
    %533 = vmatpush1.xpose.msra.mxu0 0.0
    %534 = vmatprep.subr.mxu0 0.0
    %535 = vmatpush1.xpose.msra.mxu0 0.0
    %536 = vmatprep.subr.mxu0 0.0
    %537 = vmatpush1.xpose.msra.mxu0 0.0
    %538 = vmatprep.subr.mxu0 0.0
    %539 = vmatpush1.xpose.msra.mxu0 0.0
    %540 = vmatprep.subr.mxu0 0.0
    %541 = vmatpush1.xpose.msra.mxu0 0.0
    %542 = vmatprep.subr.mxu0 0.0
    %543 = vmatpush1.xpose.msra.mxu0 0.0
    %544 = vmatprep.subr.mxu0 0.0
    %545 = vmatpush1.xpose.msra.mxu0 0.0
    %546 = vmatprep.subr.mxu0 0.0
    %547 = vmatpush1.xpose.msra.mxu0 0.0
    %548 = vmatprep.subr.mxu0 0.0
    %549 = vmatpush1.xpose.msra.mxu0 0.0
    %550 = vmatprep.subr.mxu0 0.0
    %551 = vmatpush1.xpose.msra.mxu0 %v518
    %552 = vmatprep.subr.mxu0 0.0
    %553 = vmatpush2.xpose.msra.mxu0 0.0
    %554 = vmatprep.subr.mxu0 0.0
    %555 = vmatpush2.xpose.msra.mxu0 0.0
    %556 = vmatprep.subr.mxu0 0.0
    %557 = vmatpush2.xpose.msra.mxu0 0.0
    %558 = vmatprep.subr.mxu0 0.0
    %559 = vmatpush2.xpose.msra.mxu0 0.0
    %560 = vmatprep.subr.mxu0 0.0
    %561 = vmatpush2.xpose.msra.mxu0 0.0
    %562 = vmatprep.subr.mxu0 0.0
    %563 = vmatpush2.xpose.msra.mxu0 0.0
    %564 = vmatprep.subr.mxu0 0.0
    %565 = vmatpush2.xpose.msra.mxu0 0.0
    %566 = vmatprep.subr.mxu0 0.0
    %567 = vmatpush2.xpose.msra.mxu0 0.0
    %568 = vmatprep.subr.mxu0 0.0
    %569 = vmatpush2.xpose.msra.mxu0 0.0
    %570 = vmatprep.subr.mxu0 0.0
    %571 = vmatpush2.xpose.msra.mxu0 0.0
    %572 = vmatprep.subr.mxu0 0.0
    %573 = vmatpush2.xpose.msra.mxu0 0.0
    %574 = vmatprep.subr.mxu0 0.0
    %575 = vmatpush2.xpose.msra.mxu0 0.0
    %576 = vmatprep.subr.mxu0 0.0
    %577 = vmatpush2.xpose.msra.mxu0 0.0
    %578 = vmatprep.subr.mxu0 0.0
    %579 = vmatpush2.xpose.msra.mxu0 0.0
    %580 = vmatprep.subr.mxu0 0.0
    %581 = vmatpush2.xpose.msra.mxu0 0.0
    %582 = vmatprep.subr.mxu0 0.0
    %583 = vmatpush2.xpose.msra.mxu0 0.0
    %584 = vmatprep.mubr.f32.mxu0 0.0
    %585 = vmatmul.mubr.f32.gmra.mxu0 %v515
    %v586 = vpop.f32.mrf.mxu0
    %v587 = vadd.f32 0.0, %v586
    %v588 = vpop.f32.mrf.mxu0
    %589 = vdwg.mxu0
    %v590 = vmul.f32 %v511, 0.35355338
    %v591 = vmul.f32 %v587, 0.35355338
    %v592 = vsel %vm437, %v590, -inf
    %593 = vmax.xlane.f32.xlu0 %v592
    %v594 = vpop.xlane.xlu0 %593
    %v595 = vsel %vm437, %v591, -inf
    %596 = vmax.xlane.f32.xlu0 %v595
    %v597 = vpop.xlane.xlu0 %596
    %v598 = vsub.f32 %v590, %v594
    %v599 = vsub.f32 %v591, %v597
    %v600 = vmul.f32 %v598, 1.442695
    %v601 = vpow.pop %v600
    %v602 = vmul.f32 %v599, 1.442695
    %v603 = vpow.pop %v602
    %v604 = vsel %vm437, %v601, 0.0
    %605 = vadd.xlane.f32.xlu0 %v604
    %v606 = vpop.xlane.xlu0 %605
    %v607 = vsel %vm437, %v603, 0.0
    %608 = vadd.xlane.f32.xlu0 %v607
    %v609 = vpop.xlane.xlu0 %608
    %v610 = vrcp.pop %v606
    %v611 = vrcp.pop %v609
    %v612 = vmul.f32 %v601, %v610
    %v613 = vmul.f32 %v603, %v611
    %v615 = vsel %vm437, %v612, 0
    %617 = vmatprep.subr.mxu0 0.0
    %618 = vmatpush1.msra.mxu0 0.0
    %619 = vmatprep.subr.mxu0 0.0
    %620 = vmatpush1.msra.mxu0 0.0
    %621 = vmatprep.subr.mxu0 0.0
    %622 = vmatpush1.msra.mxu0 0.0
    %623 = vmatprep.subr.mxu0 0.0
    %624 = vmatpush1.msra.mxu0 0.0
    %625 = vmatprep.subr.mxu0 0.0
    %626 = vmatpush1.msra.mxu0 0.0
    %627 = vmatprep.subr.mxu0 0.0
    %628 = vmatpush1.msra.mxu0 0.0
    %629 = vmatprep.subr.mxu0 0.0
    %630 = vmatpush1.msra.mxu0 0.0
    %631 = vmatprep.subr.mxu0 0.0
    %632 = vmatpush1.msra.mxu0 0.0
    %633 = vmatprep.subr.mxu0 0.0
    %634 = vmatpush1.msra.mxu0 0.0
    %635 = vmatprep.subr.mxu0 0.0
    %636 = vmatpush1.msra.mxu0 0.0
    %637 = vmatprep.subr.mxu0 0.0
    %638 = vmatpush1.msra.mxu0 0.0
    %639 = vmatprep.subr.mxu0 0.0
    %640 = vmatpush1.msra.mxu0 0.0
    %641 = vmatprep.subr.mxu0 0.0
    %642 = vmatpush1.msra.mxu0 0.0
    %643 = vmatprep.subr.mxu0 0.0
    %644 = vmatpush1.msra.mxu0 0.0
    %645 = vmatprep.subr.mxu0 0.0
    %646 = vmatpush1.msra.mxu0 0.0
    %647 = vmatprep.subr.mxu0 0.0
    %648 = vmatpush1.msra.mxu0 %v429
    %649 = vmatprep.subr.mxu0 0.0
    %650 = vmatpush2.msra.mxu0 0.0
    %651 = vmatprep.subr.mxu0 0.0
    %652 = vmatpush2.msra.mxu0 0.0
    %653 = vmatprep.subr.mxu0 0.0
    %654 = vmatpush2.msra.mxu0 0.0
    %655 = vmatprep.subr.mxu0 0.0
    %656 = vmatpush2.msra.mxu0 0.0
    %657 = vmatprep.subr.mxu0 0.0
    %658 = vmatpush2.msra.mxu0 0.0
    %659 = vmatprep.subr.mxu0 0.0
    %660 = vmatpush2.msra.mxu0 0.0
    %661 = vmatprep.subr.mxu0 0.0
    %662 = vmatpush2.msra.mxu0 0.0
    %663 = vmatprep.subr.mxu0 0.0
    %664 = vmatpush2.msra.mxu0 0.0
    %665 = vmatprep.subr.mxu0 0.0
    %666 = vmatpush2.msra.mxu0 0.0
    %667 = vmatprep.subr.mxu0 0.0
    %668 = vmatpush2.msra.mxu0 0.0
    %669 = vmatprep.subr.mxu0 0.0
    %670 = vmatpush2.msra.mxu0 0.0
    %671 = vmatprep.subr.mxu0 0.0
    %672 = vmatpush2.msra.mxu0 0.0
    %673 = vmatprep.subr.mxu0 0.0
    %674 = vmatpush2.msra.mxu0 0.0
    %675 = vmatprep.subr.mxu0 0.0
    %676 = vmatpush2.msra.mxu0 0.0
    %677 = vmatprep.subr.mxu0 0.0
    %678 = vmatpush2.msra.mxu0 0.0
    %679 = vmatprep.subr.mxu0 0.0
    %680 = vmatpush2.msra.mxu0 0.0
    %681 = vmatprep.mubr.f32.mxu0 0.0
    %682 = vmatmul.mubr.f32.gmra.mxu0 %v615
    %v683 = vpop.f32.mrf.mxu0
    %v684 = vadd.f32 0.0, %v683
    %v685 = vpop.f32.mrf.mxu0
    %686 = vdwg.mxu0
    %v688 = vsel %vm437, %v613, 0
    %690 = vmatprep.subr.mxu0 0.0
    %691 = vmatpush1.msra.mxu0 0.0
    %692 = vmatprep.subr.mxu0 0.0
    %693 = vmatpush1.msra.mxu0 0.0
    %694 = vmatprep.subr.mxu0 0.0
    %695 = vmatpush1.msra.mxu0 0.0
    %696 = vmatprep.subr.mxu0 0.0
    %697 = vmatpush1.msra.mxu0 0.0
    %698 = vmatprep.subr.mxu0 0.0
    %699 = vmatpush1.msra.mxu0 0.0
    %700 = vmatprep.subr.mxu0 0.0
    %701 = vmatpush1.msra.mxu0 0.0
    %702 = vmatprep.subr.mxu0 0.0
    %703 = vmatpush1.msra.mxu0 0.0
    %704 = vmatprep.subr.mxu0 0.0
    %705 = vmatpush1.msra.mxu0 0.0
    %706 = vmatprep.subr.mxu0 0.0
    %707 = vmatpush1.msra.mxu0 0.0
    %708 = vmatprep.subr.mxu0 0.0
    %709 = vmatpush1.msra.mxu0 0.0
    %710 = vmatprep.subr.mxu0 0.0
    %711 = vmatpush1.msra.mxu0 0.0
    %712 = vmatprep.subr.mxu0 0.0
    %713 = vmatpush1.msra.mxu0 0.0
    %714 = vmatprep.subr.mxu0 0.0
    %715 = vmatpush1.msra.mxu0 0.0
    %716 = vmatprep.subr.mxu0 0.0
    %717 = vmatpush1.msra.mxu0 0.0
    %718 = vmatprep.subr.mxu0 0.0
    %719 = vmatpush1.msra.mxu0 0.0
    %720 = vmatprep.subr.mxu0 0.0
    %721 = vmatpush1.msra.mxu0 %v434
    %722 = vmatprep.subr.mxu0 0.0
    %723 = vmatpush2.msra.mxu0 0.0
    %724 = vmatprep.subr.mxu0 0.0
    %725 = vmatpush2.msra.mxu0 0.0
    %726 = vmatprep.subr.mxu0 0.0
    %727 = vmatpush2.msra.mxu0 0.0
    %728 = vmatprep.subr.mxu0 0.0
    %729 = vmatpush2.msra.mxu0 0.0
    %730 = vmatprep.subr.mxu0 0.0
    %731 = vmatpush2.msra.mxu0 0.0
    %732 = vmatprep.subr.mxu0 0.0
    %733 = vmatpush2.msra.mxu0 0.0
    %734 = vmatprep.subr.mxu0 0.0
    %735 = vmatpush2.msra.mxu0 0.0
    %736 = vmatprep.subr.mxu0 0.0
    %737 = vmatpush2.msra.mxu0 0.0
    %738 = vmatprep.subr.mxu0 0.0
    %739 = vmatpush2.msra.mxu0 0.0
    %740 = vmatprep.subr.mxu0 0.0
    %741 = vmatpush2.msra.mxu0 0.0
    %742 = vmatprep.subr.mxu0 0.0
    %743 = vmatpush2.msra.mxu0 0.0
    %744 = vmatprep.subr.mxu0 0.0
    %745 = vmatpush2.msra.mxu0 0.0
    %746 = vmatprep.subr.mxu0 0.0
    %747 = vmatpush2.msra.mxu0 0.0
    %748 = vmatprep.subr.mxu0 0.0
    %749 = vmatpush2.msra.mxu0 0.0
    %750 = vmatprep.subr.mxu0 0.0
    %751 = vmatpush2.msra.mxu0 0.0
    %752 = vmatprep.subr.mxu0 0.0
    %753 = vmatpush2.msra.mxu0 0.0
    %754 = vmatprep.mubr.f32.mxu0 0.0
    %755 = vmatmul.mubr.f32.gmra.mxu0 %v688
    %v756 = vpop.f32.mrf.mxu0
    %v757 = vadd.f32 0.0, %v756
    %v758 = vpop.f32.mrf.mxu0
    %759 = vdwg.mxu0
    %v761 = vlaneseq
    %v762 = vshrl.u32 %v761, 7
    %v763 = vsub.s32 0, %v762
    %v764 = vrot.slane %v177, %v763
    %766 = vmatprep.subr.mxu0 0.0
    %767 = vmatpush1.msra.mxu0 0.0
    %768 = vmatprep.subr.mxu0 0.0
    %769 = vmatpush1.msra.mxu0 0.0
    %770 = vmatprep.subr.mxu0 0.0
    %771 = vmatpush1.msra.mxu0 0.0
    %772 = vmatprep.subr.mxu0 0.0
    %773 = vmatpush1.msra.mxu0 0.0
    %774 = vmatprep.subr.mxu0 0.0
    %775 = vmatpush1.msra.mxu0 0.0
    %776 = vmatprep.subr.mxu0 0.0
    %777 = vmatpush1.msra.mxu0 0.0
    %778 = vmatprep.subr.mxu0 0.0
    %779 = vmatpush1.msra.mxu0 0.0
    %780 = vmatprep.subr.mxu0 0.0
    %781 = vmatpush1.msra.mxu0 0.0
    %782 = vmatprep.subr.mxu0 0.0
    %783 = vmatpush1.msra.mxu0 0.0
    %784 = vmatprep.subr.mxu0 0.0
    %785 = vmatpush1.msra.mxu0 0.0
    %786 = vmatprep.subr.mxu0 0.0
    %787 = vmatpush1.msra.mxu0 0.0
    %788 = vmatprep.subr.mxu0 0.0
    %789 = vmatpush1.msra.mxu0 0.0
    %790 = vmatprep.subr.mxu0 0.0
    %791 = vmatpush1.msra.mxu0 %v131
    %792 = vmatprep.subr.mxu0 0.0
    %793 = vmatpush1.msra.mxu0 %v130
    %794 = vmatprep.subr.mxu0 0.0
    %795 = vmatpush1.msra.mxu0 %v129
    %796 = vmatprep.subr.mxu0 0.0
    %797 = vmatpush1.msra.mxu0 %v128
    %798 = vmatprep.subr.mxu0 0.0
    %799 = vmatpush2.msra.mxu0 0.0
    %800 = vmatprep.subr.mxu0 0.0
    %801 = vmatpush2.msra.mxu0 0.0
    %802 = vmatprep.subr.mxu0 0.0
    %803 = vmatpush2.msra.mxu0 0.0
    %804 = vmatprep.subr.mxu0 0.0
    %805 = vmatpush2.msra.mxu0 0.0
    %806 = vmatprep.subr.mxu0 0.0
    %807 = vmatpush2.msra.mxu0 0.0
    %808 = vmatprep.subr.mxu0 0.0
    %809 = vmatpush2.msra.mxu0 0.0
    %810 = vmatprep.subr.mxu0 0.0
    %811 = vmatpush2.msra.mxu0 0.0
    %812 = vmatprep.subr.mxu0 0.0
    %813 = vmatpush2.msra.mxu0 0.0
    %814 = vmatprep.subr.mxu0 0.0
    %815 = vmatpush2.msra.mxu0 0.0
    %816 = vmatprep.subr.mxu0 0.0
    %817 = vmatpush2.msra.mxu0 0.0
    %818 = vmatprep.subr.mxu0 0.0
    %819 = vmatpush2.msra.mxu0 0.0
    %820 = vmatprep.subr.mxu0 0.0
    %821 = vmatpush2.msra.mxu0 0.0
    %822 = vmatprep.subr.mxu0 0.0
    %823 = vmatpush2.msra.mxu0 0.0
    %824 = vmatprep.subr.mxu0 0.0
    %825 = vmatpush2.msra.mxu0 0.0
    %826 = vmatprep.subr.mxu0 0.0
    %827 = vmatpush2.msra.mxu0 0.0
    %828 = vmatprep.subr.mxu0 0.0
    %829 = vmatpush2.msra.mxu0 0.0
    %830 = vmatprep.mubr.f32.mxu0 0.0
    %831 = vmatmul.mubr.f32.gmra.mxu0 %v195
    %v832 = vpop.f32.mrf.mxu0
    %v833 = vadd.f32 %v764, %v832
    %v834 = vpop.f32.mrf.mxu0
    %835 = vmatprep.mubr.f32.mxu0 0.0
    %836 = vmatmul.mubr.f32.gmra.mxu0 %v198
    %v837 = vpop.f32.mrf.mxu0
    %v838 = vadd.f32 %v764, %v837
    %v839 = vpop.f32.mrf.mxu0
    %840 = vdwg.mxu0
    %v842 = vlaneseq
    %v843 = vshrl.u32 %v842, 7
    %v844 = vsub.s32 0, %v843
    %v845 = vrot.slane %v181, %v844
    %847 = vmatprep.subr.mxu0 0.0
    %848 = vmatpush1.msra.mxu0 0.0
    %849 = vmatprep.subr.mxu0 0.0
    %850 = vmatpush1.msra.mxu0 0.0
    %851 = vmatprep.subr.mxu0 0.0
    %852 = vmatpush1.msra.mxu0 0.0
    %853 = vmatprep.subr.mxu0 0.0
    %854 = vmatpush1.msra.mxu0 0.0
    %855 = vmatprep.subr.mxu0 0.0
    %856 = vmatpush1.msra.mxu0 0.0
    %857 = vmatprep.subr.mxu0 0.0
    %858 = vmatpush1.msra.mxu0 0.0
    %859 = vmatprep.subr.mxu0 0.0
    %860 = vmatpush1.msra.mxu0 0.0
    %861 = vmatprep.subr.mxu0 0.0
    %862 = vmatpush1.msra.mxu0 0.0
    %863 = vmatprep.subr.mxu0 0.0
    %864 = vmatpush1.msra.mxu0 0.0
    %865 = vmatprep.subr.mxu0 0.0
    %866 = vmatpush1.msra.mxu0 0.0
    %867 = vmatprep.subr.mxu0 0.0
    %868 = vmatpush1.msra.mxu0 0.0
    %869 = vmatprep.subr.mxu0 0.0
    %870 = vmatpush1.msra.mxu0 0.0
    %871 = vmatprep.subr.mxu0 0.0
    %872 = vmatpush1.msra.mxu0 %v147
    %873 = vmatprep.subr.mxu0 0.0
    %874 = vmatpush1.msra.mxu0 %v146
    %875 = vmatprep.subr.mxu0 0.0
    %876 = vmatpush1.msra.mxu0 %v145
    %877 = vmatprep.subr.mxu0 0.0
    %878 = vmatpush1.msra.mxu0 %v144
    %879 = vmatprep.subr.mxu0 0.0
    %880 = vmatpush2.msra.mxu0 0.0
    %881 = vmatprep.subr.mxu0 0.0
    %882 = vmatpush2.msra.mxu0 0.0
    %883 = vmatprep.subr.mxu0 0.0
    %884 = vmatpush2.msra.mxu0 0.0
    %885 = vmatprep.subr.mxu0 0.0
    %886 = vmatpush2.msra.mxu0 0.0
    %887 = vmatprep.subr.mxu0 0.0
    %888 = vmatpush2.msra.mxu0 0.0
    %889 = vmatprep.subr.mxu0 0.0
    %890 = vmatpush2.msra.mxu0 0.0
    %891 = vmatprep.subr.mxu0 0.0
    %892 = vmatpush2.msra.mxu0 0.0
    %893 = vmatprep.subr.mxu0 0.0
    %894 = vmatpush2.msra.mxu0 0.0
    %895 = vmatprep.subr.mxu0 0.0
    %896 = vmatpush2.msra.mxu0 0.0
    %897 = vmatprep.subr.mxu0 0.0
    %898 = vmatpush2.msra.mxu0 0.0
    %899 = vmatprep.subr.mxu0 0.0
    %900 = vmatpush2.msra.mxu0 0.0
    %901 = vmatprep.subr.mxu0 0.0
    %902 = vmatpush2.msra.mxu0 0.0
    %903 = vmatprep.subr.mxu0 0.0
    %904 = vmatpush2.msra.mxu0 0.0
    %905 = vmatprep.subr.mxu0 0.0
    %906 = vmatpush2.msra.mxu0 0.0
    %907 = vmatprep.subr.mxu0 0.0
    %908 = vmatpush2.msra.mxu0 0.0
    %909 = vmatprep.subr.mxu0 0.0
    %910 = vmatpush2.msra.mxu0 0.0
    %911 = vmatprep.mubr.f32.mxu0 0.0
    %912 = vmatmul.mubr.f32.gmra.mxu0 %v195
    %v913 = vpop.f32.mrf.mxu0
    %v914 = vadd.f32 %v845, %v913
    %v915 = vpop.f32.mrf.mxu0
    %916 = vmatprep.mubr.f32.mxu0 0.0
    %917 = vmatmul.mubr.f32.gmra.mxu0 %v198
    %v918 = vpop.f32.mrf.mxu0
    %v919 = vadd.f32 %v845, %v918
    %v920 = vpop.f32.mrf.mxu0
    %921 = vdwg.mxu0
    %v923 = vlaneseq
    %v924 = vshrl.u32 %v923, 7
    %v925 = vsub.s32 0, %v924
    %v926 = vrot.slane %v185, %v925
    %928 = vmatprep.subr.mxu0 0.0
    %929 = vmatpush1.msra.mxu0 0.0
    %930 = vmatprep.subr.mxu0 0.0
    %931 = vmatpush1.msra.mxu0 0.0
    %932 = vmatprep.subr.mxu0 0.0
    %933 = vmatpush1.msra.mxu0 0.0
    %934 = vmatprep.subr.mxu0 0.0
    %935 = vmatpush1.msra.mxu0 0.0
    %936 = vmatprep.subr.mxu0 0.0
    %937 = vmatpush1.msra.mxu0 0.0
    %938 = vmatprep.subr.mxu0 0.0
    %939 = vmatpush1.msra.mxu0 0.0
    %940 = vmatprep.subr.mxu0 0.0
    %941 = vmatpush1.msra.mxu0 0.0
    %942 = vmatprep.subr.mxu0 0.0
    %943 = vmatpush1.msra.mxu0 0.0
    %944 = vmatprep.subr.mxu0 0.0
    %945 = vmatpush1.msra.mxu0 0.0
    %946 = vmatprep.subr.mxu0 0.0
    %947 = vmatpush1.msra.mxu0 0.0
    %948 = vmatprep.subr.mxu0 0.0
    %949 = vmatpush1.msra.mxu0 0.0
    %950 = vmatprep.subr.mxu0 0.0
    %951 = vmatpush1.msra.mxu0 0.0
    %952 = vmatprep.subr.mxu0 0.0
    %953 = vmatpush1.msra.mxu0 %v163
    %954 = vmatprep.subr.mxu0 0.0
    %955 = vmatpush1.msra.mxu0 %v162
    %956 = vmatprep.subr.mxu0 0.0
    %957 = vmatpush1.msra.mxu0 %v161
    %958 = vmatprep.subr.mxu0 0.0
    %959 = vmatpush1.msra.mxu0 %v160
    %960 = vmatprep.subr.mxu0 0.0
    %961 = vmatpush2.msra.mxu0 0.0
    %962 = vmatprep.subr.mxu0 0.0
    %963 = vmatpush2.msra.mxu0 0.0
    %964 = vmatprep.subr.mxu0 0.0
    %965 = vmatpush2.msra.mxu0 0.0
    %966 = vmatprep.subr.mxu0 0.0
    %967 = vmatpush2.msra.mxu0 0.0
    %968 = vmatprep.subr.mxu0 0.0
    %969 = vmatpush2.msra.mxu0 0.0
    %970 = vmatprep.subr.mxu0 0.0
    %971 = vmatpush2.msra.mxu0 0.0
    %972 = vmatprep.subr.mxu0 0.0
    %973 = vmatpush2.msra.mxu0 0.0
    %974 = vmatprep.subr.mxu0 0.0
    %975 = vmatpush2.msra.mxu0 0.0
    %976 = vmatprep.subr.mxu0 0.0
    %977 = vmatpush2.msra.mxu0 0.0
    %978 = vmatprep.subr.mxu0 0.0
    %979 = vmatpush2.msra.mxu0 0.0
    %980 = vmatprep.subr.mxu0 0.0
    %981 = vmatpush2.msra.mxu0 0.0
    %982 = vmatprep.subr.mxu0 0.0
    %983 = vmatpush2.msra.mxu0 0.0
    %984 = vmatprep.subr.mxu0 0.0
    %985 = vmatpush2.msra.mxu0 0.0
    %986 = vmatprep.subr.mxu0 0.0
    %987 = vmatpush2.msra.mxu0 0.0
    %988 = vmatprep.subr.mxu0 0.0
    %989 = vmatpush2.msra.mxu0 0.0
    %990 = vmatprep.subr.mxu0 0.0
    %991 = vmatpush2.msra.mxu0 0.0
    %992 = vmatprep.mubr.f32.mxu0 0.0
    %993 = vmatmul.mubr.f32.gmra.mxu0 %v195
    %v994 = vpop.f32.mrf.mxu0
    %v995 = vadd.f32 %v926, %v994
    %v996 = vpop.f32.mrf.mxu0
    %997 = vmatprep.mubr.f32.mxu0 0.0
    %998 = vmatmul.mubr.f32.gmra.mxu0 %v198
    %v999 = vpop.f32.mrf.mxu0
    %v1000 = vadd.f32 %v926, %v999
    %v1001 = vpop.f32.mrf.mxu0
    %1002 = vdwg.mxu0
    %v1004 = vsel %vm437, %v833, 0
    %v1007 = vsel %vm437, %v914, 0
    %1009 = vmatprep.subr.mxu0 0.0
    %1010 = vmatpush1.xpose.msra.mxu0 0.0
    %1011 = vmatprep.subr.mxu0 0.0
    %1012 = vmatpush1.xpose.msra.mxu0 0.0
    %1013 = vmatprep.subr.mxu0 0.0
    %1014 = vmatpush1.xpose.msra.mxu0 0.0
    %1015 = vmatprep.subr.mxu0 0.0
    %1016 = vmatpush1.xpose.msra.mxu0 0.0
    %1017 = vmatprep.subr.mxu0 0.0
    %1018 = vmatpush1.xpose.msra.mxu0 0.0
    %1019 = vmatprep.subr.mxu0 0.0
    %1020 = vmatpush1.xpose.msra.mxu0 0.0
    %1021 = vmatprep.subr.mxu0 0.0
    %1022 = vmatpush1.xpose.msra.mxu0 0.0
    %1023 = vmatprep.subr.mxu0 0.0
    %1024 = vmatpush1.xpose.msra.mxu0 0.0
    %1025 = vmatprep.subr.mxu0 0.0
    %1026 = vmatpush1.xpose.msra.mxu0 0.0
    %1027 = vmatprep.subr.mxu0 0.0
    %1028 = vmatpush1.xpose.msra.mxu0 0.0
    %1029 = vmatprep.subr.mxu0 0.0
    %1030 = vmatpush1.xpose.msra.mxu0 0.0
    %1031 = vmatprep.subr.mxu0 0.0
    %1032 = vmatpush1.xpose.msra.mxu0 0.0
    %1033 = vmatprep.subr.mxu0 0.0
    %1034 = vmatpush1.xpose.msra.mxu0 0.0
    %1035 = vmatprep.subr.mxu0 0.0
    %1036 = vmatpush1.xpose.msra.mxu0 0.0
    %1037 = vmatprep.subr.mxu0 0.0
    %1038 = vmatpush1.xpose.msra.mxu0 0.0
    %1039 = vmatprep.subr.mxu0 0.0
    %1040 = vmatpush1.xpose.msra.mxu0 %v1007
    %1041 = vmatprep.subr.mxu0 0.0
    %1042 = vmatpush2.xpose.msra.mxu0 0.0
    %1043 = vmatprep.subr.mxu0 0.0
    %1044 = vmatpush2.xpose.msra.mxu0 0.0
    %1045 = vmatprep.subr.mxu0 0.0
    %1046 = vmatpush2.xpose.msra.mxu0 0.0
    %1047 = vmatprep.subr.mxu0 0.0
    %1048 = vmatpush2.xpose.msra.mxu0 0.0
    %1049 = vmatprep.subr.mxu0 0.0
    %1050 = vmatpush2.xpose.msra.mxu0 0.0
    %1051 = vmatprep.subr.mxu0 0.0
    %1052 = vmatpush2.xpose.msra.mxu0 0.0
    %1053 = vmatprep.subr.mxu0 0.0
    %1054 = vmatpush2.xpose.msra.mxu0 0.0
    %1055 = vmatprep.subr.mxu0 0.0
    %1056 = vmatpush2.xpose.msra.mxu0 0.0
    %1057 = vmatprep.subr.mxu0 0.0
    %1058 = vmatpush2.xpose.msra.mxu0 0.0
    %1059 = vmatprep.subr.mxu0 0.0
    %1060 = vmatpush2.xpose.msra.mxu0 0.0
    %1061 = vmatprep.subr.mxu0 0.0
    %1062 = vmatpush2.xpose.msra.mxu0 0.0
    %1063 = vmatprep.subr.mxu0 0.0
    %1064 = vmatpush2.xpose.msra.mxu0 0.0
    %1065 = vmatprep.subr.mxu0 0.0
    %1066 = vmatpush2.xpose.msra.mxu0 0.0
    %1067 = vmatprep.subr.mxu0 0.0
    %1068 = vmatpush2.xpose.msra.mxu0 0.0
    %1069 = vmatprep.subr.mxu0 0.0
    %1070 = vmatpush2.xpose.msra.mxu0 0.0
    %1071 = vmatprep.subr.mxu0 0.0
    %1072 = vmatpush2.xpose.msra.mxu0 0.0
    %1073 = vmatprep.mubr.f32.mxu0 0.0
    %1074 = vmatmul.mubr.f32.gmra.mxu0 %v1004
    %v1075 = vpop.f32.mrf.mxu0
    %v1076 = vadd.f32 0.0, %v1075
    %v1077 = vpop.f32.mrf.mxu0
    %1078 = vdwg.mxu0
    %v1080 = vsel %vm437, %v838, 0
    %v1083 = vsel %vm437, %v919, 0
    %1085 = vmatprep.subr.mxu0 0.0
    %1086 = vmatpush1.xpose.msra.mxu0 0.0
    %1087 = vmatprep.subr.mxu0 0.0
    %1088 = vmatpush1.xpose.msra.mxu0 0.0
    %1089 = vmatprep.subr.mxu0 0.0
    %1090 = vmatpush1.xpose.msra.mxu0 0.0
    %1091 = vmatprep.subr.mxu0 0.0
    %1092 = vmatpush1.xpose.msra.mxu0 0.0
    %1093 = vmatprep.subr.mxu0 0.0
    %1094 = vmatpush1.xpose.msra.mxu0 0.0
    %1095 = vmatprep.subr.mxu0 0.0
    %1096 = vmatpush1.xpose.msra.mxu0 0.0
    %1097 = vmatprep.subr.mxu0 0.0
    %1098 = vmatpush1.xpose.msra.mxu0 0.0
    %1099 = vmatprep.subr.mxu0 0.0
    %1100 = vmatpush1.xpose.msra.mxu0 0.0
    %1101 = vmatprep.subr.mxu0 0.0
    %1102 = vmatpush1.xpose.msra.mxu0 0.0
    %1103 = vmatprep.subr.mxu0 0.0
    %1104 = vmatpush1.xpose.msra.mxu0 0.0
    %1105 = vmatprep.subr.mxu0 0.0
    %1106 = vmatpush1.xpose.msra.mxu0 0.0
    %1107 = vmatprep.subr.mxu0 0.0
    %1108 = vmatpush1.xpose.msra.mxu0 0.0
    %1109 = vmatprep.subr.mxu0 0.0
    %1110 = vmatpush1.xpose.msra.mxu0 0.0
    %1111 = vmatprep.subr.mxu0 0.0
    %1112 = vmatpush1.xpose.msra.mxu0 0.0
    %1113 = vmatprep.subr.mxu0 0.0
    %1114 = vmatpush1.xpose.msra.mxu0 0.0
    %1115 = vmatprep.subr.mxu0 0.0
    %1116 = vmatpush1.xpose.msra.mxu0 %v1083
    %1117 = vmatprep.subr.mxu0 0.0
    %1118 = vmatpush2.xpose.msra.mxu0 0.0
    %1119 = vmatprep.subr.mxu0 0.0
    %1120 = vmatpush2.xpose.msra.mxu0 0.0
    %1121 = vmatprep.subr.mxu0 0.0
    %1122 = vmatpush2.xpose.msra.mxu0 0.0
    %1123 = vmatprep.subr.mxu0 0.0
    %1124 = vmatpush2.xpose.msra.mxu0 0.0
    %1125 = vmatprep.subr.mxu0 0.0
    %1126 = vmatpush2.xpose.msra.mxu0 0.0
    %1127 = vmatprep.subr.mxu0 0.0
    %1128 = vmatpush2.xpose.msra.mxu0 0.0
    %1129 = vmatprep.subr.mxu0 0.0
    %1130 = vmatpush2.xpose.msra.mxu0 0.0
    %1131 = vmatprep.subr.mxu0 0.0
    %1132 = vmatpush2.xpose.msra.mxu0 0.0
    %1133 = vmatprep.subr.mxu0 0.0
    %1134 = vmatpush2.xpose.msra.mxu0 0.0
    %1135 = vmatprep.subr.mxu0 0.0
    %1136 = vmatpush2.xpose.msra.mxu0 0.0
    %1137 = vmatprep.subr.mxu0 0.0
    %1138 = vmatpush2.xpose.msra.mxu0 0.0
    %1139 = vmatprep.subr.mxu0 0.0
    %1140 = vmatpush2.xpose.msra.mxu0 0.0
    %1141 = vmatprep.subr.mxu0 0.0
    %1142 = vmatpush2.xpose.msra.mxu0 0.0
    %1143 = vmatprep.subr.mxu0 0.0
    %1144 = vmatpush2.xpose.msra.mxu0 0.0
    %1145 = vmatprep.subr.mxu0 0.0
    %1146 = vmatpush2.xpose.msra.mxu0 0.0
    %1147 = vmatprep.subr.mxu0 0.0
    %1148 = vmatpush2.xpose.msra.mxu0 0.0
    %1149 = vmatprep.mubr.f32.mxu0 0.0
    %1150 = vmatmul.mubr.f32.gmra.mxu0 %v1080
    %v1151 = vpop.f32.mrf.mxu0
    %v1152 = vadd.f32 0.0, %v1151
    %v1153 = vpop.f32.mrf.mxu0
    %1154 = vdwg.mxu0
    %v1155 = vmul.f32 %v1076, 0.35355338
    %v1156 = vmul.f32 %v1152, 0.35355338
    %v1157 = vsel %vm437, %v1155, -inf
    %1158 = vmax.xlane.f32.xlu0 %v1157
    %v1159 = vpop.xlane.xlu0 %1158
    %v1160 = vsel %vm437, %v1156, -inf
    %1161 = vmax.xlane.f32.xlu0 %v1160
    %v1162 = vpop.xlane.xlu0 %1161
    %v1163 = vsub.f32 %v1155, %v1159
    %v1164 = vsub.f32 %v1156, %v1162
    %v1165 = vmul.f32 %v1163, 1.442695
    %v1166 = vpow.pop %v1165
    %v1167 = vmul.f32 %v1164, 1.442695
    %v1168 = vpow.pop %v1167
    %v1169 = vsel %vm437, %v1166, 0.0
    %1170 = vadd.xlane.f32.xlu0 %v1169
    %v1171 = vpop.xlane.xlu0 %1170
    %v1172 = vsel %vm437, %v1168, 0.0
    %1173 = vadd.xlane.f32.xlu0 %v1172
    %v1174 = vpop.xlane.xlu0 %1173
    %v1175 = vrcp.pop %v1171
    %v1176 = vrcp.pop %v1174
    %v1177 = vmul.f32 %v1166, %v1175
    %v1178 = vmul.f32 %v1168, %v1176
    %v1180 = vsel %vm437, %v1177, 0
    %1182 = vmatprep.subr.mxu0 0.0
    %1183 = vmatpush1.msra.mxu0 0.0
    %1184 = vmatprep.subr.mxu0 0.0
    %1185 = vmatpush1.msra.mxu0 0.0
    %1186 = vmatprep.subr.mxu0 0.0
    %1187 = vmatpush1.msra.mxu0 0.0
    %1188 = vmatprep.subr.mxu0 0.0
    %1189 = vmatpush1.msra.mxu0 0.0
    %1190 = vmatprep.subr.mxu0 0.0
    %1191 = vmatpush1.msra.mxu0 0.0
    %1192 = vmatprep.subr.mxu0 0.0
    %1193 = vmatpush1.msra.mxu0 0.0
    %1194 = vmatprep.subr.mxu0 0.0
    %1195 = vmatpush1.msra.mxu0 0.0
    %1196 = vmatprep.subr.mxu0 0.0
    %1197 = vmatpush1.msra.mxu0 0.0
    %1198 = vmatprep.subr.mxu0 0.0
    %1199 = vmatpush1.msra.mxu0 0.0
    %1200 = vmatprep.subr.mxu0 0.0
    %1201 = vmatpush1.msra.mxu0 0.0
    %1202 = vmatprep.subr.mxu0 0.0
    %1203 = vmatpush1.msra.mxu0 0.0
    %1204 = vmatprep.subr.mxu0 0.0
    %1205 = vmatpush1.msra.mxu0 0.0
    %1206 = vmatprep.subr.mxu0 0.0
    %1207 = vmatpush1.msra.mxu0 0.0
    %1208 = vmatprep.subr.mxu0 0.0
    %1209 = vmatpush1.msra.mxu0 0.0
    %1210 = vmatprep.subr.mxu0 0.0
    %1211 = vmatpush1.msra.mxu0 0.0
    %1212 = vmatprep.subr.mxu0 0.0
    %1213 = vmatpush1.msra.mxu0 %v995
    %1214 = vmatprep.subr.mxu0 0.0
    %1215 = vmatpush2.msra.mxu0 0.0
    %1216 = vmatprep.subr.mxu0 0.0
    %1217 = vmatpush2.msra.mxu0 0.0
    %1218 = vmatprep.subr.mxu0 0.0
    %1219 = vmatpush2.msra.mxu0 0.0
    %1220 = vmatprep.subr.mxu0 0.0
    %1221 = vmatpush2.msra.mxu0 0.0
    %1222 = vmatprep.subr.mxu0 0.0
    %1223 = vmatpush2.msra.mxu0 0.0
    %1224 = vmatprep.subr.mxu0 0.0
    %1225 = vmatpush2.msra.mxu0 0.0
    %1226 = vmatprep.subr.mxu0 0.0
    %1227 = vmatpush2.msra.mxu0 0.0
    %1228 = vmatprep.subr.mxu0 0.0
    %1229 = vmatpush2.msra.mxu0 0.0
    %1230 = vmatprep.subr.mxu0 0.0
    %1231 = vmatpush2.msra.mxu0 0.0
    %1232 = vmatprep.subr.mxu0 0.0
    %1233 = vmatpush2.msra.mxu0 0.0
    %1234 = vmatprep.subr.mxu0 0.0
    %1235 = vmatpush2.msra.mxu0 0.0
    %1236 = vmatprep.subr.mxu0 0.0
    %1237 = vmatpush2.msra.mxu0 0.0
    %1238 = vmatprep.subr.mxu0 0.0
    %1239 = vmatpush2.msra.mxu0 0.0
    %1240 = vmatprep.subr.mxu0 0.0
    %1241 = vmatpush2.msra.mxu0 0.0
    %1242 = vmatprep.subr.mxu0 0.0
    %1243 = vmatpush2.msra.mxu0 0.0
    %1244 = vmatprep.subr.mxu0 0.0
    %1245 = vmatpush2.msra.mxu0 0.0
    %1246 = vmatprep.mubr.f32.mxu0 0.0
    %1247 = vmatmul.mubr.f32.gmra.mxu0 %v1180
    %v1248 = vpop.f32.mrf.mxu0
    %v1249 = vadd.f32 0.0, %v1248
    %v1250 = vpop.f32.mrf.mxu0
    %1251 = vdwg.mxu0
    %v1253 = vsel %vm437, %v1178, 0
    %1255 = vmatprep.subr.mxu0 0.0
    %1256 = vmatpush1.msra.mxu0 0.0
    %1257 = vmatprep.subr.mxu0 0.0
    %1258 = vmatpush1.msra.mxu0 0.0
    %1259 = vmatprep.subr.mxu0 0.0
    %1260 = vmatpush1.msra.mxu0 0.0
    %1261 = vmatprep.subr.mxu0 0.0
    %1262 = vmatpush1.msra.mxu0 0.0
    %1263 = vmatprep.subr.mxu0 0.0
    %1264 = vmatpush1.msra.mxu0 0.0
    %1265 = vmatprep.subr.mxu0 0.0
    %1266 = vmatpush1.msra.mxu0 0.0
    %1267 = vmatprep.subr.mxu0 0.0
    %1268 = vmatpush1.msra.mxu0 0.0
    %1269 = vmatprep.subr.mxu0 0.0
    %1270 = vmatpush1.msra.mxu0 0.0
    %1271 = vmatprep.subr.mxu0 0.0
    %1272 = vmatpush1.msra.mxu0 0.0
    %1273 = vmatprep.subr.mxu0 0.0
    %1274 = vmatpush1.msra.mxu0 0.0
    %1275 = vmatprep.subr.mxu0 0.0
    %1276 = vmatpush1.msra.mxu0 0.0
    %1277 = vmatprep.subr.mxu0 0.0
    %1278 = vmatpush1.msra.mxu0 0.0
    %1279 = vmatprep.subr.mxu0 0.0
    %1280 = vmatpush1.msra.mxu0 0.0
    %1281 = vmatprep.subr.mxu0 0.0
    %1282 = vmatpush1.msra.mxu0 0.0
    %1283 = vmatprep.subr.mxu0 0.0
    %1284 = vmatpush1.msra.mxu0 0.0
    %1285 = vmatprep.subr.mxu0 0.0
    %1286 = vmatpush1.msra.mxu0 %v1000
    %1287 = vmatprep.subr.mxu0 0.0
    %1288 = vmatpush2.msra.mxu0 0.0
    %1289 = vmatprep.subr.mxu0 0.0
    %1290 = vmatpush2.msra.mxu0 0.0
    %1291 = vmatprep.subr.mxu0 0.0
    %1292 = vmatpush2.msra.mxu0 0.0
    %1293 = vmatprep.subr.mxu0 0.0
    %1294 = vmatpush2.msra.mxu0 0.0
    %1295 = vmatprep.subr.mxu0 0.0
    %1296 = vmatpush2.msra.mxu0 0.0
    %1297 = vmatprep.subr.mxu0 0.0
    %1298 = vmatpush2.msra.mxu0 0.0
    %1299 = vmatprep.subr.mxu0 0.0
    %1300 = vmatpush2.msra.mxu0 0.0
    %1301 = vmatprep.subr.mxu0 0.0
    %1302 = vmatpush2.msra.mxu0 0.0
    %1303 = vmatprep.subr.mxu0 0.0
    %1304 = vmatpush2.msra.mxu0 0.0
    %1305 = vmatprep.subr.mxu0 0.0
    %1306 = vmatpush2.msra.mxu0 0.0
    %1307 = vmatprep.subr.mxu0 0.0
    %1308 = vmatpush2.msra.mxu0 0.0
    %1309 = vmatprep.subr.mxu0 0.0
    %1310 = vmatpush2.msra.mxu0 0.0
    %1311 = vmatprep.subr.mxu0 0.0
    %1312 = vmatpush2.msra.mxu0 0.0
    %1313 = vmatprep.subr.mxu0 0.0
    %1314 = vmatpush2.msra.mxu0 0.0
    %1315 = vmatprep.subr.mxu0 0.0
    %1316 = vmatpush2.msra.mxu0 0.0
    %1317 = vmatprep.subr.mxu0 0.0
    %1318 = vmatpush2.msra.mxu0 0.0
    %1319 = vmatprep.mubr.f32.mxu0 0.0
    %1320 = vmatmul.mubr.f32.gmra.mxu0 %v1253
    %v1321 = vpop.f32.mrf.mxu0
    %v1322 = vadd.f32 0.0, %v1321
    %v1323 = vpop.f32.mrf.mxu0
    %1324 = vdwg.mxu0
    %v1326 = vsel %vm437, %v1249, 0
    %v1329 = vsel %vm437, %v1322, 0
    %1331 = vmatprep.subr.mxu0 0.0
    %1332 = vmatpush1.msra.mxu0 0.0
    %1333 = vmatprep.subr.mxu0 0.0
    %1334 = vmatpush1.msra.mxu0 0.0
    %1335 = vmatprep.subr.mxu0 0.0
    %1336 = vmatpush1.msra.mxu0 0.0
    %1337 = vmatprep.subr.mxu0 0.0
    %1338 = vmatpush1.msra.mxu0 0.0
    %1339 = vmatprep.subr.mxu0 0.0
    %1340 = vmatpush1.msra.mxu0 0.0
    %1341 = vmatprep.subr.mxu0 0.0
    %1342 = vmatpush1.msra.mxu0 0.0
    %1343 = vmatprep.subr.mxu0 0.0
    %1344 = vmatpush1.msra.mxu0 0.0
    %1345 = vmatprep.subr.mxu0 0.0
    %1346 = vmatpush1.msra.mxu0 0.0
    %1347 = vmatprep.subr.mxu0 0.0
    %1348 = vmatpush1.msra.mxu0 0.0
    %1349 = vmatprep.subr.mxu0 0.0
    %1350 = vmatpush1.msra.mxu0 0.0
    %1351 = vmatprep.subr.mxu0 0.0
    %1352 = vmatpush1.msra.mxu0 0.0
    %1353 = vmatprep.subr.mxu0 0.0
    %1354 = vmatpush1.msra.mxu0 0.0
    %1355 = vmatprep.subr.mxu0 0.0
    %1356 = vmatpush1.msra.mxu0 0.0
    %1357 = vmatprep.subr.mxu0 0.0
    %1358 = vmatpush1.msra.mxu0 0.0
    %1359 = vmatprep.subr.mxu0 0.0
    %1360 = vmatpush1.msra.mxu0 0.0
    %1361 = vmatprep.subr.mxu0 0.0
    %1362 = vmatpush1.msra.mxu0 %v173
    %1363 = vmatprep.subr.mxu0 0.0
    %1364 = vmatpush2.msra.mxu0 0.0
    %1365 = vmatprep.subr.mxu0 0.0
    %1366 = vmatpush2.msra.mxu0 0.0
    %1367 = vmatprep.subr.mxu0 0.0
    %1368 = vmatpush2.msra.mxu0 0.0
    %1369 = vmatprep.subr.mxu0 0.0
    %1370 = vmatpush2.msra.mxu0 0.0
    %1371 = vmatprep.subr.mxu0 0.0
    %1372 = vmatpush2.msra.mxu0 0.0
    %1373 = vmatprep.subr.mxu0 0.0
    %1374 = vmatpush2.msra.mxu0 0.0
    %1375 = vmatprep.subr.mxu0 0.0
    %1376 = vmatpush2.msra.mxu0 0.0
    %1377 = vmatprep.subr.mxu0 0.0
    %1378 = vmatpush2.msra.mxu0 0.0
    %1379 = vmatprep.subr.mxu0 0.0
    %1380 = vmatpush2.msra.mxu0 0.0
    %1381 = vmatprep.subr.mxu0 0.0
    %1382 = vmatpush2.msra.mxu0 0.0
    %1383 = vmatprep.subr.mxu0 0.0
    %1384 = vmatpush2.msra.mxu0 0.0
    %1385 = vmatprep.subr.mxu0 0.0
    %1386 = vmatpush2.msra.mxu0 0.0
    %1387 = vmatprep.subr.mxu0 0.0
    %1388 = vmatpush2.msra.mxu0 0.0
    %1389 = vmatprep.subr.mxu0 0.0
    %1390 = vmatpush2.msra.mxu0 0.0
    %1391 = vmatprep.subr.mxu0 0.0
    %1392 = vmatpush2.msra.mxu0 0.0
    %1393 = vmatprep.subr.mxu0 0.0
    %1394 = vmatpush2.msra.mxu0 0.0
    %1395 = vmatprep.mubr.f32.mxu0 0.0
    %1396 = vmatmul.mubr.f32.gmra.mxu0 %v1326
    %v1397 = vpop.f32.mrf.mxu0
    %v1398 = vadd.f32 0.0, %v1397
    %v1399 = vpop.f32.mrf.mxu0
    %1400 = vmatprep.mubr.f32.mxu0 0.0
    %1401 = vmatmul.mubr.f32.gmra.mxu0 %v1329
    %v1402 = vpop.f32.mrf.mxu0
    %v1403 = vadd.f32 0.0, %v1402
    %v1404 = vpop.f32.mrf.mxu0
    %1405 = vdwg.mxu0
    %v1407 = vsel %vm437, %v684, 0
    %v1410 = vsel %vm437, %v757, 0
    %1412 = vmatprep.subr.mxu0 0.0
    %1413 = vmatpush1.msra.mxu0 0.0
    %1414 = vmatprep.subr.mxu0 0.0
    %1415 = vmatpush1.msra.mxu0 0.0
    %1416 = vmatprep.subr.mxu0 0.0
    %1417 = vmatpush1.msra.mxu0 0.0
    %1418 = vmatprep.subr.mxu0 0.0
    %1419 = vmatpush1.msra.mxu0 0.0
    %1420 = vmatprep.subr.mxu0 0.0
    %1421 = vmatpush1.msra.mxu0 0.0
    %1422 = vmatprep.subr.mxu0 0.0
    %1423 = vmatpush1.msra.mxu0 0.0
    %1424 = vmatprep.subr.mxu0 0.0
    %1425 = vmatpush1.msra.mxu0 0.0
    %1426 = vmatprep.subr.mxu0 0.0
    %1427 = vmatpush1.msra.mxu0 0.0
    %1428 = vmatprep.subr.mxu0 0.0
    %1429 = vmatpush1.msra.mxu0 0.0
    %1430 = vmatprep.subr.mxu0 0.0
    %1431 = vmatpush1.msra.mxu0 0.0
    %1432 = vmatprep.subr.mxu0 0.0
    %1433 = vmatpush1.msra.mxu0 0.0
    %1434 = vmatprep.subr.mxu0 0.0
    %1435 = vmatpush1.msra.mxu0 0.0
    %1436 = vmatprep.subr.mxu0 0.0
    %1437 = vmatpush1.msra.mxu0 0.0
    %1438 = vmatprep.subr.mxu0 0.0
    %1439 = vmatpush1.msra.mxu0 0.0
    %1440 = vmatprep.subr.mxu0 0.0
    %1441 = vmatpush1.msra.mxu0 0.0
    %1442 = vmatprep.subr.mxu0 0.0
    %1443 = vmatpush1.msra.mxu0 %v172
    %1444 = vmatprep.subr.mxu0 0.0
    %1445 = vmatpush2.msra.mxu0 0.0
    %1446 = vmatprep.subr.mxu0 0.0
    %1447 = vmatpush2.msra.mxu0 0.0
    %1448 = vmatprep.subr.mxu0 0.0
    %1449 = vmatpush2.msra.mxu0 0.0
    %1450 = vmatprep.subr.mxu0 0.0
    %1451 = vmatpush2.msra.mxu0 0.0
    %1452 = vmatprep.subr.mxu0 0.0
    %1453 = vmatpush2.msra.mxu0 0.0
    %1454 = vmatprep.subr.mxu0 0.0
    %1455 = vmatpush2.msra.mxu0 0.0
    %1456 = vmatprep.subr.mxu0 0.0
    %1457 = vmatpush2.msra.mxu0 0.0
    %1458 = vmatprep.subr.mxu0 0.0
    %1459 = vmatpush2.msra.mxu0 0.0
    %1460 = vmatprep.subr.mxu0 0.0
    %1461 = vmatpush2.msra.mxu0 0.0
    %1462 = vmatprep.subr.mxu0 0.0
    %1463 = vmatpush2.msra.mxu0 0.0
    %1464 = vmatprep.subr.mxu0 0.0
    %1465 = vmatpush2.msra.mxu0 0.0
    %1466 = vmatprep.subr.mxu0 0.0
    %1467 = vmatpush2.msra.mxu0 0.0
    %1468 = vmatprep.subr.mxu0 0.0
    %1469 = vmatpush2.msra.mxu0 0.0
    %1470 = vmatprep.subr.mxu0 0.0
    %1471 = vmatpush2.msra.mxu0 0.0
    %1472 = vmatprep.subr.mxu0 0.0
    %1473 = vmatpush2.msra.mxu0 0.0
    %1474 = vmatprep.subr.mxu0 0.0
    %1475 = vmatpush2.msra.mxu0 0.0
    %1476 = vmatprep.mubr.f32.mxu0 0.0
    %1477 = vmatmul.mubr.f32.gmra.mxu0 %v1407
    %v1478 = vpop.f32.mrf.mxu0
    %v1479 = vadd.f32 %v1398, %v1478
    %v1480 = vpop.f32.mrf.mxu0
    %1481 = vmatprep.mubr.f32.mxu0 0.0
    %1482 = vmatmul.mubr.f32.gmra.mxu0 %v1410
    %v1483 = vpop.f32.mrf.mxu0
    %v1484 = vadd.f32 %v1403, %v1483
    %v1485 = vpop.f32.mrf.mxu0
    %1486 = vdwg.mxu0
    %v1488 = vlaneseq
    %v1489 = vshrl.u32 %v1488, 7
    %v1490 = vsub.s32 0, %v1489
    %v1491 = vrot.slane %v178, %v1490
    %1493 = vmatprep.subr.mxu0 0.0
    %1494 = vmatpush1.msra.mxu0 0.0
    %1495 = vmatprep.subr.mxu0 0.0
    %1496 = vmatpush1.msra.mxu0 0.0
    %1497 = vmatprep.subr.mxu0 0.0
    %1498 = vmatpush1.msra.mxu0 0.0
    %1499 = vmatprep.subr.mxu0 0.0
    %1500 = vmatpush1.msra.mxu0 0.0
    %1501 = vmatprep.subr.mxu0 0.0
    %1502 = vmatpush1.msra.mxu0 0.0
    %1503 = vmatprep.subr.mxu0 0.0
    %1504 = vmatpush1.msra.mxu0 0.0
    %1505 = vmatprep.subr.mxu0 0.0
    %1506 = vmatpush1.msra.mxu0 0.0
    %1507 = vmatprep.subr.mxu0 0.0
    %1508 = vmatpush1.msra.mxu0 0.0
    %1509 = vmatprep.subr.mxu0 0.0
    %1510 = vmatpush1.msra.mxu0 0.0
    %1511 = vmatprep.subr.mxu0 0.0
    %1512 = vmatpush1.msra.mxu0 0.0
    %1513 = vmatprep.subr.mxu0 0.0
    %1514 = vmatpush1.msra.mxu0 0.0
    %1515 = vmatprep.subr.mxu0 0.0
    %1516 = vmatpush1.msra.mxu0 0.0
    %1517 = vmatprep.subr.mxu0 0.0
    %1518 = vmatpush1.msra.mxu0 %v135
    %1519 = vmatprep.subr.mxu0 0.0
    %1520 = vmatpush1.msra.mxu0 %v134
    %1521 = vmatprep.subr.mxu0 0.0
    %1522 = vmatpush1.msra.mxu0 %v133
    %1523 = vmatprep.subr.mxu0 0.0
    %1524 = vmatpush1.msra.mxu0 %v132
    %1525 = vmatprep.subr.mxu0 0.0
    %1526 = vmatpush2.msra.mxu0 0.0
    %1527 = vmatprep.subr.mxu0 0.0
    %1528 = vmatpush2.msra.mxu0 0.0
    %1529 = vmatprep.subr.mxu0 0.0
    %1530 = vmatpush2.msra.mxu0 0.0
    %1531 = vmatprep.subr.mxu0 0.0
    %1532 = vmatpush2.msra.mxu0 0.0
    %1533 = vmatprep.subr.mxu0 0.0
    %1534 = vmatpush2.msra.mxu0 0.0
    %1535 = vmatprep.subr.mxu0 0.0
    %1536 = vmatpush2.msra.mxu0 0.0
    %1537 = vmatprep.subr.mxu0 0.0
    %1538 = vmatpush2.msra.mxu0 0.0
    %1539 = vmatprep.subr.mxu0 0.0
    %1540 = vmatpush2.msra.mxu0 0.0
    %1541 = vmatprep.subr.mxu0 0.0
    %1542 = vmatpush2.msra.mxu0 0.0
    %1543 = vmatprep.subr.mxu0 0.0
    %1544 = vmatpush2.msra.mxu0 0.0
    %1545 = vmatprep.subr.mxu0 0.0
    %1546 = vmatpush2.msra.mxu0 0.0
    %1547 = vmatprep.subr.mxu0 0.0
    %1548 = vmatpush2.msra.mxu0 0.0
    %1549 = vmatprep.subr.mxu0 0.0
    %1550 = vmatpush2.msra.mxu0 0.0
    %1551 = vmatprep.subr.mxu0 0.0
    %1552 = vmatpush2.msra.mxu0 0.0
    %1553 = vmatprep.subr.mxu0 0.0
    %1554 = vmatpush2.msra.mxu0 0.0
    %1555 = vmatprep.subr.mxu0 0.0
    %1556 = vmatpush2.msra.mxu0 0.0
    %1557 = vmatprep.mubr.f32.mxu0 0.0
    %1558 = vmatmul.mubr.f32.gmra.mxu0 %v195
    %v1559 = vpop.f32.mrf.mxu0
    %v1560 = vadd.f32 %v1491, %v1559
    %v1561 = vpop.f32.mrf.mxu0
    %1562 = vmatprep.mubr.f32.mxu0 0.0
    %1563 = vmatmul.mubr.f32.gmra.mxu0 %v198
    %v1564 = vpop.f32.mrf.mxu0
    %v1565 = vadd.f32 %v1491, %v1564
    %v1566 = vpop.f32.mrf.mxu0
    %1567 = vdwg.mxu0
    %v1569 = vlaneseq
    %v1570 = vshrl.u32 %v1569, 7
    %v1571 = vsub.s32 0, %v1570
    %v1572 = vrot.slane %v182, %v1571
    %1574 = vmatprep.subr.mxu0 0.0
    %1575 = vmatpush1.msra.mxu0 0.0
    %1576 = vmatprep.subr.mxu0 0.0
    %1577 = vmatpush1.msra.mxu0 0.0
    %1578 = vmatprep.subr.mxu0 0.0
    %1579 = vmatpush1.msra.mxu0 0.0
    %1580 = vmatprep.subr.mxu0 0.0
    %1581 = vmatpush1.msra.mxu0 0.0
    %1582 = vmatprep.subr.mxu0 0.0
    %1583 = vmatpush1.msra.mxu0 0.0
    %1584 = vmatprep.subr.mxu0 0.0
    %1585 = vmatpush1.msra.mxu0 0.0
    %1586 = vmatprep.subr.mxu0 0.0
    %1587 = vmatpush1.msra.mxu0 0.0
    %1588 = vmatprep.subr.mxu0 0.0
    %1589 = vmatpush1.msra.mxu0 0.0
    %1590 = vmatprep.subr.mxu0 0.0
    %1591 = vmatpush1.msra.mxu0 0.0
    %1592 = vmatprep.subr.mxu0 0.0
    %1593 = vmatpush1.msra.mxu0 0.0
    %1594 = vmatprep.subr.mxu0 0.0
    %1595 = vmatpush1.msra.mxu0 0.0
    %1596 = vmatprep.subr.mxu0 0.0
    %1597 = vmatpush1.msra.mxu0 0.0
    %1598 = vmatprep.subr.mxu0 0.0
    %1599 = vmatpush1.msra.mxu0 %v151
    %1600 = vmatprep.subr.mxu0 0.0
    %1601 = vmatpush1.msra.mxu0 %v150
    %1602 = vmatprep.subr.mxu0 0.0
    %1603 = vmatpush1.msra.mxu0 %v149
    %1604 = vmatprep.subr.mxu0 0.0
    %1605 = vmatpush1.msra.mxu0 %v148
    %1606 = vmatprep.subr.mxu0 0.0
    %1607 = vmatpush2.msra.mxu0 0.0
    %1608 = vmatprep.subr.mxu0 0.0
    %1609 = vmatpush2.msra.mxu0 0.0
    %1610 = vmatprep.subr.mxu0 0.0
    %1611 = vmatpush2.msra.mxu0 0.0
    %1612 = vmatprep.subr.mxu0 0.0
    %1613 = vmatpush2.msra.mxu0 0.0
    %1614 = vmatprep.subr.mxu0 0.0
    %1615 = vmatpush2.msra.mxu0 0.0
    %1616 = vmatprep.subr.mxu0 0.0
    %1617 = vmatpush2.msra.mxu0 0.0
    %1618 = vmatprep.subr.mxu0 0.0
    %1619 = vmatpush2.msra.mxu0 0.0
    %1620 = vmatprep.subr.mxu0 0.0
    %1621 = vmatpush2.msra.mxu0 0.0
    %1622 = vmatprep.subr.mxu0 0.0
    %1623 = vmatpush2.msra.mxu0 0.0
    %1624 = vmatprep.subr.mxu0 0.0
    %1625 = vmatpush2.msra.mxu0 0.0
    %1626 = vmatprep.subr.mxu0 0.0
    %1627 = vmatpush2.msra.mxu0 0.0
    %1628 = vmatprep.subr.mxu0 0.0
    %1629 = vmatpush2.msra.mxu0 0.0
    %1630 = vmatprep.subr.mxu0 0.0
    %1631 = vmatpush2.msra.mxu0 0.0
    %1632 = vmatprep.subr.mxu0 0.0
    %1633 = vmatpush2.msra.mxu0 0.0
    %1634 = vmatprep.subr.mxu0 0.0
    %1635 = vmatpush2.msra.mxu0 0.0
    %1636 = vmatprep.subr.mxu0 0.0
    %1637 = vmatpush2.msra.mxu0 0.0
    %1638 = vmatprep.mubr.f32.mxu0 0.0
    %1639 = vmatmul.mubr.f32.gmra.mxu0 %v195
    %v1640 = vpop.f32.mrf.mxu0
    %v1641 = vadd.f32 %v1572, %v1640
    %v1642 = vpop.f32.mrf.mxu0
    %1643 = vmatprep.mubr.f32.mxu0 0.0
    %1644 = vmatmul.mubr.f32.gmra.mxu0 %v198
    %v1645 = vpop.f32.mrf.mxu0
    %v1646 = vadd.f32 %v1572, %v1645
    %v1647 = vpop.f32.mrf.mxu0
    %1648 = vdwg.mxu0
    %v1650 = vlaneseq
    %v1651 = vshrl.u32 %v1650, 7
    %v1652 = vsub.s32 0, %v1651
    %v1653 = vrot.slane %v186, %v1652
    %1655 = vmatprep.subr.mxu0 0.0
    %1656 = vmatpush1.msra.mxu0 0.0
    %1657 = vmatprep.subr.mxu0 0.0
    %1658 = vmatpush1.msra.mxu0 0.0
    %1659 = vmatprep.subr.mxu0 0.0
    %1660 = vmatpush1.msra.mxu0 0.0
    %1661 = vmatprep.subr.mxu0 0.0
    %1662 = vmatpush1.msra.mxu0 0.0
    %1663 = vmatprep.subr.mxu0 0.0
    %1664 = vmatpush1.msra.mxu0 0.0
    %1665 = vmatprep.subr.mxu0 0.0
    %1666 = vmatpush1.msra.mxu0 0.0
    %1667 = vmatprep.subr.mxu0 0.0
    %1668 = vmatpush1.msra.mxu0 0.0
    %1669 = vmatprep.subr.mxu0 0.0
    %1670 = vmatpush1.msra.mxu0 0.0
    %1671 = vmatprep.subr.mxu0 0.0
    %1672 = vmatpush1.msra.mxu0 0.0
    %1673 = vmatprep.subr.mxu0 0.0
    %1674 = vmatpush1.msra.mxu0 0.0
    %1675 = vmatprep.subr.mxu0 0.0
    %1676 = vmatpush1.msra.mxu0 0.0
    %1677 = vmatprep.subr.mxu0 0.0
    %1678 = vmatpush1.msra.mxu0 0.0
    %1679 = vmatprep.subr.mxu0 0.0
    %1680 = vmatpush1.msra.mxu0 %v167
    %1681 = vmatprep.subr.mxu0 0.0
    %1682 = vmatpush1.msra.mxu0 %v166
    %1683 = vmatprep.subr.mxu0 0.0
    %1684 = vmatpush1.msra.mxu0 %v165
    %1685 = vmatprep.subr.mxu0 0.0
    %1686 = vmatpush1.msra.mxu0 %v164
    %1687 = vmatprep.subr.mxu0 0.0
    %1688 = vmatpush2.msra.mxu0 0.0
    %1689 = vmatprep.subr.mxu0 0.0
    %1690 = vmatpush2.msra.mxu0 0.0
    %1691 = vmatprep.subr.mxu0 0.0
    %1692 = vmatpush2.msra.mxu0 0.0
    %1693 = vmatprep.subr.mxu0 0.0
    %1694 = vmatpush2.msra.mxu0 0.0
    %1695 = vmatprep.subr.mxu0 0.0
    %1696 = vmatpush2.msra.mxu0 0.0
    %1697 = vmatprep.subr.mxu0 0.0
    %1698 = vmatpush2.msra.mxu0 0.0
    %1699 = vmatprep.subr.mxu0 0.0
    %1700 = vmatpush2.msra.mxu0 0.0
    %1701 = vmatprep.subr.mxu0 0.0
    %1702 = vmatpush2.msra.mxu0 0.0
    %1703 = vmatprep.subr.mxu0 0.0
    %1704 = vmatpush2.msra.mxu0 0.0
    %1705 = vmatprep.subr.mxu0 0.0
    %1706 = vmatpush2.msra.mxu0 0.0
    %1707 = vmatprep.subr.mxu0 0.0
    %1708 = vmatpush2.msra.mxu0 0.0
    %1709 = vmatprep.subr.mxu0 0.0
    %1710 = vmatpush2.msra.mxu0 0.0
    %1711 = vmatprep.subr.mxu0 0.0
    %1712 = vmatpush2.msra.mxu0 0.0
    %1713 = vmatprep.subr.mxu0 0.0
    %1714 = vmatpush2.msra.mxu0 0.0
    %1715 = vmatprep.subr.mxu0 0.0
    %1716 = vmatpush2.msra.mxu0 0.0
    %1717 = vmatprep.subr.mxu0 0.0
    %1718 = vmatpush2.msra.mxu0 0.0
    %1719 = vmatprep.mubr.f32.mxu0 0.0
    %1720 = vmatmul.mubr.f32.gmra.mxu0 %v195
    %v1721 = vpop.f32.mrf.mxu0
    %v1722 = vadd.f32 %v1653, %v1721
    %v1723 = vpop.f32.mrf.mxu0
    %1724 = vmatprep.mubr.f32.mxu0 0.0
    %1725 = vmatmul.mubr.f32.gmra.mxu0 %v198
    %v1726 = vpop.f32.mrf.mxu0
    %v1727 = vadd.f32 %v1653, %v1726
    %v1728 = vpop.f32.mrf.mxu0
    %1729 = vdwg.mxu0
    %v1731 = vsel %vm437, %v1560, 0
    %v1734 = vsel %vm437, %v1641, 0
    %1736 = vmatprep.subr.mxu0 0.0
    %1737 = vmatpush1.xpose.msra.mxu0 0.0
    %1738 = vmatprep.subr.mxu0 0.0
    %1739 = vmatpush1.xpose.msra.mxu0 0.0
    %1740 = vmatprep.subr.mxu0 0.0
    %1741 = vmatpush1.xpose.msra.mxu0 0.0
    %1742 = vmatprep.subr.mxu0 0.0
    %1743 = vmatpush1.xpose.msra.mxu0 0.0
    %1744 = vmatprep.subr.mxu0 0.0
    %1745 = vmatpush1.xpose.msra.mxu0 0.0
    %1746 = vmatprep.subr.mxu0 0.0
    %1747 = vmatpush1.xpose.msra.mxu0 0.0
    %1748 = vmatprep.subr.mxu0 0.0
    %1749 = vmatpush1.xpose.msra.mxu0 0.0
    %1750 = vmatprep.subr.mxu0 0.0
    %1751 = vmatpush1.xpose.msra.mxu0 0.0
    %1752 = vmatprep.subr.mxu0 0.0
    %1753 = vmatpush1.xpose.msra.mxu0 0.0
    %1754 = vmatprep.subr.mxu0 0.0
    %1755 = vmatpush1.xpose.msra.mxu0 0.0
    %1756 = vmatprep.subr.mxu0 0.0
    %1757 = vmatpush1.xpose.msra.mxu0 0.0
    %1758 = vmatprep.subr.mxu0 0.0
    %1759 = vmatpush1.xpose.msra.mxu0 0.0
    %1760 = vmatprep.subr.mxu0 0.0
    %1761 = vmatpush1.xpose.msra.mxu0 0.0
    %1762 = vmatprep.subr.mxu0 0.0
    %1763 = vmatpush1.xpose.msra.mxu0 0.0
    %1764 = vmatprep.subr.mxu0 0.0
    %1765 = vmatpush1.xpose.msra.mxu0 0.0
    %1766 = vmatprep.subr.mxu0 0.0
    %1767 = vmatpush1.xpose.msra.mxu0 %v1734
    %1768 = vmatprep.subr.mxu0 0.0
    %1769 = vmatpush2.xpose.msra.mxu0 0.0
    %1770 = vmatprep.subr.mxu0 0.0
    %1771 = vmatpush2.xpose.msra.mxu0 0.0
    %1772 = vmatprep.subr.mxu0 0.0
    %1773 = vmatpush2.xpose.msra.mxu0 0.0
    %1774 = vmatprep.subr.mxu0 0.0
    %1775 = vmatpush2.xpose.msra.mxu0 0.0
    %1776 = vmatprep.subr.mxu0 0.0
    %1777 = vmatpush2.xpose.msra.mxu0 0.0
    %1778 = vmatprep.subr.mxu0 0.0
    %1779 = vmatpush2.xpose.msra.mxu0 0.0
    %1780 = vmatprep.subr.mxu0 0.0
    %1781 = vmatpush2.xpose.msra.mxu0 0.0
    %1782 = vmatprep.subr.mxu0 0.0
    %1783 = vmatpush2.xpose.msra.mxu0 0.0
    %1784 = vmatprep.subr.mxu0 0.0
    %1785 = vmatpush2.xpose.msra.mxu0 0.0
    %1786 = vmatprep.subr.mxu0 0.0
    %1787 = vmatpush2.xpose.msra.mxu0 0.0
    %1788 = vmatprep.subr.mxu0 0.0
    %1789 = vmatpush2.xpose.msra.mxu0 0.0
    %1790 = vmatprep.subr.mxu0 0.0
    %1791 = vmatpush2.xpose.msra.mxu0 0.0
    %1792 = vmatprep.subr.mxu0 0.0
    %1793 = vmatpush2.xpose.msra.mxu0 0.0
    %1794 = vmatprep.subr.mxu0 0.0
    %1795 = vmatpush2.xpose.msra.mxu0 0.0
    %1796 = vmatprep.subr.mxu0 0.0
    %1797 = vmatpush2.xpose.msra.mxu0 0.0
    %1798 = vmatprep.subr.mxu0 0.0
    %1799 = vmatpush2.xpose.msra.mxu0 0.0
    %1800 = vmatprep.mubr.f32.mxu0 0.0
    %1801 = vmatmul.mubr.f32.gmra.mxu0 %v1731
    %v1802 = vpop.f32.mrf.mxu0
    %v1803 = vadd.f32 0.0, %v1802
    %v1804 = vpop.f32.mrf.mxu0
    %1805 = vdwg.mxu0
    %v1807 = vsel %vm437, %v1565, 0
    %v1810 = vsel %vm437, %v1646, 0
    %1812 = vmatprep.subr.mxu0 0.0
    %1813 = vmatpush1.xpose.msra.mxu0 0.0
    %1814 = vmatprep.subr.mxu0 0.0
    %1815 = vmatpush1.xpose.msra.mxu0 0.0
    %1816 = vmatprep.subr.mxu0 0.0
    %1817 = vmatpush1.xpose.msra.mxu0 0.0
    %1818 = vmatprep.subr.mxu0 0.0
    %1819 = vmatpush1.xpose.msra.mxu0 0.0
    %1820 = vmatprep.subr.mxu0 0.0
    %1821 = vmatpush1.xpose.msra.mxu0 0.0
    %1822 = vmatprep.subr.mxu0 0.0
    %1823 = vmatpush1.xpose.msra.mxu0 0.0
    %1824 = vmatprep.subr.mxu0 0.0
    %1825 = vmatpush1.xpose.msra.mxu0 0.0
    %1826 = vmatprep.subr.mxu0 0.0
    %1827 = vmatpush1.xpose.msra.mxu0 0.0
    %1828 = vmatprep.subr.mxu0 0.0
    %1829 = vmatpush1.xpose.msra.mxu0 0.0
    %1830 = vmatprep.subr.mxu0 0.0
    %1831 = vmatpush1.xpose.msra.mxu0 0.0
    %1832 = vmatprep.subr.mxu0 0.0
    %1833 = vmatpush1.xpose.msra.mxu0 0.0
    %1834 = vmatprep.subr.mxu0 0.0
    %1835 = vmatpush1.xpose.msra.mxu0 0.0
    %1836 = vmatprep.subr.mxu0 0.0
    %1837 = vmatpush1.xpose.msra.mxu0 0.0
    %1838 = vmatprep.subr.mxu0 0.0
    %1839 = vmatpush1.xpose.msra.mxu0 0.0
    %1840 = vmatprep.subr.mxu0 0.0
    %1841 = vmatpush1.xpose.msra.mxu0 0.0
    %1842 = vmatprep.subr.mxu0 0.0
    %1843 = vmatpush1.xpose.msra.mxu0 %v1810
    %1844 = vmatprep.subr.mxu0 0.0
    %1845 = vmatpush2.xpose.msra.mxu0 0.0
    %1846 = vmatprep.subr.mxu0 0.0
    %1847 = vmatpush2.xpose.msra.mxu0 0.0
    %1848 = vmatprep.subr.mxu0 0.0
    %1849 = vmatpush2.xpose.msra.mxu0 0.0
    %1850 = vmatprep.subr.mxu0 0.0
    %1851 = vmatpush2.xpose.msra.mxu0 0.0
    %1852 = vmatprep.subr.mxu0 0.0
    %1853 = vmatpush2.xpose.msra.mxu0 0.0
    %1854 = vmatprep.subr.mxu0 0.0
    %1855 = vmatpush2.xpose.msra.mxu0 0.0
    %1856 = vmatprep.subr.mxu0 0.0
    %1857 = vmatpush2.xpose.msra.mxu0 0.0
    %1858 = vmatprep.subr.mxu0 0.0
    %1859 = vmatpush2.xpose.msra.mxu0 0.0
    %1860 = vmatprep.subr.mxu0 0.0
    %1861 = vmatpush2.xpose.msra.mxu0 0.0
    %1862 = vmatprep.subr.mxu0 0.0
    %1863 = vmatpush2.xpose.msra.mxu0 0.0
    %1864 = vmatprep.subr.mxu0 0.0
    %1865 = vmatpush2.xpose.msra.mxu0 0.0
    %1866 = vmatprep.subr.mxu0 0.0
    %1867 = vmatpush2.xpose.msra.mxu0 0.0
    %1868 = vmatprep.subr.mxu0 0.0
    %1869 = vmatpush2.xpose.msra.mxu0 0.0
    %1870 = vmatprep.subr.mxu0 0.0
    %1871 = vmatpush2.xpose.msra.mxu0 0.0
    %1872 = vmatprep.subr.mxu0 0.0
    %1873 = vmatpush2.xpose.msra.mxu0 0.0
    %1874 = vmatprep.subr.mxu0 0.0
    %1875 = vmatpush2.xpose.msra.mxu0 0.0
    %1876 = vmatprep.mubr.f32.mxu0 0.0
    %1877 = vmatmul.mubr.f32.gmra.mxu0 %v1807
    %v1878 = vpop.f32.mrf.mxu0
    %v1879 = vadd.f32 0.0, %v1878
    %v1880 = vpop.f32.mrf.mxu0
    %1881 = vdwg.mxu0
    %v1882 = vmul.f32 %v1803, 0.35355338
    %v1883 = vmul.f32 %v1879, 0.35355338
    %v1884 = vsel %vm437, %v1882, -inf
    %1885 = vmax.xlane.f32.xlu0 %v1884
    %v1886 = vpop.xlane.xlu0 %1885
    %v1887 = vsel %vm437, %v1883, -inf
    %1888 = vmax.xlane.f32.xlu0 %v1887
    %v1889 = vpop.xlane.xlu0 %1888
    %v1890 = vsub.f32 %v1882, %v1886
    %v1891 = vsub.f32 %v1883, %v1889
    %v1892 = vmul.f32 %v1890, 1.442695
    %v1893 = vpow.pop %v1892
    %v1894 = vmul.f32 %v1891, 1.442695
    %v1895 = vpow.pop %v1894
    %v1896 = vsel %vm437, %v1893, 0.0
    %1897 = vadd.xlane.f32.xlu0 %v1896
    %v1898 = vpop.xlane.xlu0 %1897
    %v1899 = vsel %vm437, %v1895, 0.0
    %1900 = vadd.xlane.f32.xlu0 %v1899
    %v1901 = vpop.xlane.xlu0 %1900
    %v1902 = vrcp.pop %v1898
    %v1903 = vrcp.pop %v1901
    %v1904 = vmul.f32 %v1893, %v1902
    %v1905 = vmul.f32 %v1895, %v1903
    %v1907 = vsel %vm437, %v1904, 0
    %1909 = vmatprep.subr.mxu0 0.0
    %1910 = vmatpush1.msra.mxu0 0.0
    %1911 = vmatprep.subr.mxu0 0.0
    %1912 = vmatpush1.msra.mxu0 0.0
    %1913 = vmatprep.subr.mxu0 0.0
    %1914 = vmatpush1.msra.mxu0 0.0
    %1915 = vmatprep.subr.mxu0 0.0
    %1916 = vmatpush1.msra.mxu0 0.0
    %1917 = vmatprep.subr.mxu0 0.0
    %1918 = vmatpush1.msra.mxu0 0.0
    %1919 = vmatprep.subr.mxu0 0.0
    %1920 = vmatpush1.msra.mxu0 0.0
    %1921 = vmatprep.subr.mxu0 0.0
    %1922 = vmatpush1.msra.mxu0 0.0
    %1923 = vmatprep.subr.mxu0 0.0
    %1924 = vmatpush1.msra.mxu0 0.0
    %1925 = vmatprep.subr.mxu0 0.0
    %1926 = vmatpush1.msra.mxu0 0.0
    %1927 = vmatprep.subr.mxu0 0.0
    %1928 = vmatpush1.msra.mxu0 0.0
    %1929 = vmatprep.subr.mxu0 0.0
    %1930 = vmatpush1.msra.mxu0 0.0
    %1931 = vmatprep.subr.mxu0 0.0
    %1932 = vmatpush1.msra.mxu0 0.0
    %1933 = vmatprep.subr.mxu0 0.0
    %1934 = vmatpush1.msra.mxu0 0.0
    %1935 = vmatprep.subr.mxu0 0.0
    %1936 = vmatpush1.msra.mxu0 0.0
    %1937 = vmatprep.subr.mxu0 0.0
    %1938 = vmatpush1.msra.mxu0 0.0
    %1939 = vmatprep.subr.mxu0 0.0
    %1940 = vmatpush1.msra.mxu0 %v1722
    %1941 = vmatprep.subr.mxu0 0.0
    %1942 = vmatpush2.msra.mxu0 0.0
    %1943 = vmatprep.subr.mxu0 0.0
    %1944 = vmatpush2.msra.mxu0 0.0
    %1945 = vmatprep.subr.mxu0 0.0
    %1946 = vmatpush2.msra.mxu0 0.0
    %1947 = vmatprep.subr.mxu0 0.0
    %1948 = vmatpush2.msra.mxu0 0.0
    %1949 = vmatprep.subr.mxu0 0.0
    %1950 = vmatpush2.msra.mxu0 0.0
    %1951 = vmatprep.subr.mxu0 0.0
    %1952 = vmatpush2.msra.mxu0 0.0
    %1953 = vmatprep.subr.mxu0 0.0
    %1954 = vmatpush2.msra.mxu0 0.0
    %1955 = vmatprep.subr.mxu0 0.0
    %1956 = vmatpush2.msra.mxu0 0.0
    %1957 = vmatprep.subr.mxu0 0.0
    %1958 = vmatpush2.msra.mxu0 0.0
    %1959 = vmatprep.subr.mxu0 0.0
    %1960 = vmatpush2.msra.mxu0 0.0
    %1961 = vmatprep.subr.mxu0 0.0
    %1962 = vmatpush2.msra.mxu0 0.0
    %1963 = vmatprep.subr.mxu0 0.0
    %1964 = vmatpush2.msra.mxu0 0.0
    %1965 = vmatprep.subr.mxu0 0.0
    %1966 = vmatpush2.msra.mxu0 0.0
    %1967 = vmatprep.subr.mxu0 0.0
    %1968 = vmatpush2.msra.mxu0 0.0
    %1969 = vmatprep.subr.mxu0 0.0
    %1970 = vmatpush2.msra.mxu0 0.0
    %1971 = vmatprep.subr.mxu0 0.0
    %1972 = vmatpush2.msra.mxu0 0.0
    %1973 = vmatprep.mubr.f32.mxu0 0.0
    %1974 = vmatmul.mubr.f32.gmra.mxu0 %v1907
    %v1975 = vpop.f32.mrf.mxu0
    %v1976 = vadd.f32 0.0, %v1975
    %v1977 = vpop.f32.mrf.mxu0
    %1978 = vdwg.mxu0
    %v1980 = vsel %vm437, %v1905, 0
    %1982 = vmatprep.subr.mxu0 0.0
    %1983 = vmatpush1.msra.mxu0 0.0
    %1984 = vmatprep.subr.mxu0 0.0
    %1985 = vmatpush1.msra.mxu0 0.0
    %1986 = vmatprep.subr.mxu0 0.0
    %1987 = vmatpush1.msra.mxu0 0.0
    %1988 = vmatprep.subr.mxu0 0.0
    %1989 = vmatpush1.msra.mxu0 0.0
    %1990 = vmatprep.subr.mxu0 0.0
    %1991 = vmatpush1.msra.mxu0 0.0
    %1992 = vmatprep.subr.mxu0 0.0
    %1993 = vmatpush1.msra.mxu0 0.0
    %1994 = vmatprep.subr.mxu0 0.0
    %1995 = vmatpush1.msra.mxu0 0.0
    %1996 = vmatprep.subr.mxu0 0.0
    %1997 = vmatpush1.msra.mxu0 0.0
    %1998 = vmatprep.subr.mxu0 0.0
    %1999 = vmatpush1.msra.mxu0 0.0
    %2000 = vmatprep.subr.mxu0 0.0
    %2001 = vmatpush1.msra.mxu0 0.0
    %2002 = vmatprep.subr.mxu0 0.0
    %2003 = vmatpush1.msra.mxu0 0.0
    %2004 = vmatprep.subr.mxu0 0.0
    %2005 = vmatpush1.msra.mxu0 0.0
    %2006 = vmatprep.subr.mxu0 0.0
    %2007 = vmatpush1.msra.mxu0 0.0
    %2008 = vmatprep.subr.mxu0 0.0
    %2009 = vmatpush1.msra.mxu0 0.0
    %2010 = vmatprep.subr.mxu0 0.0
    %2011 = vmatpush1.msra.mxu0 0.0
    %2012 = vmatprep.subr.mxu0 0.0
    %2013 = vmatpush1.msra.mxu0 %v1727
    %2014 = vmatprep.subr.mxu0 0.0
    %2015 = vmatpush2.msra.mxu0 0.0
    %2016 = vmatprep.subr.mxu0 0.0
    %2017 = vmatpush2.msra.mxu0 0.0
    %2018 = vmatprep.subr.mxu0 0.0
    %2019 = vmatpush2.msra.mxu0 0.0
    %2020 = vmatprep.subr.mxu0 0.0
    %2021 = vmatpush2.msra.mxu0 0.0
    %2022 = vmatprep.subr.mxu0 0.0
    %2023 = vmatpush2.msra.mxu0 0.0
    %2024 = vmatprep.subr.mxu0 0.0
    %2025 = vmatpush2.msra.mxu0 0.0
    %2026 = vmatprep.subr.mxu0 0.0
    %2027 = vmatpush2.msra.mxu0 0.0
    %2028 = vmatprep.subr.mxu0 0.0
    %2029 = vmatpush2.msra.mxu0 0.0
    %2030 = vmatprep.subr.mxu0 0.0
    %2031 = vmatpush2.msra.mxu0 0.0
    %2032 = vmatprep.subr.mxu0 0.0
    %2033 = vmatpush2.msra.mxu0 0.0
    %2034 = vmatprep.subr.mxu0 0.0
    %2035 = vmatpush2.msra.mxu0 0.0
    %2036 = vmatprep.subr.mxu0 0.0
    %2037 = vmatpush2.msra.mxu0 0.0
    %2038 = vmatprep.subr.mxu0 0.0
    %2039 = vmatpush2.msra.mxu0 0.0
    %2040 = vmatprep.subr.mxu0 0.0
    %2041 = vmatpush2.msra.mxu0 0.0
    %2042 = vmatprep.subr.mxu0 0.0
    %2043 = vmatpush2.msra.mxu0 0.0
    %2044 = vmatprep.subr.mxu0 0.0
    %2045 = vmatpush2.msra.mxu0 0.0
    %2046 = vmatprep.mubr.f32.mxu0 0.0
    %2047 = vmatmul.mubr.f32.gmra.mxu0 %v1980
    %v2048 = vpop.f32.mrf.mxu0
    %v2049 = vadd.f32 0.0, %v2048
    %v2050 = vpop.f32.mrf.mxu0
    %2051 = vdwg.mxu0
    %v2053 = vsel %vm437, %v1976, 0
    %v2056 = vsel %vm437, %v2049, 0
    %2058 = vmatprep.subr.mxu0 0.0
    %2059 = vmatpush1.msra.mxu0 0.0
    %2060 = vmatprep.subr.mxu0 0.0
    %2061 = vmatpush1.msra.mxu0 0.0
    %2062 = vmatprep.subr.mxu0 0.0
    %2063 = vmatpush1.msra.mxu0 0.0
    %2064 = vmatprep.subr.mxu0 0.0
    %2065 = vmatpush1.msra.mxu0 0.0
    %2066 = vmatprep.subr.mxu0 0.0
    %2067 = vmatpush1.msra.mxu0 0.0
    %2068 = vmatprep.subr.mxu0 0.0
    %2069 = vmatpush1.msra.mxu0 0.0
    %2070 = vmatprep.subr.mxu0 0.0
    %2071 = vmatpush1.msra.mxu0 0.0
    %2072 = vmatprep.subr.mxu0 0.0
    %2073 = vmatpush1.msra.mxu0 0.0
    %2074 = vmatprep.subr.mxu0 0.0
    %2075 = vmatpush1.msra.mxu0 0.0
    %2076 = vmatprep.subr.mxu0 0.0
    %2077 = vmatpush1.msra.mxu0 0.0
    %2078 = vmatprep.subr.mxu0 0.0
    %2079 = vmatpush1.msra.mxu0 0.0
    %2080 = vmatprep.subr.mxu0 0.0
    %2081 = vmatpush1.msra.mxu0 0.0
    %2082 = vmatprep.subr.mxu0 0.0
    %2083 = vmatpush1.msra.mxu0 0.0
    %2084 = vmatprep.subr.mxu0 0.0
    %2085 = vmatpush1.msra.mxu0 0.0
    %2086 = vmatprep.subr.mxu0 0.0
    %2087 = vmatpush1.msra.mxu0 0.0
    %2088 = vmatprep.subr.mxu0 0.0
    %2089 = vmatpush1.msra.mxu0 %v174
    %2090 = vmatprep.subr.mxu0 0.0
    %2091 = vmatpush2.msra.mxu0 0.0
    %2092 = vmatprep.subr.mxu0 0.0
    %2093 = vmatpush2.msra.mxu0 0.0
    %2094 = vmatprep.subr.mxu0 0.0
    %2095 = vmatpush2.msra.mxu0 0.0
    %2096 = vmatprep.subr.mxu0 0.0
    %2097 = vmatpush2.msra.mxu0 0.0
    %2098 = vmatprep.subr.mxu0 0.0
    %2099 = vmatpush2.msra.mxu0 0.0
    %2100 = vmatprep.subr.mxu0 0.0
    %2101 = vmatpush2.msra.mxu0 0.0
    %2102 = vmatprep.subr.mxu0 0.0
    %2103 = vmatpush2.msra.mxu0 0.0
    %2104 = vmatprep.subr.mxu0 0.0
    %2105 = vmatpush2.msra.mxu0 0.0
    %2106 = vmatprep.subr.mxu0 0.0
    %2107 = vmatpush2.msra.mxu0 0.0
    %2108 = vmatprep.subr.mxu0 0.0
    %2109 = vmatpush2.msra.mxu0 0.0
    %2110 = vmatprep.subr.mxu0 0.0
    %2111 = vmatpush2.msra.mxu0 0.0
    %2112 = vmatprep.subr.mxu0 0.0
    %2113 = vmatpush2.msra.mxu0 0.0
    %2114 = vmatprep.subr.mxu0 0.0
    %2115 = vmatpush2.msra.mxu0 0.0
    %2116 = vmatprep.subr.mxu0 0.0
    %2117 = vmatpush2.msra.mxu0 0.0
    %2118 = vmatprep.subr.mxu0 0.0
    %2119 = vmatpush2.msra.mxu0 0.0
    %2120 = vmatprep.subr.mxu0 0.0
    %2121 = vmatpush2.msra.mxu0 0.0
    %2122 = vmatprep.mubr.f32.mxu0 0.0
    %2123 = vmatmul.mubr.f32.gmra.mxu0 %v2053
    %v2124 = vpop.f32.mrf.mxu0
    %v2125 = vadd.f32 0.0, %v2124
    %v2126 = vpop.f32.mrf.mxu0
    %2127 = vmatprep.mubr.f32.mxu0 0.0
    %2128 = vmatmul.mubr.f32.gmra.mxu0 %v2056
    %v2129 = vpop.f32.mrf.mxu0
    %v2130 = vadd.f32 0.0, %v2129
    %v2131 = vpop.f32.mrf.mxu0
    %2132 = vdwg.mxu0
    %v2133 = vadd.f32 %v1479, %v2125
    %v2134 = vadd.f32 %v1484, %v2130
    %v2136 = vlaneseq
    %v2137 = vshrl.u32 %v2136, 7
    %v2138 = vsub.s32 0, %v2137
    %v2139 = vrot.slane %v179, %v2138
    %2141 = vmatprep.subr.mxu0 0.0
    %2142 = vmatpush1.msra.mxu0 0.0
    %2143 = vmatprep.subr.mxu0 0.0
    %2144 = vmatpush1.msra.mxu0 0.0
    %2145 = vmatprep.subr.mxu0 0.0
    %2146 = vmatpush1.msra.mxu0 0.0
    %2147 = vmatprep.subr.mxu0 0.0
    %2148 = vmatpush1.msra.mxu0 0.0
    %2149 = vmatprep.subr.mxu0 0.0
    %2150 = vmatpush1.msra.mxu0 0.0
    %2151 = vmatprep.subr.mxu0 0.0
    %2152 = vmatpush1.msra.mxu0 0.0
    %2153 = vmatprep.subr.mxu0 0.0
    %2154 = vmatpush1.msra.mxu0 0.0
    %2155 = vmatprep.subr.mxu0 0.0
    %2156 = vmatpush1.msra.mxu0 0.0
    %2157 = vmatprep.subr.mxu0 0.0
    %2158 = vmatpush1.msra.mxu0 0.0
    %2159 = vmatprep.subr.mxu0 0.0
    %2160 = vmatpush1.msra.mxu0 0.0
    %2161 = vmatprep.subr.mxu0 0.0
    %2162 = vmatpush1.msra.mxu0 0.0
    %2163 = vmatprep.subr.mxu0 0.0
    %2164 = vmatpush1.msra.mxu0 0.0
    %2165 = vmatprep.subr.mxu0 0.0
    %2166 = vmatpush1.msra.mxu0 %v139
    %2167 = vmatprep.subr.mxu0 0.0
    %2168 = vmatpush1.msra.mxu0 %v138
    %2169 = vmatprep.subr.mxu0 0.0
    %2170 = vmatpush1.msra.mxu0 %v137
    %2171 = vmatprep.subr.mxu0 0.0
    %2172 = vmatpush1.msra.mxu0 %v136
    %2173 = vmatprep.subr.mxu0 0.0
    %2174 = vmatpush2.msra.mxu0 0.0
    %2175 = vmatprep.subr.mxu0 0.0
    %2176 = vmatpush2.msra.mxu0 0.0
    %2177 = vmatprep.subr.mxu0 0.0
    %2178 = vmatpush2.msra.mxu0 0.0
    %2179 = vmatprep.subr.mxu0 0.0
    %2180 = vmatpush2.msra.mxu0 0.0
    %2181 = vmatprep.subr.mxu0 0.0
    %2182 = vmatpush2.msra.mxu0 0.0
    %2183 = vmatprep.subr.mxu0 0.0
    %2184 = vmatpush2.msra.mxu0 0.0
    %2185 = vmatprep.subr.mxu0 0.0
    %2186 = vmatpush2.msra.mxu0 0.0
    %2187 = vmatprep.subr.mxu0 0.0
    %2188 = vmatpush2.msra.mxu0 0.0
    %2189 = vmatprep.subr.mxu0 0.0
    %2190 = vmatpush2.msra.mxu0 0.0
    %2191 = vmatprep.subr.mxu0 0.0
    %2192 = vmatpush2.msra.mxu0 0.0
    %2193 = vmatprep.subr.mxu0 0.0
    %2194 = vmatpush2.msra.mxu0 0.0
    %2195 = vmatprep.subr.mxu0 0.0
    %2196 = vmatpush2.msra.mxu0 0.0
    %2197 = vmatprep.subr.mxu0 0.0
    %2198 = vmatpush2.msra.mxu0 0.0
    %2199 = vmatprep.subr.mxu0 0.0
    %2200 = vmatpush2.msra.mxu0 0.0
    %2201 = vmatprep.subr.mxu0 0.0
    %2202 = vmatpush2.msra.mxu0 0.0
    %2203 = vmatprep.subr.mxu0 0.0
    %2204 = vmatpush2.msra.mxu0 0.0
    %2205 = vmatprep.mubr.f32.mxu0 0.0
    %2206 = vmatmul.mubr.f32.gmra.mxu0 %v195
    %v2207 = vpop.f32.mrf.mxu0
    %v2208 = vadd.f32 %v2139, %v2207
    %v2209 = vpop.f32.mrf.mxu0
    %2210 = vmatprep.mubr.f32.mxu0 0.0
    %2211 = vmatmul.mubr.f32.gmra.mxu0 %v198
    %v2212 = vpop.f32.mrf.mxu0
    %v2213 = vadd.f32 %v2139, %v2212
    %v2214 = vpop.f32.mrf.mxu0
    %2215 = vdwg.mxu0
    %v2217 = vlaneseq
    %v2218 = vshrl.u32 %v2217, 7
    %v2219 = vsub.s32 0, %v2218
    %v2220 = vrot.slane %v183, %v2219
    %2222 = vmatprep.subr.mxu0 0.0
    %2223 = vmatpush1.msra.mxu0 0.0
    %2224 = vmatprep.subr.mxu0 0.0
    %2225 = vmatpush1.msra.mxu0 0.0
    %2226 = vmatprep.subr.mxu0 0.0
    %2227 = vmatpush1.msra.mxu0 0.0
    %2228 = vmatprep.subr.mxu0 0.0
    %2229 = vmatpush1.msra.mxu0 0.0
    %2230 = vmatprep.subr.mxu0 0.0
    %2231 = vmatpush1.msra.mxu0 0.0
    %2232 = vmatprep.subr.mxu0 0.0
    %2233 = vmatpush1.msra.mxu0 0.0
    %2234 = vmatprep.subr.mxu0 0.0
    %2235 = vmatpush1.msra.mxu0 0.0
    %2236 = vmatprep.subr.mxu0 0.0
    %2237 = vmatpush1.msra.mxu0 0.0
    %2238 = vmatprep.subr.mxu0 0.0
    %2239 = vmatpush1.msra.mxu0 0.0
    %2240 = vmatprep.subr.mxu0 0.0
    %2241 = vmatpush1.msra.mxu0 0.0
    %2242 = vmatprep.subr.mxu0 0.0
    %2243 = vmatpush1.msra.mxu0 0.0
    %2244 = vmatprep.subr.mxu0 0.0
    %2245 = vmatpush1.msra.mxu0 0.0
    %2246 = vmatprep.subr.mxu0 0.0
    %2247 = vmatpush1.msra.mxu0 %v155
    %2248 = vmatprep.subr.mxu0 0.0
    %2249 = vmatpush1.msra.mxu0 %v154
    %2250 = vmatprep.subr.mxu0 0.0
    %2251 = vmatpush1.msra.mxu0 %v153
    %2252 = vmatprep.subr.mxu0 0.0
    %2253 = vmatpush1.msra.mxu0 %v152
    %2254 = vmatprep.subr.mxu0 0.0
    %2255 = vmatpush2.msra.mxu0 0.0
    %2256 = vmatprep.subr.mxu0 0.0
    %2257 = vmatpush2.msra.mxu0 0.0
    %2258 = vmatprep.subr.mxu0 0.0
    %2259 = vmatpush2.msra.mxu0 0.0
    %2260 = vmatprep.subr.mxu0 0.0
    %2261 = vmatpush2.msra.mxu0 0.0
    %2262 = vmatprep.subr.mxu0 0.0
    %2263 = vmatpush2.msra.mxu0 0.0
    %2264 = vmatprep.subr.mxu0 0.0
    %2265 = vmatpush2.msra.mxu0 0.0
    %2266 = vmatprep.subr.mxu0 0.0
    %2267 = vmatpush2.msra.mxu0 0.0
    %2268 = vmatprep.subr.mxu0 0.0
    %2269 = vmatpush2.msra.mxu0 0.0
    %2270 = vmatprep.subr.mxu0 0.0
    %2271 = vmatpush2.msra.mxu0 0.0
    %2272 = vmatprep.subr.mxu0 0.0
    %2273 = vmatpush2.msra.mxu0 0.0
    %2274 = vmatprep.subr.mxu0 0.0
    %2275 = vmatpush2.msra.mxu0 0.0
    %2276 = vmatprep.subr.mxu0 0.0
    %2277 = vmatpush2.msra.mxu0 0.0
    %2278 = vmatprep.subr.mxu0 0.0
    %2279 = vmatpush2.msra.mxu0 0.0
    %2280 = vmatprep.subr.mxu0 0.0
    %2281 = vmatpush2.msra.mxu0 0.0
    %2282 = vmatprep.subr.mxu0 0.0
    %2283 = vmatpush2.msra.mxu0 0.0
    %2284 = vmatprep.subr.mxu0 0.0
    %2285 = vmatpush2.msra.mxu0 0.0
    %2286 = vmatprep.mubr.f32.mxu0 0.0
    %2287 = vmatmul.mubr.f32.gmra.mxu0 %v195
    %v2288 = vpop.f32.mrf.mxu0
    %v2289 = vadd.f32 %v2220, %v2288
    %v2290 = vpop.f32.mrf.mxu0
    %2291 = vmatprep.mubr.f32.mxu0 0.0
    %2292 = vmatmul.mubr.f32.gmra.mxu0 %v198
    %v2293 = vpop.f32.mrf.mxu0
    %v2294 = vadd.f32 %v2220, %v2293
    %v2295 = vpop.f32.mrf.mxu0
    %2296 = vdwg.mxu0
    %v2298 = vlaneseq
    %v2299 = vshrl.u32 %v2298, 7
    %v2300 = vsub.s32 0, %v2299
    %v2301 = vrot.slane %v187, %v2300
    %2303 = vmatprep.subr.mxu0 0.0
    %2304 = vmatpush1.msra.mxu0 0.0
    %2305 = vmatprep.subr.mxu0 0.0
    %2306 = vmatpush1.msra.mxu0 0.0
    %2307 = vmatprep.subr.mxu0 0.0
    %2308 = vmatpush1.msra.mxu0 0.0
    %2309 = vmatprep.subr.mxu0 0.0
    %2310 = vmatpush1.msra.mxu0 0.0
    %2311 = vmatprep.subr.mxu0 0.0
    %2312 = vmatpush1.msra.mxu0 0.0
    %2313 = vmatprep.subr.mxu0 0.0
    %2314 = vmatpush1.msra.mxu0 0.0
    %2315 = vmatprep.subr.mxu0 0.0
    %2316 = vmatpush1.msra.mxu0 0.0
    %2317 = vmatprep.subr.mxu0 0.0
    %2318 = vmatpush1.msra.mxu0 0.0
    %2319 = vmatprep.subr.mxu0 0.0
    %2320 = vmatpush1.msra.mxu0 0.0
    %2321 = vmatprep.subr.mxu0 0.0
    %2322 = vmatpush1.msra.mxu0 0.0
    %2323 = vmatprep.subr.mxu0 0.0
    %2324 = vmatpush1.msra.mxu0 0.0
    %2325 = vmatprep.subr.mxu0 0.0
    %2326 = vmatpush1.msra.mxu0 0.0
    %2327 = vmatprep.subr.mxu0 0.0
    %2328 = vmatpush1.msra.mxu0 %v171
    %2329 = vmatprep.subr.mxu0 0.0
    %2330 = vmatpush1.msra.mxu0 %v170
    %2331 = vmatprep.subr.mxu0 0.0
    %2332 = vmatpush1.msra.mxu0 %v169
    %2333 = vmatprep.subr.mxu0 0.0
    %2334 = vmatpush1.msra.mxu0 %v168
    %2335 = vmatprep.subr.mxu0 0.0
    %2336 = vmatpush2.msra.mxu0 0.0
    %2337 = vmatprep.subr.mxu0 0.0
    %2338 = vmatpush2.msra.mxu0 0.0
    %2339 = vmatprep.subr.mxu0 0.0
    %2340 = vmatpush2.msra.mxu0 0.0
    %2341 = vmatprep.subr.mxu0 0.0
    %2342 = vmatpush2.msra.mxu0 0.0
    %2343 = vmatprep.subr.mxu0 0.0
    %2344 = vmatpush2.msra.mxu0 0.0
    %2345 = vmatprep.subr.mxu0 0.0
    %2346 = vmatpush2.msra.mxu0 0.0
    %2347 = vmatprep.subr.mxu0 0.0
    %2348 = vmatpush2.msra.mxu0 0.0
    %2349 = vmatprep.subr.mxu0 0.0
    %2350 = vmatpush2.msra.mxu0 0.0
    %2351 = vmatprep.subr.mxu0 0.0
    %2352 = vmatpush2.msra.mxu0 0.0
    %2353 = vmatprep.subr.mxu0 0.0
    %2354 = vmatpush2.msra.mxu0 0.0
    %2355 = vmatprep.subr.mxu0 0.0
    %2356 = vmatpush2.msra.mxu0 0.0
    %2357 = vmatprep.subr.mxu0 0.0
    %2358 = vmatpush2.msra.mxu0 0.0
    %2359 = vmatprep.subr.mxu0 0.0
    %2360 = vmatpush2.msra.mxu0 0.0
    %2361 = vmatprep.subr.mxu0 0.0
    %2362 = vmatpush2.msra.mxu0 0.0
    %2363 = vmatprep.subr.mxu0 0.0
    %2364 = vmatpush2.msra.mxu0 0.0
    %2365 = vmatprep.subr.mxu0 0.0
    %2366 = vmatpush2.msra.mxu0 0.0
    %2367 = vmatprep.mubr.f32.mxu0 0.0
    %2368 = vmatmul.mubr.f32.gmra.mxu0 %v195
    %v2369 = vpop.f32.mrf.mxu0
    %v2370 = vadd.f32 %v2301, %v2369
    %v2371 = vpop.f32.mrf.mxu0
    %2372 = vmatprep.mubr.f32.mxu0 0.0
    %2373 = vmatmul.mubr.f32.gmra.mxu0 %v198
    %v2374 = vpop.f32.mrf.mxu0
    %v2375 = vadd.f32 %v2301, %v2374
    %v2376 = vpop.f32.mrf.mxu0
    %2377 = vdwg.mxu0
    %v2379 = vsel %vm437, %v2208, 0
    %v2382 = vsel %vm437, %v2289, 0
    %2384 = vmatprep.subr.mxu0 0.0
    %2385 = vmatpush1.xpose.msra.mxu0 0.0
    %2386 = vmatprep.subr.mxu0 0.0
    %2387 = vmatpush1.xpose.msra.mxu0 0.0
    %2388 = vmatprep.subr.mxu0 0.0
    %2389 = vmatpush1.xpose.msra.mxu0 0.0
    %2390 = vmatprep.subr.mxu0 0.0
    %2391 = vmatpush1.xpose.msra.mxu0 0.0
    %2392 = vmatprep.subr.mxu0 0.0
    %2393 = vmatpush1.xpose.msra.mxu0 0.0
    %2394 = vmatprep.subr.mxu0 0.0
    %2395 = vmatpush1.xpose.msra.mxu0 0.0
    %2396 = vmatprep.subr.mxu0 0.0
    %2397 = vmatpush1.xpose.msra.mxu0 0.0
    %2398 = vmatprep.subr.mxu0 0.0
    %2399 = vmatpush1.xpose.msra.mxu0 0.0
    %2400 = vmatprep.subr.mxu0 0.0
    %2401 = vmatpush1.xpose.msra.mxu0 0.0
    %2402 = vmatprep.subr.mxu0 0.0
    %2403 = vmatpush1.xpose.msra.mxu0 0.0
    %2404 = vmatprep.subr.mxu0 0.0
    %2405 = vmatpush1.xpose.msra.mxu0 0.0
    %2406 = vmatprep.subr.mxu0 0.0
    %2407 = vmatpush1.xpose.msra.mxu0 0.0
    %2408 = vmatprep.subr.mxu0 0.0
    %2409 = vmatpush1.xpose.msra.mxu0 0.0
    %2410 = vmatprep.subr.mxu0 0.0
    %2411 = vmatpush1.xpose.msra.mxu0 0.0
    %2412 = vmatprep.subr.mxu0 0.0
    %2413 = vmatpush1.xpose.msra.mxu0 0.0
    %2414 = vmatprep.subr.mxu0 0.0
    %2415 = vmatpush1.xpose.msra.mxu0 %v2382
    %2416 = vmatprep.subr.mxu0 0.0
    %2417 = vmatpush2.xpose.msra.mxu0 0.0
    %2418 = vmatprep.subr.mxu0 0.0
    %2419 = vmatpush2.xpose.msra.mxu0 0.0
    %2420 = vmatprep.subr.mxu0 0.0
    %2421 = vmatpush2.xpose.msra.mxu0 0.0
    %2422 = vmatprep.subr.mxu0 0.0
    %2423 = vmatpush2.xpose.msra.mxu0 0.0
    %2424 = vmatprep.subr.mxu0 0.0
    %2425 = vmatpush2.xpose.msra.mxu0 0.0
    %2426 = vmatprep.subr.mxu0 0.0
    %2427 = vmatpush2.xpose.msra.mxu0 0.0
    %2428 = vmatprep.subr.mxu0 0.0
    %2429 = vmatpush2.xpose.msra.mxu0 0.0
    %2430 = vmatprep.subr.mxu0 0.0
    %2431 = vmatpush2.xpose.msra.mxu0 0.0
    %2432 = vmatprep.subr.mxu0 0.0
    %2433 = vmatpush2.xpose.msra.mxu0 0.0
    %2434 = vmatprep.subr.mxu0 0.0
    %2435 = vmatpush2.xpose.msra.mxu0 0.0
    %2436 = vmatprep.subr.mxu0 0.0
    %2437 = vmatpush2.xpose.msra.mxu0 0.0
    %2438 = vmatprep.subr.mxu0 0.0
    %2439 = vmatpush2.xpose.msra.mxu0 0.0
    %2440 = vmatprep.subr.mxu0 0.0
    %2441 = vmatpush2.xpose.msra.mxu0 0.0
    %2442 = vmatprep.subr.mxu0 0.0
    %2443 = vmatpush2.xpose.msra.mxu0 0.0
    %2444 = vmatprep.subr.mxu0 0.0
    %2445 = vmatpush2.xpose.msra.mxu0 0.0
    %2446 = vmatprep.subr.mxu0 0.0
    %2447 = vmatpush2.xpose.msra.mxu0 0.0
    %2448 = vmatprep.mubr.f32.mxu0 0.0
    %2449 = vmatmul.mubr.f32.gmra.mxu0 %v2379
    %v2450 = vpop.f32.mrf.mxu0
    %v2451 = vadd.f32 0.0, %v2450
    %v2452 = vpop.f32.mrf.mxu0
    %2453 = vdwg.mxu0
    %v2455 = vsel %vm437, %v2213, 0
    %v2458 = vsel %vm437, %v2294, 0
    %2460 = vmatprep.subr.mxu0 0.0
    %2461 = vmatpush1.xpose.msra.mxu0 0.0
    %2462 = vmatprep.subr.mxu0 0.0
    %2463 = vmatpush1.xpose.msra.mxu0 0.0
    %2464 = vmatprep.subr.mxu0 0.0
    %2465 = vmatpush1.xpose.msra.mxu0 0.0
    %2466 = vmatprep.subr.mxu0 0.0
    %2467 = vmatpush1.xpose.msra.mxu0 0.0
    %2468 = vmatprep.subr.mxu0 0.0
    %2469 = vmatpush1.xpose.msra.mxu0 0.0
    %2470 = vmatprep.subr.mxu0 0.0
    %2471 = vmatpush1.xpose.msra.mxu0 0.0
    %2472 = vmatprep.subr.mxu0 0.0
    %2473 = vmatpush1.xpose.msra.mxu0 0.0
    %2474 = vmatprep.subr.mxu0 0.0
    %2475 = vmatpush1.xpose.msra.mxu0 0.0
    %2476 = vmatprep.subr.mxu0 0.0
    %2477 = vmatpush1.xpose.msra.mxu0 0.0
    %2478 = vmatprep.subr.mxu0 0.0
    %2479 = vmatpush1.xpose.msra.mxu0 0.0
    %2480 = vmatprep.subr.mxu0 0.0
    %2481 = vmatpush1.xpose.msra.mxu0 0.0
    %2482 = vmatprep.subr.mxu0 0.0
    %2483 = vmatpush1.xpose.msra.mxu0 0.0
    %2484 = vmatprep.subr.mxu0 0.0
    %2485 = vmatpush1.xpose.msra.mxu0 0.0
    %2486 = vmatprep.subr.mxu0 0.0
    %2487 = vmatpush1.xpose.msra.mxu0 0.0
    %2488 = vmatprep.subr.mxu0 0.0
    %2489 = vmatpush1.xpose.msra.mxu0 0.0
    %2490 = vmatprep.subr.mxu0 0.0
    %2491 = vmatpush1.xpose.msra.mxu0 %v2458
    %2492 = vmatprep.subr.mxu0 0.0
    %2493 = vmatpush2.xpose.msra.mxu0 0.0
    %2494 = vmatprep.subr.mxu0 0.0
    %2495 = vmatpush2.xpose.msra.mxu0 0.0
    %2496 = vmatprep.subr.mxu0 0.0
    %2497 = vmatpush2.xpose.msra.mxu0 0.0
    %2498 = vmatprep.subr.mxu0 0.0
    %2499 = vmatpush2.xpose.msra.mxu0 0.0
    %2500 = vmatprep.subr.mxu0 0.0
    %2501 = vmatpush2.xpose.msra.mxu0 0.0
    %2502 = vmatprep.subr.mxu0 0.0
    %2503 = vmatpush2.xpose.msra.mxu0 0.0
    %2504 = vmatprep.subr.mxu0 0.0
    %2505 = vmatpush2.xpose.msra.mxu0 0.0
    %2506 = vmatprep.subr.mxu0 0.0
    %2507 = vmatpush2.xpose.msra.mxu0 0.0
    %2508 = vmatprep.subr.mxu0 0.0
    %2509 = vmatpush2.xpose.msra.mxu0 0.0
    %2510 = vmatprep.subr.mxu0 0.0
    %2511 = vmatpush2.xpose.msra.mxu0 0.0
    %2512 = vmatprep.subr.mxu0 0.0
    %2513 = vmatpush2.xpose.msra.mxu0 0.0
    %2514 = vmatprep.subr.mxu0 0.0
    %2515 = vmatpush2.xpose.msra.mxu0 0.0
    %2516 = vmatprep.subr.mxu0 0.0
    %2517 = vmatpush2.xpose.msra.mxu0 0.0
    %2518 = vmatprep.subr.mxu0 0.0
    %2519 = vmatpush2.xpose.msra.mxu0 0.0
    %2520 = vmatprep.subr.mxu0 0.0
    %2521 = vmatpush2.xpose.msra.mxu0 0.0
    %2522 = vmatprep.subr.mxu0 0.0
    %2523 = vmatpush2.xpose.msra.mxu0 0.0
    %2524 = vmatprep.mubr.f32.mxu0 0.0
    %2525 = vmatmul.mubr.f32.gmra.mxu0 %v2455
    %v2526 = vpop.f32.mrf.mxu0
    %v2527 = vadd.f32 0.0, %v2526
    %v2528 = vpop.f32.mrf.mxu0
    %2529 = vdwg.mxu0
    %v2530 = vmul.f32 %v2451, 0.35355338
    %v2531 = vmul.f32 %v2527, 0.35355338
    %v2532 = vsel %vm437, %v2530, -inf
    %2533 = vmax.xlane.f32.xlu0 %v2532
    %v2534 = vpop.xlane.xlu0 %2533
    %v2535 = vsel %vm437, %v2531, -inf
    %2536 = vmax.xlane.f32.xlu0 %v2535
    %v2537 = vpop.xlane.xlu0 %2536
    %v2538 = vsub.f32 %v2530, %v2534
    %v2539 = vsub.f32 %v2531, %v2537
    %v2540 = vmul.f32 %v2538, 1.442695
    %v2541 = vpow.pop %v2540
    %v2542 = vmul.f32 %v2539, 1.442695
    %v2543 = vpow.pop %v2542
    %v2544 = vsel %vm437, %v2541, 0.0
    %2545 = vadd.xlane.f32.xlu0 %v2544
    %v2546 = vpop.xlane.xlu0 %2545
    %v2547 = vsel %vm437, %v2543, 0.0
    %2548 = vadd.xlane.f32.xlu0 %v2547
    %v2549 = vpop.xlane.xlu0 %2548
    %v2550 = vrcp.pop %v2546
    %v2551 = vrcp.pop %v2549
    %v2552 = vmul.f32 %v2541, %v2550
    %v2553 = vmul.f32 %v2543, %v2551
    %v2555 = vsel %vm437, %v2552, 0
    %2557 = vmatprep.subr.mxu0 0.0
    %2558 = vmatpush1.msra.mxu0 0.0
    %2559 = vmatprep.subr.mxu0 0.0
    %2560 = vmatpush1.msra.mxu0 0.0
    %2561 = vmatprep.subr.mxu0 0.0
    %2562 = vmatpush1.msra.mxu0 0.0
    %2563 = vmatprep.subr.mxu0 0.0
    %2564 = vmatpush1.msra.mxu0 0.0
    %2565 = vmatprep.subr.mxu0 0.0
    %2566 = vmatpush1.msra.mxu0 0.0
    %2567 = vmatprep.subr.mxu0 0.0
    %2568 = vmatpush1.msra.mxu0 0.0
    %2569 = vmatprep.subr.mxu0 0.0
    %2570 = vmatpush1.msra.mxu0 0.0
    %2571 = vmatprep.subr.mxu0 0.0
    %2572 = vmatpush1.msra.mxu0 0.0
    %2573 = vmatprep.subr.mxu0 0.0
    %2574 = vmatpush1.msra.mxu0 0.0
    %2575 = vmatprep.subr.mxu0 0.0
    %2576 = vmatpush1.msra.mxu0 0.0
    %2577 = vmatprep.subr.mxu0 0.0
    %2578 = vmatpush1.msra.mxu0 0.0
    %2579 = vmatprep.subr.mxu0 0.0
    %2580 = vmatpush1.msra.mxu0 0.0
    %2581 = vmatprep.subr.mxu0 0.0
    %2582 = vmatpush1.msra.mxu0 0.0
    %2583 = vmatprep.subr.mxu0 0.0
    %2584 = vmatpush1.msra.mxu0 0.0
    %2585 = vmatprep.subr.mxu0 0.0
    %2586 = vmatpush1.msra.mxu0 0.0
    %2587 = vmatprep.subr.mxu0 0.0
    %2588 = vmatpush1.msra.mxu0 %v2370
    %2589 = vmatprep.subr.mxu0 0.0
    %2590 = vmatpush2.msra.mxu0 0.0
    %2591 = vmatprep.subr.mxu0 0.0
    %2592 = vmatpush2.msra.mxu0 0.0
    %2593 = vmatprep.subr.mxu0 0.0
    %2594 = vmatpush2.msra.mxu0 0.0
    %2595 = vmatprep.subr.mxu0 0.0
    %2596 = vmatpush2.msra.mxu0 0.0
    %2597 = vmatprep.subr.mxu0 0.0
    %2598 = vmatpush2.msra.mxu0 0.0
    %2599 = vmatprep.subr.mxu0 0.0
    %2600 = vmatpush2.msra.mxu0 0.0
    %2601 = vmatprep.subr.mxu0 0.0
    %2602 = vmatpush2.msra.mxu0 0.0
    %2603 = vmatprep.subr.mxu0 0.0
    %2604 = vmatpush2.msra.mxu0 0.0
    %2605 = vmatprep.subr.mxu0 0.0
    %2606 = vmatpush2.msra.mxu0 0.0
    %2607 = vmatprep.subr.mxu0 0.0
    %2608 = vmatpush2.msra.mxu0 0.0
    %2609 = vmatprep.subr.mxu0 0.0
    %2610 = vmatpush2.msra.mxu0 0.0
    %2611 = vmatprep.subr.mxu0 0.0
    %2612 = vmatpush2.msra.mxu0 0.0
    %2613 = vmatprep.subr.mxu0 0.0
    %2614 = vmatpush2.msra.mxu0 0.0
    %2615 = vmatprep.subr.mxu0 0.0
    %2616 = vmatpush2.msra.mxu0 0.0
    %2617 = vmatprep.subr.mxu0 0.0
    %2618 = vmatpush2.msra.mxu0 0.0
    %2619 = vmatprep.subr.mxu0 0.0
    %2620 = vmatpush2.msra.mxu0 0.0
    %2621 = vmatprep.mubr.f32.mxu0 0.0
    %2622 = vmatmul.mubr.f32.gmra.mxu0 %v2555
    %v2623 = vpop.f32.mrf.mxu0
    %v2624 = vadd.f32 0.0, %v2623
    %v2625 = vpop.f32.mrf.mxu0
    %2626 = vdwg.mxu0
    %v2628 = vsel %vm437, %v2553, 0
    %2630 = vmatprep.subr.mxu0 0.0
    %2631 = vmatpush1.msra.mxu0 0.0
    %2632 = vmatprep.subr.mxu0 0.0
    %2633 = vmatpush1.msra.mxu0 0.0
    %2634 = vmatprep.subr.mxu0 0.0
    %2635 = vmatpush1.msra.mxu0 0.0
    %2636 = vmatprep.subr.mxu0 0.0
    %2637 = vmatpush1.msra.mxu0 0.0
    %2638 = vmatprep.subr.mxu0 0.0
    %2639 = vmatpush1.msra.mxu0 0.0
    %2640 = vmatprep.subr.mxu0 0.0
    %2641 = vmatpush1.msra.mxu0 0.0
    %2642 = vmatprep.subr.mxu0 0.0
    %2643 = vmatpush1.msra.mxu0 0.0
    %2644 = vmatprep.subr.mxu0 0.0
    %2645 = vmatpush1.msra.mxu0 0.0
    %2646 = vmatprep.subr.mxu0 0.0
    %2647 = vmatpush1.msra.mxu0 0.0
    %2648 = vmatprep.subr.mxu0 0.0
    %2649 = vmatpush1.msra.mxu0 0.0
    %2650 = vmatprep.subr.mxu0 0.0
    %2651 = vmatpush1.msra.mxu0 0.0
    %2652 = vmatprep.subr.mxu0 0.0
    %2653 = vmatpush1.msra.mxu0 0.0
    %2654 = vmatprep.subr.mxu0 0.0
    %2655 = vmatpush1.msra.mxu0 0.0
    %2656 = vmatprep.subr.mxu0 0.0
    %2657 = vmatpush1.msra.mxu0 0.0
    %2658 = vmatprep.subr.mxu0 0.0
    %2659 = vmatpush1.msra.mxu0 0.0
    %2660 = vmatprep.subr.mxu0 0.0
    %2661 = vmatpush1.msra.mxu0 %v2375
    %2662 = vmatprep.subr.mxu0 0.0
    %2663 = vmatpush2.msra.mxu0 0.0
    %2664 = vmatprep.subr.mxu0 0.0
    %2665 = vmatpush2.msra.mxu0 0.0
    %2666 = vmatprep.subr.mxu0 0.0
    %2667 = vmatpush2.msra.mxu0 0.0
    %2668 = vmatprep.subr.mxu0 0.0
    %2669 = vmatpush2.msra.mxu0 0.0
    %2670 = vmatprep.subr.mxu0 0.0
    %2671 = vmatpush2.msra.mxu0 0.0
    %2672 = vmatprep.subr.mxu0 0.0
    %2673 = vmatpush2.msra.mxu0 0.0
    %2674 = vmatprep.subr.mxu0 0.0
    %2675 = vmatpush2.msra.mxu0 0.0
    %2676 = vmatprep.subr.mxu0 0.0
    %2677 = vmatpush2.msra.mxu0 0.0
    %2678 = vmatprep.subr.mxu0 0.0
    %2679 = vmatpush2.msra.mxu0 0.0
    %2680 = vmatprep.subr.mxu0 0.0
    %2681 = vmatpush2.msra.mxu0 0.0
    %2682 = vmatprep.subr.mxu0 0.0
    %2683 = vmatpush2.msra.mxu0 0.0
    %2684 = vmatprep.subr.mxu0 0.0
    %2685 = vmatpush2.msra.mxu0 0.0
    %2686 = vmatprep.subr.mxu0 0.0
    %2687 = vmatpush2.msra.mxu0 0.0
    %2688 = vmatprep.subr.mxu0 0.0
    %2689 = vmatpush2.msra.mxu0 0.0
    %2690 = vmatprep.subr.mxu0 0.0
    %2691 = vmatpush2.msra.mxu0 0.0
    %2692 = vmatprep.subr.mxu0 0.0
    %2693 = vmatpush2.msra.mxu0 0.0
    %2694 = vmatprep.mubr.f32.mxu0 0.0
    %2695 = vmatmul.mubr.f32.gmra.mxu0 %v2628
    %v2696 = vpop.f32.mrf.mxu0
    %v2697 = vadd.f32 0.0, %v2696
    %v2698 = vpop.f32.mrf.mxu0
    %2699 = vdwg.mxu0
    %v2701 = vsel %vm437, %v2624, 0
    %v2704 = vsel %vm437, %v2697, 0
    %2706 = vmatprep.subr.mxu0 0.0
    %2707 = vmatpush1.msra.mxu0 0.0
    %2708 = vmatprep.subr.mxu0 0.0
    %2709 = vmatpush1.msra.mxu0 0.0
    %2710 = vmatprep.subr.mxu0 0.0
    %2711 = vmatpush1.msra.mxu0 0.0
    %2712 = vmatprep.subr.mxu0 0.0
    %2713 = vmatpush1.msra.mxu0 0.0
    %2714 = vmatprep.subr.mxu0 0.0
    %2715 = vmatpush1.msra.mxu0 0.0
    %2716 = vmatprep.subr.mxu0 0.0
    %2717 = vmatpush1.msra.mxu0 0.0
    %2718 = vmatprep.subr.mxu0 0.0
    %2719 = vmatpush1.msra.mxu0 0.0
    %2720 = vmatprep.subr.mxu0 0.0
    %2721 = vmatpush1.msra.mxu0 0.0
    %2722 = vmatprep.subr.mxu0 0.0
    %2723 = vmatpush1.msra.mxu0 0.0
    %2724 = vmatprep.subr.mxu0 0.0
    %2725 = vmatpush1.msra.mxu0 0.0
    %2726 = vmatprep.subr.mxu0 0.0
    %2727 = vmatpush1.msra.mxu0 0.0
    %2728 = vmatprep.subr.mxu0 0.0
    %2729 = vmatpush1.msra.mxu0 0.0
    %2730 = vmatprep.subr.mxu0 0.0
    %2731 = vmatpush1.msra.mxu0 0.0
    %2732 = vmatprep.subr.mxu0 0.0
    %2733 = vmatpush1.msra.mxu0 0.0
    %2734 = vmatprep.subr.mxu0 0.0
    %2735 = vmatpush1.msra.mxu0 0.0
    %2736 = vmatprep.subr.mxu0 0.0
    %2737 = vmatpush1.msra.mxu0 %v175
    %2738 = vmatprep.subr.mxu0 0.0
    %2739 = vmatpush2.msra.mxu0 0.0
    %2740 = vmatprep.subr.mxu0 0.0
    %2741 = vmatpush2.msra.mxu0 0.0
    %2742 = vmatprep.subr.mxu0 0.0
    %2743 = vmatpush2.msra.mxu0 0.0
    %2744 = vmatprep.subr.mxu0 0.0
    %2745 = vmatpush2.msra.mxu0 0.0
    %2746 = vmatprep.subr.mxu0 0.0
    %2747 = vmatpush2.msra.mxu0 0.0
    %2748 = vmatprep.subr.mxu0 0.0
    %2749 = vmatpush2.msra.mxu0 0.0
    %2750 = vmatprep.subr.mxu0 0.0
    %2751 = vmatpush2.msra.mxu0 0.0
    %2752 = vmatprep.subr.mxu0 0.0
    %2753 = vmatpush2.msra.mxu0 0.0
    %2754 = vmatprep.subr.mxu0 0.0
    %2755 = vmatpush2.msra.mxu0 0.0
    %2756 = vmatprep.subr.mxu0 0.0
    %2757 = vmatpush2.msra.mxu0 0.0
    %2758 = vmatprep.subr.mxu0 0.0
    %2759 = vmatpush2.msra.mxu0 0.0
    %2760 = vmatprep.subr.mxu0 0.0
    %2761 = vmatpush2.msra.mxu0 0.0
    %2762 = vmatprep.subr.mxu0 0.0
    %2763 = vmatpush2.msra.mxu0 0.0
    %2764 = vmatprep.subr.mxu0 0.0
    %2765 = vmatpush2.msra.mxu0 0.0
    %2766 = vmatprep.subr.mxu0 0.0
    %2767 = vmatpush2.msra.mxu0 0.0
    %2768 = vmatprep.subr.mxu0 0.0
    %2769 = vmatpush2.msra.mxu0 0.0
    %2770 = vmatprep.mubr.f32.mxu0 0.0
    %2771 = vmatmul.mubr.f32.gmra.mxu0 %v2701
    %v2772 = vpop.f32.mrf.mxu0
    %v2773 = vadd.f32 0.0, %v2772
    %v2774 = vpop.f32.mrf.mxu0
    %2775 = vmatprep.mubr.f32.mxu0 0.0
    %2776 = vmatmul.mubr.f32.gmra.mxu0 %v2704
    %v2777 = vpop.f32.mrf.mxu0
    %v2778 = vadd.f32 0.0, %v2777
    %v2779 = vpop.f32.mrf.mxu0
    %2780 = vdwg.mxu0
    %v2781 = vadd.f32 %v2133, %v2773
    %v2782 = vadd.f32 %v2134, %v2778
    %v2783 = vadd.f32 %v76, %v2781
    %v2784 = vadd.f32 %v77, %v2782
    %v2785 = vld [vmem:[%s11] sm:$0x1]
    %v2787 = vlaneseq
    %v2788 = vshrl.u32 %v2787, 7
    %v2789 = vsub.s32 0, %v2788
    %v2790 = vrot.slane %v2785, %v2789
    %v2792 = vadd.f32 %v2783, %v2790
    %v2793 = vadd.f32 %v2784, %v2790
    %v2794 = vld [vmem:[%s12] sm:$0x1]
    %v2795 = vld [vmem:[%s13] sm:$0x1]
    %v2796 = vsel %vm80, %v2792, 0.0
    %2797 = vadd.xlane.f32.xlu0 %v2796
    %v2798 = vpop.xlane.xlu0 %2797
    %v2799 = vsel %vm80, %v2793, 0.0
    %2800 = vadd.xlane.f32.xlu0 %v2799
    %v2801 = vpop.xlane.xlu0 %2800
    %v2802 = vmul.f32 %v2798, %v87
    %v2803 = vmul.f32 %v2801, %v87
    %v2804 = vsub.f32 %v2792, %v2802
    %v2805 = vsub.f32 %v2793, %v2803
    %v2806 = vmul.f32 %v2804, %v2804
    %v2807 = vmul.f32 %v2805, %v2805
    %v2808 = vsel %vm80, %v2806, 0.0
    %2809 = vadd.xlane.f32.xlu0 %v2808
    %v2810 = vpop.xlane.xlu0 %2809
    %v2811 = vsel %vm80, %v2807, 0.0
    %2812 = vadd.xlane.f32.xlu0 %v2811
    %v2813 = vpop.xlane.xlu0 %2812
    %v2814 = vmul.f32 %v2810, %v87
    %v2815 = vmul.f32 %v2813, %v87
    %v2816 = vadd.f32 %v2814, 1e-05
    %v2817 = vadd.f32 %v2815, 1e-05
    %v2818 = vrsqrt.pop %v2816
    %v2819 = vrsqrt.pop %v2817
    %v2820 = vmul.f32 %v2804, %v2818
    %v2821 = vmul.f32 %v2805, %v2819
    %v2823 = vlaneseq
    %v2824 = vshrl.u32 %v2823, 7
    %v2825 = vsub.s32 0, %v2824
    %v2826 = vrot.slane %v2794, %v2825
    %v2828 = vmul.f32 %v2820, %v2826
    %v2829 = vmul.f32 %v2821, %v2826
    %v2831 = vlaneseq
    %v2832 = vshrl.u32 %v2831, 7
    %v2833 = vsub.s32 0, %v2832
    %v2834 = vrot.slane %v2795, %v2833
    %v2836 = vadd.f32 %v2828, %v2834
    %v2837 = vadd.f32 %v2829, %v2834
    %v2838 = vld [vmem:[%s14] sm:$0xff]
    %v2839 = vld [vmem:[%s14 + $0x8] sm:$0xff]
    %v2840 = vld [vmem:[%s14 + $0x10] sm:$0xff]
    %v2841 = vld [vmem:[%s14 + $0x18] sm:$0xff]
    %v2842 = vld [vmem:[%s15] sm:$0x1]
    %v2844 = vlaneseq
    %v2845 = vshrl.u32 %v2844, 7
    %v2846 = vsub.s32 0, %v2845
    %v2847 = vrot.slane %v2842, %v2846
    %v2850 = vsel %vm80, %v2836, 0
    %v2853 = vsel %vm80, %v2837, 0
    %2855 = vmatprep.subr.mxu0 0.0
    %2856 = vmatpush1.msra.mxu0 0.0
    %2857 = vmatprep.subr.mxu0 0.0
    %2858 = vmatpush1.msra.mxu0 0.0
    %2859 = vmatprep.subr.mxu0 0.0
    %2860 = vmatpush1.msra.mxu0 0.0
    %2861 = vmatprep.subr.mxu0 0.0
    %2862 = vmatpush1.msra.mxu0 0.0
    %2863 = vmatprep.subr.mxu0 0.0
    %2864 = vmatpush1.msra.mxu0 0.0
    %2865 = vmatprep.subr.mxu0 0.0
    %2866 = vmatpush1.msra.mxu0 0.0
    %2867 = vmatprep.subr.mxu0 0.0
    %2868 = vmatpush1.msra.mxu0 0.0
    %2869 = vmatprep.subr.mxu0 0.0
    %2870 = vmatpush1.msra.mxu0 0.0
    %2871 = vmatprep.subr.mxu0 0.0
    %2872 = vmatpush1.msra.mxu0 0.0
    %2873 = vmatprep.subr.mxu0 0.0
    %2874 = vmatpush1.msra.mxu0 0.0
    %2875 = vmatprep.subr.mxu0 0.0
    %2876 = vmatpush1.msra.mxu0 0.0
    %2877 = vmatprep.subr.mxu0 0.0
    %2878 = vmatpush1.msra.mxu0 0.0
    %2879 = vmatprep.subr.mxu0 0.0
    %2880 = vmatpush1.msra.mxu0 %v2841
    %2881 = vmatprep.subr.mxu0 0.0
    %2882 = vmatpush1.msra.mxu0 %v2840
    %2883 = vmatprep.subr.mxu0 0.0
    %2884 = vmatpush1.msra.mxu0 %v2839
    %2885 = vmatprep.subr.mxu0 0.0
    %2886 = vmatpush1.msra.mxu0 %v2838
    %2887 = vmatprep.subr.mxu0 0.0
    %2888 = vmatpush2.msra.mxu0 0.0
    %2889 = vmatprep.subr.mxu0 0.0
    %2890 = vmatpush2.msra.mxu0 0.0
    %2891 = vmatprep.subr.mxu0 0.0
    %2892 = vmatpush2.msra.mxu0 0.0
    %2893 = vmatprep.subr.mxu0 0.0
    %2894 = vmatpush2.msra.mxu0 0.0
    %2895 = vmatprep.subr.mxu0 0.0
    %2896 = vmatpush2.msra.mxu0 0.0
    %2897 = vmatprep.subr.mxu0 0.0
    %2898 = vmatpush2.msra.mxu0 0.0
    %2899 = vmatprep.subr.mxu0 0.0
    %2900 = vmatpush2.msra.mxu0 0.0
    %2901 = vmatprep.subr.mxu0 0.0
    %2902 = vmatpush2.msra.mxu0 0.0
    %2903 = vmatprep.subr.mxu0 0.0
    %2904 = vmatpush2.msra.mxu0 0.0
    %2905 = vmatprep.subr.mxu0 0.0
    %2906 = vmatpush2.msra.mxu0 0.0
    %2907 = vmatprep.subr.mxu0 0.0
    %2908 = vmatpush2.msra.mxu0 0.0
    %2909 = vmatprep.subr.mxu0 0.0
    %2910 = vmatpush2.msra.mxu0 0.0
    %2911 = vmatprep.subr.mxu0 0.0
    %2912 = vmatpush2.msra.mxu0 0.0
    %2913 = vmatprep.subr.mxu0 0.0
    %2914 = vmatpush2.msra.mxu0 0.0
    %2915 = vmatprep.subr.mxu0 0.0
    %2916 = vmatpush2.msra.mxu0 0.0
    %2917 = vmatprep.subr.mxu0 0.0
    %2918 = vmatpush2.msra.mxu0 0.0
    %2919 = vmatprep.mubr.f32.mxu0 0.0
    %2920 = vmatmul.mubr.f32.gmra.mxu0 %v2850
    %v2921 = vpop.f32.mrf.mxu0
    %v2922 = vadd.f32 %v2847, %v2921
    %v2923 = vpop.f32.mrf.mxu0
    %2924 = vmatprep.mubr.f32.mxu0 0.0
    %2925 = vmatmul.mubr.f32.gmra.mxu0 %v2853
    %v2926 = vpop.f32.mrf.mxu0
    %v2927 = vadd.f32 %v2847, %v2926
    %v2928 = vpop.f32.mrf.mxu0
    %2929 = vdwg.mxu0
    %v2930 = vmul.f32 %v2922, 0.5
    %v2931 = vmul.f32 %v2927, 0.5
    %v2932 = vmul.f32 %v2922, 0.70710677
    %v2933 = vmul.f32 %v2927, 0.70710677
    %vm2934 = vcmp.lt.f32.partialorder %v2932, 0.0
    %vm2935 = vcmp.lt.f32.partialorder %v2933, 0.0
    %v2936 = vsub.f32 0.0, %v2932
    %v2937 = vsub.f32 0.0, %v2933
    %v2938 = vsel %vm2934, %v2936, %v2932
    %v2939 = vsel %vm2935, %v2937, %v2933
    %v2940 = vmul.f32 %v2938, 0.3275911
    %v2941 = vmul.f32 %v2939, 0.3275911
    %v2942 = vadd.f32 %v2940, 1.0
    %v2943 = vadd.f32 %v2941, 1.0
    %v2944 = vrcp.pop %v2942
    %v2945 = vmul.f32 1.0, %v2944
    %v2946 = vrcp.pop %v2943
    %v2947 = vmul.f32 1.0, %v2946
    %v2948 = vmul.f32 %v2945, 1.0614054
    %v2949 = vmul.f32 %v2947, 1.0614054
    %v2950 = vadd.f32 %v2948, -1.4531521
    %v2951 = vadd.f32 %v2949, -1.4531521
    %v2952 = vmul.f32 %v2950, %v2945
    %v2953 = vmul.f32 %v2951, %v2947
    %v2954 = vadd.f32 %v2952, 1.4214138
    %v2955 = vadd.f32 %v2953, 1.4214138
    %v2956 = vmul.f32 %v2954, %v2945
    %v2957 = vmul.f32 %v2955, %v2947
    %v2958 = vadd.f32 %v2956, -0.28449672
    %v2959 = vadd.f32 %v2957, -0.28449672
    %v2960 = vmul.f32 %v2958, %v2945
    %v2961 = vmul.f32 %v2959, %v2947
    %v2962 = vadd.f32 %v2960, 0.2548296
    %v2963 = vadd.f32 %v2961, 0.2548296
    %v2964 = vmul.f32 %v2962, %v2945
    %v2965 = vmul.f32 %v2963, %v2947
    %v2966 = vsub.f32 0.0, %v2938
    %v2967 = vsub.f32 0.0, %v2939
    %v2968 = vmul.f32 %v2966, %v2938
    %v2969 = vmul.f32 %v2967, %v2939
    %v2970 = vmul.f32 %v2968, 1.442695
    %v2971 = vpow.pop %v2970
    %v2972 = vmul.f32 %v2969, 1.442695
    %v2973 = vpow.pop %v2972
    %v2974 = vmul.f32 %v2964, %v2971
    %v2975 = vmul.f32 %v2965, %v2973
    %v2976 = vsub.f32 1.0, %v2974
    %v2977 = vsub.f32 1.0, %v2975
    %v2978 = vsub.f32 0.0, %v2976
    %v2979 = vsub.f32 0.0, %v2977
    %v2980 = vsel %vm2934, %v2978, %v2976
    %v2981 = vsel %vm2935, %v2979, %v2977
    %v2982 = vadd.f32 %v2980, 1.0
    %v2983 = vadd.f32 %v2981, 1.0
    %v2984 = vmul.f32 %v2930, %v2982
    %v2985 = vmul.f32 %v2931, %v2983
    %v2986 = vld [vmem:[%s16] sm:$0xff]
    %v2987 = vld [vmem:[%s16 + $0x8] sm:$0xff]
    %v2988 = vld [vmem:[%s16 + $0x10] sm:$0xff]
    %v2989 = vld [vmem:[%s16 + $0x18] sm:$0xff]
    %v2990 = vld [vmem:[%s16 + $0x20] sm:$0xff]
    %v2991 = vld [vmem:[%s16 + $0x28] sm:$0xff]
    %v2992 = vld [vmem:[%s16 + $0x30] sm:$0xff]
    %v2993 = vld [vmem:[%s16 + $0x38] sm:$0xff]
    %vm2994 = vcmask 523264
    %v2996 = vsel %vm2994, %v2984, 0
    %v2999 = vsel %vm2994, %v2985, 0
    %3001 = vmatprep.subr.mxu0 0.0
    %3002 = vmatpush1.msra.mxu0 0.0
    %3003 = vmatprep.subr.mxu0 0.0
    %3004 = vmatpush1.msra.mxu0 0.0
    %3005 = vmatprep.subr.mxu0 0.0
    %3006 = vmatpush1.msra.mxu0 0.0
    %3007 = vmatprep.subr.mxu0 0.0
    %3008 = vmatpush1.msra.mxu0 0.0
    %3009 = vmatprep.subr.mxu0 0.0
    %3010 = vmatpush1.msra.mxu0 0.0
    %3011 = vmatprep.subr.mxu0 0.0
    %3012 = vmatpush1.msra.mxu0 0.0
    %3013 = vmatprep.subr.mxu0 0.0
    %3014 = vmatpush1.msra.mxu0 0.0
    %3015 = vmatprep.subr.mxu0 0.0
    %3016 = vmatpush1.msra.mxu0 0.0
    %3017 = vmatprep.subr.mxu0 0.0
    %3018 = vmatpush1.msra.mxu0 %v2993
    %3019 = vmatprep.subr.mxu0 0.0
    %3020 = vmatpush1.msra.mxu0 %v2992
    %3021 = vmatprep.subr.mxu0 0.0
    %3022 = vmatpush1.msra.mxu0 %v2991
    %3023 = vmatprep.subr.mxu0 0.0
    %3024 = vmatpush1.msra.mxu0 %v2990
    %3025 = vmatprep.subr.mxu0 0.0
    %3026 = vmatpush1.msra.mxu0 %v2989
    %3027 = vmatprep.subr.mxu0 0.0
    %3028 = vmatpush1.msra.mxu0 %v2988
    %3029 = vmatprep.subr.mxu0 0.0
    %3030 = vmatpush1.msra.mxu0 %v2987
    %3031 = vmatprep.subr.mxu0 0.0
    %3032 = vmatpush1.msra.mxu0 %v2986
    %3033 = vmatprep.subr.mxu0 0.0
    %3034 = vmatpush2.msra.mxu0 0.0
    %3035 = vmatprep.subr.mxu0 0.0
    %3036 = vmatpush2.msra.mxu0 0.0
    %3037 = vmatprep.subr.mxu0 0.0
    %3038 = vmatpush2.msra.mxu0 0.0
    %3039 = vmatprep.subr.mxu0 0.0
    %3040 = vmatpush2.msra.mxu0 0.0
    %3041 = vmatprep.subr.mxu0 0.0
    %3042 = vmatpush2.msra.mxu0 0.0
    %3043 = vmatprep.subr.mxu0 0.0
    %3044 = vmatpush2.msra.mxu0 0.0
    %3045 = vmatprep.subr.mxu0 0.0
    %3046 = vmatpush2.msra.mxu0 0.0
    %3047 = vmatprep.subr.mxu0 0.0
    %3048 = vmatpush2.msra.mxu0 0.0
    %3049 = vmatprep.subr.mxu0 0.0
    %3050 = vmatpush2.msra.mxu0 0.0
    %3051 = vmatprep.subr.mxu0 0.0
    %3052 = vmatpush2.msra.mxu0 0.0
    %3053 = vmatprep.subr.mxu0 0.0
    %3054 = vmatpush2.msra.mxu0 0.0
    %3055 = vmatprep.subr.mxu0 0.0
    %3056 = vmatpush2.msra.mxu0 0.0
    %3057 = vmatprep.subr.mxu0 0.0
    %3058 = vmatpush2.msra.mxu0 0.0
    %3059 = vmatprep.subr.mxu0 0.0
    %3060 = vmatpush2.msra.mxu0 0.0
    %3061 = vmatprep.subr.mxu0 0.0
    %3062 = vmatpush2.msra.mxu0 0.0
    %3063 = vmatprep.subr.mxu0 0.0
    %3064 = vmatpush2.msra.mxu0 0.0
    %3065 = vmatprep.mubr.f32.mxu0 0.0
    %3066 = vmatmul.mubr.f32.gmra.mxu0 %v2996
    %v3067 = vpop.f32.mrf.mxu0
    %v3068 = vadd.f32 0.0, %v3067
    %v3069 = vpop.f32.mrf.mxu0
    %3070 = vmatprep.mubr.f32.mxu0 0.0
    %3071 = vmatmul.mubr.f32.gmra.mxu0 %v2999
    %v3072 = vpop.f32.mrf.mxu0
    %v3073 = vadd.f32 0.0, %v3072
    %v3074 = vpop.f32.mrf.mxu0
    %3075 = vdwg.mxu0
    %v3076 = vadd.f32 %v2792, %v3068
    %v3077 = vadd.f32 %v2793, %v3073
    %v3078 = vld [vmem:[%s17] sm:$0x1]
    %v3080 = vlaneseq
    %v3081 = vshrl.u32 %v3080, 7
    %v3082 = vsub.s32 0, %v3081
    %v3083 = vrot.slane %v3078, %v3082
    %v3085 = vadd.f32 %v3076, %v3083
    %v3086 = vadd.f32 %v3077, %v3083
    %s3087 = scalar_lea.vmem %s2, 1
    %v3088 = vld [vmem:[%s3087] sm:$0x1]
    %s3089 = scalar_lea.vmem %s3, 1
    %v3090 = vld [vmem:[%s3089] sm:$0x1]
    %v3091 = vsel %vm80, %v3085, 0.0
    %3092 = vadd.xlane.f32.xlu0 %v3091
    %v3093 = vpop.xlane.xlu0 %3092
    %v3094 = vsel %vm80, %v3086, 0.0
    %3095 = vadd.xlane.f32.xlu0 %v3094
    %v3096 = vpop.xlane.xlu0 %3095
    %v3097 = vmul.f32 %v3093, %v87
    %v3098 = vmul.f32 %v3096, %v87
    %v3099 = vsub.f32 %v3085, %v3097
    %v3100 = vsub.f32 %v3086, %v3098
    %v3101 = vmul.f32 %v3099, %v3099
    %v3102 = vmul.f32 %v3100, %v3100
    %v3103 = vsel %vm80, %v3101, 0.0
    %3104 = vadd.xlane.f32.xlu0 %v3103
    %v3105 = vpop.xlane.xlu0 %3104
    %v3106 = vsel %vm80, %v3102, 0.0
    %3107 = vadd.xlane.f32.xlu0 %v3106
    %v3108 = vpop.xlane.xlu0 %3107
    %v3109 = vmul.f32 %v3105, %v87
    %v3110 = vmul.f32 %v3108, %v87
    %v3111 = vadd.f32 %v3109, 1e-05
    %v3112 = vadd.f32 %v3110, 1e-05
    %v3113 = vrsqrt.pop %v3111
    %v3114 = vrsqrt.pop %v3112
    %v3115 = vmul.f32 %v3099, %v3113
    %v3116 = vmul.f32 %v3100, %v3114
    %v3118 = vlaneseq
    %v3119 = vshrl.u32 %v3118, 7
    %v3120 = vsub.s32 0, %v3119
    %v3121 = vrot.slane %v3088, %v3120
    %v3123 = vmul.f32 %v3115, %v3121
    %v3124 = vmul.f32 %v3116, %v3121
    %v3126 = vlaneseq
    %v3127 = vshrl.u32 %v3126, 7
    %v3128 = vsub.s32 0, %v3127
    %v3129 = vrot.slane %v3090, %v3128
    %v3131 = vadd.f32 %v3123, %v3129
    %v3132 = vadd.f32 %v3124, %v3129
    %s3133 = scalar_lea.vmem %s4, 128
    %v3134 = vld [vmem:[%s3133] sm:$0xff]
    %v3135 = vld [vmem:[%s3133 + $0x8] sm:$0xff]
    %v3136 = vld [vmem:[%s3133 + $0x10] sm:$0xff]
    %v3137 = vld [vmem:[%s3133 + $0x18] sm:$0xff]
    %v3138 = vld [vmem:[%s3133 + $0x20] sm:$0xff]
    %v3139 = vld [vmem:[%s3133 + $0x28] sm:$0xff]
    %v3140 = vld [vmem:[%s3133 + $0x30] sm:$0xff]
    %v3141 = vld [vmem:[%s3133 + $0x38] sm:$0xff]
    %v3142 = vld [vmem:[%s3133 + $0x40] sm:$0xff]
    %v3143 = vld [vmem:[%s3133 + $0x48] sm:$0xff]
    %v3144 = vld [vmem:[%s3133 + $0x50] sm:$0xff]
    %v3145 = vld [vmem:[%s3133 + $0x58] sm:$0xff]
    %v3146 = vld [vmem:[%s3133 + $0x60] sm:$0xff]
    %v3147 = vld [vmem:[%s3133 + $0x68] sm:$0xff]
    %v3148 = vld [vmem:[%s3133 + $0x70] sm:$0xff]
    %v3149 = vld [vmem:[%s3133 + $0x78] sm:$0xff]
    %s3150 = scalar_lea.vmem %s6, 128
    %v3151 = vld [vmem:[%s3150] sm:$0xff]
    %v3152 = vld [vmem:[%s3150 + $0x8] sm:$0xff]
    %v3153 = vld [vmem:[%s3150 + $0x10] sm:$0xff]
    %v3154 = vld [vmem:[%s3150 + $0x18] sm:$0xff]
    %v3155 = vld [vmem:[%s3150 + $0x20] sm:$0xff]
    %v3156 = vld [vmem:[%s3150 + $0x28] sm:$0xff]
    %v3157 = vld [vmem:[%s3150 + $0x30] sm:$0xff]
    %v3158 = vld [vmem:[%s3150 + $0x38] sm:$0xff]
    %v3159 = vld [vmem:[%s3150 + $0x40] sm:$0xff]
    %v3160 = vld [vmem:[%s3150 + $0x48] sm:$0xff]
    %v3161 = vld [vmem:[%s3150 + $0x50] sm:$0xff]
    %v3162 = vld [vmem:[%s3150 + $0x58] sm:$0xff]
    %v3163 = vld [vmem:[%s3150 + $0x60] sm:$0xff]
    %v3164 = vld [vmem:[%s3150 + $0x68] sm:$0xff]
    %v3165 = vld [vmem:[%s3150 + $0x70] sm:$0xff]
    %v3166 = vld [vmem:[%s3150 + $0x78] sm:$0xff]
    %s3167 = scalar_lea.vmem %s8, 128
    %v3168 = vld [vmem:[%s3167] sm:$0xff]
    %v3169 = vld [vmem:[%s3167 + $0x8] sm:$0xff]
    %v3170 = vld [vmem:[%s3167 + $0x10] sm:$0xff]
    %v3171 = vld [vmem:[%s3167 + $0x18] sm:$0xff]
    %v3172 = vld [vmem:[%s3167 + $0x20] sm:$0xff]
    %v3173 = vld [vmem:[%s3167 + $0x28] sm:$0xff]
    %v3174 = vld [vmem:[%s3167 + $0x30] sm:$0xff]
    %v3175 = vld [vmem:[%s3167 + $0x38] sm:$0xff]
    %v3176 = vld [vmem:[%s3167 + $0x40] sm:$0xff]
    %v3177 = vld [vmem:[%s3167 + $0x48] sm:$0xff]
    %v3178 = vld [vmem:[%s3167 + $0x50] sm:$0xff]
    %v3179 = vld [vmem:[%s3167 + $0x58] sm:$0xff]
    %v3180 = vld [vmem:[%s3167 + $0x60] sm:$0xff]
    %v3181 = vld [vmem:[%s3167 + $0x68] sm:$0xff]
    %v3182 = vld [vmem:[%s3167 + $0x70] sm:$0xff]
    %v3183 = vld [vmem:[%s3167 + $0x78] sm:$0xff]
    %s3184 = scalar_lea.vmem %s10, 32
    %v3185 = vld [vmem:[%s3184] sm:$0xff]
    %v3186 = vld [vmem:[%s3184 + $0x8] sm:$0xff]
    %v3187 = vld [vmem:[%s3184 + $0x10] sm:$0xff]
    %v3188 = vld [vmem:[%s3184 + $0x18] sm:$0xff]
    %s3189 = scalar_lea.vmem %s5, 4
    %v3190 = vld [vmem:[%s3189] sm:$0x1]
    %v3191 = vld [vmem:[%s3189 + $0x1] sm:$0x1]
    %v3192 = vld [vmem:[%s3189 + $0x2] sm:$0x1]
    %v3193 = vld [vmem:[%s3189 + $0x3] sm:$0x1]
    %s3194 = scalar_lea.vmem %s7, 4
    %v3195 = vld [vmem:[%s3194] sm:$0x1]
    %v3196 = vld [vmem:[%s3194 + $0x1] sm:$0x1]
    %v3197 = vld [vmem:[%s3194 + $0x2] sm:$0x1]
    %v3198 = vld [vmem:[%s3194 + $0x3] sm:$0x1]
    %s3199 = scalar_lea.vmem %s9, 4
    %v3200 = vld [vmem:[%s3199] sm:$0x1]
    %v3201 = vld [vmem:[%s3199 + $0x1] sm:$0x1]
    %v3202 = vld [vmem:[%s3199 + $0x2] sm:$0x1]
    %v3203 = vld [vmem:[%s3199 + $0x3] sm:$0x1]
    %v3205 = vlaneseq
    %v3206 = vshrl.u32 %v3205, 7
    %v3207 = vsub.s32 0, %v3206
    %v3208 = vrot.slane %v3190, %v3207
    %v3211 = vsel %vm80, %v3131, 0
    %v3214 = vsel %vm80, %v3132, 0
    %3216 = vmatprep.subr.mxu0 0.0
    %3217 = vmatpush1.msra.mxu0 0.0
    %3218 = vmatprep.subr.mxu0 0.0
    %3219 = vmatpush1.msra.mxu0 0.0
    %3220 = vmatprep.subr.mxu0 0.0
    %3221 = vmatpush1.msra.mxu0 0.0
    %3222 = vmatprep.subr.mxu0 0.0
    %3223 = vmatpush1.msra.mxu0 0.0
    %3224 = vmatprep.subr.mxu0 0.0
    %3225 = vmatpush1.msra.mxu0 0.0
    %3226 = vmatprep.subr.mxu0 0.0
    %3227 = vmatpush1.msra.mxu0 0.0
    %3228 = vmatprep.subr.mxu0 0.0
    %3229 = vmatpush1.msra.mxu0 0.0
    %3230 = vmatprep.subr.mxu0 0.0
    %3231 = vmatpush1.msra.mxu0 0.0
    %3232 = vmatprep.subr.mxu0 0.0
    %3233 = vmatpush1.msra.mxu0 0.0
    %3234 = vmatprep.subr.mxu0 0.0
    %3235 = vmatpush1.msra.mxu0 0.0
    %3236 = vmatprep.subr.mxu0 0.0
    %3237 = vmatpush1.msra.mxu0 0.0
    %3238 = vmatprep.subr.mxu0 0.0
    %3239 = vmatpush1.msra.mxu0 0.0
    %3240 = vmatprep.subr.mxu0 0.0
    %3241 = vmatpush1.msra.mxu0 %v3137
    %3242 = vmatprep.subr.mxu0 0.0
    %3243 = vmatpush1.msra.mxu0 %v3136
    %3244 = vmatprep.subr.mxu0 0.0
    %3245 = vmatpush1.msra.mxu0 %v3135
    %3246 = vmatprep.subr.mxu0 0.0
    %3247 = vmatpush1.msra.mxu0 %v3134
    %3248 = vmatprep.subr.mxu0 0.0
    %3249 = vmatpush2.msra.mxu0 0.0
    %3250 = vmatprep.subr.mxu0 0.0
    %3251 = vmatpush2.msra.mxu0 0.0
    %3252 = vmatprep.subr.mxu0 0.0
    %3253 = vmatpush2.msra.mxu0 0.0
    %3254 = vmatprep.subr.mxu0 0.0
    %3255 = vmatpush2.msra.mxu0 0.0
    %3256 = vmatprep.subr.mxu0 0.0
    %3257 = vmatpush2.msra.mxu0 0.0
    %3258 = vmatprep.subr.mxu0 0.0
    %3259 = vmatpush2.msra.mxu0 0.0
    %3260 = vmatprep.subr.mxu0 0.0
    %3261 = vmatpush2.msra.mxu0 0.0
    %3262 = vmatprep.subr.mxu0 0.0
    %3263 = vmatpush2.msra.mxu0 0.0
    %3264 = vmatprep.subr.mxu0 0.0
    %3265 = vmatpush2.msra.mxu0 0.0
    %3266 = vmatprep.subr.mxu0 0.0
    %3267 = vmatpush2.msra.mxu0 0.0
    %3268 = vmatprep.subr.mxu0 0.0
    %3269 = vmatpush2.msra.mxu0 0.0
    %3270 = vmatprep.subr.mxu0 0.0
    %3271 = vmatpush2.msra.mxu0 0.0
    %3272 = vmatprep.subr.mxu0 0.0
    %3273 = vmatpush2.msra.mxu0 0.0
    %3274 = vmatprep.subr.mxu0 0.0
    %3275 = vmatpush2.msra.mxu0 0.0
    %3276 = vmatprep.subr.mxu0 0.0
    %3277 = vmatpush2.msra.mxu0 0.0
    %3278 = vmatprep.subr.mxu0 0.0
    %3279 = vmatpush2.msra.mxu0 0.0
    %3280 = vmatprep.mubr.f32.mxu0 0.0
    %3281 = vmatmul.mubr.f32.gmra.mxu0 %v3211
    %v3282 = vpop.f32.mrf.mxu0
    %v3283 = vadd.f32 %v3208, %v3282
    %v3284 = vpop.f32.mrf.mxu0
    %3285 = vmatprep.mubr.f32.mxu0 0.0
    %3286 = vmatmul.mubr.f32.gmra.mxu0 %v3214
    %v3287 = vpop.f32.mrf.mxu0
    %v3288 = vadd.f32 %v3208, %v3287
    %v3289 = vpop.f32.mrf.mxu0
    %3290 = vdwg.mxu0
    %v3292 = vlaneseq
    %v3293 = vshrl.u32 %v3292, 7
    %v3294 = vsub.s32 0, %v3293
    %v3295 = vrot.slane %v3195, %v3294
    %3297 = vmatprep.subr.mxu0 0.0
    %3298 = vmatpush1.msra.mxu0 0.0
    %3299 = vmatprep.subr.mxu0 0.0
    %3300 = vmatpush1.msra.mxu0 0.0
    %3301 = vmatprep.subr.mxu0 0.0
    %3302 = vmatpush1.msra.mxu0 0.0
    %3303 = vmatprep.subr.mxu0 0.0
    %3304 = vmatpush1.msra.mxu0 0.0
    %3305 = vmatprep.subr.mxu0 0.0
    %3306 = vmatpush1.msra.mxu0 0.0
    %3307 = vmatprep.subr.mxu0 0.0
    %3308 = vmatpush1.msra.mxu0 0.0
    %3309 = vmatprep.subr.mxu0 0.0
    %3310 = vmatpush1.msra.mxu0 0.0
    %3311 = vmatprep.subr.mxu0 0.0
    %3312 = vmatpush1.msra.mxu0 0.0
    %3313 = vmatprep.subr.mxu0 0.0
    %3314 = vmatpush1.msra.mxu0 0.0
    %3315 = vmatprep.subr.mxu0 0.0
    %3316 = vmatpush1.msra.mxu0 0.0
    %3317 = vmatprep.subr.mxu0 0.0
    %3318 = vmatpush1.msra.mxu0 0.0
    %3319 = vmatprep.subr.mxu0 0.0
    %3320 = vmatpush1.msra.mxu0 0.0
    %3321 = vmatprep.subr.mxu0 0.0
    %3322 = vmatpush1.msra.mxu0 %v3154
    %3323 = vmatprep.subr.mxu0 0.0
    %3324 = vmatpush1.msra.mxu0 %v3153
    %3325 = vmatprep.subr.mxu0 0.0
    %3326 = vmatpush1.msra.mxu0 %v3152
    %3327 = vmatprep.subr.mxu0 0.0
    %3328 = vmatpush1.msra.mxu0 %v3151
    %3329 = vmatprep.subr.mxu0 0.0
    %3330 = vmatpush2.msra.mxu0 0.0
    %3331 = vmatprep.subr.mxu0 0.0
    %3332 = vmatpush2.msra.mxu0 0.0
    %3333 = vmatprep.subr.mxu0 0.0
    %3334 = vmatpush2.msra.mxu0 0.0
    %3335 = vmatprep.subr.mxu0 0.0
    %3336 = vmatpush2.msra.mxu0 0.0
    %3337 = vmatprep.subr.mxu0 0.0
    %3338 = vmatpush2.msra.mxu0 0.0
    %3339 = vmatprep.subr.mxu0 0.0
    %3340 = vmatpush2.msra.mxu0 0.0
    %3341 = vmatprep.subr.mxu0 0.0
    %3342 = vmatpush2.msra.mxu0 0.0
    %3343 = vmatprep.subr.mxu0 0.0
    %3344 = vmatpush2.msra.mxu0 0.0
    %3345 = vmatprep.subr.mxu0 0.0
    %3346 = vmatpush2.msra.mxu0 0.0
    %3347 = vmatprep.subr.mxu0 0.0
    %3348 = vmatpush2.msra.mxu0 0.0
    %3349 = vmatprep.subr.mxu0 0.0
    %3350 = vmatpush2.msra.mxu0 0.0
    %3351 = vmatprep.subr.mxu0 0.0
    %3352 = vmatpush2.msra.mxu0 0.0
    %3353 = vmatprep.subr.mxu0 0.0
    %3354 = vmatpush2.msra.mxu0 0.0
    %3355 = vmatprep.subr.mxu0 0.0
    %3356 = vmatpush2.msra.mxu0 0.0
    %3357 = vmatprep.subr.mxu0 0.0
    %3358 = vmatpush2.msra.mxu0 0.0
    %3359 = vmatprep.subr.mxu0 0.0
    %3360 = vmatpush2.msra.mxu0 0.0
    %3361 = vmatprep.mubr.f32.mxu0 0.0
    %3362 = vmatmul.mubr.f32.gmra.mxu0 %v3211
    %v3363 = vpop.f32.mrf.mxu0
    %v3364 = vadd.f32 %v3295, %v3363
    %v3365 = vpop.f32.mrf.mxu0
    %3366 = vmatprep.mubr.f32.mxu0 0.0
    %3367 = vmatmul.mubr.f32.gmra.mxu0 %v3214
    %v3368 = vpop.f32.mrf.mxu0
    %v3369 = vadd.f32 %v3295, %v3368
    %v3370 = vpop.f32.mrf.mxu0
    %3371 = vdwg.mxu0
    %v3373 = vlaneseq
    %v3374 = vshrl.u32 %v3373, 7
    %v3375 = vsub.s32 0, %v3374
    %v3376 = vrot.slane %v3200, %v3375
    %3378 = vmatprep.subr.mxu0 0.0
    %3379 = vmatpush1.msra.mxu0 0.0
    %3380 = vmatprep.subr.mxu0 0.0
    %3381 = vmatpush1.msra.mxu0 0.0
    %3382 = vmatprep.subr.mxu0 0.0
    %3383 = vmatpush1.msra.mxu0 0.0
    %3384 = vmatprep.subr.mxu0 0.0
    %3385 = vmatpush1.msra.mxu0 0.0
    %3386 = vmatprep.subr.mxu0 0.0
    %3387 = vmatpush1.msra.mxu0 0.0
    %3388 = vmatprep.subr.mxu0 0.0
    %3389 = vmatpush1.msra.mxu0 0.0
    %3390 = vmatprep.subr.mxu0 0.0
    %3391 = vmatpush1.msra.mxu0 0.0
    %3392 = vmatprep.subr.mxu0 0.0
    %3393 = vmatpush1.msra.mxu0 0.0
    %3394 = vmatprep.subr.mxu0 0.0
    %3395 = vmatpush1.msra.mxu0 0.0
    %3396 = vmatprep.subr.mxu0 0.0
    %3397 = vmatpush1.msra.mxu0 0.0
    %3398 = vmatprep.subr.mxu0 0.0
    %3399 = vmatpush1.msra.mxu0 0.0
    %3400 = vmatprep.subr.mxu0 0.0
    %3401 = vmatpush1.msra.mxu0 0.0
    %3402 = vmatprep.subr.mxu0 0.0
    %3403 = vmatpush1.msra.mxu0 %v3171
    %3404 = vmatprep.subr.mxu0 0.0
    %3405 = vmatpush1.msra.mxu0 %v3170
    %3406 = vmatprep.subr.mxu0 0.0
    %3407 = vmatpush1.msra.mxu0 %v3169
    %3408 = vmatprep.subr.mxu0 0.0
    %3409 = vmatpush1.msra.mxu0 %v3168
    %3410 = vmatprep.subr.mxu0 0.0
    %3411 = vmatpush2.msra.mxu0 0.0
    %3412 = vmatprep.subr.mxu0 0.0
    %3413 = vmatpush2.msra.mxu0 0.0
    %3414 = vmatprep.subr.mxu0 0.0
    %3415 = vmatpush2.msra.mxu0 0.0
    %3416 = vmatprep.subr.mxu0 0.0
    %3417 = vmatpush2.msra.mxu0 0.0
    %3418 = vmatprep.subr.mxu0 0.0
    %3419 = vmatpush2.msra.mxu0 0.0
    %3420 = vmatprep.subr.mxu0 0.0
    %3421 = vmatpush2.msra.mxu0 0.0
    %3422 = vmatprep.subr.mxu0 0.0
    %3423 = vmatpush2.msra.mxu0 0.0
    %3424 = vmatprep.subr.mxu0 0.0
    %3425 = vmatpush2.msra.mxu0 0.0
    %3426 = vmatprep.subr.mxu0 0.0
    %3427 = vmatpush2.msra.mxu0 0.0
    %3428 = vmatprep.subr.mxu0 0.0
    %3429 = vmatpush2.msra.mxu0 0.0
    %3430 = vmatprep.subr.mxu0 0.0
    %3431 = vmatpush2.msra.mxu0 0.0
    %3432 = vmatprep.subr.mxu0 0.0
    %3433 = vmatpush2.msra.mxu0 0.0
    %3434 = vmatprep.subr.mxu0 0.0
    %3435 = vmatpush2.msra.mxu0 0.0
    %3436 = vmatprep.subr.mxu0 0.0
    %3437 = vmatpush2.msra.mxu0 0.0
    %3438 = vmatprep.subr.mxu0 0.0
    %3439 = vmatpush2.msra.mxu0 0.0
    %3440 = vmatprep.subr.mxu0 0.0
    %3441 = vmatpush2.msra.mxu0 0.0
    %3442 = vmatprep.mubr.f32.mxu0 0.0
    %3443 = vmatmul.mubr.f32.gmra.mxu0 %v3211
    %v3444 = vpop.f32.mrf.mxu0
    %v3445 = vadd.f32 %v3376, %v3444
    %v3446 = vpop.f32.mrf.mxu0
    %3447 = vmatprep.mubr.f32.mxu0 0.0
    %3448 = vmatmul.mubr.f32.gmra.mxu0 %v3214
    %v3449 = vpop.f32.mrf.mxu0
    %v3450 = vadd.f32 %v3376, %v3449
    %v3451 = vpop.f32.mrf.mxu0
    %3452 = vdwg.mxu0
    %v3454 = vsel %vm437, %v3283, 0
    %v3457 = vsel %vm437, %v3364, 0
    %3459 = vmatprep.subr.mxu0 0.0
    %3460 = vmatpush1.xpose.msra.mxu0 0.0
    %3461 = vmatprep.subr.mxu0 0.0
    %3462 = vmatpush1.xpose.msra.mxu0 0.0
    %3463 = vmatprep.subr.mxu0 0.0
    %3464 = vmatpush1.xpose.msra.mxu0 0.0
    %3465 = vmatprep.subr.mxu0 0.0
    %3466 = vmatpush1.xpose.msra.mxu0 0.0
    %3467 = vmatprep.subr.mxu0 0.0
    %3468 = vmatpush1.xpose.msra.mxu0 0.0
    %3469 = vmatprep.subr.mxu0 0.0
    %3470 = vmatpush1.xpose.msra.mxu0 0.0
    %3471 = vmatprep.subr.mxu0 0.0
    %3472 = vmatpush1.xpose.msra.mxu0 0.0
    %3473 = vmatprep.subr.mxu0 0.0
    %3474 = vmatpush1.xpose.msra.mxu0 0.0
    %3475 = vmatprep.subr.mxu0 0.0
    %3476 = vmatpush1.xpose.msra.mxu0 0.0
    %3477 = vmatprep.subr.mxu0 0.0
    %3478 = vmatpush1.xpose.msra.mxu0 0.0
    %3479 = vmatprep.subr.mxu0 0.0
    %3480 = vmatpush1.xpose.msra.mxu0 0.0
    %3481 = vmatprep.subr.mxu0 0.0
    %3482 = vmatpush1.xpose.msra.mxu0 0.0
    %3483 = vmatprep.subr.mxu0 0.0
    %3484 = vmatpush1.xpose.msra.mxu0 0.0
    %3485 = vmatprep.subr.mxu0 0.0
    %3486 = vmatpush1.xpose.msra.mxu0 0.0
    %3487 = vmatprep.subr.mxu0 0.0
    %3488 = vmatpush1.xpose.msra.mxu0 0.0
    %3489 = vmatprep.subr.mxu0 0.0
    %3490 = vmatpush1.xpose.msra.mxu0 %v3457
    %3491 = vmatprep.subr.mxu0 0.0
    %3492 = vmatpush2.xpose.msra.mxu0 0.0
    %3493 = vmatprep.subr.mxu0 0.0
    %3494 = vmatpush2.xpose.msra.mxu0 0.0
    %3495 = vmatprep.subr.mxu0 0.0
    %3496 = vmatpush2.xpose.msra.mxu0 0.0
    %3497 = vmatprep.subr.mxu0 0.0
    %3498 = vmatpush2.xpose.msra.mxu0 0.0
    %3499 = vmatprep.subr.mxu0 0.0
    %3500 = vmatpush2.xpose.msra.mxu0 0.0
    %3501 = vmatprep.subr.mxu0 0.0
    %3502 = vmatpush2.xpose.msra.mxu0 0.0
    %3503 = vmatprep.subr.mxu0 0.0
    %3504 = vmatpush2.xpose.msra.mxu0 0.0
    %3505 = vmatprep.subr.mxu0 0.0
    %3506 = vmatpush2.xpose.msra.mxu0 0.0
    %3507 = vmatprep.subr.mxu0 0.0
    %3508 = vmatpush2.xpose.msra.mxu0 0.0
    %3509 = vmatprep.subr.mxu0 0.0
    %3510 = vmatpush2.xpose.msra.mxu0 0.0
    %3511 = vmatprep.subr.mxu0 0.0
    %3512 = vmatpush2.xpose.msra.mxu0 0.0
    %3513 = vmatprep.subr.mxu0 0.0
    %3514 = vmatpush2.xpose.msra.mxu0 0.0
    %3515 = vmatprep.subr.mxu0 0.0
    %3516 = vmatpush2.xpose.msra.mxu0 0.0
    %3517 = vmatprep.subr.mxu0 0.0
    %3518 = vmatpush2.xpose.msra.mxu0 0.0
    %3519 = vmatprep.subr.mxu0 0.0
    %3520 = vmatpush2.xpose.msra.mxu0 0.0
    %3521 = vmatprep.subr.mxu0 0.0
    %3522 = vmatpush2.xpose.msra.mxu0 0.0
    %3523 = vmatprep.mubr.f32.mxu0 0.0
    %3524 = vmatmul.mubr.f32.gmra.mxu0 %v3454
    %v3525 = vpop.f32.mrf.mxu0
    %v3526 = vadd.f32 0.0, %v3525
    %v3527 = vpop.f32.mrf.mxu0
    %3528 = vdwg.mxu0
    %v3530 = vsel %vm437, %v3288, 0
    %v3533 = vsel %vm437, %v3369, 0
    %3535 = vmatprep.subr.mxu0 0.0
    %3536 = vmatpush1.xpose.msra.mxu0 0.0
    %3537 = vmatprep.subr.mxu0 0.0
    %3538 = vmatpush1.xpose.msra.mxu0 0.0
    %3539 = vmatprep.subr.mxu0 0.0
    %3540 = vmatpush1.xpose.msra.mxu0 0.0
    %3541 = vmatprep.subr.mxu0 0.0
    %3542 = vmatpush1.xpose.msra.mxu0 0.0
    %3543 = vmatprep.subr.mxu0 0.0
    %3544 = vmatpush1.xpose.msra.mxu0 0.0
    %3545 = vmatprep.subr.mxu0 0.0
    %3546 = vmatpush1.xpose.msra.mxu0 0.0
    %3547 = vmatprep.subr.mxu0 0.0
    %3548 = vmatpush1.xpose.msra.mxu0 0.0
    %3549 = vmatprep.subr.mxu0 0.0
    %3550 = vmatpush1.xpose.msra.mxu0 0.0
    %3551 = vmatprep.subr.mxu0 0.0
    %3552 = vmatpush1.xpose.msra.mxu0 0.0
    %3553 = vmatprep.subr.mxu0 0.0
    %3554 = vmatpush1.xpose.msra.mxu0 0.0
    %3555 = vmatprep.subr.mxu0 0.0
    %3556 = vmatpush1.xpose.msra.mxu0 0.0
    %3557 = vmatprep.subr.mxu0 0.0
    %3558 = vmatpush1.xpose.msra.mxu0 0.0
    %3559 = vmatprep.subr.mxu0 0.0
    %3560 = vmatpush1.xpose.msra.mxu0 0.0
    %3561 = vmatprep.subr.mxu0 0.0
    %3562 = vmatpush1.xpose.msra.mxu0 0.0
    %3563 = vmatprep.subr.mxu0 0.0
    %3564 = vmatpush1.xpose.msra.mxu0 0.0
    %3565 = vmatprep.subr.mxu0 0.0
    %3566 = vmatpush1.xpose.msra.mxu0 %v3533
    %3567 = vmatprep.subr.mxu0 0.0
    %3568 = vmatpush2.xpose.msra.mxu0 0.0
    %3569 = vmatprep.subr.mxu0 0.0
    %3570 = vmatpush2.xpose.msra.mxu0 0.0
    %3571 = vmatprep.subr.mxu0 0.0
    %3572 = vmatpush2.xpose.msra.mxu0 0.0
    %3573 = vmatprep.subr.mxu0 0.0
    %3574 = vmatpush2.xpose.msra.mxu0 0.0
    %3575 = vmatprep.subr.mxu0 0.0
    %3576 = vmatpush2.xpose.msra.mxu0 0.0
    %3577 = vmatprep.subr.mxu0 0.0
    %3578 = vmatpush2.xpose.msra.mxu0 0.0
    %3579 = vmatprep.subr.mxu0 0.0
    %3580 = vmatpush2.xpose.msra.mxu0 0.0
    %3581 = vmatprep.subr.mxu0 0.0
    %3582 = vmatpush2.xpose.msra.mxu0 0.0
    %3583 = vmatprep.subr.mxu0 0.0
    %3584 = vmatpush2.xpose.msra.mxu0 0.0
    %3585 = vmatprep.subr.mxu0 0.0
    %3586 = vmatpush2.xpose.msra.mxu0 0.0
    %3587 = vmatprep.subr.mxu0 0.0
    %3588 = vmatpush2.xpose.msra.mxu0 0.0
    %3589 = vmatprep.subr.mxu0 0.0
    %3590 = vmatpush2.xpose.msra.mxu0 0.0
    %3591 = vmatprep.subr.mxu0 0.0
    %3592 = vmatpush2.xpose.msra.mxu0 0.0
    %3593 = vmatprep.subr.mxu0 0.0
    %3594 = vmatpush2.xpose.msra.mxu0 0.0
    %3595 = vmatprep.subr.mxu0 0.0
    %3596 = vmatpush2.xpose.msra.mxu0 0.0
    %3597 = vmatprep.subr.mxu0 0.0
    %3598 = vmatpush2.xpose.msra.mxu0 0.0
    %3599 = vmatprep.mubr.f32.mxu0 0.0
    %3600 = vmatmul.mubr.f32.gmra.mxu0 %v3530
    %v3601 = vpop.f32.mrf.mxu0
    %v3602 = vadd.f32 0.0, %v3601
    %v3603 = vpop.f32.mrf.mxu0
    %3604 = vdwg.mxu0
    %v3605 = vmul.f32 %v3526, 0.35355338
    %v3606 = vmul.f32 %v3602, 0.35355338
    %v3607 = vsel %vm437, %v3605, -inf
    %3608 = vmax.xlane.f32.xlu0 %v3607
    %v3609 = vpop.xlane.xlu0 %3608
    %v3610 = vsel %vm437, %v3606, -inf
    %3611 = vmax.xlane.f32.xlu0 %v3610
    %v3612 = vpop.xlane.xlu0 %3611
    %v3613 = vsub.f32 %v3605, %v3609
    %v3614 = vsub.f32 %v3606, %v3612
    %v3615 = vmul.f32 %v3613, 1.442695
    %v3616 = vpow.pop %v3615
    %v3617 = vmul.f32 %v3614, 1.442695
    %v3618 = vpow.pop %v3617
    %v3619 = vsel %vm437, %v3616, 0.0
    %3620 = vadd.xlane.f32.xlu0 %v3619
    %v3621 = vpop.xlane.xlu0 %3620
    %v3622 = vsel %vm437, %v3618, 0.0
    %3623 = vadd.xlane.f32.xlu0 %v3622
    %v3624 = vpop.xlane.xlu0 %3623
    %v3625 = vrcp.pop %v3621
    %v3626 = vrcp.pop %v3624
    %v3627 = vmul.f32 %v3616, %v3625
    %v3628 = vmul.f32 %v3618, %v3626
    %v3630 = vsel %vm437, %v3627, 0
    %3632 = vmatprep.subr.mxu0 0.0
    %3633 = vmatpush1.msra.mxu0 0.0
    %3634 = vmatprep.subr.mxu0 0.0
    %3635 = vmatpush1.msra.mxu0 0.0
    %3636 = vmatprep.subr.mxu0 0.0
    %3637 = vmatpush1.msra.mxu0 0.0
    %3638 = vmatprep.subr.mxu0 0.0
    %3639 = vmatpush1.msra.mxu0 0.0
    %3640 = vmatprep.subr.mxu0 0.0
    %3641 = vmatpush1.msra.mxu0 0.0
    %3642 = vmatprep.subr.mxu0 0.0
    %3643 = vmatpush1.msra.mxu0 0.0
    %3644 = vmatprep.subr.mxu0 0.0
    %3645 = vmatpush1.msra.mxu0 0.0
    %3646 = vmatprep.subr.mxu0 0.0
    %3647 = vmatpush1.msra.mxu0 0.0
    %3648 = vmatprep.subr.mxu0 0.0
    %3649 = vmatpush1.msra.mxu0 0.0
    %3650 = vmatprep.subr.mxu0 0.0
    %3651 = vmatpush1.msra.mxu0 0.0
    %3652 = vmatprep.subr.mxu0 0.0
    %3653 = vmatpush1.msra.mxu0 0.0
    %3654 = vmatprep.subr.mxu0 0.0
    %3655 = vmatpush1.msra.mxu0 0.0
    %3656 = vmatprep.subr.mxu0 0.0
    %3657 = vmatpush1.msra.mxu0 0.0
    %3658 = vmatprep.subr.mxu0 0.0
    %3659 = vmatpush1.msra.mxu0 0.0
    %3660 = vmatprep.subr.mxu0 0.0
    %3661 = vmatpush1.msra.mxu0 0.0
    %3662 = vmatprep.subr.mxu0 0.0
    %3663 = vmatpush1.msra.mxu0 %v3445
    %3664 = vmatprep.subr.mxu0 0.0
    %3665 = vmatpush2.msra.mxu0 0.0
    %3666 = vmatprep.subr.mxu0 0.0
    %3667 = vmatpush2.msra.mxu0 0.0
    %3668 = vmatprep.subr.mxu0 0.0
    %3669 = vmatpush2.msra.mxu0 0.0
    %3670 = vmatprep.subr.mxu0 0.0
    %3671 = vmatpush2.msra.mxu0 0.0
    %3672 = vmatprep.subr.mxu0 0.0
    %3673 = vmatpush2.msra.mxu0 0.0
    %3674 = vmatprep.subr.mxu0 0.0
    %3675 = vmatpush2.msra.mxu0 0.0
    %3676 = vmatprep.subr.mxu0 0.0
    %3677 = vmatpush2.msra.mxu0 0.0
    %3678 = vmatprep.subr.mxu0 0.0
    %3679 = vmatpush2.msra.mxu0 0.0
    %3680 = vmatprep.subr.mxu0 0.0
    %3681 = vmatpush2.msra.mxu0 0.0
    %3682 = vmatprep.subr.mxu0 0.0
    %3683 = vmatpush2.msra.mxu0 0.0
    %3684 = vmatprep.subr.mxu0 0.0
    %3685 = vmatpush2.msra.mxu0 0.0
    %3686 = vmatprep.subr.mxu0 0.0
    %3687 = vmatpush2.msra.mxu0 0.0
    %3688 = vmatprep.subr.mxu0 0.0
    %3689 = vmatpush2.msra.mxu0 0.0
    %3690 = vmatprep.subr.mxu0 0.0
    %3691 = vmatpush2.msra.mxu0 0.0
    %3692 = vmatprep.subr.mxu0 0.0
    %3693 = vmatpush2.msra.mxu0 0.0
    %3694 = vmatprep.subr.mxu0 0.0
    %3695 = vmatpush2.msra.mxu0 0.0
    %3696 = vmatprep.mubr.f32.mxu0 0.0
    %3697 = vmatmul.mubr.f32.gmra.mxu0 %v3630
    %v3698 = vpop.f32.mrf.mxu0
    %v3699 = vadd.f32 0.0, %v3698
    %v3700 = vpop.f32.mrf.mxu0
    %3701 = vdwg.mxu0
    %v3703 = vsel %vm437, %v3628, 0
    %3705 = vmatprep.subr.mxu0 0.0
    %3706 = vmatpush1.msra.mxu0 0.0
    %3707 = vmatprep.subr.mxu0 0.0
    %3708 = vmatpush1.msra.mxu0 0.0
    %3709 = vmatprep.subr.mxu0 0.0
    %3710 = vmatpush1.msra.mxu0 0.0
    %3711 = vmatprep.subr.mxu0 0.0
    %3712 = vmatpush1.msra.mxu0 0.0
    %3713 = vmatprep.subr.mxu0 0.0
    %3714 = vmatpush1.msra.mxu0 0.0
    %3715 = vmatprep.subr.mxu0 0.0
    %3716 = vmatpush1.msra.mxu0 0.0
    %3717 = vmatprep.subr.mxu0 0.0
    %3718 = vmatpush1.msra.mxu0 0.0
    %3719 = vmatprep.subr.mxu0 0.0
    %3720 = vmatpush1.msra.mxu0 0.0
    %3721 = vmatprep.subr.mxu0 0.0
    %3722 = vmatpush1.msra.mxu0 0.0
    %3723 = vmatprep.subr.mxu0 0.0
    %3724 = vmatpush1.msra.mxu0 0.0
    %3725 = vmatprep.subr.mxu0 0.0
    %3726 = vmatpush1.msra.mxu0 0.0
    %3727 = vmatprep.subr.mxu0 0.0
    %3728 = vmatpush1.msra.mxu0 0.0
    %3729 = vmatprep.subr.mxu0 0.0
    %3730 = vmatpush1.msra.mxu0 0.0
    %3731 = vmatprep.subr.mxu0 0.0
    %3732 = vmatpush1.msra.mxu0 0.0
    %3733 = vmatprep.subr.mxu0 0.0
    %3734 = vmatpush1.msra.mxu0 0.0
    %3735 = vmatprep.subr.mxu0 0.0
    %3736 = vmatpush1.msra.mxu0 %v3450
    %3737 = vmatprep.subr.mxu0 0.0
    %3738 = vmatpush2.msra.mxu0 0.0
    %3739 = vmatprep.subr.mxu0 0.0
    %3740 = vmatpush2.msra.mxu0 0.0
    %3741 = vmatprep.subr.mxu0 0.0
    %3742 = vmatpush2.msra.mxu0 0.0
    %3743 = vmatprep.subr.mxu0 0.0
    %3744 = vmatpush2.msra.mxu0 0.0
    %3745 = vmatprep.subr.mxu0 0.0
    %3746 = vmatpush2.msra.mxu0 0.0
    %3747 = vmatprep.subr.mxu0 0.0
    %3748 = vmatpush2.msra.mxu0 0.0
    %3749 = vmatprep.subr.mxu0 0.0
    %3750 = vmatpush2.msra.mxu0 0.0
    %3751 = vmatprep.subr.mxu0 0.0
    %3752 = vmatpush2.msra.mxu0 0.0
    %3753 = vmatprep.subr.mxu0 0.0
    %3754 = vmatpush2.msra.mxu0 0.0
    %3755 = vmatprep.subr.mxu0 0.0
    %3756 = vmatpush2.msra.mxu0 0.0
    %3757 = vmatprep.subr.mxu0 0.0
    %3758 = vmatpush2.msra.mxu0 0.0
    %3759 = vmatprep.subr.mxu0 0.0
    %3760 = vmatpush2.msra.mxu0 0.0
    %3761 = vmatprep.subr.mxu0 0.0
    %3762 = vmatpush2.msra.mxu0 0.0
    %3763 = vmatprep.subr.mxu0 0.0
    %3764 = vmatpush2.msra.mxu0 0.0
    %3765 = vmatprep.subr.mxu0 0.0
    %3766 = vmatpush2.msra.mxu0 0.0
    %3767 = vmatprep.subr.mxu0 0.0
    %3768 = vmatpush2.msra.mxu0 0.0
    %3769 = vmatprep.mubr.f32.mxu0 0.0
    %3770 = vmatmul.mubr.f32.gmra.mxu0 %v3703
    %v3771 = vpop.f32.mrf.mxu0
    %v3772 = vadd.f32 0.0, %v3771
    %v3773 = vpop.f32.mrf.mxu0
    %3774 = vdwg.mxu0
    %v3776 = vlaneseq
    %v3777 = vshrl.u32 %v3776, 7
    %v3778 = vsub.s32 0, %v3777
    %v3779 = vrot.slane %v3191, %v3778
    %3781 = vmatprep.subr.mxu0 0.0
    %3782 = vmatpush1.msra.mxu0 0.0
    %3783 = vmatprep.subr.mxu0 0.0
    %3784 = vmatpush1.msra.mxu0 0.0
    %3785 = vmatprep.subr.mxu0 0.0
    %3786 = vmatpush1.msra.mxu0 0.0
    %3787 = vmatprep.subr.mxu0 0.0
    %3788 = vmatpush1.msra.mxu0 0.0
    %3789 = vmatprep.subr.mxu0 0.0
    %3790 = vmatpush1.msra.mxu0 0.0
    %3791 = vmatprep.subr.mxu0 0.0
    %3792 = vmatpush1.msra.mxu0 0.0
    %3793 = vmatprep.subr.mxu0 0.0
    %3794 = vmatpush1.msra.mxu0 0.0
    %3795 = vmatprep.subr.mxu0 0.0
    %3796 = vmatpush1.msra.mxu0 0.0
    %3797 = vmatprep.subr.mxu0 0.0
    %3798 = vmatpush1.msra.mxu0 0.0
    %3799 = vmatprep.subr.mxu0 0.0
    %3800 = vmatpush1.msra.mxu0 0.0
    %3801 = vmatprep.subr.mxu0 0.0
    %3802 = vmatpush1.msra.mxu0 0.0
    %3803 = vmatprep.subr.mxu0 0.0
    %3804 = vmatpush1.msra.mxu0 0.0
    %3805 = vmatprep.subr.mxu0 0.0
    %3806 = vmatpush1.msra.mxu0 %v3141
    %3807 = vmatprep.subr.mxu0 0.0
    %3808 = vmatpush1.msra.mxu0 %v3140
    %3809 = vmatprep.subr.mxu0 0.0
    %3810 = vmatpush1.msra.mxu0 %v3139
    %3811 = vmatprep.subr.mxu0 0.0
    %3812 = vmatpush1.msra.mxu0 %v3138
    %3813 = vmatprep.subr.mxu0 0.0
    %3814 = vmatpush2.msra.mxu0 0.0
    %3815 = vmatprep.subr.mxu0 0.0
    %3816 = vmatpush2.msra.mxu0 0.0
    %3817 = vmatprep.subr.mxu0 0.0
    %3818 = vmatpush2.msra.mxu0 0.0
    %3819 = vmatprep.subr.mxu0 0.0
    %3820 = vmatpush2.msra.mxu0 0.0
    %3821 = vmatprep.subr.mxu0 0.0
    %3822 = vmatpush2.msra.mxu0 0.0
    %3823 = vmatprep.subr.mxu0 0.0
    %3824 = vmatpush2.msra.mxu0 0.0
    %3825 = vmatprep.subr.mxu0 0.0
    %3826 = vmatpush2.msra.mxu0 0.0
    %3827 = vmatprep.subr.mxu0 0.0
    %3828 = vmatpush2.msra.mxu0 0.0
    %3829 = vmatprep.subr.mxu0 0.0
    %3830 = vmatpush2.msra.mxu0 0.0
    %3831 = vmatprep.subr.mxu0 0.0
    %3832 = vmatpush2.msra.mxu0 0.0
    %3833 = vmatprep.subr.mxu0 0.0
    %3834 = vmatpush2.msra.mxu0 0.0
    %3835 = vmatprep.subr.mxu0 0.0
    %3836 = vmatpush2.msra.mxu0 0.0
    %3837 = vmatprep.subr.mxu0 0.0
    %3838 = vmatpush2.msra.mxu0 0.0
    %3839 = vmatprep.subr.mxu0 0.0
    %3840 = vmatpush2.msra.mxu0 0.0
    %3841 = vmatprep.subr.mxu0 0.0
    %3842 = vmatpush2.msra.mxu0 0.0
    %3843 = vmatprep.subr.mxu0 0.0
    %3844 = vmatpush2.msra.mxu0 0.0
    %3845 = vmatprep.mubr.f32.mxu0 0.0
    %3846 = vmatmul.mubr.f32.gmra.mxu0 %v3211
    %v3847 = vpop.f32.mrf.mxu0
    %v3848 = vadd.f32 %v3779, %v3847
    %v3849 = vpop.f32.mrf.mxu0
    %3850 = vmatprep.mubr.f32.mxu0 0.0
    %3851 = vmatmul.mubr.f32.gmra.mxu0 %v3214
    %v3852 = vpop.f32.mrf.mxu0
    %v3853 = vadd.f32 %v3779, %v3852
    %v3854 = vpop.f32.mrf.mxu0
    %3855 = vdwg.mxu0
    %v3857 = vlaneseq
    %v3858 = vshrl.u32 %v3857, 7
    %v3859 = vsub.s32 0, %v3858
    %v3860 = vrot.slane %v3196, %v3859
    %3862 = vmatprep.subr.mxu0 0.0
    %3863 = vmatpush1.msra.mxu0 0.0
    %3864 = vmatprep.subr.mxu0 0.0
    %3865 = vmatpush1.msra.mxu0 0.0
    %3866 = vmatprep.subr.mxu0 0.0
    %3867 = vmatpush1.msra.mxu0 0.0
    %3868 = vmatprep.subr.mxu0 0.0
    %3869 = vmatpush1.msra.mxu0 0.0
    %3870 = vmatprep.subr.mxu0 0.0
    %3871 = vmatpush1.msra.mxu0 0.0
    %3872 = vmatprep.subr.mxu0 0.0
    %3873 = vmatpush1.msra.mxu0 0.0
    %3874 = vmatprep.subr.mxu0 0.0
    %3875 = vmatpush1.msra.mxu0 0.0
    %3876 = vmatprep.subr.mxu0 0.0
    %3877 = vmatpush1.msra.mxu0 0.0
    %3878 = vmatprep.subr.mxu0 0.0
    %3879 = vmatpush1.msra.mxu0 0.0
    %3880 = vmatprep.subr.mxu0 0.0
    %3881 = vmatpush1.msra.mxu0 0.0
    %3882 = vmatprep.subr.mxu0 0.0
    %3883 = vmatpush1.msra.mxu0 0.0
    %3884 = vmatprep.subr.mxu0 0.0
    %3885 = vmatpush1.msra.mxu0 0.0
    %3886 = vmatprep.subr.mxu0 0.0
    %3887 = vmatpush1.msra.mxu0 %v3158
    %3888 = vmatprep.subr.mxu0 0.0
    %3889 = vmatpush1.msra.mxu0 %v3157
    %3890 = vmatprep.subr.mxu0 0.0
    %3891 = vmatpush1.msra.mxu0 %v3156
    %3892 = vmatprep.subr.mxu0 0.0
    %3893 = vmatpush1.msra.mxu0 %v3155
    %3894 = vmatprep.subr.mxu0 0.0
    %3895 = vmatpush2.msra.mxu0 0.0
    %3896 = vmatprep.subr.mxu0 0.0
    %3897 = vmatpush2.msra.mxu0 0.0
    %3898 = vmatprep.subr.mxu0 0.0
    %3899 = vmatpush2.msra.mxu0 0.0
    %3900 = vmatprep.subr.mxu0 0.0
    %3901 = vmatpush2.msra.mxu0 0.0
    %3902 = vmatprep.subr.mxu0 0.0
    %3903 = vmatpush2.msra.mxu0 0.0
    %3904 = vmatprep.subr.mxu0 0.0
    %3905 = vmatpush2.msra.mxu0 0.0
    %3906 = vmatprep.subr.mxu0 0.0
    %3907 = vmatpush2.msra.mxu0 0.0
    %3908 = vmatprep.subr.mxu0 0.0
    %3909 = vmatpush2.msra.mxu0 0.0
    %3910 = vmatprep.subr.mxu0 0.0
    %3911 = vmatpush2.msra.mxu0 0.0
    %3912 = vmatprep.subr.mxu0 0.0
    %3913 = vmatpush2.msra.mxu0 0.0
    %3914 = vmatprep.subr.mxu0 0.0
    %3915 = vmatpush2.msra.mxu0 0.0
    %3916 = vmatprep.subr.mxu0 0.0
    %3917 = vmatpush2.msra.mxu0 0.0
    %3918 = vmatprep.subr.mxu0 0.0
    %3919 = vmatpush2.msra.mxu0 0.0
    %3920 = vmatprep.subr.mxu0 0.0
    %3921 = vmatpush2.msra.mxu0 0.0
    %3922 = vmatprep.subr.mxu0 0.0
    %3923 = vmatpush2.msra.mxu0 0.0
    %3924 = vmatprep.subr.mxu0 0.0
    %3925 = vmatpush2.msra.mxu0 0.0
    %3926 = vmatprep.mubr.f32.mxu0 0.0
    %3927 = vmatmul.mubr.f32.gmra.mxu0 %v3211
    %v3928 = vpop.f32.mrf.mxu0
    %v3929 = vadd.f32 %v3860, %v3928
    %v3930 = vpop.f32.mrf.mxu0
    %3931 = vmatprep.mubr.f32.mxu0 0.0
    %3932 = vmatmul.mubr.f32.gmra.mxu0 %v3214
    %v3933 = vpop.f32.mrf.mxu0
    %v3934 = vadd.f32 %v3860, %v3933
    %v3935 = vpop.f32.mrf.mxu0
    %3936 = vdwg.mxu0
    %v3938 = vlaneseq
    %v3939 = vshrl.u32 %v3938, 7
    %v3940 = vsub.s32 0, %v3939
    %v3941 = vrot.slane %v3201, %v3940
    %3943 = vmatprep.subr.mxu0 0.0
    %3944 = vmatpush1.msra.mxu0 0.0
    %3945 = vmatprep.subr.mxu0 0.0
    %3946 = vmatpush1.msra.mxu0 0.0
    %3947 = vmatprep.subr.mxu0 0.0
    %3948 = vmatpush1.msra.mxu0 0.0
    %3949 = vmatprep.subr.mxu0 0.0
    %3950 = vmatpush1.msra.mxu0 0.0
    %3951 = vmatprep.subr.mxu0 0.0
    %3952 = vmatpush1.msra.mxu0 0.0
    %3953 = vmatprep.subr.mxu0 0.0
    %3954 = vmatpush1.msra.mxu0 0.0
    %3955 = vmatprep.subr.mxu0 0.0
    %3956 = vmatpush1.msra.mxu0 0.0
    %3957 = vmatprep.subr.mxu0 0.0
    %3958 = vmatpush1.msra.mxu0 0.0
    %3959 = vmatprep.subr.mxu0 0.0
    %3960 = vmatpush1.msra.mxu0 0.0
    %3961 = vmatprep.subr.mxu0 0.0
    %3962 = vmatpush1.msra.mxu0 0.0
    %3963 = vmatprep.subr.mxu0 0.0
    %3964 = vmatpush1.msra.mxu0 0.0
    %3965 = vmatprep.subr.mxu0 0.0
    %3966 = vmatpush1.msra.mxu0 0.0
    %3967 = vmatprep.subr.mxu0 0.0
    %3968 = vmatpush1.msra.mxu0 %v3175
    %3969 = vmatprep.subr.mxu0 0.0
    %3970 = vmatpush1.msra.mxu0 %v3174
    %3971 = vmatprep.subr.mxu0 0.0
    %3972 = vmatpush1.msra.mxu0 %v3173
    %3973 = vmatprep.subr.mxu0 0.0
    %3974 = vmatpush1.msra.mxu0 %v3172
    %3975 = vmatprep.subr.mxu0 0.0
    %3976 = vmatpush2.msra.mxu0 0.0
    %3977 = vmatprep.subr.mxu0 0.0
    %3978 = vmatpush2.msra.mxu0 0.0
    %3979 = vmatprep.subr.mxu0 0.0
    %3980 = vmatpush2.msra.mxu0 0.0
    %3981 = vmatprep.subr.mxu0 0.0
    %3982 = vmatpush2.msra.mxu0 0.0
    %3983 = vmatprep.subr.mxu0 0.0
    %3984 = vmatpush2.msra.mxu0 0.0
    %3985 = vmatprep.subr.mxu0 0.0
    %3986 = vmatpush2.msra.mxu0 0.0
    %3987 = vmatprep.subr.mxu0 0.0
    %3988 = vmatpush2.msra.mxu0 0.0
    %3989 = vmatprep.subr.mxu0 0.0
    %3990 = vmatpush2.msra.mxu0 0.0
    %3991 = vmatprep.subr.mxu0 0.0
    %3992 = vmatpush2.msra.mxu0 0.0
    %3993 = vmatprep.subr.mxu0 0.0
    %3994 = vmatpush2.msra.mxu0 0.0
    %3995 = vmatprep.subr.mxu0 0.0
    %3996 = vmatpush2.msra.mxu0 0.0
    %3997 = vmatprep.subr.mxu0 0.0
    %3998 = vmatpush2.msra.mxu0 0.0
    %3999 = vmatprep.subr.mxu0 0.0
    %4000 = vmatpush2.msra.mxu0 0.0
    %4001 = vmatprep.subr.mxu0 0.0
    %4002 = vmatpush2.msra.mxu0 0.0
    %4003 = vmatprep.subr.mxu0 0.0
    %4004 = vmatpush2.msra.mxu0 0.0
    %4005 = vmatprep.subr.mxu0 0.0
    %4006 = vmatpush2.msra.mxu0 0.0
    %4007 = vmatprep.mubr.f32.mxu0 0.0
    %4008 = vmatmul.mubr.f32.gmra.mxu0 %v3211
    %v4009 = vpop.f32.mrf.mxu0
    %v4010 = vadd.f32 %v3941, %v4009
    %v4011 = vpop.f32.mrf.mxu0
    %4012 = vmatprep.mubr.f32.mxu0 0.0
    %4013 = vmatmul.mubr.f32.gmra.mxu0 %v3214
    %v4014 = vpop.f32.mrf.mxu0
    %v4015 = vadd.f32 %v3941, %v4014
    %v4016 = vpop.f32.mrf.mxu0
    %4017 = vdwg.mxu0
    %v4019 = vsel %vm437, %v3848, 0
    %v4022 = vsel %vm437, %v3929, 0
    %4024 = vmatprep.subr.mxu0 0.0
    %4025 = vmatpush1.xpose.msra.mxu0 0.0
    %4026 = vmatprep.subr.mxu0 0.0
    %4027 = vmatpush1.xpose.msra.mxu0 0.0
    %4028 = vmatprep.subr.mxu0 0.0
    %4029 = vmatpush1.xpose.msra.mxu0 0.0
    %4030 = vmatprep.subr.mxu0 0.0
    %4031 = vmatpush1.xpose.msra.mxu0 0.0
    %4032 = vmatprep.subr.mxu0 0.0
    %4033 = vmatpush1.xpose.msra.mxu0 0.0
    %4034 = vmatprep.subr.mxu0 0.0
    %4035 = vmatpush1.xpose.msra.mxu0 0.0
    %4036 = vmatprep.subr.mxu0 0.0
    %4037 = vmatpush1.xpose.msra.mxu0 0.0
    %4038 = vmatprep.subr.mxu0 0.0
    %4039 = vmatpush1.xpose.msra.mxu0 0.0
    %4040 = vmatprep.subr.mxu0 0.0
    %4041 = vmatpush1.xpose.msra.mxu0 0.0
    %4042 = vmatprep.subr.mxu0 0.0
    %4043 = vmatpush1.xpose.msra.mxu0 0.0
    %4044 = vmatprep.subr.mxu0 0.0
    %4045 = vmatpush1.xpose.msra.mxu0 0.0
    %4046 = vmatprep.subr.mxu0 0.0
    %4047 = vmatpush1.xpose.msra.mxu0 0.0
    %4048 = vmatprep.subr.mxu0 0.0
    %4049 = vmatpush1.xpose.msra.mxu0 0.0
    %4050 = vmatprep.subr.mxu0 0.0
    %4051 = vmatpush1.xpose.msra.mxu0 0.0
    %4052 = vmatprep.subr.mxu0 0.0
    %4053 = vmatpush1.xpose.msra.mxu0 0.0
    %4054 = vmatprep.subr.mxu0 0.0
    %4055 = vmatpush1.xpose.msra.mxu0 %v4022
    %4056 = vmatprep.subr.mxu0 0.0
    %4057 = vmatpush2.xpose.msra.mxu0 0.0
    %4058 = vmatprep.subr.mxu0 0.0
    %4059 = vmatpush2.xpose.msra.mxu0 0.0
    %4060 = vmatprep.subr.mxu0 0.0
    %4061 = vmatpush2.xpose.msra.mxu0 0.0
    %4062 = vmatprep.subr.mxu0 0.0
    %4063 = vmatpush2.xpose.msra.mxu0 0.0
    %4064 = vmatprep.subr.mxu0 0.0
    %4065 = vmatpush2.xpose.msra.mxu0 0.0
    %4066 = vmatprep.subr.mxu0 0.0
    %4067 = vmatpush2.xpose.msra.mxu0 0.0
    %4068 = vmatprep.subr.mxu0 0.0
    %4069 = vmatpush2.xpose.msra.mxu0 0.0
    %4070 = vmatprep.subr.mxu0 0.0
    %4071 = vmatpush2.xpose.msra.mxu0 0.0
    %4072 = vmatprep.subr.mxu0 0.0
    %4073 = vmatpush2.xpose.msra.mxu0 0.0
    %4074 = vmatprep.subr.mxu0 0.0
    %4075 = vmatpush2.xpose.msra.mxu0 0.0
    %4076 = vmatprep.subr.mxu0 0.0
    %4077 = vmatpush2.xpose.msra.mxu0 0.0
    %4078 = vmatprep.subr.mxu0 0.0
    %4079 = vmatpush2.xpose.msra.mxu0 0.0
    %4080 = vmatprep.subr.mxu0 0.0
    %4081 = vmatpush2.xpose.msra.mxu0 0.0
    %4082 = vmatprep.subr.mxu0 0.0
    %4083 = vmatpush2.xpose.msra.mxu0 0.0
    %4084 = vmatprep.subr.mxu0 0.0
    %4085 = vmatpush2.xpose.msra.mxu0 0.0
    %4086 = vmatprep.subr.mxu0 0.0
    %4087 = vmatpush2.xpose.msra.mxu0 0.0
    %4088 = vmatprep.mubr.f32.mxu0 0.0
    %4089 = vmatmul.mubr.f32.gmra.mxu0 %v4019
    %v4090 = vpop.f32.mrf.mxu0
    %v4091 = vadd.f32 0.0, %v4090
    %v4092 = vpop.f32.mrf.mxu0
    %4093 = vdwg.mxu0
    %v4095 = vsel %vm437, %v3853, 0
    %v4098 = vsel %vm437, %v3934, 0
    %4100 = vmatprep.subr.mxu0 0.0
    %4101 = vmatpush1.xpose.msra.mxu0 0.0
    %4102 = vmatprep.subr.mxu0 0.0
    %4103 = vmatpush1.xpose.msra.mxu0 0.0
    %4104 = vmatprep.subr.mxu0 0.0
    %4105 = vmatpush1.xpose.msra.mxu0 0.0
    %4106 = vmatprep.subr.mxu0 0.0
    %4107 = vmatpush1.xpose.msra.mxu0 0.0
    %4108 = vmatprep.subr.mxu0 0.0
    %4109 = vmatpush1.xpose.msra.mxu0 0.0
    %4110 = vmatprep.subr.mxu0 0.0
    %4111 = vmatpush1.xpose.msra.mxu0 0.0
    %4112 = vmatprep.subr.mxu0 0.0
    %4113 = vmatpush1.xpose.msra.mxu0 0.0
    %4114 = vmatprep.subr.mxu0 0.0
    %4115 = vmatpush1.xpose.msra.mxu0 0.0
    %4116 = vmatprep.subr.mxu0 0.0
    %4117 = vmatpush1.xpose.msra.mxu0 0.0
    %4118 = vmatprep.subr.mxu0 0.0
    %4119 = vmatpush1.xpose.msra.mxu0 0.0
    %4120 = vmatprep.subr.mxu0 0.0
    %4121 = vmatpush1.xpose.msra.mxu0 0.0
    %4122 = vmatprep.subr.mxu0 0.0
    %4123 = vmatpush1.xpose.msra.mxu0 0.0
    %4124 = vmatprep.subr.mxu0 0.0
    %4125 = vmatpush1.xpose.msra.mxu0 0.0
    %4126 = vmatprep.subr.mxu0 0.0
    %4127 = vmatpush1.xpose.msra.mxu0 0.0
    %4128 = vmatprep.subr.mxu0 0.0
    %4129 = vmatpush1.xpose.msra.mxu0 0.0
    %4130 = vmatprep.subr.mxu0 0.0
    %4131 = vmatpush1.xpose.msra.mxu0 %v4098
    %4132 = vmatprep.subr.mxu0 0.0
    %4133 = vmatpush2.xpose.msra.mxu0 0.0
    %4134 = vmatprep.subr.mxu0 0.0
    %4135 = vmatpush2.xpose.msra.mxu0 0.0
    %4136 = vmatprep.subr.mxu0 0.0
    %4137 = vmatpush2.xpose.msra.mxu0 0.0
    %4138 = vmatprep.subr.mxu0 0.0
    %4139 = vmatpush2.xpose.msra.mxu0 0.0
    %4140 = vmatprep.subr.mxu0 0.0
    %4141 = vmatpush2.xpose.msra.mxu0 0.0
    %4142 = vmatprep.subr.mxu0 0.0
    %4143 = vmatpush2.xpose.msra.mxu0 0.0
    %4144 = vmatprep.subr.mxu0 0.0
    %4145 = vmatpush2.xpose.msra.mxu0 0.0
    %4146 = vmatprep.subr.mxu0 0.0
    %4147 = vmatpush2.xpose.msra.mxu0 0.0
    %4148 = vmatprep.subr.mxu0 0.0
    %4149 = vmatpush2.xpose.msra.mxu0 0.0
    %4150 = vmatprep.subr.mxu0 0.0
    %4151 = vmatpush2.xpose.msra.mxu0 0.0
    %4152 = vmatprep.subr.mxu0 0.0
    %4153 = vmatpush2.xpose.msra.mxu0 0.0
    %4154 = vmatprep.subr.mxu0 0.0
    %4155 = vmatpush2.xpose.msra.mxu0 0.0
    %4156 = vmatprep.subr.mxu0 0.0
    %4157 = vmatpush2.xpose.msra.mxu0 0.0
    %4158 = vmatprep.subr.mxu0 0.0
    %4159 = vmatpush2.xpose.msra.mxu0 0.0
    %4160 = vmatprep.subr.mxu0 0.0
    %4161 = vmatpush2.xpose.msra.mxu0 0.0
    %4162 = vmatprep.subr.mxu0 0.0
    %4163 = vmatpush2.xpose.msra.mxu0 0.0
    %4164 = vmatprep.mubr.f32.mxu0 0.0
    %4165 = vmatmul.mubr.f32.gmra.mxu0 %v4095
    %v4166 = vpop.f32.mrf.mxu0
    %v4167 = vadd.f32 0.0, %v4166
    %v4168 = vpop.f32.mrf.mxu0
    %4169 = vdwg.mxu0
    %v4170 = vmul.f32 %v4091, 0.35355338
    %v4171 = vmul.f32 %v4167, 0.35355338
    %v4172 = vsel %vm437, %v4170, -inf
    %4173 = vmax.xlane.f32.xlu0 %v4172
    %v4174 = vpop.xlane.xlu0 %4173
    %v4175 = vsel %vm437, %v4171, -inf
    %4176 = vmax.xlane.f32.xlu0 %v4175
    %v4177 = vpop.xlane.xlu0 %4176
    %v4178 = vsub.f32 %v4170, %v4174
    %v4179 = vsub.f32 %v4171, %v4177
    %v4180 = vmul.f32 %v4178, 1.442695
    %v4181 = vpow.pop %v4180
    %v4182 = vmul.f32 %v4179, 1.442695
    %v4183 = vpow.pop %v4182
    %v4184 = vsel %vm437, %v4181, 0.0
    %4185 = vadd.xlane.f32.xlu0 %v4184
    %v4186 = vpop.xlane.xlu0 %4185
    %v4187 = vsel %vm437, %v4183, 0.0
    %4188 = vadd.xlane.f32.xlu0 %v4187
    %v4189 = vpop.xlane.xlu0 %4188
    %v4190 = vrcp.pop %v4186
    %v4191 = vrcp.pop %v4189
    %v4192 = vmul.f32 %v4181, %v4190
    %v4193 = vmul.f32 %v4183, %v4191
    %v4195 = vsel %vm437, %v4192, 0
    %4197 = vmatprep.subr.mxu0 0.0
    %4198 = vmatpush1.msra.mxu0 0.0
    %4199 = vmatprep.subr.mxu0 0.0
    %4200 = vmatpush1.msra.mxu0 0.0
    %4201 = vmatprep.subr.mxu0 0.0
    %4202 = vmatpush1.msra.mxu0 0.0
    %4203 = vmatprep.subr.mxu0 0.0
    %4204 = vmatpush1.msra.mxu0 0.0
    %4205 = vmatprep.subr.mxu0 0.0
    %4206 = vmatpush1.msra.mxu0 0.0
    %4207 = vmatprep.subr.mxu0 0.0
    %4208 = vmatpush1.msra.mxu0 0.0
    %4209 = vmatprep.subr.mxu0 0.0
    %4210 = vmatpush1.msra.mxu0 0.0
    %4211 = vmatprep.subr.mxu0 0.0
    %4212 = vmatpush1.msra.mxu0 0.0
    %4213 = vmatprep.subr.mxu0 0.0
    %4214 = vmatpush1.msra.mxu0 0.0
    %4215 = vmatprep.subr.mxu0 0.0
    %4216 = vmatpush1.msra.mxu0 0.0
    %4217 = vmatprep.subr.mxu0 0.0
    %4218 = vmatpush1.msra.mxu0 0.0
    %4219 = vmatprep.subr.mxu0 0.0
    %4220 = vmatpush1.msra.mxu0 0.0
    %4221 = vmatprep.subr.mxu0 0.0
    %4222 = vmatpush1.msra.mxu0 0.0
    %4223 = vmatprep.subr.mxu0 0.0
    %4224 = vmatpush1.msra.mxu0 0.0
    %4225 = vmatprep.subr.mxu0 0.0
    %4226 = vmatpush1.msra.mxu0 0.0
    %4227 = vmatprep.subr.mxu0 0.0
    %4228 = vmatpush1.msra.mxu0 %v4010
    %4229 = vmatprep.subr.mxu0 0.0
    %4230 = vmatpush2.msra.mxu0 0.0
    %4231 = vmatprep.subr.mxu0 0.0
    %4232 = vmatpush2.msra.mxu0 0.0
    %4233 = vmatprep.subr.mxu0 0.0
    %4234 = vmatpush2.msra.mxu0 0.0
    %4235 = vmatprep.subr.mxu0 0.0
    %4236 = vmatpush2.msra.mxu0 0.0
    %4237 = vmatprep.subr.mxu0 0.0
    %4238 = vmatpush2.msra.mxu0 0.0
    %4239 = vmatprep.subr.mxu0 0.0
    %4240 = vmatpush2.msra.mxu0 0.0
    %4241 = vmatprep.subr.mxu0 0.0
    %4242 = vmatpush2.msra.mxu0 0.0
    %4243 = vmatprep.subr.mxu0 0.0
    %4244 = vmatpush2.msra.mxu0 0.0
    %4245 = vmatprep.subr.mxu0 0.0
    %4246 = vmatpush2.msra.mxu0 0.0
    %4247 = vmatprep.subr.mxu0 0.0
    %4248 = vmatpush2.msra.mxu0 0.0
    %4249 = vmatprep.subr.mxu0 0.0
    %4250 = vmatpush2.msra.mxu0 0.0
    %4251 = vmatprep.subr.mxu0 0.0
    %4252 = vmatpush2.msra.mxu0 0.0
    %4253 = vmatprep.subr.mxu0 0.0
    %4254 = vmatpush2.msra.mxu0 0.0
    %4255 = vmatprep.subr.mxu0 0.0
    %4256 = vmatpush2.msra.mxu0 0.0
    %4257 = vmatprep.subr.mxu0 0.0
    %4258 = vmatpush2.msra.mxu0 0.0
    %4259 = vmatprep.subr.mxu0 0.0
    %4260 = vmatpush2.msra.mxu0 0.0
    %4261 = vmatprep.mubr.f32.mxu0 0.0
    %4262 = vmatmul.mubr.f32.gmra.mxu0 %v4195
    %v4263 = vpop.f32.mrf.mxu0
    %v4264 = vadd.f32 0.0, %v4263
    %v4265 = vpop.f32.mrf.mxu0
    %4266 = vdwg.mxu0
    %v4268 = vsel %vm437, %v4193, 0
    %4270 = vmatprep.subr.mxu0 0.0
    %4271 = vmatpush1.msra.mxu0 0.0
    %4272 = vmatprep.subr.mxu0 0.0
    %4273 = vmatpush1.msra.mxu0 0.0
    %4274 = vmatprep.subr.mxu0 0.0
    %4275 = vmatpush1.msra.mxu0 0.0
    %4276 = vmatprep.subr.mxu0 0.0
    %4277 = vmatpush1.msra.mxu0 0.0
    %4278 = vmatprep.subr.mxu0 0.0
    %4279 = vmatpush1.msra.mxu0 0.0
    %4280 = vmatprep.subr.mxu0 0.0
    %4281 = vmatpush1.msra.mxu0 0.0
    %4282 = vmatprep.subr.mxu0 0.0
    %4283 = vmatpush1.msra.mxu0 0.0
    %4284 = vmatprep.subr.mxu0 0.0
    %4285 = vmatpush1.msra.mxu0 0.0
    %4286 = vmatprep.subr.mxu0 0.0
    %4287 = vmatpush1.msra.mxu0 0.0
    %4288 = vmatprep.subr.mxu0 0.0
    %4289 = vmatpush1.msra.mxu0 0.0
    %4290 = vmatprep.subr.mxu0 0.0
    %4291 = vmatpush1.msra.mxu0 0.0
    %4292 = vmatprep.subr.mxu0 0.0
    %4293 = vmatpush1.msra.mxu0 0.0
    %4294 = vmatprep.subr.mxu0 0.0
    %4295 = vmatpush1.msra.mxu0 0.0
    %4296 = vmatprep.subr.mxu0 0.0
    %4297 = vmatpush1.msra.mxu0 0.0
    %4298 = vmatprep.subr.mxu0 0.0
    %4299 = vmatpush1.msra.mxu0 0.0
    %4300 = vmatprep.subr.mxu0 0.0
    %4301 = vmatpush1.msra.mxu0 %v4015
    %4302 = vmatprep.subr.mxu0 0.0
    %4303 = vmatpush2.msra.mxu0 0.0
    %4304 = vmatprep.subr.mxu0 0.0
    %4305 = vmatpush2.msra.mxu0 0.0
    %4306 = vmatprep.subr.mxu0 0.0
    %4307 = vmatpush2.msra.mxu0 0.0
    %4308 = vmatprep.subr.mxu0 0.0
    %4309 = vmatpush2.msra.mxu0 0.0
    %4310 = vmatprep.subr.mxu0 0.0
    %4311 = vmatpush2.msra.mxu0 0.0
    %4312 = vmatprep.subr.mxu0 0.0
    %4313 = vmatpush2.msra.mxu0 0.0
    %4314 = vmatprep.subr.mxu0 0.0
    %4315 = vmatpush2.msra.mxu0 0.0
    %4316 = vmatprep.subr.mxu0 0.0
    %4317 = vmatpush2.msra.mxu0 0.0
    %4318 = vmatprep.subr.mxu0 0.0
    %4319 = vmatpush2.msra.mxu0 0.0
    %4320 = vmatprep.subr.mxu0 0.0
    %4321 = vmatpush2.msra.mxu0 0.0
    %4322 = vmatprep.subr.mxu0 0.0
    %4323 = vmatpush2.msra.mxu0 0.0
    %4324 = vmatprep.subr.mxu0 0.0
    %4325 = vmatpush2.msra.mxu0 0.0
    %4326 = vmatprep.subr.mxu0 0.0
    %4327 = vmatpush2.msra.mxu0 0.0
    %4328 = vmatprep.subr.mxu0 0.0
    %4329 = vmatpush2.msra.mxu0 0.0
    %4330 = vmatprep.subr.mxu0 0.0
    %4331 = vmatpush2.msra.mxu0 0.0
    %4332 = vmatprep.subr.mxu0 0.0
    %4333 = vmatpush2.msra.mxu0 0.0
    %4334 = vmatprep.mubr.f32.mxu0 0.0
    %4335 = vmatmul.mubr.f32.gmra.mxu0 %v4268
    %v4336 = vpop.f32.mrf.mxu0
    %v4337 = vadd.f32 0.0, %v4336
    %v4338 = vpop.f32.mrf.mxu0
    %4339 = vdwg.mxu0
    %v4341 = vsel %vm437, %v4264, 0
    %v4344 = vsel %vm437, %v4337, 0
    %4346 = vmatprep.subr.mxu0 0.0
    %4347 = vmatpush1.msra.mxu0 0.0
    %4348 = vmatprep.subr.mxu0 0.0
    %4349 = vmatpush1.msra.mxu0 0.0
    %4350 = vmatprep.subr.mxu0 0.0
    %4351 = vmatpush1.msra.mxu0 0.0
    %4352 = vmatprep.subr.mxu0 0.0
    %4353 = vmatpush1.msra.mxu0 0.0
    %4354 = vmatprep.subr.mxu0 0.0
    %4355 = vmatpush1.msra.mxu0 0.0
    %4356 = vmatprep.subr.mxu0 0.0
    %4357 = vmatpush1.msra.mxu0 0.0
    %4358 = vmatprep.subr.mxu0 0.0
    %4359 = vmatpush1.msra.mxu0 0.0
    %4360 = vmatprep.subr.mxu0 0.0
    %4361 = vmatpush1.msra.mxu0 0.0
    %4362 = vmatprep.subr.mxu0 0.0
    %4363 = vmatpush1.msra.mxu0 0.0
    %4364 = vmatprep.subr.mxu0 0.0
    %4365 = vmatpush1.msra.mxu0 0.0
    %4366 = vmatprep.subr.mxu0 0.0
    %4367 = vmatpush1.msra.mxu0 0.0
    %4368 = vmatprep.subr.mxu0 0.0
    %4369 = vmatpush1.msra.mxu0 0.0
    %4370 = vmatprep.subr.mxu0 0.0
    %4371 = vmatpush1.msra.mxu0 0.0
    %4372 = vmatprep.subr.mxu0 0.0
    %4373 = vmatpush1.msra.mxu0 0.0
    %4374 = vmatprep.subr.mxu0 0.0
    %4375 = vmatpush1.msra.mxu0 0.0
    %4376 = vmatprep.subr.mxu0 0.0
    %4377 = vmatpush1.msra.mxu0 %v3186
    %4378 = vmatprep.subr.mxu0 0.0
    %4379 = vmatpush2.msra.mxu0 0.0
    %4380 = vmatprep.subr.mxu0 0.0
    %4381 = vmatpush2.msra.mxu0 0.0
    %4382 = vmatprep.subr.mxu0 0.0
    %4383 = vmatpush2.msra.mxu0 0.0
    %4384 = vmatprep.subr.mxu0 0.0
    %4385 = vmatpush2.msra.mxu0 0.0
    %4386 = vmatprep.subr.mxu0 0.0
    %4387 = vmatpush2.msra.mxu0 0.0
    %4388 = vmatprep.subr.mxu0 0.0
    %4389 = vmatpush2.msra.mxu0 0.0
    %4390 = vmatprep.subr.mxu0 0.0
    %4391 = vmatpush2.msra.mxu0 0.0
    %4392 = vmatprep.subr.mxu0 0.0
    %4393 = vmatpush2.msra.mxu0 0.0
    %4394 = vmatprep.subr.mxu0 0.0
    %4395 = vmatpush2.msra.mxu0 0.0
    %4396 = vmatprep.subr.mxu0 0.0
    %4397 = vmatpush2.msra.mxu0 0.0
    %4398 = vmatprep.subr.mxu0 0.0
    %4399 = vmatpush2.msra.mxu0 0.0
    %4400 = vmatprep.subr.mxu0 0.0
    %4401 = vmatpush2.msra.mxu0 0.0
    %4402 = vmatprep.subr.mxu0 0.0
    %4403 = vmatpush2.msra.mxu0 0.0
    %4404 = vmatprep.subr.mxu0 0.0
    %4405 = vmatpush2.msra.mxu0 0.0
    %4406 = vmatprep.subr.mxu0 0.0
    %4407 = vmatpush2.msra.mxu0 0.0
    %4408 = vmatprep.subr.mxu0 0.0
    %4409 = vmatpush2.msra.mxu0 0.0
    %4410 = vmatprep.mubr.f32.mxu0 0.0
    %4411 = vmatmul.mubr.f32.gmra.mxu0 %v4341
    %v4412 = vpop.f32.mrf.mxu0
    %v4413 = vadd.f32 0.0, %v4412
    %v4414 = vpop.f32.mrf.mxu0
    %4415 = vmatprep.mubr.f32.mxu0 0.0
    %4416 = vmatmul.mubr.f32.gmra.mxu0 %v4344
    %v4417 = vpop.f32.mrf.mxu0
    %v4418 = vadd.f32 0.0, %v4417
    %v4419 = vpop.f32.mrf.mxu0
    %4420 = vdwg.mxu0
    %v4422 = vsel %vm437, %v3699, 0
    %v4425 = vsel %vm437, %v3772, 0
    %4427 = vmatprep.subr.mxu0 0.0
    %4428 = vmatpush1.msra.mxu0 0.0
    %4429 = vmatprep.subr.mxu0 0.0
    %4430 = vmatpush1.msra.mxu0 0.0
    %4431 = vmatprep.subr.mxu0 0.0
    %4432 = vmatpush1.msra.mxu0 0.0
    %4433 = vmatprep.subr.mxu0 0.0
    %4434 = vmatpush1.msra.mxu0 0.0
    %4435 = vmatprep.subr.mxu0 0.0
    %4436 = vmatpush1.msra.mxu0 0.0
    %4437 = vmatprep.subr.mxu0 0.0
    %4438 = vmatpush1.msra.mxu0 0.0
    %4439 = vmatprep.subr.mxu0 0.0
    %4440 = vmatpush1.msra.mxu0 0.0
    %4441 = vmatprep.subr.mxu0 0.0
    %4442 = vmatpush1.msra.mxu0 0.0
    %4443 = vmatprep.subr.mxu0 0.0
    %4444 = vmatpush1.msra.mxu0 0.0
    %4445 = vmatprep.subr.mxu0 0.0
    %4446 = vmatpush1.msra.mxu0 0.0
    %4447 = vmatprep.subr.mxu0 0.0
    %4448 = vmatpush1.msra.mxu0 0.0
    %4449 = vmatprep.subr.mxu0 0.0
    %4450 = vmatpush1.msra.mxu0 0.0
    %4451 = vmatprep.subr.mxu0 0.0
    %4452 = vmatpush1.msra.mxu0 0.0
    %4453 = vmatprep.subr.mxu0 0.0
    %4454 = vmatpush1.msra.mxu0 0.0
    %4455 = vmatprep.subr.mxu0 0.0
    %4456 = vmatpush1.msra.mxu0 0.0
    %4457 = vmatprep.subr.mxu0 0.0
    %4458 = vmatpush1.msra.mxu0 %v3185
    %4459 = vmatprep.subr.mxu0 0.0
    %4460 = vmatpush2.msra.mxu0 0.0
    %4461 = vmatprep.subr.mxu0 0.0
    %4462 = vmatpush2.msra.mxu0 0.0
    %4463 = vmatprep.subr.mxu0 0.0
    %4464 = vmatpush2.msra.mxu0 0.0
    %4465 = vmatprep.subr.mxu0 0.0
    %4466 = vmatpush2.msra.mxu0 0.0
    %4467 = vmatprep.subr.mxu0 0.0
    %4468 = vmatpush2.msra.mxu0 0.0
    %4469 = vmatprep.subr.mxu0 0.0
    %4470 = vmatpush2.msra.mxu0 0.0
    %4471 = vmatprep.subr.mxu0 0.0
    %4472 = vmatpush2.msra.mxu0 0.0
    %4473 = vmatprep.subr.mxu0 0.0
    %4474 = vmatpush2.msra.mxu0 0.0
    %4475 = vmatprep.subr.mxu0 0.0
    %4476 = vmatpush2.msra.mxu0 0.0
    %4477 = vmatprep.subr.mxu0 0.0
    %4478 = vmatpush2.msra.mxu0 0.0
    %4479 = vmatprep.subr.mxu0 0.0
    %4480 = vmatpush2.msra.mxu0 0.0
    %4481 = vmatprep.subr.mxu0 0.0
    %4482 = vmatpush2.msra.mxu0 0.0
    %4483 = vmatprep.subr.mxu0 0.0
    %4484 = vmatpush2.msra.mxu0 0.0
    %4485 = vmatprep.subr.mxu0 0.0
    %4486 = vmatpush2.msra.mxu0 0.0
    %4487 = vmatprep.subr.mxu0 0.0
    %4488 = vmatpush2.msra.mxu0 0.0
    %4489 = vmatprep.subr.mxu0 0.0
    %4490 = vmatpush2.msra.mxu0 0.0
    %4491 = vmatprep.mubr.f32.mxu0 0.0
    %4492 = vmatmul.mubr.f32.gmra.mxu0 %v4422
    %v4493 = vpop.f32.mrf.mxu0
    %v4494 = vadd.f32 %v4413, %v4493
    %v4495 = vpop.f32.mrf.mxu0
    %4496 = vmatprep.mubr.f32.mxu0 0.0
    %4497 = vmatmul.mubr.f32.gmra.mxu0 %v4425
    %v4498 = vpop.f32.mrf.mxu0
    %v4499 = vadd.f32 %v4418, %v4498
    %v4500 = vpop.f32.mrf.mxu0
    %4501 = vdwg.mxu0
    %v4503 = vlaneseq
    %v4504 = vshrl.u32 %v4503, 7
    %v4505 = vsub.s32 0, %v4504
    %v4506 = vrot.slane %v3192, %v4505
    %4508 = vmatprep.subr.mxu0 0.0
    %4509 = vmatpush1.msra.mxu0 0.0
    %4510 = vmatprep.subr.mxu0 0.0
    %4511 = vmatpush1.msra.mxu0 0.0
    %4512 = vmatprep.subr.mxu0 0.0
    %4513 = vmatpush1.msra.mxu0 0.0
    %4514 = vmatprep.subr.mxu0 0.0
    %4515 = vmatpush1.msra.mxu0 0.0
    %4516 = vmatprep.subr.mxu0 0.0
    %4517 = vmatpush1.msra.mxu0 0.0
    %4518 = vmatprep.subr.mxu0 0.0
    %4519 = vmatpush1.msra.mxu0 0.0
    %4520 = vmatprep.subr.mxu0 0.0
    %4521 = vmatpush1.msra.mxu0 0.0
    %4522 = vmatprep.subr.mxu0 0.0
    %4523 = vmatpush1.msra.mxu0 0.0
    %4524 = vmatprep.subr.mxu0 0.0
    %4525 = vmatpush1.msra.mxu0 0.0
    %4526 = vmatprep.subr.mxu0 0.0
    %4527 = vmatpush1.msra.mxu0 0.0
    %4528 = vmatprep.subr.mxu0 0.0
    %4529 = vmatpush1.msra.mxu0 0.0
    %4530 = vmatprep.subr.mxu0 0.0
    %4531 = vmatpush1.msra.mxu0 0.0
    %4532 = vmatprep.subr.mxu0 0.0
    %4533 = vmatpush1.msra.mxu0 %v3145
    %4534 = vmatprep.subr.mxu0 0.0
    %4535 = vmatpush1.msra.mxu0 %v3144
    %4536 = vmatprep.subr.mxu0 0.0
    %4537 = vmatpush1.msra.mxu0 %v3143
    %4538 = vmatprep.subr.mxu0 0.0
    %4539 = vmatpush1.msra.mxu0 %v3142
    %4540 = vmatprep.subr.mxu0 0.0
    %4541 = vmatpush2.msra.mxu0 0.0
    %4542 = vmatprep.subr.mxu0 0.0
    %4543 = vmatpush2.msra.mxu0 0.0
    %4544 = vmatprep.subr.mxu0 0.0
    %4545 = vmatpush2.msra.mxu0 0.0
    %4546 = vmatprep.subr.mxu0 0.0
    %4547 = vmatpush2.msra.mxu0 0.0
    %4548 = vmatprep.subr.mxu0 0.0
    %4549 = vmatpush2.msra.mxu0 0.0
    %4550 = vmatprep.subr.mxu0 0.0
    %4551 = vmatpush2.msra.mxu0 0.0
    %4552 = vmatprep.subr.mxu0 0.0
    %4553 = vmatpush2.msra.mxu0 0.0
    %4554 = vmatprep.subr.mxu0 0.0
    %4555 = vmatpush2.msra.mxu0 0.0
    %4556 = vmatprep.subr.mxu0 0.0
    %4557 = vmatpush2.msra.mxu0 0.0
    %4558 = vmatprep.subr.mxu0 0.0
    %4559 = vmatpush2.msra.mxu0 0.0
    %4560 = vmatprep.subr.mxu0 0.0
    %4561 = vmatpush2.msra.mxu0 0.0
    %4562 = vmatprep.subr.mxu0 0.0
    %4563 = vmatpush2.msra.mxu0 0.0
    %4564 = vmatprep.subr.mxu0 0.0
    %4565 = vmatpush2.msra.mxu0 0.0
    %4566 = vmatprep.subr.mxu0 0.0
    %4567 = vmatpush2.msra.mxu0 0.0
    %4568 = vmatprep.subr.mxu0 0.0
    %4569 = vmatpush2.msra.mxu0 0.0
    %4570 = vmatprep.subr.mxu0 0.0
    %4571 = vmatpush2.msra.mxu0 0.0
    %4572 = vmatprep.mubr.f32.mxu0 0.0
    %4573 = vmatmul.mubr.f32.gmra.mxu0 %v3211
    %v4574 = vpop.f32.mrf.mxu0
    %v4575 = vadd.f32 %v4506, %v4574
    %v4576 = vpop.f32.mrf.mxu0
    %4577 = vmatprep.mubr.f32.mxu0 0.0
    %4578 = vmatmul.mubr.f32.gmra.mxu0 %v3214
    %v4579 = vpop.f32.mrf.mxu0
    %v4580 = vadd.f32 %v4506, %v4579
    %v4581 = vpop.f32.mrf.mxu0
    %4582 = vdwg.mxu0
    %v4584 = vlaneseq
    %v4585 = vshrl.u32 %v4584, 7
    %v4586 = vsub.s32 0, %v4585
    %v4587 = vrot.slane %v3197, %v4586
    %4589 = vmatprep.subr.mxu0 0.0
    %4590 = vmatpush1.msra.mxu0 0.0
    %4591 = vmatprep.subr.mxu0 0.0
    %4592 = vmatpush1.msra.mxu0 0.0
    %4593 = vmatprep.subr.mxu0 0.0
    %4594 = vmatpush1.msra.mxu0 0.0
    %4595 = vmatprep.subr.mxu0 0.0
    %4596 = vmatpush1.msra.mxu0 0.0
    %4597 = vmatprep.subr.mxu0 0.0
    %4598 = vmatpush1.msra.mxu0 0.0
    %4599 = vmatprep.subr.mxu0 0.0
    %4600 = vmatpush1.msra.mxu0 0.0
    %4601 = vmatprep.subr.mxu0 0.0
    %4602 = vmatpush1.msra.mxu0 0.0
    %4603 = vmatprep.subr.mxu0 0.0
    %4604 = vmatpush1.msra.mxu0 0.0
    %4605 = vmatprep.subr.mxu0 0.0
    %4606 = vmatpush1.msra.mxu0 0.0
    %4607 = vmatprep.subr.mxu0 0.0
    %4608 = vmatpush1.msra.mxu0 0.0
    %4609 = vmatprep.subr.mxu0 0.0
    %4610 = vmatpush1.msra.mxu0 0.0
    %4611 = vmatprep.subr.mxu0 0.0
    %4612 = vmatpush1.msra.mxu0 0.0
    %4613 = vmatprep.subr.mxu0 0.0
    %4614 = vmatpush1.msra.mxu0 %v3162
    %4615 = vmatprep.subr.mxu0 0.0
    %4616 = vmatpush1.msra.mxu0 %v3161
    %4617 = vmatprep.subr.mxu0 0.0
    %4618 = vmatpush1.msra.mxu0 %v3160
    %4619 = vmatprep.subr.mxu0 0.0
    %4620 = vmatpush1.msra.mxu0 %v3159
    %4621 = vmatprep.subr.mxu0 0.0
    %4622 = vmatpush2.msra.mxu0 0.0
    %4623 = vmatprep.subr.mxu0 0.0
    %4624 = vmatpush2.msra.mxu0 0.0
    %4625 = vmatprep.subr.mxu0 0.0
    %4626 = vmatpush2.msra.mxu0 0.0
    %4627 = vmatprep.subr.mxu0 0.0
    %4628 = vmatpush2.msra.mxu0 0.0
    %4629 = vmatprep.subr.mxu0 0.0
    %4630 = vmatpush2.msra.mxu0 0.0
    %4631 = vmatprep.subr.mxu0 0.0
    %4632 = vmatpush2.msra.mxu0 0.0
    %4633 = vmatprep.subr.mxu0 0.0
    %4634 = vmatpush2.msra.mxu0 0.0
    %4635 = vmatprep.subr.mxu0 0.0
    %4636 = vmatpush2.msra.mxu0 0.0
    %4637 = vmatprep.subr.mxu0 0.0
    %4638 = vmatpush2.msra.mxu0 0.0
    %4639 = vmatprep.subr.mxu0 0.0
    %4640 = vmatpush2.msra.mxu0 0.0
    %4641 = vmatprep.subr.mxu0 0.0
    %4642 = vmatpush2.msra.mxu0 0.0
    %4643 = vmatprep.subr.mxu0 0.0
    %4644 = vmatpush2.msra.mxu0 0.0
    %4645 = vmatprep.subr.mxu0 0.0
    %4646 = vmatpush2.msra.mxu0 0.0
    %4647 = vmatprep.subr.mxu0 0.0
    %4648 = vmatpush2.msra.mxu0 0.0
    %4649 = vmatprep.subr.mxu0 0.0
    %4650 = vmatpush2.msra.mxu0 0.0
    %4651 = vmatprep.subr.mxu0 0.0
    %4652 = vmatpush2.msra.mxu0 0.0
    %4653 = vmatprep.mubr.f32.mxu0 0.0
    %4654 = vmatmul.mubr.f32.gmra.mxu0 %v3211
    %v4655 = vpop.f32.mrf.mxu0
    %v4656 = vadd.f32 %v4587, %v4655
    %v4657 = vpop.f32.mrf.mxu0
    %4658 = vmatprep.mubr.f32.mxu0 0.0
    %4659 = vmatmul.mubr.f32.gmra.mxu0 %v3214
    %v4660 = vpop.f32.mrf.mxu0
    %v4661 = vadd.f32 %v4587, %v4660
    %v4662 = vpop.f32.mrf.mxu0
    %4663 = vdwg.mxu0
    %v4665 = vlaneseq
    %v4666 = vshrl.u32 %v4665, 7
    %v4667 = vsub.s32 0, %v4666
    %v4668 = vrot.slane %v3202, %v4667
    %4670 = vmatprep.subr.mxu0 0.0
    %4671 = vmatpush1.msra.mxu0 0.0
    %4672 = vmatprep.subr.mxu0 0.0
    %4673 = vmatpush1.msra.mxu0 0.0
    %4674 = vmatprep.subr.mxu0 0.0
    %4675 = vmatpush1.msra.mxu0 0.0
    %4676 = vmatprep.subr.mxu0 0.0
    %4677 = vmatpush1.msra.mxu0 0.0
    %4678 = vmatprep.subr.mxu0 0.0
    %4679 = vmatpush1.msra.mxu0 0.0
    %4680 = vmatprep.subr.mxu0 0.0
    %4681 = vmatpush1.msra.mxu0 0.0
    %4682 = vmatprep.subr.mxu0 0.0
    %4683 = vmatpush1.msra.mxu0 0.0
    %4684 = vmatprep.subr.mxu0 0.0
    %4685 = vmatpush1.msra.mxu0 0.0
    %4686 = vmatprep.subr.mxu0 0.0
    %4687 = vmatpush1.msra.mxu0 0.0
    %4688 = vmatprep.subr.mxu0 0.0
    %4689 = vmatpush1.msra.mxu0 0.0
    %4690 = vmatprep.subr.mxu0 0.0
    %4691 = vmatpush1.msra.mxu0 0.0
    %4692 = vmatprep.subr.mxu0 0.0
    %4693 = vmatpush1.msra.mxu0 0.0
    %4694 = vmatprep.subr.mxu0 0.0
    %4695 = vmatpush1.msra.mxu0 %v3179
    %4696 = vmatprep.subr.mxu0 0.0
    %4697 = vmatpush1.msra.mxu0 %v3178
    %4698 = vmatprep.subr.mxu0 0.0
    %4699 = vmatpush1.msra.mxu0 %v3177
    %4700 = vmatprep.subr.mxu0 0.0
    %4701 = vmatpush1.msra.mxu0 %v3176
    %4702 = vmatprep.subr.mxu0 0.0
    %4703 = vmatpush2.msra.mxu0 0.0
    %4704 = vmatprep.subr.mxu0 0.0
    %4705 = vmatpush2.msra.mxu0 0.0
    %4706 = vmatprep.subr.mxu0 0.0
    %4707 = vmatpush2.msra.mxu0 0.0
    %4708 = vmatprep.subr.mxu0 0.0
    %4709 = vmatpush2.msra.mxu0 0.0
    %4710 = vmatprep.subr.mxu0 0.0
    %4711 = vmatpush2.msra.mxu0 0.0
    %4712 = vmatprep.subr.mxu0 0.0
    %4713 = vmatpush2.msra.mxu0 0.0
    %4714 = vmatprep.subr.mxu0 0.0
    %4715 = vmatpush2.msra.mxu0 0.0
    %4716 = vmatprep.subr.mxu0 0.0
    %4717 = vmatpush2.msra.mxu0 0.0
    %4718 = vmatprep.subr.mxu0 0.0
    %4719 = vmatpush2.msra.mxu0 0.0
    %4720 = vmatprep.subr.mxu0 0.0
    %4721 = vmatpush2.msra.mxu0 0.0
    %4722 = vmatprep.subr.mxu0 0.0
    %4723 = vmatpush2.msra.mxu0 0.0
    %4724 = vmatprep.subr.mxu0 0.0
    %4725 = vmatpush2.msra.mxu0 0.0
    %4726 = vmatprep.subr.mxu0 0.0
    %4727 = vmatpush2.msra.mxu0 0.0
    %4728 = vmatprep.subr.mxu0 0.0
    %4729 = vmatpush2.msra.mxu0 0.0
    %4730 = vmatprep.subr.mxu0 0.0
    %4731 = vmatpush2.msra.mxu0 0.0
    %4732 = vmatprep.subr.mxu0 0.0
    %4733 = vmatpush2.msra.mxu0 0.0
    %4734 = vmatprep.mubr.f32.mxu0 0.0
    %4735 = vmatmul.mubr.f32.gmra.mxu0 %v3211
    %v4736 = vpop.f32.mrf.mxu0
    %v4737 = vadd.f32 %v4668, %v4736
    %v4738 = vpop.f32.mrf.mxu0
    %4739 = vmatprep.mubr.f32.mxu0 0.0
    %4740 = vmatmul.mubr.f32.gmra.mxu0 %v3214
    %v4741 = vpop.f32.mrf.mxu0
    %v4742 = vadd.f32 %v4668, %v4741
    %v4743 = vpop.f32.mrf.mxu0
    %4744 = vdwg.mxu0
    %v4746 = vsel %vm437, %v4575, 0
    %v4749 = vsel %vm437, %v4656, 0
    %4751 = vmatprep.subr.mxu0 0.0
    %4752 = vmatpush1.xpose.msra.mxu0 0.0
    %4753 = vmatprep.subr.mxu0 0.0
    %4754 = vmatpush1.xpose.msra.mxu0 0.0
    %4755 = vmatprep.subr.mxu0 0.0
    %4756 = vmatpush1.xpose.msra.mxu0 0.0
    %4757 = vmatprep.subr.mxu0 0.0
    %4758 = vmatpush1.xpose.msra.mxu0 0.0
    %4759 = vmatprep.subr.mxu0 0.0
    %4760 = vmatpush1.xpose.msra.mxu0 0.0
    %4761 = vmatprep.subr.mxu0 0.0
    %4762 = vmatpush1.xpose.msra.mxu0 0.0
    %4763 = vmatprep.subr.mxu0 0.0
    %4764 = vmatpush1.xpose.msra.mxu0 0.0
    %4765 = vmatprep.subr.mxu0 0.0
    %4766 = vmatpush1.xpose.msra.mxu0 0.0
    %4767 = vmatprep.subr.mxu0 0.0
    %4768 = vmatpush1.xpose.msra.mxu0 0.0
    %4769 = vmatprep.subr.mxu0 0.0
    %4770 = vmatpush1.xpose.msra.mxu0 0.0
    %4771 = vmatprep.subr.mxu0 0.0
    %4772 = vmatpush1.xpose.msra.mxu0 0.0
    %4773 = vmatprep.subr.mxu0 0.0
    %4774 = vmatpush1.xpose.msra.mxu0 0.0
    %4775 = vmatprep.subr.mxu0 0.0
    %4776 = vmatpush1.xpose.msra.mxu0 0.0
    %4777 = vmatprep.subr.mxu0 0.0
    %4778 = vmatpush1.xpose.msra.mxu0 0.0
    %4779 = vmatprep.subr.mxu0 0.0
    %4780 = vmatpush1.xpose.msra.mxu0 0.0
    %4781 = vmatprep.subr.mxu0 0.0
    %4782 = vmatpush1.xpose.msra.mxu0 %v4749
    %4783 = vmatprep.subr.mxu0 0.0
    %4784 = vmatpush2.xpose.msra.mxu0 0.0
    %4785 = vmatprep.subr.mxu0 0.0
    %4786 = vmatpush2.xpose.msra.mxu0 0.0
    %4787 = vmatprep.subr.mxu0 0.0
    %4788 = vmatpush2.xpose.msra.mxu0 0.0
    %4789 = vmatprep.subr.mxu0 0.0
    %4790 = vmatpush2.xpose.msra.mxu0 0.0
    %4791 = vmatprep.subr.mxu0 0.0
    %4792 = vmatpush2.xpose.msra.mxu0 0.0
    %4793 = vmatprep.subr.mxu0 0.0
    %4794 = vmatpush2.xpose.msra.mxu0 0.0
    %4795 = vmatprep.subr.mxu0 0.0
    %4796 = vmatpush2.xpose.msra.mxu0 0.0
    %4797 = vmatprep.subr.mxu0 0.0
    %4798 = vmatpush2.xpose.msra.mxu0 0.0
    %4799 = vmatprep.subr.mxu0 0.0
    %4800 = vmatpush2.xpose.msra.mxu0 0.0
    %4801 = vmatprep.subr.mxu0 0.0
    %4802 = vmatpush2.xpose.msra.mxu0 0.0
    %4803 = vmatprep.subr.mxu0 0.0
    %4804 = vmatpush2.xpose.msra.mxu0 0.0
    %4805 = vmatprep.subr.mxu0 0.0
    %4806 = vmatpush2.xpose.msra.mxu0 0.0
    %4807 = vmatprep.subr.mxu0 0.0
    %4808 = vmatpush2.xpose.msra.mxu0 0.0
    %4809 = vmatprep.subr.mxu0 0.0
    %4810 = vmatpush2.xpose.msra.mxu0 0.0
    %4811 = vmatprep.subr.mxu0 0.0
    %4812 = vmatpush2.xpose.msra.mxu0 0.0
    %4813 = vmatprep.subr.mxu0 0.0
    %4814 = vmatpush2.xpose.msra.mxu0 0.0
    %4815 = vmatprep.mubr.f32.mxu0 0.0
    %4816 = vmatmul.mubr.f32.gmra.mxu0 %v4746
    %v4817 = vpop.f32.mrf.mxu0
    %v4818 = vadd.f32 0.0, %v4817
    %v4819 = vpop.f32.mrf.mxu0
    %4820 = vdwg.mxu0
    %v4822 = vsel %vm437, %v4580, 0
    %v4825 = vsel %vm437, %v4661, 0
    %4827 = vmatprep.subr.mxu0 0.0
    %4828 = vmatpush1.xpose.msra.mxu0 0.0
    %4829 = vmatprep.subr.mxu0 0.0
    %4830 = vmatpush1.xpose.msra.mxu0 0.0
    %4831 = vmatprep.subr.mxu0 0.0
    %4832 = vmatpush1.xpose.msra.mxu0 0.0
    %4833 = vmatprep.subr.mxu0 0.0
    %4834 = vmatpush1.xpose.msra.mxu0 0.0
    %4835 = vmatprep.subr.mxu0 0.0
    %4836 = vmatpush1.xpose.msra.mxu0 0.0
    %4837 = vmatprep.subr.mxu0 0.0
    %4838 = vmatpush1.xpose.msra.mxu0 0.0
    %4839 = vmatprep.subr.mxu0 0.0
    %4840 = vmatpush1.xpose.msra.mxu0 0.0
    %4841 = vmatprep.subr.mxu0 0.0
    %4842 = vmatpush1.xpose.msra.mxu0 0.0
    %4843 = vmatprep.subr.mxu0 0.0
    %4844 = vmatpush1.xpose.msra.mxu0 0.0
    %4845 = vmatprep.subr.mxu0 0.0
    %4846 = vmatpush1.xpose.msra.mxu0 0.0
    %4847 = vmatprep.subr.mxu0 0.0
    %4848 = vmatpush1.xpose.msra.mxu0 0.0
    %4849 = vmatprep.subr.mxu0 0.0
    %4850 = vmatpush1.xpose.msra.mxu0 0.0
    %4851 = vmatprep.subr.mxu0 0.0
    %4852 = vmatpush1.xpose.msra.mxu0 0.0
    %4853 = vmatprep.subr.mxu0 0.0
    %4854 = vmatpush1.xpose.msra.mxu0 0.0
    %4855 = vmatprep.subr.mxu0 0.0
    %4856 = vmatpush1.xpose.msra.mxu0 0.0
    %4857 = vmatprep.subr.mxu0 0.0
    %4858 = vmatpush1.xpose.msra.mxu0 %v4825
    %4859 = vmatprep.subr.mxu0 0.0
    %4860 = vmatpush2.xpose.msra.mxu0 0.0
    %4861 = vmatprep.subr.mxu0 0.0
    %4862 = vmatpush2.xpose.msra.mxu0 0.0
    %4863 = vmatprep.subr.mxu0 0.0
    %4864 = vmatpush2.xpose.msra.mxu0 0.0
    %4865 = vmatprep.subr.mxu0 0.0
    %4866 = vmatpush2.xpose.msra.mxu0 0.0
    %4867 = vmatprep.subr.mxu0 0.0
    %4868 = vmatpush2.xpose.msra.mxu0 0.0
    %4869 = vmatprep.subr.mxu0 0.0
    %4870 = vmatpush2.xpose.msra.mxu0 0.0
    %4871 = vmatprep.subr.mxu0 0.0
    %4872 = vmatpush2.xpose.msra.mxu0 0.0
    %4873 = vmatprep.subr.mxu0 0.0
    %4874 = vmatpush2.xpose.msra.mxu0 0.0
    %4875 = vmatprep.subr.mxu0 0.0
    %4876 = vmatpush2.xpose.msra.mxu0 0.0
    %4877 = vmatprep.subr.mxu0 0.0
    %4878 = vmatpush2.xpose.msra.mxu0 0.0
    %4879 = vmatprep.subr.mxu0 0.0
    %4880 = vmatpush2.xpose.msra.mxu0 0.0
    %4881 = vmatprep.subr.mxu0 0.0
    %4882 = vmatpush2.xpose.msra.mxu0 0.0
    %4883 = vmatprep.subr.mxu0 0.0
    %4884 = vmatpush2.xpose.msra.mxu0 0.0
    %4885 = vmatprep.subr.mxu0 0.0
    %4886 = vmatpush2.xpose.msra.mxu0 0.0
    %4887 = vmatprep.subr.mxu0 0.0
    %4888 = vmatpush2.xpose.msra.mxu0 0.0
    %4889 = vmatprep.subr.mxu0 0.0
    %4890 = vmatpush2.xpose.msra.mxu0 0.0
    %4891 = vmatprep.mubr.f32.mxu0 0.0
    %4892 = vmatmul.mubr.f32.gmra.mxu0 %v4822
    %v4893 = vpop.f32.mrf.mxu0
    %v4894 = vadd.f32 0.0, %v4893
    %v4895 = vpop.f32.mrf.mxu0
    %4896 = vdwg.mxu0
    %v4897 = vmul.f32 %v4818, 0.35355338
    %v4898 = vmul.f32 %v4894, 0.35355338
    %v4899 = vsel %vm437, %v4897, -inf
    %4900 = vmax.xlane.f32.xlu0 %v4899
    %v4901 = vpop.xlane.xlu0 %4900
    %v4902 = vsel %vm437, %v4898, -inf
    %4903 = vmax.xlane.f32.xlu0 %v4902
    %v4904 = vpop.xlane.xlu0 %4903
    %v4905 = vsub.f32 %v4897, %v4901
    %v4906 = vsub.f32 %v4898, %v4904
    %v4907 = vmul.f32 %v4905, 1.442695
    %v4908 = vpow.pop %v4907
    %v4909 = vmul.f32 %v4906, 1.442695
    %v4910 = vpow.pop %v4909
    %v4911 = vsel %vm437, %v4908, 0.0
    %4912 = vadd.xlane.f32.xlu0 %v4911
    %v4913 = vpop.xlane.xlu0 %4912
    %v4914 = vsel %vm437, %v4910, 0.0
    %4915 = vadd.xlane.f32.xlu0 %v4914
    %v4916 = vpop.xlane.xlu0 %4915
    %v4917 = vrcp.pop %v4913
    %v4918 = vrcp.pop %v4916
    %v4919 = vmul.f32 %v4908, %v4917
    %v4920 = vmul.f32 %v4910, %v4918
    %v4922 = vsel %vm437, %v4919, 0
    %4924 = vmatprep.subr.mxu0 0.0
    %4925 = vmatpush1.msra.mxu0 0.0
    %4926 = vmatprep.subr.mxu0 0.0
    %4927 = vmatpush1.msra.mxu0 0.0
    %4928 = vmatprep.subr.mxu0 0.0
    %4929 = vmatpush1.msra.mxu0 0.0
    %4930 = vmatprep.subr.mxu0 0.0
    %4931 = vmatpush1.msra.mxu0 0.0
    %4932 = vmatprep.subr.mxu0 0.0
    %4933 = vmatpush1.msra.mxu0 0.0
    %4934 = vmatprep.subr.mxu0 0.0
    %4935 = vmatpush1.msra.mxu0 0.0
    %4936 = vmatprep.subr.mxu0 0.0
    %4937 = vmatpush1.msra.mxu0 0.0
    %4938 = vmatprep.subr.mxu0 0.0
    %4939 = vmatpush1.msra.mxu0 0.0
    %4940 = vmatprep.subr.mxu0 0.0
    %4941 = vmatpush1.msra.mxu0 0.0
    %4942 = vmatprep.subr.mxu0 0.0
    %4943 = vmatpush1.msra.mxu0 0.0
    %4944 = vmatprep.subr.mxu0 0.0
    %4945 = vmatpush1.msra.mxu0 0.0
    %4946 = vmatprep.subr.mxu0 0.0
    %4947 = vmatpush1.msra.mxu0 0.0
    %4948 = vmatprep.subr.mxu0 0.0
    %4949 = vmatpush1.msra.mxu0 0.0
    %4950 = vmatprep.subr.mxu0 0.0
    %4951 = vmatpush1.msra.mxu0 0.0
    %4952 = vmatprep.subr.mxu0 0.0
    %4953 = vmatpush1.msra.mxu0 0.0
    %4954 = vmatprep.subr.mxu0 0.0
    %4955 = vmatpush1.msra.mxu0 %v4737
    %4956 = vmatprep.subr.mxu0 0.0
    %4957 = vmatpush2.msra.mxu0 0.0
    %4958 = vmatprep.subr.mxu0 0.0
    %4959 = vmatpush2.msra.mxu0 0.0
    %4960 = vmatprep.subr.mxu0 0.0
    %4961 = vmatpush2.msra.mxu0 0.0
    %4962 = vmatprep.subr.mxu0 0.0
    %4963 = vmatpush2.msra.mxu0 0.0
    %4964 = vmatprep.subr.mxu0 0.0
    %4965 = vmatpush2.msra.mxu0 0.0
    %4966 = vmatprep.subr.mxu0 0.0
    %4967 = vmatpush2.msra.mxu0 0.0
    %4968 = vmatprep.subr.mxu0 0.0
    %4969 = vmatpush2.msra.mxu0 0.0
    %4970 = vmatprep.subr.mxu0 0.0
    %4971 = vmatpush2.msra.mxu0 0.0
    %4972 = vmatprep.subr.mxu0 0.0
    %4973 = vmatpush2.msra.mxu0 0.0
    %4974 = vmatprep.subr.mxu0 0.0
    %4975 = vmatpush2.msra.mxu0 0.0
    %4976 = vmatprep.subr.mxu0 0.0
    %4977 = vmatpush2.msra.mxu0 0.0
    %4978 = vmatprep.subr.mxu0 0.0
    %4979 = vmatpush2.msra.mxu0 0.0
    %4980 = vmatprep.subr.mxu0 0.0
    %4981 = vmatpush2.msra.mxu0 0.0
    %4982 = vmatprep.subr.mxu0 0.0
    %4983 = vmatpush2.msra.mxu0 0.0
    %4984 = vmatprep.subr.mxu0 0.0
    %4985 = vmatpush2.msra.mxu0 0.0
    %4986 = vmatprep.subr.mxu0 0.0
    %4987 = vmatpush2.msra.mxu0 0.0
    %4988 = vmatprep.mubr.f32.mxu0 0.0
    %4989 = vmatmul.mubr.f32.gmra.mxu0 %v4922
    %v4990 = vpop.f32.mrf.mxu0
    %v4991 = vadd.f32 0.0, %v4990
    %v4992 = vpop.f32.mrf.mxu0
    %4993 = vdwg.mxu0
    %v4995 = vsel %vm437, %v4920, 0
    %4997 = vmatprep.subr.mxu0 0.0
    %4998 = vmatpush1.msra.mxu0 0.0
    %4999 = vmatprep.subr.mxu0 0.0
    %5000 = vmatpush1.msra.mxu0 0.0
    %5001 = vmatprep.subr.mxu0 0.0
    %5002 = vmatpush1.msra.mxu0 0.0
    %5003 = vmatprep.subr.mxu0 0.0
    %5004 = vmatpush1.msra.mxu0 0.0
    %5005 = vmatprep.subr.mxu0 0.0
    %5006 = vmatpush1.msra.mxu0 0.0
    %5007 = vmatprep.subr.mxu0 0.0
    %5008 = vmatpush1.msra.mxu0 0.0
    %5009 = vmatprep.subr.mxu0 0.0
    %5010 = vmatpush1.msra.mxu0 0.0
    %5011 = vmatprep.subr.mxu0 0.0
    %5012 = vmatpush1.msra.mxu0 0.0
    %5013 = vmatprep.subr.mxu0 0.0
    %5014 = vmatpush1.msra.mxu0 0.0
    %5015 = vmatprep.subr.mxu0 0.0
    %5016 = vmatpush1.msra.mxu0 0.0
    %5017 = vmatprep.subr.mxu0 0.0
    %5018 = vmatpush1.msra.mxu0 0.0
    %5019 = vmatprep.subr.mxu0 0.0
    %5020 = vmatpush1.msra.mxu0 0.0
    %5021 = vmatprep.subr.mxu0 0.0
    %5022 = vmatpush1.msra.mxu0 0.0
    %5023 = vmatprep.subr.mxu0 0.0
    %5024 = vmatpush1.msra.mxu0 0.0
    %5025 = vmatprep.subr.mxu0 0.0
    %5026 = vmatpush1.msra.mxu0 0.0
    %5027 = vmatprep.subr.mxu0 0.0
    %5028 = vmatpush1.msra.mxu0 %v4742
    %5029 = vmatprep.subr.mxu0 0.0
    %5030 = vmatpush2.msra.mxu0 0.0
    %5031 = vmatprep.subr.mxu0 0.0
    %5032 = vmatpush2.msra.mxu0 0.0
    %5033 = vmatprep.subr.mxu0 0.0
    %5034 = vmatpush2.msra.mxu0 0.0
    %5035 = vmatprep.subr.mxu0 0.0
    %5036 = vmatpush2.msra.mxu0 0.0
    %5037 = vmatprep.subr.mxu0 0.0
    %5038 = vmatpush2.msra.mxu0 0.0
    %5039 = vmatprep.subr.mxu0 0.0
    %5040 = vmatpush2.msra.mxu0 0.0
    %5041 = vmatprep.subr.mxu0 0.0
    %5042 = vmatpush2.msra.mxu0 0.0
    %5043 = vmatprep.subr.mxu0 0.0
    %5044 = vmatpush2.msra.mxu0 0.0
    %5045 = vmatprep.subr.mxu0 0.0
    %5046 = vmatpush2.msra.mxu0 0.0
    %5047 = vmatprep.subr.mxu0 0.0
    %5048 = vmatpush2.msra.mxu0 0.0
    %5049 = vmatprep.subr.mxu0 0.0
    %5050 = vmatpush2.msra.mxu0 0.0
    %5051 = vmatprep.subr.mxu0 0.0
    %5052 = vmatpush2.msra.mxu0 0.0
    %5053 = vmatprep.subr.mxu0 0.0
    %5054 = vmatpush2.msra.mxu0 0.0
    %5055 = vmatprep.subr.mxu0 0.0
    %5056 = vmatpush2.msra.mxu0 0.0
    %5057 = vmatprep.subr.mxu0 0.0
    %5058 = vmatpush2.msra.mxu0 0.0
    %5059 = vmatprep.subr.mxu0 0.0
    %5060 = vmatpush2.msra.mxu0 0.0
    %5061 = vmatprep.mubr.f32.mxu0 0.0
    %5062 = vmatmul.mubr.f32.gmra.mxu0 %v4995
    %v5063 = vpop.f32.mrf.mxu0
    %v5064 = vadd.f32 0.0, %v5063
    %v5065 = vpop.f32.mrf.mxu0
    %5066 = vdwg.mxu0
    %v5068 = vsel %vm437, %v4991, 0
    %v5071 = vsel %vm437, %v5064, 0
    %5073 = vmatprep.subr.mxu0 0.0
    %5074 = vmatpush1.msra.mxu0 0.0
    %5075 = vmatprep.subr.mxu0 0.0
    %5076 = vmatpush1.msra.mxu0 0.0
    %5077 = vmatprep.subr.mxu0 0.0
    %5078 = vmatpush1.msra.mxu0 0.0
    %5079 = vmatprep.subr.mxu0 0.0
    %5080 = vmatpush1.msra.mxu0 0.0
    %5081 = vmatprep.subr.mxu0 0.0
    %5082 = vmatpush1.msra.mxu0 0.0
    %5083 = vmatprep.subr.mxu0 0.0
    %5084 = vmatpush1.msra.mxu0 0.0
    %5085 = vmatprep.subr.mxu0 0.0
    %5086 = vmatpush1.msra.mxu0 0.0
    %5087 = vmatprep.subr.mxu0 0.0
    %5088 = vmatpush1.msra.mxu0 0.0
    %5089 = vmatprep.subr.mxu0 0.0
    %5090 = vmatpush1.msra.mxu0 0.0
    %5091 = vmatprep.subr.mxu0 0.0
    %5092 = vmatpush1.msra.mxu0 0.0
    %5093 = vmatprep.subr.mxu0 0.0
    %5094 = vmatpush1.msra.mxu0 0.0
    %5095 = vmatprep.subr.mxu0 0.0
    %5096 = vmatpush1.msra.mxu0 0.0
    %5097 = vmatprep.subr.mxu0 0.0
    %5098 = vmatpush1.msra.mxu0 0.0
    %5099 = vmatprep.subr.mxu0 0.0
    %5100 = vmatpush1.msra.mxu0 0.0
    %5101 = vmatprep.subr.mxu0 0.0
    %5102 = vmatpush1.msra.mxu0 0.0
    %5103 = vmatprep.subr.mxu0 0.0
    %5104 = vmatpush1.msra.mxu0 %v3187
    %5105 = vmatprep.subr.mxu0 0.0
    %5106 = vmatpush2.msra.mxu0 0.0
    %5107 = vmatprep.subr.mxu0 0.0
    %5108 = vmatpush2.msra.mxu0 0.0
    %5109 = vmatprep.subr.mxu0 0.0
    %5110 = vmatpush2.msra.mxu0 0.0
    %5111 = vmatprep.subr.mxu0 0.0
    %5112 = vmatpush2.msra.mxu0 0.0
    %5113 = vmatprep.subr.mxu0 0.0
    %5114 = vmatpush2.msra.mxu0 0.0
    %5115 = vmatprep.subr.mxu0 0.0
    %5116 = vmatpush2.msra.mxu0 0.0
    %5117 = vmatprep.subr.mxu0 0.0
    %5118 = vmatpush2.msra.mxu0 0.0
    %5119 = vmatprep.subr.mxu0 0.0
    %5120 = vmatpush2.msra.mxu0 0.0
    %5121 = vmatprep.subr.mxu0 0.0
    %5122 = vmatpush2.msra.mxu0 0.0
    %5123 = vmatprep.subr.mxu0 0.0
    %5124 = vmatpush2.msra.mxu0 0.0
    %5125 = vmatprep.subr.mxu0 0.0
    %5126 = vmatpush2.msra.mxu0 0.0
    %5127 = vmatprep.subr.mxu0 0.0
    %5128 = vmatpush2.msra.mxu0 0.0
    %5129 = vmatprep.subr.mxu0 0.0
    %5130 = vmatpush2.msra.mxu0 0.0
    %5131 = vmatprep.subr.mxu0 0.0
    %5132 = vmatpush2.msra.mxu0 0.0
    %5133 = vmatprep.subr.mxu0 0.0
    %5134 = vmatpush2.msra.mxu0 0.0
    %5135 = vmatprep.subr.mxu0 0.0
    %5136 = vmatpush2.msra.mxu0 0.0
    %5137 = vmatprep.mubr.f32.mxu0 0.0
    %5138 = vmatmul.mubr.f32.gmra.mxu0 %v5068
    %v5139 = vpop.f32.mrf.mxu0
    %v5140 = vadd.f32 0.0, %v5139
    %v5141 = vpop.f32.mrf.mxu0
    %5142 = vmatprep.mubr.f32.mxu0 0.0
    %5143 = vmatmul.mubr.f32.gmra.mxu0 %v5071
    %v5144 = vpop.f32.mrf.mxu0
    %v5145 = vadd.f32 0.0, %v5144
    %v5146 = vpop.f32.mrf.mxu0
    %5147 = vdwg.mxu0
    %v5148 = vadd.f32 %v4494, %v5140
    %v5149 = vadd.f32 %v4499, %v5145
    %v5151 = vlaneseq
    %v5152 = vshrl.u32 %v5151, 7
    %v5153 = vsub.s32 0, %v5152
    %v5154 = vrot.slane %v3193, %v5153
    %5156 = vmatprep.subr.mxu0 0.0
    %5157 = vmatpush1.msra.mxu0 0.0
    %5158 = vmatprep.subr.mxu0 0.0
    %5159 = vmatpush1.msra.mxu0 0.0
    %5160 = vmatprep.subr.mxu0 0.0
    %5161 = vmatpush1.msra.mxu0 0.0
    %5162 = vmatprep.subr.mxu0 0.0
    %5163 = vmatpush1.msra.mxu0 0.0
    %5164 = vmatprep.subr.mxu0 0.0
    %5165 = vmatpush1.msra.mxu0 0.0
    %5166 = vmatprep.subr.mxu0 0.0
    %5167 = vmatpush1.msra.mxu0 0.0
    %5168 = vmatprep.subr.mxu0 0.0
    %5169 = vmatpush1.msra.mxu0 0.0
    %5170 = vmatprep.subr.mxu0 0.0
    %5171 = vmatpush1.msra.mxu0 0.0
    %5172 = vmatprep.subr.mxu0 0.0
    %5173 = vmatpush1.msra.mxu0 0.0
    %5174 = vmatprep.subr.mxu0 0.0
    %5175 = vmatpush1.msra.mxu0 0.0
    %5176 = vmatprep.subr.mxu0 0.0
    %5177 = vmatpush1.msra.mxu0 0.0
    %5178 = vmatprep.subr.mxu0 0.0
    %5179 = vmatpush1.msra.mxu0 0.0
    %5180 = vmatprep.subr.mxu0 0.0
    %5181 = vmatpush1.msra.mxu0 %v3149
    %5182 = vmatprep.subr.mxu0 0.0
    %5183 = vmatpush1.msra.mxu0 %v3148
    %5184 = vmatprep.subr.mxu0 0.0
    %5185 = vmatpush1.msra.mxu0 %v3147
    %5186 = vmatprep.subr.mxu0 0.0
    %5187 = vmatpush1.msra.mxu0 %v3146
    %5188 = vmatprep.subr.mxu0 0.0
    %5189 = vmatpush2.msra.mxu0 0.0
    %5190 = vmatprep.subr.mxu0 0.0
    %5191 = vmatpush2.msra.mxu0 0.0
    %5192 = vmatprep.subr.mxu0 0.0
    %5193 = vmatpush2.msra.mxu0 0.0
    %5194 = vmatprep.subr.mxu0 0.0
    %5195 = vmatpush2.msra.mxu0 0.0
    %5196 = vmatprep.subr.mxu0 0.0
    %5197 = vmatpush2.msra.mxu0 0.0
    %5198 = vmatprep.subr.mxu0 0.0
    %5199 = vmatpush2.msra.mxu0 0.0
    %5200 = vmatprep.subr.mxu0 0.0
    %5201 = vmatpush2.msra.mxu0 0.0
    %5202 = vmatprep.subr.mxu0 0.0
    %5203 = vmatpush2.msra.mxu0 0.0
    %5204 = vmatprep.subr.mxu0 0.0
    %5205 = vmatpush2.msra.mxu0 0.0
    %5206 = vmatprep.subr.mxu0 0.0
    %5207 = vmatpush2.msra.mxu0 0.0
    %5208 = vmatprep.subr.mxu0 0.0
    %5209 = vmatpush2.msra.mxu0 0.0
    %5210 = vmatprep.subr.mxu0 0.0
    %5211 = vmatpush2.msra.mxu0 0.0
    %5212 = vmatprep.subr.mxu0 0.0
    %5213 = vmatpush2.msra.mxu0 0.0
    %5214 = vmatprep.subr.mxu0 0.0
    %5215 = vmatpush2.msra.mxu0 0.0
    %5216 = vmatprep.subr.mxu0 0.0
    %5217 = vmatpush2.msra.mxu0 0.0
    %5218 = vmatprep.subr.mxu0 0.0
    %5219 = vmatpush2.msra.mxu0 0.0
    %5220 = vmatprep.mubr.f32.mxu0 0.0
    %5221 = vmatmul.mubr.f32.gmra.mxu0 %v3211
    %v5222 = vpop.f32.mrf.mxu0
    %v5223 = vadd.f32 %v5154, %v5222
    %v5224 = vpop.f32.mrf.mxu0
    %5225 = vmatprep.mubr.f32.mxu0 0.0
    %5226 = vmatmul.mubr.f32.gmra.mxu0 %v3214
    %v5227 = vpop.f32.mrf.mxu0
    %v5228 = vadd.f32 %v5154, %v5227
    %v5229 = vpop.f32.mrf.mxu0
    %5230 = vdwg.mxu0
    %v5232 = vlaneseq
    %v5233 = vshrl.u32 %v5232, 7
    %v5234 = vsub.s32 0, %v5233
    %v5235 = vrot.slane %v3198, %v5234
    %5237 = vmatprep.subr.mxu0 0.0
    %5238 = vmatpush1.msra.mxu0 0.0
    %5239 = vmatprep.subr.mxu0 0.0
    %5240 = vmatpush1.msra.mxu0 0.0
    %5241 = vmatprep.subr.mxu0 0.0
    %5242 = vmatpush1.msra.mxu0 0.0
    %5243 = vmatprep.subr.mxu0 0.0
    %5244 = vmatpush1.msra.mxu0 0.0
    %5245 = vmatprep.subr.mxu0 0.0
    %5246 = vmatpush1.msra.mxu0 0.0
    %5247 = vmatprep.subr.mxu0 0.0
    %5248 = vmatpush1.msra.mxu0 0.0
    %5249 = vmatprep.subr.mxu0 0.0
    %5250 = vmatpush1.msra.mxu0 0.0
    %5251 = vmatprep.subr.mxu0 0.0
    %5252 = vmatpush1.msra.mxu0 0.0
    %5253 = vmatprep.subr.mxu0 0.0
    %5254 = vmatpush1.msra.mxu0 0.0
    %5255 = vmatprep.subr.mxu0 0.0
    %5256 = vmatpush1.msra.mxu0 0.0
    %5257 = vmatprep.subr.mxu0 0.0
    %5258 = vmatpush1.msra.mxu0 0.0
    %5259 = vmatprep.subr.mxu0 0.0
    %5260 = vmatpush1.msra.mxu0 0.0
    %5261 = vmatprep.subr.mxu0 0.0
    %5262 = vmatpush1.msra.mxu0 %v3166
    %5263 = vmatprep.subr.mxu0 0.0
    %5264 = vmatpush1.msra.mxu0 %v3165
    %5265 = vmatprep.subr.mxu0 0.0
    %5266 = vmatpush1.msra.mxu0 %v3164
    %5267 = vmatprep.subr.mxu0 0.0
    %5268 = vmatpush1.msra.mxu0 %v3163
    %5269 = vmatprep.subr.mxu0 0.0
    %5270 = vmatpush2.msra.mxu0 0.0
    %5271 = vmatprep.subr.mxu0 0.0
    %5272 = vmatpush2.msra.mxu0 0.0
    %5273 = vmatprep.subr.mxu0 0.0
    %5274 = vmatpush2.msra.mxu0 0.0
    %5275 = vmatprep.subr.mxu0 0.0
    %5276 = vmatpush2.msra.mxu0 0.0
    %5277 = vmatprep.subr.mxu0 0.0
    %5278 = vmatpush2.msra.mxu0 0.0
    %5279 = vmatprep.subr.mxu0 0.0
    %5280 = vmatpush2.msra.mxu0 0.0
    %5281 = vmatprep.subr.mxu0 0.0
    %5282 = vmatpush2.msra.mxu0 0.0
    %5283 = vmatprep.subr.mxu0 0.0
    %5284 = vmatpush2.msra.mxu0 0.0
    %5285 = vmatprep.subr.mxu0 0.0
    %5286 = vmatpush2.msra.mxu0 0.0
    %5287 = vmatprep.subr.mxu0 0.0
    %5288 = vmatpush2.msra.mxu0 0.0
    %5289 = vmatprep.subr.mxu0 0.0
    %5290 = vmatpush2.msra.mxu0 0.0
    %5291 = vmatprep.subr.mxu0 0.0
    %5292 = vmatpush2.msra.mxu0 0.0
    %5293 = vmatprep.subr.mxu0 0.0
    %5294 = vmatpush2.msra.mxu0 0.0
    %5295 = vmatprep.subr.mxu0 0.0
    %5296 = vmatpush2.msra.mxu0 0.0
    %5297 = vmatprep.subr.mxu0 0.0
    %5298 = vmatpush2.msra.mxu0 0.0
    %5299 = vmatprep.subr.mxu0 0.0
    %5300 = vmatpush2.msra.mxu0 0.0
    %5301 = vmatprep.mubr.f32.mxu0 0.0
    %5302 = vmatmul.mubr.f32.gmra.mxu0 %v3211
    %v5303 = vpop.f32.mrf.mxu0
    %v5304 = vadd.f32 %v5235, %v5303
    %v5305 = vpop.f32.mrf.mxu0
    %5306 = vmatprep.mubr.f32.mxu0 0.0
    %5307 = vmatmul.mubr.f32.gmra.mxu0 %v3214
    %v5308 = vpop.f32.mrf.mxu0
    %v5309 = vadd.f32 %v5235, %v5308
    %v5310 = vpop.f32.mrf.mxu0
    %5311 = vdwg.mxu0
    %v5313 = vlaneseq
    %v5314 = vshrl.u32 %v5313, 7
    %v5315 = vsub.s32 0, %v5314
    %v5316 = vrot.slane %v3203, %v5315
    %5318 = vmatprep.subr.mxu0 0.0
    %5319 = vmatpush1.msra.mxu0 0.0
    %5320 = vmatprep.subr.mxu0 0.0
    %5321 = vmatpush1.msra.mxu0 0.0
    %5322 = vmatprep.subr.mxu0 0.0
    %5323 = vmatpush1.msra.mxu0 0.0
    %5324 = vmatprep.subr.mxu0 0.0
    %5325 = vmatpush1.msra.mxu0 0.0
    %5326 = vmatprep.subr.mxu0 0.0
    %5327 = vmatpush1.msra.mxu0 0.0
    %5328 = vmatprep.subr.mxu0 0.0
    %5329 = vmatpush1.msra.mxu0 0.0
    %5330 = vmatprep.subr.mxu0 0.0
    %5331 = vmatpush1.msra.mxu0 0.0
    %5332 = vmatprep.subr.mxu0 0.0
    %5333 = vmatpush1.msra.mxu0 0.0
    %5334 = vmatprep.subr.mxu0 0.0
    %5335 = vmatpush1.msra.mxu0 0.0
    %5336 = vmatprep.subr.mxu0 0.0
    %5337 = vmatpush1.msra.mxu0 0.0
    %5338 = vmatprep.subr.mxu0 0.0
    %5339 = vmatpush1.msra.mxu0 0.0
    %5340 = vmatprep.subr.mxu0 0.0
    %5341 = vmatpush1.msra.mxu0 0.0
    %5342 = vmatprep.subr.mxu0 0.0
    %5343 = vmatpush1.msra.mxu0 %v3183
    %5344 = vmatprep.subr.mxu0 0.0
    %5345 = vmatpush1.msra.mxu0 %v3182
    %5346 = vmatprep.subr.mxu0 0.0
    %5347 = vmatpush1.msra.mxu0 %v3181
    %5348 = vmatprep.subr.mxu0 0.0
    %5349 = vmatpush1.msra.mxu0 %v3180
    %5350 = vmatprep.subr.mxu0 0.0
    %5351 = vmatpush2.msra.mxu0 0.0
    %5352 = vmatprep.subr.mxu0 0.0
    %5353 = vmatpush2.msra.mxu0 0.0
    %5354 = vmatprep.subr.mxu0 0.0
    %5355 = vmatpush2.msra.mxu0 0.0
    %5356 = vmatprep.subr.mxu0 0.0
    %5357 = vmatpush2.msra.mxu0 0.0
    %5358 = vmatprep.subr.mxu0 0.0
    %5359 = vmatpush2.msra.mxu0 0.0
    %5360 = vmatprep.subr.mxu0 0.0
    %5361 = vmatpush2.msra.mxu0 0.0
    %5362 = vmatprep.subr.mxu0 0.0
    %5363 = vmatpush2.msra.mxu0 0.0
    %5364 = vmatprep.subr.mxu0 0.0
    %5365 = vmatpush2.msra.mxu0 0.0
    %5366 = vmatprep.subr.mxu0 0.0
    %5367 = vmatpush2.msra.mxu0 0.0
    %5368 = vmatprep.subr.mxu0 0.0
    %5369 = vmatpush2.msra.mxu0 0.0
    %5370 = vmatprep.subr.mxu0 0.0
    %5371 = vmatpush2.msra.mxu0 0.0
    %5372 = vmatprep.subr.mxu0 0.0
    %5373 = vmatpush2.msra.mxu0 0.0
    %5374 = vmatprep.subr.mxu0 0.0
    %5375 = vmatpush2.msra.mxu0 0.0
    %5376 = vmatprep.subr.mxu0 0.0
    %5377 = vmatpush2.msra.mxu0 0.0
    %5378 = vmatprep.subr.mxu0 0.0
    %5379 = vmatpush2.msra.mxu0 0.0
    %5380 = vmatprep.subr.mxu0 0.0
    %5381 = vmatpush2.msra.mxu0 0.0
    %5382 = vmatprep.mubr.f32.mxu0 0.0
    %5383 = vmatmul.mubr.f32.gmra.mxu0 %v3211
    %v5384 = vpop.f32.mrf.mxu0
    %v5385 = vadd.f32 %v5316, %v5384
    %v5386 = vpop.f32.mrf.mxu0
    %5387 = vmatprep.mubr.f32.mxu0 0.0
    %5388 = vmatmul.mubr.f32.gmra.mxu0 %v3214
    %v5389 = vpop.f32.mrf.mxu0
    %v5390 = vadd.f32 %v5316, %v5389
    %v5391 = vpop.f32.mrf.mxu0
    %5392 = vdwg.mxu0
    %v5394 = vsel %vm437, %v5223, 0
    %v5397 = vsel %vm437, %v5304, 0
    %5399 = vmatprep.subr.mxu0 0.0
    %5400 = vmatpush1.xpose.msra.mxu0 0.0
    %5401 = vmatprep.subr.mxu0 0.0
    %5402 = vmatpush1.xpose.msra.mxu0 0.0
    %5403 = vmatprep.subr.mxu0 0.0
    %5404 = vmatpush1.xpose.msra.mxu0 0.0
    %5405 = vmatprep.subr.mxu0 0.0
    %5406 = vmatpush1.xpose.msra.mxu0 0.0
    %5407 = vmatprep.subr.mxu0 0.0
    %5408 = vmatpush1.xpose.msra.mxu0 0.0
    %5409 = vmatprep.subr.mxu0 0.0
    %5410 = vmatpush1.xpose.msra.mxu0 0.0
    %5411 = vmatprep.subr.mxu0 0.0
    %5412 = vmatpush1.xpose.msra.mxu0 0.0
    %5413 = vmatprep.subr.mxu0 0.0
    %5414 = vmatpush1.xpose.msra.mxu0 0.0
    %5415 = vmatprep.subr.mxu0 0.0
    %5416 = vmatpush1.xpose.msra.mxu0 0.0
    %5417 = vmatprep.subr.mxu0 0.0
    %5418 = vmatpush1.xpose.msra.mxu0 0.0
    %5419 = vmatprep.subr.mxu0 0.0
    %5420 = vmatpush1.xpose.msra.mxu0 0.0
    %5421 = vmatprep.subr.mxu0 0.0
    %5422 = vmatpush1.xpose.msra.mxu0 0.0
    %5423 = vmatprep.subr.mxu0 0.0
    %5424 = vmatpush1.xpose.msra.mxu0 0.0
    %5425 = vmatprep.subr.mxu0 0.0
    %5426 = vmatpush1.xpose.msra.mxu0 0.0
    %5427 = vmatprep.subr.mxu0 0.0
    %5428 = vmatpush1.xpose.msra.mxu0 0.0
    %5429 = vmatprep.subr.mxu0 0.0
    %5430 = vmatpush1.xpose.msra.mxu0 %v5397
    %5431 = vmatprep.subr.mxu0 0.0
    %5432 = vmatpush2.xpose.msra.mxu0 0.0
    %5433 = vmatprep.subr.mxu0 0.0
    %5434 = vmatpush2.xpose.msra.mxu0 0.0
    %5435 = vmatprep.subr.mxu0 0.0
    %5436 = vmatpush2.xpose.msra.mxu0 0.0
    %5437 = vmatprep.subr.mxu0 0.0
    %5438 = vmatpush2.xpose.msra.mxu0 0.0
    %5439 = vmatprep.subr.mxu0 0.0
    %5440 = vmatpush2.xpose.msra.mxu0 0.0
    %5441 = vmatprep.subr.mxu0 0.0
    %5442 = vmatpush2.xpose.msra.mxu0 0.0
    %5443 = vmatprep.subr.mxu0 0.0
    %5444 = vmatpush2.xpose.msra.mxu0 0.0
    %5445 = vmatprep.subr.mxu0 0.0
    %5446 = vmatpush2.xpose.msra.mxu0 0.0
    %5447 = vmatprep.subr.mxu0 0.0
    %5448 = vmatpush2.xpose.msra.mxu0 0.0
    %5449 = vmatprep.subr.mxu0 0.0
    %5450 = vmatpush2.xpose.msra.mxu0 0.0
    %5451 = vmatprep.subr.mxu0 0.0
    %5452 = vmatpush2.xpose.msra.mxu0 0.0
    %5453 = vmatprep.subr.mxu0 0.0
    %5454 = vmatpush2.xpose.msra.mxu0 0.0
    %5455 = vmatprep.subr.mxu0 0.0
    %5456 = vmatpush2.xpose.msra.mxu0 0.0
    %5457 = vmatprep.subr.mxu0 0.0
    %5458 = vmatpush2.xpose.msra.mxu0 0.0
    %5459 = vmatprep.subr.mxu0 0.0
    %5460 = vmatpush2.xpose.msra.mxu0 0.0
    %5461 = vmatprep.subr.mxu0 0.0
    %5462 = vmatpush2.xpose.msra.mxu0 0.0
    %5463 = vmatprep.mubr.f32.mxu0 0.0
    %5464 = vmatmul.mubr.f32.gmra.mxu0 %v5394
    %v5465 = vpop.f32.mrf.mxu0
    %v5466 = vadd.f32 0.0, %v5465
    %v5467 = vpop.f32.mrf.mxu0
    %5468 = vdwg.mxu0
    %v5470 = vsel %vm437, %v5228, 0
    %v5473 = vsel %vm437, %v5309, 0
    %5475 = vmatprep.subr.mxu0 0.0
    %5476 = vmatpush1.xpose.msra.mxu0 0.0
    %5477 = vmatprep.subr.mxu0 0.0
    %5478 = vmatpush1.xpose.msra.mxu0 0.0
    %5479 = vmatprep.subr.mxu0 0.0
    %5480 = vmatpush1.xpose.msra.mxu0 0.0
    %5481 = vmatprep.subr.mxu0 0.0
    %5482 = vmatpush1.xpose.msra.mxu0 0.0
    %5483 = vmatprep.subr.mxu0 0.0
    %5484 = vmatpush1.xpose.msra.mxu0 0.0
    %5485 = vmatprep.subr.mxu0 0.0
    %5486 = vmatpush1.xpose.msra.mxu0 0.0
    %5487 = vmatprep.subr.mxu0 0.0
    %5488 = vmatpush1.xpose.msra.mxu0 0.0
    %5489 = vmatprep.subr.mxu0 0.0
    %5490 = vmatpush1.xpose.msra.mxu0 0.0
    %5491 = vmatprep.subr.mxu0 0.0
    %5492 = vmatpush1.xpose.msra.mxu0 0.0
    %5493 = vmatprep.subr.mxu0 0.0
    %5494 = vmatpush1.xpose.msra.mxu0 0.0
    %5495 = vmatprep.subr.mxu0 0.0
    %5496 = vmatpush1.xpose.msra.mxu0 0.0
    %5497 = vmatprep.subr.mxu0 0.0
    %5498 = vmatpush1.xpose.msra.mxu0 0.0
    %5499 = vmatprep.subr.mxu0 0.0
    %5500 = vmatpush1.xpose.msra.mxu0 0.0
    %5501 = vmatprep.subr.mxu0 0.0
    %5502 = vmatpush1.xpose.msra.mxu0 0.0
    %5503 = vmatprep.subr.mxu0 0.0
    %5504 = vmatpush1.xpose.msra.mxu0 0.0
    %5505 = vmatprep.subr.mxu0 0.0
    %5506 = vmatpush1.xpose.msra.mxu0 %v5473
    %5507 = vmatprep.subr.mxu0 0.0
    %5508 = vmatpush2.xpose.msra.mxu0 0.0
    %5509 = vmatprep.subr.mxu0 0.0
    %5510 = vmatpush2.xpose.msra.mxu0 0.0
    %5511 = vmatprep.subr.mxu0 0.0
    %5512 = vmatpush2.xpose.msra.mxu0 0.0
    %5513 = vmatprep.subr.mxu0 0.0
    %5514 = vmatpush2.xpose.msra.mxu0 0.0
    %5515 = vmatprep.subr.mxu0 0.0
    %5516 = vmatpush2.xpose.msra.mxu0 0.0
    %5517 = vmatprep.subr.mxu0 0.0
    %5518 = vmatpush2.xpose.msra.mxu0 0.0
    %5519 = vmatprep.subr.mxu0 0.0
    %5520 = vmatpush2.xpose.msra.mxu0 0.0
    %5521 = vmatprep.subr.mxu0 0.0
    %5522 = vmatpush2.xpose.msra.mxu0 0.0
    %5523 = vmatprep.subr.mxu0 0.0
    %5524 = vmatpush2.xpose.msra.mxu0 0.0
    %5525 = vmatprep.subr.mxu0 0.0
    %5526 = vmatpush2.xpose.msra.mxu0 0.0
    %5527 = vmatprep.subr.mxu0 0.0
    %5528 = vmatpush2.xpose.msra.mxu0 0.0
    %5529 = vmatprep.subr.mxu0 0.0
    %5530 = vmatpush2.xpose.msra.mxu0 0.0
    %5531 = vmatprep.subr.mxu0 0.0
    %5532 = vmatpush2.xpose.msra.mxu0 0.0
    %5533 = vmatprep.subr.mxu0 0.0
    %5534 = vmatpush2.xpose.msra.mxu0 0.0
    %5535 = vmatprep.subr.mxu0 0.0
    %5536 = vmatpush2.xpose.msra.mxu0 0.0
    %5537 = vmatprep.subr.mxu0 0.0
    %5538 = vmatpush2.xpose.msra.mxu0 0.0
    %5539 = vmatprep.mubr.f32.mxu0 0.0
    %5540 = vmatmul.mubr.f32.gmra.mxu0 %v5470
    %v5541 = vpop.f32.mrf.mxu0
    %v5542 = vadd.f32 0.0, %v5541
    %v5543 = vpop.f32.mrf.mxu0
    %5544 = vdwg.mxu0
    %v5545 = vmul.f32 %v5466, 0.35355338
    %v5546 = vmul.f32 %v5542, 0.35355338
    %v5547 = vsel %vm437, %v5545, -inf
    %5548 = vmax.xlane.f32.xlu0 %v5547
    %v5549 = vpop.xlane.xlu0 %5548
    %v5550 = vsel %vm437, %v5546, -inf
    %5551 = vmax.xlane.f32.xlu0 %v5550
    %v5552 = vpop.xlane.xlu0 %5551
    %v5553 = vsub.f32 %v5545, %v5549
    %v5554 = vsub.f32 %v5546, %v5552
    %v5555 = vmul.f32 %v5553, 1.442695
    %v5556 = vpow.pop %v5555
    %v5557 = vmul.f32 %v5554, 1.442695
    %v5558 = vpow.pop %v5557
    %v5559 = vsel %vm437, %v5556, 0.0
    %5560 = vadd.xlane.f32.xlu0 %v5559
    %v5561 = vpop.xlane.xlu0 %5560
    %v5562 = vsel %vm437, %v5558, 0.0
    %5563 = vadd.xlane.f32.xlu0 %v5562
    %v5564 = vpop.xlane.xlu0 %5563
    %v5565 = vrcp.pop %v5561
    %v5566 = vrcp.pop %v5564
    %v5567 = vmul.f32 %v5556, %v5565
    %v5568 = vmul.f32 %v5558, %v5566
    %v5570 = vsel %vm437, %v5567, 0
    %5572 = vmatprep.subr.mxu0 0.0
    %5573 = vmatpush1.msra.mxu0 0.0
    %5574 = vmatprep.subr.mxu0 0.0
    %5575 = vmatpush1.msra.mxu0 0.0
    %5576 = vmatprep.subr.mxu0 0.0
    %5577 = vmatpush1.msra.mxu0 0.0
    %5578 = vmatprep.subr.mxu0 0.0
    %5579 = vmatpush1.msra.mxu0 0.0
    %5580 = vmatprep.subr.mxu0 0.0
    %5581 = vmatpush1.msra.mxu0 0.0
    %5582 = vmatprep.subr.mxu0 0.0
    %5583 = vmatpush1.msra.mxu0 0.0
    %5584 = vmatprep.subr.mxu0 0.0
    %5585 = vmatpush1.msra.mxu0 0.0
    %5586 = vmatprep.subr.mxu0 0.0
    %5587 = vmatpush1.msra.mxu0 0.0
    %5588 = vmatprep.subr.mxu0 0.0
    %5589 = vmatpush1.msra.mxu0 0.0
    %5590 = vmatprep.subr.mxu0 0.0
    %5591 = vmatpush1.msra.mxu0 0.0
    %5592 = vmatprep.subr.mxu0 0.0
    %5593 = vmatpush1.msra.mxu0 0.0
    %5594 = vmatprep.subr.mxu0 0.0
    %5595 = vmatpush1.msra.mxu0 0.0
    %5596 = vmatprep.subr.mxu0 0.0
    %5597 = vmatpush1.msra.mxu0 0.0
    %5598 = vmatprep.subr.mxu0 0.0
    %5599 = vmatpush1.msra.mxu0 0.0
    %5600 = vmatprep.subr.mxu0 0.0
    %5601 = vmatpush1.msra.mxu0 0.0
    %5602 = vmatprep.subr.mxu0 0.0
    %5603 = vmatpush1.msra.mxu0 %v5385
    %5604 = vmatprep.subr.mxu0 0.0
    %5605 = vmatpush2.msra.mxu0 0.0
    %5606 = vmatprep.subr.mxu0 0.0
    %5607 = vmatpush2.msra.mxu0 0.0
    %5608 = vmatprep.subr.mxu0 0.0
    %5609 = vmatpush2.msra.mxu0 0.0
    %5610 = vmatprep.subr.mxu0 0.0
    %5611 = vmatpush2.msra.mxu0 0.0
    %5612 = vmatprep.subr.mxu0 0.0
    %5613 = vmatpush2.msra.mxu0 0.0
    %5614 = vmatprep.subr.mxu0 0.0
    %5615 = vmatpush2.msra.mxu0 0.0
    %5616 = vmatprep.subr.mxu0 0.0
    %5617 = vmatpush2.msra.mxu0 0.0
    %5618 = vmatprep.subr.mxu0 0.0
    %5619 = vmatpush2.msra.mxu0 0.0
    %5620 = vmatprep.subr.mxu0 0.0
    %5621 = vmatpush2.msra.mxu0 0.0
    %5622 = vmatprep.subr.mxu0 0.0
    %5623 = vmatpush2.msra.mxu0 0.0
    %5624 = vmatprep.subr.mxu0 0.0
    %5625 = vmatpush2.msra.mxu0 0.0
    %5626 = vmatprep.subr.mxu0 0.0
    %5627 = vmatpush2.msra.mxu0 0.0
    %5628 = vmatprep.subr.mxu0 0.0
    %5629 = vmatpush2.msra.mxu0 0.0
    %5630 = vmatprep.subr.mxu0 0.0
    %5631 = vmatpush2.msra.mxu0 0.0
    %5632 = vmatprep.subr.mxu0 0.0
    %5633 = vmatpush2.msra.mxu0 0.0
    %5634 = vmatprep.subr.mxu0 0.0
    %5635 = vmatpush2.msra.mxu0 0.0
    %5636 = vmatprep.mubr.f32.mxu0 0.0
    %5637 = vmatmul.mubr.f32.gmra.mxu0 %v5570
    %v5638 = vpop.f32.mrf.mxu0
    %v5639 = vadd.f32 0.0, %v5638
    %v5640 = vpop.f32.mrf.mxu0
    %5641 = vdwg.mxu0
    %v5643 = vsel %vm437, %v5568, 0
    %5645 = vmatprep.subr.mxu0 0.0
    %5646 = vmatpush1.msra.mxu0 0.0
    %5647 = vmatprep.subr.mxu0 0.0
    %5648 = vmatpush1.msra.mxu0 0.0
    %5649 = vmatprep.subr.mxu0 0.0
    %5650 = vmatpush1.msra.mxu0 0.0
    %5651 = vmatprep.subr.mxu0 0.0
    %5652 = vmatpush1.msra.mxu0 0.0
    %5653 = vmatprep.subr.mxu0 0.0
    %5654 = vmatpush1.msra.mxu0 0.0
    %5655 = vmatprep.subr.mxu0 0.0
    %5656 = vmatpush1.msra.mxu0 0.0
    %5657 = vmatprep.subr.mxu0 0.0
    %5658 = vmatpush1.msra.mxu0 0.0
    %5659 = vmatprep.subr.mxu0 0.0
    %5660 = vmatpush1.msra.mxu0 0.0
    %5661 = vmatprep.subr.mxu0 0.0
    %5662 = vmatpush1.msra.mxu0 0.0
    %5663 = vmatprep.subr.mxu0 0.0
    %5664 = vmatpush1.msra.mxu0 0.0
    %5665 = vmatprep.subr.mxu0 0.0
    %5666 = vmatpush1.msra.mxu0 0.0
    %5667 = vmatprep.subr.mxu0 0.0
    %5668 = vmatpush1.msra.mxu0 0.0
    %5669 = vmatprep.subr.mxu0 0.0
    %5670 = vmatpush1.msra.mxu0 0.0
    %5671 = vmatprep.subr.mxu0 0.0
    %5672 = vmatpush1.msra.mxu0 0.0
    %5673 = vmatprep.subr.mxu0 0.0
    %5674 = vmatpush1.msra.mxu0 0.0
    %5675 = vmatprep.subr.mxu0 0.0
    %5676 = vmatpush1.msra.mxu0 %v5390
    %5677 = vmatprep.subr.mxu0 0.0
    %5678 = vmatpush2.msra.mxu0 0.0
    %5679 = vmatprep.subr.mxu0 0.0
    %5680 = vmatpush2.msra.mxu0 0.0
    %5681 = vmatprep.subr.mxu0 0.0
    %5682 = vmatpush2.msra.mxu0 0.0
    %5683 = vmatprep.subr.mxu0 0.0
    %5684 = vmatpush2.msra.mxu0 0.0
    %5685 = vmatprep.subr.mxu0 0.0
    %5686 = vmatpush2.msra.mxu0 0.0
    %5687 = vmatprep.subr.mxu0 0.0
    %5688 = vmatpush2.msra.mxu0 0.0
    %5689 = vmatprep.subr.mxu0 0.0
    %5690 = vmatpush2.msra.mxu0 0.0
    %5691 = vmatprep.subr.mxu0 0.0
    %5692 = vmatpush2.msra.mxu0 0.0
    %5693 = vmatprep.subr.mxu0 0.0
    %5694 = vmatpush2.msra.mxu0 0.0
    %5695 = vmatprep.subr.mxu0 0.0
    %5696 = vmatpush2.msra.mxu0 0.0
    %5697 = vmatprep.subr.mxu0 0.0
    %5698 = vmatpush2.msra.mxu0 0.0
    %5699 = vmatprep.subr.mxu0 0.0
    %5700 = vmatpush2.msra.mxu0 0.0
    %5701 = vmatprep.subr.mxu0 0.0
    %5702 = vmatpush2.msra.mxu0 0.0
    %5703 = vmatprep.subr.mxu0 0.0
    %5704 = vmatpush2.msra.mxu0 0.0
    %5705 = vmatprep.subr.mxu0 0.0
    %5706 = vmatpush2.msra.mxu0 0.0
    %5707 = vmatprep.subr.mxu0 0.0
    %5708 = vmatpush2.msra.mxu0 0.0
    %5709 = vmatprep.mubr.f32.mxu0 0.0
    %5710 = vmatmul.mubr.f32.gmra.mxu0 %v5643
    %v5711 = vpop.f32.mrf.mxu0
    %v5712 = vadd.f32 0.0, %v5711
    %v5713 = vpop.f32.mrf.mxu0
    %5714 = vdwg.mxu0
    %v5716 = vsel %vm437, %v5639, 0
    %v5719 = vsel %vm437, %v5712, 0
    %5721 = vmatprep.subr.mxu0 0.0
    %5722 = vmatpush1.msra.mxu0 0.0
    %5723 = vmatprep.subr.mxu0 0.0
    %5724 = vmatpush1.msra.mxu0 0.0
    %5725 = vmatprep.subr.mxu0 0.0
    %5726 = vmatpush1.msra.mxu0 0.0
    %5727 = vmatprep.subr.mxu0 0.0
    %5728 = vmatpush1.msra.mxu0 0.0
    %5729 = vmatprep.subr.mxu0 0.0
    %5730 = vmatpush1.msra.mxu0 0.0
    %5731 = vmatprep.subr.mxu0 0.0
    %5732 = vmatpush1.msra.mxu0 0.0
    %5733 = vmatprep.subr.mxu0 0.0
    %5734 = vmatpush1.msra.mxu0 0.0
    %5735 = vmatprep.subr.mxu0 0.0
    %5736 = vmatpush1.msra.mxu0 0.0
    %5737 = vmatprep.subr.mxu0 0.0
    %5738 = vmatpush1.msra.mxu0 0.0
    %5739 = vmatprep.subr.mxu0 0.0
    %5740 = vmatpush1.msra.mxu0 0.0
    %5741 = vmatprep.subr.mxu0 0.0
    %5742 = vmatpush1.msra.mxu0 0.0
    %5743 = vmatprep.subr.mxu0 0.0
    %5744 = vmatpush1.msra.mxu0 0.0
    %5745 = vmatprep.subr.mxu0 0.0
    %5746 = vmatpush1.msra.mxu0 0.0
    %5747 = vmatprep.subr.mxu0 0.0
    %5748 = vmatpush1.msra.mxu0 0.0
    %5749 = vmatprep.subr.mxu0 0.0
    %5750 = vmatpush1.msra.mxu0 0.0
    %5751 = vmatprep.subr.mxu0 0.0
    %5752 = vmatpush1.msra.mxu0 %v3188
    %5753 = vmatprep.subr.mxu0 0.0
    %5754 = vmatpush2.msra.mxu0 0.0
    %5755 = vmatprep.subr.mxu0 0.0
    %5756 = vmatpush2.msra.mxu0 0.0
    %5757 = vmatprep.subr.mxu0 0.0
    %5758 = vmatpush2.msra.mxu0 0.0
    %5759 = vmatprep.subr.mxu0 0.0
    %5760 = vmatpush2.msra.mxu0 0.0
    %5761 = vmatprep.subr.mxu0 0.0
    %5762 = vmatpush2.msra.mxu0 0.0
    %5763 = vmatprep.subr.mxu0 0.0
    %5764 = vmatpush2.msra.mxu0 0.0
    %5765 = vmatprep.subr.mxu0 0.0
    %5766 = vmatpush2.msra.mxu0 0.0
    %5767 = vmatprep.subr.mxu0 0.0
    %5768 = vmatpush2.msra.mxu0 0.0
    %5769 = vmatprep.subr.mxu0 0.0
    %5770 = vmatpush2.msra.mxu0 0.0
    %5771 = vmatprep.subr.mxu0 0.0
    %5772 = vmatpush2.msra.mxu0 0.0
    %5773 = vmatprep.subr.mxu0 0.0
    %5774 = vmatpush2.msra.mxu0 0.0
    %5775 = vmatprep.subr.mxu0 0.0
    %5776 = vmatpush2.msra.mxu0 0.0
    %5777 = vmatprep.subr.mxu0 0.0
    %5778 = vmatpush2.msra.mxu0 0.0
    %5779 = vmatprep.subr.mxu0 0.0
    %5780 = vmatpush2.msra.mxu0 0.0
    %5781 = vmatprep.subr.mxu0 0.0
    %5782 = vmatpush2.msra.mxu0 0.0
    %5783 = vmatprep.subr.mxu0 0.0
    %5784 = vmatpush2.msra.mxu0 0.0
    %5785 = vmatprep.mubr.f32.mxu0 0.0
    %5786 = vmatmul.mubr.f32.gmra.mxu0 %v5716
    %v5787 = vpop.f32.mrf.mxu0
    %v5788 = vadd.f32 0.0, %v5787
    %v5789 = vpop.f32.mrf.mxu0
    %5790 = vmatprep.mubr.f32.mxu0 0.0
    %5791 = vmatmul.mubr.f32.gmra.mxu0 %v5719
    %v5792 = vpop.f32.mrf.mxu0
    %v5793 = vadd.f32 0.0, %v5792
    %v5794 = vpop.f32.mrf.mxu0
    %5795 = vdwg.mxu0
    %v5796 = vadd.f32 %v5148, %v5788
    %v5797 = vadd.f32 %v5149, %v5793
    %v5798 = vadd.f32 %v3085, %v5796
    %v5799 = vadd.f32 %v3086, %v5797
    %s5800 = scalar_lea.vmem %s11, 1
    %v5801 = vld [vmem:[%s5800] sm:$0x1]
    %v5803 = vlaneseq
    %v5804 = vshrl.u32 %v5803, 7
    %v5805 = vsub.s32 0, %v5804
    %v5806 = vrot.slane %v5801, %v5805
    %v5808 = vadd.f32 %v5798, %v5806
    %v5809 = vadd.f32 %v5799, %v5806
    %s5810 = scalar_lea.vmem %s12, 1
    %v5811 = vld [vmem:[%s5810] sm:$0x1]
    %s5812 = scalar_lea.vmem %s13, 1
    %v5813 = vld [vmem:[%s5812] sm:$0x1]
    %v5814 = vsel %vm80, %v5808, 0.0
    %5815 = vadd.xlane.f32.xlu0 %v5814
    %v5816 = vpop.xlane.xlu0 %5815
    %v5817 = vsel %vm80, %v5809, 0.0
    %5818 = vadd.xlane.f32.xlu0 %v5817
    %v5819 = vpop.xlane.xlu0 %5818
    %v5820 = vmul.f32 %v5816, %v87
    %v5821 = vmul.f32 %v5819, %v87
    %v5822 = vsub.f32 %v5808, %v5820
    %v5823 = vsub.f32 %v5809, %v5821
    %v5824 = vmul.f32 %v5822, %v5822
    %v5825 = vmul.f32 %v5823, %v5823
    %v5826 = vsel %vm80, %v5824, 0.0
    %5827 = vadd.xlane.f32.xlu0 %v5826
    %v5828 = vpop.xlane.xlu0 %5827
    %v5829 = vsel %vm80, %v5825, 0.0
    %5830 = vadd.xlane.f32.xlu0 %v5829
    %v5831 = vpop.xlane.xlu0 %5830
    %v5832 = vmul.f32 %v5828, %v87
    %v5833 = vmul.f32 %v5831, %v87
    %v5834 = vadd.f32 %v5832, 1e-05
    %v5835 = vadd.f32 %v5833, 1e-05
    %v5836 = vrsqrt.pop %v5834
    %v5837 = vrsqrt.pop %v5835
    %v5838 = vmul.f32 %v5822, %v5836
    %v5839 = vmul.f32 %v5823, %v5837
    %v5841 = vlaneseq
    %v5842 = vshrl.u32 %v5841, 7
    %v5843 = vsub.s32 0, %v5842
    %v5844 = vrot.slane %v5811, %v5843
    %v5846 = vmul.f32 %v5838, %v5844
    %v5847 = vmul.f32 %v5839, %v5844
    %v5849 = vlaneseq
    %v5850 = vshrl.u32 %v5849, 7
    %v5851 = vsub.s32 0, %v5850
    %v5852 = vrot.slane %v5813, %v5851
    %v5854 = vadd.f32 %v5846, %v5852
    %v5855 = vadd.f32 %v5847, %v5852
    %s5856 = scalar_lea.vmem %s14, 32
    %v5857 = vld [vmem:[%s5856] sm:$0xff]
    %v5858 = vld [vmem:[%s5856 + $0x8] sm:$0xff]
    %v5859 = vld [vmem:[%s5856 + $0x10] sm:$0xff]
    %v5860 = vld [vmem:[%s5856 + $0x18] sm:$0xff]
    %s5861 = scalar_lea.vmem %s15, 1
    %v5862 = vld [vmem:[%s5861] sm:$0x1]
    %v5864 = vlaneseq
    %v5865 = vshrl.u32 %v5864, 7
    %v5866 = vsub.s32 0, %v5865
    %v5867 = vrot.slane %v5862, %v5866
    %v5870 = vsel %vm80, %v5854, 0
    %v5873 = vsel %vm80, %v5855, 0
    %5875 = vmatprep.subr.mxu0 0.0
    %5876 = vmatpush1.msra.mxu0 0.0
    %5877 = vmatprep.subr.mxu0 0.0
    %5878 = vmatpush1.msra.mxu0 0.0
    %5879 = vmatprep.subr.mxu0 0.0
    %5880 = vmatpush1.msra.mxu0 0.0
    %5881 = vmatprep.subr.mxu0 0.0
    %5882 = vmatpush1.msra.mxu0 0.0
    %5883 = vmatprep.subr.mxu0 0.0
    %5884 = vmatpush1.msra.mxu0 0.0
    %5885 = vmatprep.subr.mxu0 0.0
    %5886 = vmatpush1.msra.mxu0 0.0
    %5887 = vmatprep.subr.mxu0 0.0
    %5888 = vmatpush1.msra.mxu0 0.0
    %5889 = vmatprep.subr.mxu0 0.0
    %5890 = vmatpush1.msra.mxu0 0.0
    %5891 = vmatprep.subr.mxu0 0.0
    %5892 = vmatpush1.msra.mxu0 0.0
    %5893 = vmatprep.subr.mxu0 0.0
    %5894 = vmatpush1.msra.mxu0 0.0
    %5895 = vmatprep.subr.mxu0 0.0
    %5896 = vmatpush1.msra.mxu0 0.0
    %5897 = vmatprep.subr.mxu0 0.0
    %5898 = vmatpush1.msra.mxu0 0.0
    %5899 = vmatprep.subr.mxu0 0.0
    %5900 = vmatpush1.msra.mxu0 %v5860
    %5901 = vmatprep.subr.mxu0 0.0
    %5902 = vmatpush1.msra.mxu0 %v5859
    %5903 = vmatprep.subr.mxu0 0.0
    %5904 = vmatpush1.msra.mxu0 %v5858
    %5905 = vmatprep.subr.mxu0 0.0
    %5906 = vmatpush1.msra.mxu0 %v5857
    %5907 = vmatprep.subr.mxu0 0.0
    %5908 = vmatpush2.msra.mxu0 0.0
    %5909 = vmatprep.subr.mxu0 0.0
    %5910 = vmatpush2.msra.mxu0 0.0
    %5911 = vmatprep.subr.mxu0 0.0
    %5912 = vmatpush2.msra.mxu0 0.0
    %5913 = vmatprep.subr.mxu0 0.0
    %5914 = vmatpush2.msra.mxu0 0.0
    %5915 = vmatprep.subr.mxu0 0.0
    %5916 = vmatpush2.msra.mxu0 0.0
    %5917 = vmatprep.subr.mxu0 0.0
    %5918 = vmatpush2.msra.mxu0 0.0
    %5919 = vmatprep.subr.mxu0 0.0
    %5920 = vmatpush2.msra.mxu0 0.0
    %5921 = vmatprep.subr.mxu0 0.0
    %5922 = vmatpush2.msra.mxu0 0.0
    %5923 = vmatprep.subr.mxu0 0.0
    %5924 = vmatpush2.msra.mxu0 0.0
    %5925 = vmatprep.subr.mxu0 0.0
    %5926 = vmatpush2.msra.mxu0 0.0
    %5927 = vmatprep.subr.mxu0 0.0
    %5928 = vmatpush2.msra.mxu0 0.0
    %5929 = vmatprep.subr.mxu0 0.0
    %5930 = vmatpush2.msra.mxu0 0.0
    %5931 = vmatprep.subr.mxu0 0.0
    %5932 = vmatpush2.msra.mxu0 0.0
    %5933 = vmatprep.subr.mxu0 0.0
    %5934 = vmatpush2.msra.mxu0 0.0
    %5935 = vmatprep.subr.mxu0 0.0
    %5936 = vmatpush2.msra.mxu0 0.0
    %5937 = vmatprep.subr.mxu0 0.0
    %5938 = vmatpush2.msra.mxu0 0.0
    %5939 = vmatprep.mubr.f32.mxu0 0.0
    %5940 = vmatmul.mubr.f32.gmra.mxu0 %v5870
    %v5941 = vpop.f32.mrf.mxu0
    %v5942 = vadd.f32 %v5867, %v5941
    %v5943 = vpop.f32.mrf.mxu0
    %5944 = vmatprep.mubr.f32.mxu0 0.0
    %5945 = vmatmul.mubr.f32.gmra.mxu0 %v5873
    %v5946 = vpop.f32.mrf.mxu0
    %v5947 = vadd.f32 %v5867, %v5946
    %v5948 = vpop.f32.mrf.mxu0
    %5949 = vdwg.mxu0
    %v5950 = vmul.f32 %v5942, 0.5
    %v5951 = vmul.f32 %v5947, 0.5
    %v5952 = vmul.f32 %v5942, 0.70710677
    %v5953 = vmul.f32 %v5947, 0.70710677
    %vm5954 = vcmp.lt.f32.partialorder %v5952, 0.0
    %vm5955 = vcmp.lt.f32.partialorder %v5953, 0.0
    %v5956 = vsub.f32 0.0, %v5952
    %v5957 = vsub.f32 0.0, %v5953
    %v5958 = vsel %vm5954, %v5956, %v5952
    %v5959 = vsel %vm5955, %v5957, %v5953
    %v5960 = vmul.f32 %v5958, 0.3275911
    %v5961 = vmul.f32 %v5959, 0.3275911
    %v5962 = vadd.f32 %v5960, 1.0
    %v5963 = vadd.f32 %v5961, 1.0
    %v5964 = vrcp.pop %v5962
    %v5965 = vmul.f32 1.0, %v5964
    %v5966 = vrcp.pop %v5963
    %v5967 = vmul.f32 1.0, %v5966
    %v5968 = vmul.f32 %v5965, 1.0614054
    %v5969 = vmul.f32 %v5967, 1.0614054
    %v5970 = vadd.f32 %v5968, -1.4531521
    %v5971 = vadd.f32 %v5969, -1.4531521
    %v5972 = vmul.f32 %v5970, %v5965
    %v5973 = vmul.f32 %v5971, %v5967
    %v5974 = vadd.f32 %v5972, 1.4214138
    %v5975 = vadd.f32 %v5973, 1.4214138
    %v5976 = vmul.f32 %v5974, %v5965
    %v5977 = vmul.f32 %v5975, %v5967
    %v5978 = vadd.f32 %v5976, -0.28449672
    %v5979 = vadd.f32 %v5977, -0.28449672
    %v5980 = vmul.f32 %v5978, %v5965
    %v5981 = vmul.f32 %v5979, %v5967
    %v5982 = vadd.f32 %v5980, 0.2548296
    %v5983 = vadd.f32 %v5981, 0.2548296
    %v5984 = vmul.f32 %v5982, %v5965
    %v5985 = vmul.f32 %v5983, %v5967
    %v5986 = vsub.f32 0.0, %v5958
    %v5987 = vsub.f32 0.0, %v5959
    %v5988 = vmul.f32 %v5986, %v5958
    %v5989 = vmul.f32 %v5987, %v5959
    %v5990 = vmul.f32 %v5988, 1.442695
    %v5991 = vpow.pop %v5990
    %v5992 = vmul.f32 %v5989, 1.442695
    %v5993 = vpow.pop %v5992
    %v5994 = vmul.f32 %v5984, %v5991
    %v5995 = vmul.f32 %v5985, %v5993
    %v5996 = vsub.f32 1.0, %v5994
    %v5997 = vsub.f32 1.0, %v5995
    %v5998 = vsub.f32 0.0, %v5996
    %v5999 = vsub.f32 0.0, %v5997
    %v6000 = vsel %vm5954, %v5998, %v5996
    %v6001 = vsel %vm5955, %v5999, %v5997
    %v6002 = vadd.f32 %v6000, 1.0
    %v6003 = vadd.f32 %v6001, 1.0
    %v6004 = vmul.f32 %v5950, %v6002
    %v6005 = vmul.f32 %v5951, %v6003
    %s6006 = scalar_lea.vmem %s16, 64
    %v6007 = vld [vmem:[%s6006] sm:$0xff]
    %v6008 = vld [vmem:[%s6006 + $0x8] sm:$0xff]
    %v6009 = vld [vmem:[%s6006 + $0x10] sm:$0xff]
    %v6010 = vld [vmem:[%s6006 + $0x18] sm:$0xff]
    %v6011 = vld [vmem:[%s6006 + $0x20] sm:$0xff]
    %v6012 = vld [vmem:[%s6006 + $0x28] sm:$0xff]
    %v6013 = vld [vmem:[%s6006 + $0x30] sm:$0xff]
    %v6014 = vld [vmem:[%s6006 + $0x38] sm:$0xff]
    %v6016 = vsel %vm2994, %v6004, 0
    %v6019 = vsel %vm2994, %v6005, 0
    %6021 = vmatprep.subr.mxu0 0.0
    %6022 = vmatpush1.msra.mxu0 0.0
    %6023 = vmatprep.subr.mxu0 0.0
    %6024 = vmatpush1.msra.mxu0 0.0
    %6025 = vmatprep.subr.mxu0 0.0
    %6026 = vmatpush1.msra.mxu0 0.0
    %6027 = vmatprep.subr.mxu0 0.0
    %6028 = vmatpush1.msra.mxu0 0.0
    %6029 = vmatprep.subr.mxu0 0.0
    %6030 = vmatpush1.msra.mxu0 0.0
    %6031 = vmatprep.subr.mxu0 0.0
    %6032 = vmatpush1.msra.mxu0 0.0
    %6033 = vmatprep.subr.mxu0 0.0
    %6034 = vmatpush1.msra.mxu0 0.0
    %6035 = vmatprep.subr.mxu0 0.0
    %6036 = vmatpush1.msra.mxu0 0.0
    %6037 = vmatprep.subr.mxu0 0.0
    %6038 = vmatpush1.msra.mxu0 %v6014
    %6039 = vmatprep.subr.mxu0 0.0
    %6040 = vmatpush1.msra.mxu0 %v6013
    %6041 = vmatprep.subr.mxu0 0.0
    %6042 = vmatpush1.msra.mxu0 %v6012
    %6043 = vmatprep.subr.mxu0 0.0
    %6044 = vmatpush1.msra.mxu0 %v6011
    %6045 = vmatprep.subr.mxu0 0.0
    %6046 = vmatpush1.msra.mxu0 %v6010
    %6047 = vmatprep.subr.mxu0 0.0
    %6048 = vmatpush1.msra.mxu0 %v6009
    %6049 = vmatprep.subr.mxu0 0.0
    %6050 = vmatpush1.msra.mxu0 %v6008
    %6051 = vmatprep.subr.mxu0 0.0
    %6052 = vmatpush1.msra.mxu0 %v6007
    %6053 = vmatprep.subr.mxu0 0.0
    %6054 = vmatpush2.msra.mxu0 0.0
    %6055 = vmatprep.subr.mxu0 0.0
    %6056 = vmatpush2.msra.mxu0 0.0
    %6057 = vmatprep.subr.mxu0 0.0
    %6058 = vmatpush2.msra.mxu0 0.0
    %6059 = vmatprep.subr.mxu0 0.0
    %6060 = vmatpush2.msra.mxu0 0.0
    %6061 = vmatprep.subr.mxu0 0.0
    %6062 = vmatpush2.msra.mxu0 0.0
    %6063 = vmatprep.subr.mxu0 0.0
    %6064 = vmatpush2.msra.mxu0 0.0
    %6065 = vmatprep.subr.mxu0 0.0
    %6066 = vmatpush2.msra.mxu0 0.0
    %6067 = vmatprep.subr.mxu0 0.0
    %6068 = vmatpush2.msra.mxu0 0.0
    %6069 = vmatprep.subr.mxu0 0.0
    %6070 = vmatpush2.msra.mxu0 0.0
    %6071 = vmatprep.subr.mxu0 0.0
    %6072 = vmatpush2.msra.mxu0 0.0
    %6073 = vmatprep.subr.mxu0 0.0
    %6074 = vmatpush2.msra.mxu0 0.0
    %6075 = vmatprep.subr.mxu0 0.0
    %6076 = vmatpush2.msra.mxu0 0.0
    %6077 = vmatprep.subr.mxu0 0.0
    %6078 = vmatpush2.msra.mxu0 0.0
    %6079 = vmatprep.subr.mxu0 0.0
    %6080 = vmatpush2.msra.mxu0 0.0
    %6081 = vmatprep.subr.mxu0 0.0
    %6082 = vmatpush2.msra.mxu0 0.0
    %6083 = vmatprep.subr.mxu0 0.0
    %6084 = vmatpush2.msra.mxu0 0.0
    %6085 = vmatprep.mubr.f32.mxu0 0.0
    %6086 = vmatmul.mubr.f32.gmra.mxu0 %v6016
    %v6087 = vpop.f32.mrf.mxu0
    %v6088 = vadd.f32 0.0, %v6087
    %v6089 = vpop.f32.mrf.mxu0
    %6090 = vmatprep.mubr.f32.mxu0 0.0
    %6091 = vmatmul.mubr.f32.gmra.mxu0 %v6019
    %v6092 = vpop.f32.mrf.mxu0
    %v6093 = vadd.f32 0.0, %v6092
    %v6094 = vpop.f32.mrf.mxu0
    %6095 = vdwg.mxu0
    %v6096 = vadd.f32 %v5808, %v6088
    %v6097 = vadd.f32 %v5809, %v6093
    %s6098 = scalar_lea.vmem %s17, 1
    %v6099 = vld [vmem:[%s6098] sm:$0x1]
    %v6101 = vlaneseq
    %v6102 = vshrl.u32 %v6101, 7
    %v6103 = vsub.s32 0, %v6102
    %v6104 = vrot.slane %v6099, %v6103
    %v6106 = vadd.f32 %v6096, %v6104
    %v6107 = vadd.f32 %v6097, %v6104
    %6108 = vst.msk [vmem:[#allocation2] sm:$0xff] %vm80, %v6106
    %6109 = vst.msk [vmem:[#allocation2 + $0x8] sm:$0xff] %vm80, %v6107
    // Predicated region
    $region74: #{tpu_custom_call.1} parent=1 // pred_check
      _
    $region75: #{tpu_custom_call.1} parent=1 // pred_check_branch
      %6111 = sbr.rel (0) target = $region77
    $region76: #{tpu_custom_call.1} parent=1 // pred_region
      %s6113 = ssub.s32 256, 256
      %6114 = vsyncadd [#allocation3], %s6113
      %s6115 = sshll.u32 [#allocation2], 4
      %s6116 = int_to_ptr.vmem [resolvable:$true] %s6115
      %6121 = dma.vmem_to_hbm [thread:$0]  %s6116, 256, %s18, [#allocation3], 128, 128, 8
    $region77: #{tpu_custom_call.1} parent=1 // pred_fallthru
      _
    // Predicated region
    $region78: #{tpu_custom_call.1} parent=1 // pred_check
      _
    $region79: #{tpu_custom_call.1} parent=1 // pred_check_branch
      %6123 = sbr.rel (0) target = $region81
    $region80: #{tpu_custom_call.1} parent=1 // pred_region
      %6124 = dma.done [#allocation3], 256
    $region81: #{tpu_custom_call.1} parent=1 // pred_fallthru
      _
    %6125 = vsyncpa [#allocation3], 1

</llo_original>
